<compile_context>
chip_gen: v5e
topology: v5e:2x2
jax: 0.10.0
libtpu: 0.0.40
codegen_flags: <defaults>
</compile_context>

<pallas_src>
import jax
import jax.numpy as jnp
from jax import lax
from jax.experimental import pallas as pl
from jax.experimental.pallas import tpu as pltpu

_EPS = 1e-5
_VMEM_LIMIT = 64 * 1024 * 1024      # sized so the same kernel fits v7x (64 MiB VMEM)
_ROW_TILE_TARGET = 1024             # 512-1024 row tiles ~= HBM roofline


def _pick_tile(P, target=_ROW_TILE_TARGET):
    """Largest row tile <= target that divides P and is a multiple of 8."""
    if P <= target:
        return P
    for t in range(target, 7, -8):
        if P % t == 0:
            return t
    return P


def _compiler_params():
    return pltpu.CompilerParams(
        dimension_semantics=("parallel",),      # shard tiles across TCs on v7x
        vmem_limit_bytes=_VMEM_LIMIT)


# ----------------------------------------------------------------------------
# Kernel: per-channel partial statistics (sum, sum of squares) of a (P, C) map.
# ----------------------------------------------------------------------------
def _stats_kernel(x_ref, s_ref, q_ref):
    x = x_ref[...].astype(jnp.float32)
    s_ref[...] = jnp.sum(x, axis=0, keepdims=True)[None]
    q_ref[...] = jnp.sum(x * x, axis=0, keepdims=True)[None]


def _channel_stats(x2d):
    """Per-channel (mean, biased var) over all rows of a (P, C) array."""
    P, C = x2d.shape
    Pt = _pick_tile(P)
    nT = P // Pt
    s, q = pl.pallas_call(
        _stats_kernel,
        out_shape=(jax.ShapeDtypeStruct((nT, 1, C), jnp.float32),
                   jax.ShapeDtypeStruct((nT, 1, C), jnp.float32)),
        grid_spec=pltpu.PrefetchScalarGridSpec(
            num_scalar_prefetch=0,
            grid=(nT,),
            in_specs=[pl.BlockSpec((Pt, C), lambda i: (i, 0))],
            out_specs=(pl.BlockSpec((1, 1, C), lambda i: (i, 0, 0)),
                       pl.BlockSpec((1, 1, C), lambda i: (i, 0, 0)))),
        compiler_params=_compiler_params(),
    )(x2d)
    mean = s.sum(axis=0) / P                      # (1, C)  -- tiny XLA glue
    var = q.sum(axis=0) / P - mean * mean         # biased (train-mode BN)
    return mean, var


# ----------------------------------------------------------------------------
# Kernel: fused BN1(folded) + ReLU + 1x1 conv + BN2 partial statistics.
# ----------------------------------------------------------------------------
def _make_fused1x1_kernel(n_pieces):
    def kernel(*refs):
        xs = refs[0:n_pieces]                      # (Pt, Cj) f32 activations
        scs = refs[n_pieces:2 * n_pieces]          # (1, Cj)  folded BN1 scale
        shs = refs[2 * n_pieces:3 * n_pieces]      # (1, Cj)  folded BN1 shift
        ws = refs[3 * n_pieces:4 * n_pieces]       # (Cj, Cmid) bf16 w1 slices
        y_ref, s_ref, q_ref = refs[4 * n_pieces:]
        acc = jnp.zeros(y_ref.shape, jnp.float32)
        for j in range(n_pieces):
            h = jnp.maximum(xs[j][...] * scs[j][...] + shs[j][...], 0.0)
            acc = acc + jnp.dot(h.astype(jnp.bfloat16), ws[j][...],
                                preferred_element_type=jnp.float32)
        y_ref[...] = acc
        # Per-tile partial sums for the global BN2 statistics of y.
        s_ref[...] = jnp.sum(acc, axis=0, keepdims=True)[None]
        q_ref[...] = jnp.sum(acc * acc, axis=0, keepdims=True)[None]
    return kernel


# ----------------------------------------------------------------------------
# Kernel: fused BN2 affine + ReLU + zero-pad (VMEM) + 3x3 conv + output stats.
# ----------------------------------------------------------------------------
def _make_conv3x3_kernel(H, W, Cmid, G):
    HW = H * W
    use_im2col = (Cmid % 128 == 0)   # lane-aligned concat -> single K=9*Cmid matmul

    def kernel(y_ref, sc_ref, sh_ref, w_ref, o_ref, s_ref, q_ref, zpad_ref):
        # y_ref: (H*W, Cmid) one image; w_ref: (9*Cmid, G) bf16.
        z = jnp.maximum(y_ref[...] * sc_ref[...] + sh_ref[...], 0.0)
        # Zero padding lives entirely in VMEM scratch: no HBM round trip.
        zpad_ref[...] = jnp.zeros(zpad_ref.shape, zpad_ref.dtype)
        zpad_ref[1:H + 1, 1:W + 1, :] = z.reshape(H, W, Cmid)
        taps = [zpad_ref[dy:dy + H, dx:dx + W, :].reshape(HW, Cmid)
                for dy in range(3) for dx in range(3)]
        if use_im2col:
            # Wide channels: im2col slab, one MXU matmul with K = 9*Cmid.
            col = jnp.concatenate([t.astype(jnp.bfloat16) for t in taps], axis=-1)
            acc = jnp.dot(col, w_ref[...], preferred_element_type=jnp.float32)
        else:
            # Narrow channels (toy sizes): avoid unaligned lane concat and
            # accumulate the 9 taps against the matching w3 row slices.
            acc = jnp.zeros((HW, G), jnp.float32)
            for k, tap in enumerate(taps):
                acc = acc + jnp.dot(tap.astype(jnp.bfloat16),
                                    w_ref[k * Cmid:(k + 1) * Cmid, :],
                                    preferred_element_type=jnp.float32)
        o_ref[...] = acc
        # Partial stats of this layer's output -> BN1 of later layers, for free.
        s_ref[...] = jnp.sum(acc, axis=0, keepdims=True)[None]
        q_ref[...] = jnp.sum(acc * acc, axis=0, keepdims=True)[None]
    return kernel


# ----------------------------------------------------------------------------
# One BC_Block.
# ----------------------------------------------------------------------------
def _bc_layer(pieces, piece_stats, params, N, H, W):
    """pieces: layer-input channel groups (newest first), each (P, Cj) f32.
    piece_stats: per-piece (mean, var) of shape (1, Cj) (reusable batch stats).
    Returns (out (P, G) f32, (mean, var) of out)."""
    g1, b1, w1, g2, b2, w3 = params
    P = pieces[0].shape[0]
    HW = H * W
    Cmid = w1.shape[1]
    G = w3.shape[-1]

    widths = [p.shape[1] for p in pieces]
    offs, o = [], 0
    for wdt in widths:
        offs.append(o)
        o += wdt

    # Fold BN1 (batch stats + affine) into per-channel scale/shift (tiny glue).
    scales, shifts, w1s = [], [], []
    for j, (mu, var) in enumerate(piece_stats):
        sl = slice(offs[j], offs[j] + widths[j])
        sc = g1[:, sl] * lax.rsqrt(var + _EPS)
        scales.append(sc)
        shifts.append(b1[:, sl] - mu * sc)
        w1s.append(w1[sl, :].astype(jnp.bfloat16))     # bf16 MXU operands

    # ---- fused BN1 + ReLU + 1x1 conv (+ BN2 partial stats), pixel-tiled ----
    Pt = _pick_tile(P)
    nT = P // Pt
    cin = sum(widths)
    piece_specs = [pl.BlockSpec((Pt, wdt), lambda i: (i, 0)) for wdt in widths]
    vec_specs = [pl.BlockSpec((1, wdt), lambda i: (0, 0)) for wdt in widths]
    w_specs = [pl.BlockSpec((wdt, Cmid), lambda i: (0, 0)) for wdt in widths]

    y, ys, yq = pl.pallas_call(
        _make_fused1x1_kernel(len(pieces)),
        out_shape=(jax.ShapeDtypeStruct((P, Cmid), jnp.float32),
                   jax.ShapeDtypeStruct((nT, 1, Cmid), jnp.float32),
                   jax.ShapeDtypeStruct((nT, 1, Cmid), jnp.float32)),
        grid_spec=pltpu.PrefetchScalarGridSpec(
            num_scalar_prefetch=0,
            grid=(nT,),
            in_specs=piece_specs + vec_specs + vec_specs + w_specs,
            out_specs=(pl.BlockSpec((Pt, Cmid), lambda i: (i, 0)),
                       pl.BlockSpec((1, 1, Cmid), lambda i: (i, 0, 0)),
                       pl.BlockSpec((1, 1, Cmid), lambda i: (i, 0, 0)))),
        compiler_params=_compiler_params(),
        cost_estimate=pl.CostEstimate(
            flops=2 * P * cin * Cmid,
            transcendentals=0,
            bytes_accessed=4 * P * (cin + Cmid) + 2 * cin * Cmid),
    )(*pieces, *scales, *shifts, *w1s)

    # Finish the global BN2 statistics and fold the affine (tiny glue).
    mean2 = ys.sum(axis=0) / P                    # (1, Cmid)
    var2 = yq.sum(axis=0) / P - mean2 * mean2
    scale2 = g2 * lax.rsqrt(var2 + _EPS)
    shift2 = b2 - mean2 * scale2

    # ---- fused BN2 + ReLU + pad + 3x3 conv (+ stats of out), per image ----
    w3col = w3.reshape(9 * Cmid, G).astype(jnp.bfloat16)
    out, osum, osq = pl.pallas_call(
        _make_conv3x3_kernel(H, W, Cmid, G),
        out_shape=(jax.ShapeDtypeStruct((P, G), jnp.float32),
                   jax.ShapeDtypeStruct((N, 1, G), jnp.float32),
                   jax.ShapeDtypeStruct((N, 1, G), jnp.float32)),
        grid_spec=pltpu.PrefetchScalarGridSpec(
            num_scalar_prefetch=0,
            grid=(N,),
            in_specs=[pl.BlockSpec((HW, Cmid), lambda n: (n, 0)),
                      pl.BlockSpec((1, Cmid), lambda n: (0, 0)),
                      pl.BlockSpec((1, Cmid), lambda n: (0, 0)),
                      pl.BlockSpec((9 * Cmid, G), lambda n: (0, 0))],
            out_specs=(pl.BlockSpec((HW, G), lambda n: (n, 0)),
                       pl.BlockSpec((1, 1, G), lambda n: (n, 0, 0)),
                       pl.BlockSpec((1, 1, G), lambda n: (n, 0, 0))),
            scratch_shapes=[pltpu.VMEM((H + 2, W + 2, Cmid), jnp.float32)]),
        compiler_params=_compiler_params(),
        cost_estimate=pl.CostEstimate(
            flops=2 * P * 9 * Cmid * G,
            transcendentals=0,
            bytes_accessed=4 * P * (Cmid + G) + 2 * 9 * Cmid * G),
    )(y, scale2, shift2, w3col)

    mean_o = osum.sum(axis=0) / P                 # (1, G)
    var_o = osq.sum(axis=0) / P - mean_o * mean_o
    return out, (mean_o, var_o)


# ----------------------------------------------------------------------------
# DenseBlock forward (NCHW in / NCHW out, matching the PyTorch module).
# ----------------------------------------------------------------------------
def dense_block_forward(x_nchw, layer_params):
    N, C0, H, W = x_nchw.shape
    P = N * H * W
    x0 = jnp.transpose(x_nchw, (0, 2, 3, 1)).reshape(P, C0)   # NHWC pixel rows

    # Channel groups of the growing feature map, newest first (cat((out, x))).
    pieces = [x0]
    stats = [_channel_stats(x0)]
    for params in layer_params:
        out, out_stats = _bc_layer(pieces, stats, params, N, H, W)
        pieces.insert(0, out)
        stats.insert(0, out_stats)

    # Single concatenation at the very end (O(L) instead of O(L^2) traffic).
    feat = jnp.concatenate(pieces, axis=-1).reshape(N, H, W, -1)
    return jnp.transpose(feat, (0, 3, 1, 2))


def init_dense_block_params(key, in_channel, growth_rate, num_layers):
    params = []
    channel = in_channel
    cmid = 4 * growth_rate
    for _ in range(num_layers):
        key, k1, k2, k3, k4, k5, k6 = jax.random.split(key, 7)
        g1 = 1.0 + 0.1 * jax.random.normal(k1, (1, channel), jnp.float32)
        b1 = 0.1 * jax.random.normal(k2, (1, channel), jnp.float32)
        w1 = 0.1 * jax.random.normal(k3, (channel, cmid), jnp.float32)
        g2 = 1.0 + 0.1 * jax.random.normal(k4, (1, cmid), jnp.float32)
        b2 = 0.1 * jax.random.normal(k5, (1, cmid), jnp.float32)
        # HWIO layout for the 3x3 conv (PyTorch OIHW -> HWIO).
        w3 = 0.1 * jax.random.normal(k6, (3, 3, cmid, growth_rate), jnp.float32)
        params.append((g1, b1, w1, g2, b2, w3))
        channel += growth_rate
    return params


# ----------------------------------------------------------------------------
# Pure-JAX reference (validation only).
# ----------------------------------------------------------------------------
def _reference_forward(x_nchw, layer_params):
    x = x_nchw
    for g1, b1, w1, g2, b2, w3 in layer_params:
        mu = jnp.mean(x, axis=(0, 2, 3), keepdims=True)
        var = jnp.mean(jnp.square(x - mu), axis=(0, 2, 3), keepdims=True)
        h = (x - mu) * lax.rsqrt(var + _EPS) * g1.reshape(1, -1, 1, 1) \
            + b1.reshape(1, -1, 1, 1)
        h = jnp.maximum(h, 0.0)
        y = lax.conv_general_dilated(
            h, jnp.transpose(w1, (1, 0))[:, :, None, None], (1, 1), 'VALID',
            dimension_numbers=('NCHW', 'OIHW', 'NCHW'),
            precision=lax.Precision.HIGHEST)
        mu2 = jnp.mean(y, axis=(0, 2, 3), keepdims=True)
        var2 = jnp.mean(jnp.square(y - mu2), axis=(0, 2, 3), keepdims=True)
        z = (y - mu2) * lax.rsqrt(var2 + _EPS) * g2.reshape(1, -1, 1, 1) \
            + b2.reshape(1, -1, 1, 1)
        z = jnp.maximum(z, 0.0)
        out = lax.conv_general_dilated(
            z, jnp.transpose(w3, (3, 2, 0, 1)), (1, 1), ((1, 1), (1, 1)),
            dimension_numbers=('NCHW', 'OIHW', 'NCHW'),
            precision=lax.Precision.HIGHEST)
        x = jnp.concatenate([out, x], axis=1)
    return x


if __name__ == "__main__":
    key = jax.random.PRNGKey(0)
    kx, kp = jax.random.split(key)

    batch, in_channel, spatial = 2, 4, 16
    growth_rate, num_layers = 4, 3

    x = jax.random.normal(kx, (batch, in_channel, spatial, spatial), jnp.float32)
    layer_params = init_dense_block_params(kp, in_channel, growth_rate, num_layers)

    fwd = jax.jit(dense_block_forward)
    y = jax.block_until_ready(fwd(x, layer_params))

    expected_channels = in_channel + growth_rate * num_layers
    assert y.shape == (batch, expected_channels, spatial, spatial), y.shape
    assert bool(jnp.all(jnp.isfinite(y)))

    # Validate against a pure-JAX f32 reference (loose tol: bf16 MXU operands).
    y_ref = jax.block_until_ready(_reference_forward(x, layer_params))
    max_err = float(jnp.max(jnp.abs(y - y_ref)))
    assert bool(jnp.allclose(y, y_ref, rtol=5e-2, atol=1e-1)), max_err

    print("KERNEL_OK")
</pallas_src>

<mosaic_0001>
module attributes {stable_mosaic.version = 11 : i64} {
  func.func @_stats_kernel(%arg0: i32, %arg1: memref<512x4xf32, #tpu.memory_space<vmem>>, %arg2: memref<1x1x4xf32, #tpu.memory_space<vmem>>, %arg3: memref<1x1x4xf32, #tpu.memory_space<vmem>>) attributes {dimension_semantics = [#tpu.dimension_semantics<parallel>], iteration_bounds = array<i64: 1>, scalar_prefetch = 0 : i64, scratch_operands = 0 : i64, tpu.core_type = #tpu.core_type<tc>, window_params = [{transform_indices = @transform_0, window_bounds = array<i64: 512, 4>}, {transform_indices = @transform_1, window_bounds = array<i64: 1, 1, 4>}, {transform_indices = @transform_2, window_bounds = array<i64: 1, 1, 4>}]} {
    %c0 = arith.constant 0 : index
    %c0_0 = arith.constant 0 : index
    %0 = vector.load %arg1[%c0, %c0_0] : memref<512x4xf32, #tpu.memory_space<vmem>>, vector<512x4xf32>
    %cst = arith.constant dense<0.000000e+00> : vector<4xf32>
    %1 = vector.multi_reduction <add>, %0, %cst [0] : vector<512x4xf32> to vector<4xf32>
    %2 = vector.shape_cast %1 : vector<4xf32> to vector<1x4xf32>
    %3 = vector.shape_cast %2 : vector<1x4xf32> to vector<1x1x4xf32>
    %c0_1 = arith.constant 0 : index
    %c0_2 = arith.constant 0 : index
    %c0_3 = arith.constant 0 : index
    %4 = vector.load %arg2[%c0_1, %c0_2, %c0_3] : memref<1x1x4xf32, #tpu.memory_space<vmem>>, vector<1x1x4xf32>
    tpu.vector_store %arg2[%c0_1, %c0_2, %c0_3], %3 {strides = array<i32>} : memref<1x1x4xf32, #tpu.memory_space<vmem>>, vector<1x1x4xf32>,
    %5 = arith.mulf %0, %0 : vector<512x4xf32>
    %cst_4 = arith.constant dense<0.000000e+00> : vector<4xf32>
    %6 = vector.multi_reduction <add>, %5, %cst_4 [0] : vector<512x4xf32> to vector<4xf32>
    %7 = vector.shape_cast %6 : vector<4xf32> to vector<1x4xf32>
    %8 = vector.shape_cast %7 : vector<1x4xf32> to vector<1x1x4xf32>
    %c0_5 = arith.constant 0 : index
    %c0_6 = arith.constant 0 : index
    %c0_7 = arith.constant 0 : index
    %9 = vector.load %arg3[%c0_5, %c0_6, %c0_7] : memref<1x1x4xf32, #tpu.memory_space<vmem>>, vector<1x1x4xf32>
    tpu.vector_store %arg3[%c0_5, %c0_6, %c0_7], %8 {strides = array<i32>} : memref<1x1x4xf32, #tpu.memory_space<vmem>>, vector<1x1x4xf32>,
    return
  }
  func.func @transform_0(%arg0: i32) -> (i32, i32) {
    %c0_i32 = arith.constant 0 : i32
    %c0_i32_0 = arith.constant 0 : i32
    return %arg0, %c0_i32 : i32, i32
  }
  func.func @transform_1(%arg0: i32) -> (i32, i32, i32) {
    %c0_i32 = arith.constant 0 : i32
    %c0_i32_0 = arith.constant 0 : i32
    %c0_i32_1 = arith.constant 0 : i32
    return %arg0, %c0_i32, %c0_i32_0 : i32, i32, i32
  }
  func.func @transform_2(%arg0: i32) -> (i32, i32, i32) {
    %c0_i32 = arith.constant 0 : i32
    %c0_i32_0 = arith.constant 0 : i32
    %c0_i32_1 = arith.constant 0 : i32
    return %arg0, %c0_i32, %c0_i32_0 : i32, i32, i32
  }
}

module attributes {stable_mosaic.version = 11 : i64} {
  func.func @kernel(%arg0: i32, %arg1: memref<512x4xf32, #tpu.memory_space<vmem>>, %arg2: memref<1x4xf32, #tpu.memory_space<vmem>>, %arg3: memref<1x4xf32, #tpu.memory_space<vmem>>, %arg4: memref<4x16xbf16, #tpu.memory_space<vmem>>, %arg5: memref<512x16xf32, #tpu.memory_space<vmem>>, %arg6: memref<1x1x16xf32, #tpu.memory_space<vmem>>, %arg7: memref<1x1x16xf32, #tpu.memory_space<vmem>>) attributes {dimension_semantics = [#tpu.dimension_semantics<parallel>], iteration_bounds = array<i64: 1>, scalar_prefetch = 0 : i64, scratch_operands = 0 : i64, tpu.core_type = #tpu.core_type<tc>, window_params = [{transform_indices = @transform_0, window_bounds = array<i64: 512, 4>}, {pipeline_mode = #tpu.pipeline_mode<synchronous>, transform_indices = @transform_1, window_bounds = array<i64: 1, 4>}, {pipeline_mode = #tpu.pipeline_mode<synchronous>, transform_indices = @transform_2, window_bounds = array<i64: 1, 4>}, {pipeline_mode = #tpu.pipeline_mode<synchronous>, transform_indices = @transform_3, window_bounds = array<i64: 4, 16>}, {transform_indices = @transform_4, window_bounds = array<i64: 512, 16>}, {transform_indices = @transform_5, window_bounds = array<i64: 1, 1, 16>}, {transform_indices = @transform_6, window_bounds = array<i64: 1, 1, 16>}]} {
    %cst = arith.constant 0.000000e+00 : f32
    %0 = vector.broadcast %cst : f32 to vector<512x16xf32>
    %c0 = arith.constant 0 : index
    %c0_0 = arith.constant 0 : index
    %1 = vector.load %arg1[%c0, %c0_0] : memref<512x4xf32, #tpu.memory_space<vmem>>, vector<512x4xf32>
    %c0_1 = arith.constant 0 : index
    %c0_2 = arith.constant 0 : index
    %2 = vector.load %arg2[%c0_1, %c0_2] : memref<1x4xf32, #tpu.memory_space<vmem>>, vector<1x4xf32>
    %3 = vector.broadcast %2 : vector<1x4xf32> to vector<512x4xf32>
    %4 = arith.mulf %1, %3 : vector<512x4xf32>
    %c0_3 = arith.constant 0 : index
    %c0_4 = arith.constant 0 : index
    %5 = vector.load %arg3[%c0_3, %c0_4] : memref<1x4xf32, #tpu.memory_space<vmem>>, vector<1x4xf32>
    %6 = vector.broadcast %5 : vector<1x4xf32> to vector<512x4xf32>
    %7 = arith.addf %4, %6 : vector<512x4xf32>
    %cst_5 = arith.constant 0.000000e+00 : f32
    %8 = vector.broadcast %cst_5 : f32 to vector<512x4xf32>
    %9 = arith.maximumf %7, %8 : vector<512x4xf32>
    %10 = arith.truncf %9 : vector<512x4xf32> to vector<512x4xbf16>
    %c0_6 = arith.constant 0 : index
    %c0_7 = arith.constant 0 : index
    %11 = vector.load %arg4[%c0_6, %c0_7] : memref<4x16xbf16, #tpu.memory_space<vmem>>, vector<4x16xbf16>
    %cst_8 = arith.constant dense<0.000000e+00> : vector<512x16xf32>
    %12 = tpu.matmul %10, %11, %cst_8 {dimension_numbers = #tpu.dot_dimension_numbers<[1], [0], [0], [1], [0, 0, 1, 1], [], []>} : vector<512x4xbf16>, vector<4x16xbf16>, vector<512x16xf32> -> vector<512x16xf32>
    %13 = arith.addf %0, %12 : vector<512x16xf32>
    %c0_9 = arith.constant 0 : index
    %c0_10 = arith.constant 0 : index
    %14 = vector.load %arg5[%c0_9, %c0_10] : memref<512x16xf32, #tpu.memory_space<vmem>>, vector<512x16xf32>
    tpu.vector_store %arg5[%c0_9, %c0_10], %13 {strides = array<i32>} : memref<512x16xf32, #tpu.memory_space<vmem>>, vector<512x16xf32>,
    %cst_11 = arith.constant dense<0.000000e+00> : vector<16xf32>
    %15 = vector.multi_reduction <add>, %13, %cst_11 [0] : vector<512x16xf32> to vector<16xf32>
    %16 = vector.shape_cast %15 : vector<16xf32> to vector<1x16xf32>
    %17 = vector.shape_cast %16 : vector<1x16xf32> to vector<1x1x16xf32>
    %c0_12 = arith.constant 0 : index
    %c0_13 = arith.constant 0 : index
    %c0_14 = arith.constant 0 : index
    %18 = vector.load %arg6[%c0_12, %c0_13, %c0_14] : memref<1x1x16xf32, #tpu.memory_space<vmem>>, vector<1x1x16xf32>
    tpu.vector_store %arg6[%c0_12, %c0_13, %c0_14], %17 {strides = array<i32>} : memref<1x1x16xf32, #tpu.memory_space<vmem>>, vector<1x1x16xf32>,
    %19 = arith.mulf %13, %13 : vector<512x16xf32>
    %cst_15 = arith.constant dense<0.000000e+00> : vector<16xf32>
    %20 = vector.multi_reduction <add>, %19, %cst_15 [0] : vector<512x16xf32> to vector<16xf32>
    %21 = vector.shape_cast %20 : vector<16xf32> to vector<1x16xf32>
    %22 = vector.shape_cast %21 : vector<1x16xf32> to vector<1x1x16xf32>
    %c0_16 = arith.constant 0 : index
    %c0_17 = arith.constant 0 : index
    %c0_18 = arith.constant 0 : index
    %23 = vector.load %arg7[%c0_16, %c0_17, %c0_18] : memref<1x1x16xf32, #tpu.memory_space<vmem>>, vector<1x1x16xf32>
    tpu.vector_store %arg7[%c0_16, %c0_17, %c0_18], %22 {strides = array<i32>} : memref<1x1x16xf32, #tpu.memory_space<vmem>>, vector<1x1x16xf32>,
    return
  }
  func.func @transform_0(%arg0: i32) -> (i32, i32) {
    %c0_i32 = arith.constant 0 : i32
    %c0_i32_0 = arith.constant 0 : i32
    return %arg0, %c0_i32 : i32, i32
  }
  func.func @transform_1(%arg0: i32) -> (i32, i32) {
    %c0_i32 = arith.constant 0 : i32
    %c0_i32_0 = arith.constant 0 : i32
    %c0_i32_1 = arith.constant 0 : i32
    return %c0_i32, %c0_i32_0 : i32, i32
  }
  func.func @transform_2(%arg0: i32) -> (i32, i32) {
    %c0_i32 = arith.constant 0 : i32
    %c0_i32_0 = arith.constant 0 : i32
    %c0_i32_1 = arith.constant 0 : i32
    return %c0_i32, %c0_i32_0 : i32, i32
  }
  func.func @transform_3(%arg0: i32) -> (i32, i32) {
    %c0_i32 = arith.constant 0 : i32
    %c0_i32_0 = arith.constant 0 : i32
    %c0_i32_1 = arith.constant 0 : i32
    return %c0_i32, %c0_i32_0 : i32, i32
  }
  func.func @transform_4(%arg0: i32) -> (i32, i32) {
    %c0_i32 = arith.constant 0 : i32
    %c0_i32_0 = arith.constant 0 : i32
    return %arg0, %c0_i32 : i32, i32
  }
  func.func @transform_5(%arg0: i32) -> (i32, i32, i32) {
    %c0_i32 = arith.constant 0 : i32
    %c0_i32_0 = arith.constant 0 : i32
    %c0_i32_1 = arith.constant 0 : i32
    return %arg0, %c0_i32, %c0_i32_0 : i32, i32, i32
  }
  func.func @transform_6(%arg0: i32) -> (i32, i32, i32) {
    %c0_i32 = arith.constant 0 : i32
    %c0_i32_0 = arith.constant 0 : i32
    %c0_i32_1 = arith.constant 0 : i32
    return %arg0, %c0_i32, %c0_i32_0 : i32, i32, i32
  }
}

module attributes {stable_mosaic.version = 11 : i64} {
  func.func @kernel(%arg0: i32, %arg1: memref<512x4xf32, #tpu.memory_space<vmem>>, %arg2: memref<512x4xf32, #tpu.memory_space<vmem>>, %arg3: memref<1x4xf32, #tpu.memory_space<vmem>>, %arg4: memref<1x4xf32, #tpu.memory_space<vmem>>, %arg5: memref<1x4xf32, #tpu.memory_space<vmem>>, %arg6: memref<1x4xf32, #tpu.memory_space<vmem>>, %arg7: memref<4x16xbf16, #tpu.memory_space<vmem>>, %arg8: memref<4x16xbf16, #tpu.memory_space<vmem>>, %arg9: memref<512x16xf32, #tpu.memory_space<vmem>>, %arg10: memref<1x1x16xf32, #tpu.memory_space<vmem>>, %arg11: memref<1x1x16xf32, #tpu.memory_space<vmem>>) attributes {dimension_semantics = [#tpu.dimension_semantics<parallel>], iteration_bounds = array<i64: 1>, scalar_prefetch = 0 : i64, scratch_operands = 0 : i64, tpu.core_type = #tpu.core_type<tc>, window_params = [{transform_indices = @transform_0, window_bounds = array<i64: 512, 4>}, {transform_indices = @transform_1, window_bounds = array<i64: 512, 4>}, {pipeline_mode = #tpu.pipeline_mode<synchronous>, transform_indices = @transform_2, window_bounds = array<i64: 1, 4>}, {pipeline_mode = #tpu.pipeline_mode<synchronous>, transform_indices = @transform_3, window_bounds = array<i64: 1, 4>}, {pipeline_mode = #tpu.pipeline_mode<synchronous>, transform_indices = @transform_4, window_bounds = array<i64: 1, 4>}, {pipeline_mode = #tpu.pipeline_mode<synchronous>, transform_indices = @transform_5, window_bounds = array<i64: 1, 4>}, {pipeline_mode = #tpu.pipeline_mode<synchronous>, transform_indices = @transform_6, window_bounds = array<i64: 4, 16>}, {pipeline_mode = #tpu.pipeline_mode<synchronous>, transform_indices = @transform_7, window_bounds = array<i64: 4, 16>}, {transform_indices = @transform_8, window_bounds = array<i64: 512, 16>}, {transform_indices = @transform_9, window_bounds = array<i64: 1, 1, 16>}, {transform_indices = @transform_10, window_bounds = array<i64: 1, 1, 16>}]} {
    %cst = arith.constant 0.000000e+00 : f32
    %0 = vector.broadcast %cst : f32 to vector<512x16xf32>
    %c0 = arith.constant 0 : index
    %c0_0 = arith.constant 0 : index
    %1 = vector.load %arg1[%c0, %c0_0] : memref<512x4xf32, #tpu.memory_space<vmem>>, vector<512x4xf32>
    %c0_1 = arith.constant 0 : index
    %c0_2 = arith.constant 0 : index
    %2 = vector.load %arg3[%c0_1, %c0_2] : memref<1x4xf32, #tpu.memory_space<vmem>>, vector<1x4xf32>
    %3 = vector.broadcast %2 : vector<1x4xf32> to vector<512x4xf32>
    %4 = arith.mulf %1, %3 : vector<512x4xf32>
    %c0_3 = arith.constant 0 : index
    %c0_4 = arith.constant 0 : index
    %5 = vector.load %arg5[%c0_3, %c0_4] : memref<1x4xf32, #tpu.memory_space<vmem>>, vector<1x4xf32>
    %6 = vector.broadcast %5 : vector<1x4xf32> to vector<512x4xf32>
    %7 = arith.addf %4, %6 : vector<512x4xf32>
    %cst_5 = arith.constant 0.000000e+00 : f32
    %8 = vector.broadcast %cst_5 : f32 to vector<512x4xf32>
    %9 = arith.maximumf %7, %8 : vector<512x4xf32>
    %10 = arith.truncf %9 : vector<512x4xf32> to vector<512x4xbf16>
    %c0_6 = arith.constant 0 : index
    %c0_7 = arith.constant 0 : index
    %11 = vector.load %arg7[%c0_6, %c0_7] : memref<4x16xbf16, #tpu.memory_space<vmem>>, vector<4x16xbf16>
    %cst_8 = arith.constant dense<0.000000e+00> : vector<512x16xf32>
    %12 = tpu.matmul %10, %11, %cst_8 {dimension_numbers = #tpu.dot_dimension_numbers<[1], [0], [0], [1], [0, 0, 1, 1], [], []>} : vector<512x4xbf16>, vector<4x16xbf16>, vector<512x16xf32> -> vector<512x16xf32>
    %13 = arith.addf %0, %12 : vector<512x16xf32>
    %c0_9 = arith.constant 0 : index
    %c0_10 = arith.constant 0 : index
    %14 = vector.load %arg2[%c0_9, %c0_10] : memref<512x4xf32, #tpu.memory_space<vmem>>, vector<512x4xf32>
    %c0_11 = arith.constant 0 : index
    %c0_12 = arith.constant 0 : index
    %15 = vector.load %arg4[%c0_11, %c0_12] : memref<1x4xf32, #tpu.memory_space<vmem>>, vector<1x4xf32>
    %16 = vector.broadcast %15 : vector<1x4xf32> to vector<512x4xf32>
    %17 = arith.mulf %14, %16 : vector<512x4xf32>
    %c0_13 = arith.constant 0 : index
    %c0_14 = arith.constant 0 : index
    %18 = vector.load %arg6[%c0_13, %c0_14] : memref<1x4xf32, #tpu.memory_space<vmem>>, vector<1x4xf32>
    %19 = vector.broadcast %18 : vector<1x4xf32> to vector<512x4xf32>
    %20 = arith.addf %17, %19 : vector<512x4xf32>
    %cst_15 = arith.constant 0.000000e+00 : f32
    %21 = vector.broadcast %cst_15 : f32 to vector<512x4xf32>
    %22 = arith.maximumf %20, %21 : vector<512x4xf32>
    %23 = arith.truncf %22 : vector<512x4xf32> to vector<512x4xbf16>
    %c0_16 = arith.constant 0 : index
    %c0_17 = arith.constant 0 : index
    %24 = vector.load %arg8[%c0_16, %c0_17] : memref<4x16xbf16, #tpu.memory_space<vmem>>, vector<4x16xbf16>
    %cst_18 = arith.constant dense<0.000000e+00> : vector<512x16xf32>
    %25 = tpu.matmul %23, %24, %cst_18 {dimension_numbers = #tpu.dot_dimension_numbers<[1], [0], [0], [1], [0, 0, 1, 1], [], []>} : vector<512x4xbf16>, vector<4x16xbf16>, vector<512x16xf32> -> vector<512x16xf32>
    %26 = arith.addf %13, %25 : vector<512x16xf32>
    %c0_19 = arith.constant 0 : index
    %c0_20 = arith.constant 0 : index
    %27 = vector.load %arg9[%c0_19, %c0_20] : memref<512x16xf32, #tpu.memory_space<vmem>>, vector<512x16xf32>
    tpu.vector_store %arg9[%c0_19, %c0_20], %26 {strides = array<i32>} : memref<512x16xf32, #tpu.memory_space<vmem>>, vector<512x16xf32>,
    %cst_21 = arith.constant dense<0.000000e+00> : vector<16xf32>
    %28 = vector.multi_reduction <add>, %26, %cst_21 [0] : vector<512x16xf32> to vector<16xf32>
    %29 = vector.shape_cast %28 : vector<16xf32> to vector<1x16xf32>
    %30 = vector.shape_cast %29 : vector<1x16xf32> to vector<1x1x16xf32>
    %c0_22 = arith.constant 0 : index
    %c0_23 = arith.constant 0 : index
    %c0_24 = arith.constant 0 : index
    %31 = vector.load %arg10[%c0_22, %c0_23, %c0_24] : memref<1x1x16xf32, #tpu.memory_space<vmem>>, vector<1x1x16xf32>
    tpu.vector_store %arg10[%c0_22, %c0_23, %c0_24], %30 {strides = array<i32>} : memref<1x1x16xf32, #tpu.memory_space<vmem>>, vector<1x1x16xf32>,
    %32 = arith.mulf %26, %26 : vector<512x16xf32>
    %cst_25 = arith.constant dense<0.000000e+00> : vector<16xf32>
    %33 = vector.multi_reduction <add>, %32, %cst_25 [0] : vector<512x16xf32> to vector<16xf32>
    %34 = vector.shape_cast %33 : vector<16xf32> to vector<1x16xf32>
    %35 = vector.shape_cast %34 : vector<1x16xf32> to vector<1x1x16xf32>
    %c0_26 = arith.constant 0 : index
    %c0_27 = arith.constant 0 : index
    %c0_28 = arith.constant 0 : index
    %36 = vector.load %arg11[%c0_26, %c0_27, %c0_28] : memref<1x1x16xf32, #tpu.memory_space<vmem>>, vector<1x1x16xf32>
    tpu.vector_store %arg11[%c0_26, %c0_27, %c0_28], %35 {strides = array<i32>} : memref<1x1x16xf32, #tpu.memory_space<vmem>>, vector<1x1x16xf32>,
    return
  }
  func.func @transform_0(%arg0: i32) -> (i32, i32) {
    %c0_i32 = arith.constant 0 : i32
    %c0_i32_0 = arith.constant 0 : i32
    return %arg0, %c0_i32 : i32, i32
  }
  func.func @transform_1(%arg0: i32) -> (i32, i32) {
    %c0_i32 = arith.constant 0 : i32
    %c0_i32_0 = arith.constant 0 : i32
    return %arg0, %c0_i32 : i32, i32
  }
  func.func @transform_2(%arg0: i32) -> (i32, i32) {
    %c0_i32 = arith.constant 0 : i32
    %c0_i32_0 = arith.constant 0 : i32
    %c0_i32_1 = arith.constant 0 : i32
    return %c0_i32, %c0_i32_0 : i32, i32
  }
  func.func @transform_3(%arg0: i32) -> (i32, i32) {
    %c0_i32 = arith.constant 0 : i32
    %c0_i32_0 = arith.constant 0 : i32
    %c0_i32_1 = arith.constant 0 : i32
    return %c0_i32, %c0_i32_0 : i32, i32
  }
  func.func @transform_4(%arg0: i32) -> (i32, i32) {
    %c0_i32 = arith.constant 0 : i32
    %c0_i32_0 = arith.constant 0 : i32
    %c0_i32_1 = arith.constant 0 : i32
    return %c0_i32, %c0_i32_0 : i32, i32
  }
  func.func @transform_5(%arg0: i32) -> (i32, i32) {
    %c0_i32 = arith.constant 0 : i32
    %c0_i32_0 = arith.constant 0 : i32
    %c0_i32_1 = arith.constant 0 : i32
    return %c0_i32, %c0_i32_0 : i32, i32
  }
  func.func @transform_6(%arg0: i32) -> (i32, i32) {
    %c0_i32 = arith.constant 0 : i32
    %c0_i32_0 = arith.constant 0 : i32
    %c0_i32_1 = arith.constant 0 : i32
    return %c0_i32, %c0_i32_0 : i32, i32
  }
  func.func @transform_7(%arg0: i32) -> (i32, i32) {
    %c0_i32 = arith.constant 0 : i32
    %c0_i32_0 = arith.constant 0 : i32
    %c0_i32_1 = arith.constant 0 : i32
    return %c0_i32, %c0_i32_0 : i32, i32
  }
  func.func @transform_8(%arg0: i32) -> (i32, i32) {
    %c0_i32 = arith.constant 0 : i32
    %c0_i32_0 = arith.constant 0 : i32
    return %arg0, %c0_i32 : i32, i32
  }
  func.func @transform_9(%arg0: i32) -> (i32, i32, i32) {
    %c0_i32 = arith.constant 0 : i32
    %c0_i32_0 = arith.constant 0 : i32
    %c0_i32_1 = arith.constant 0 : i32
    return %arg0, %c0_i32, %c0_i32_0 : i32, i32, i32
  }
  func.func @transform_10(%arg0: i32) -> (i32, i32, i32) {
    %c0_i32 = arith.constant 0 : i32
    %c0_i32_0 = arith.constant 0 : i32
    %c0_i32_1 = arith.constant 0 : i32
    return %arg0, %c0_i32, %c0_i32_0 : i32, i32, i32
  }
}

module attributes {stable_mosaic.version = 11 : i64} {
  func.func @kernel(%arg0: i32, %arg1: memref<256x16xf32, #tpu.memory_space<vmem>>, %arg2: memref<1x16xf32, #tpu.memory_space<vmem>>, %arg3: memref<1x16xf32, #tpu.memory_space<vmem>>, %arg4: memref<144x4xbf16, #tpu.memory_space<vmem>>, %arg5: memref<256x4xf32, #tpu.memory_space<vmem>>, %arg6: memref<1x1x4xf32, #tpu.memory_space<vmem>>, %arg7: memref<1x1x4xf32, #tpu.memory_space<vmem>>, %arg8: memref<18x18x16xf32, #tpu.memory_space<vmem>>) attributes {dimension_semantics = [#tpu.dimension_semantics<parallel>], iteration_bounds = array<i64: 2>, scalar_prefetch = 0 : i64, scratch_operands = 1 : i64, tpu.core_type = #tpu.core_type<tc>, window_params = [{transform_indices = @transform_0, window_bounds = array<i64: 256, 16>}, {pipeline_mode = #tpu.pipeline_mode<synchronous>, transform_indices = @transform_1, window_bounds = array<i64: 1, 16>}, {pipeline_mode = #tpu.pipeline_mode<synchronous>, transform_indices = @transform_2, window_bounds = array<i64: 1, 16>}, {pipeline_mode = #tpu.pipeline_mode<synchronous>, transform_indices = @transform_3, window_bounds = array<i64: 144, 4>}, {transform_indices = @transform_4, window_bounds = array<i64: 256, 4>}, {transform_indices = @transform_5, window_bounds = array<i64: 1, 1, 4>}, {transform_indices = @transform_6, window_bounds = array<i64: 1, 1, 4>}]} {
    %c0 = arith.constant 0 : index
    %c0_0 = arith.constant 0 : index
    %0 = vector.load %arg1[%c0, %c0_0] : memref<256x16xf32, #tpu.memory_space<vmem>>, vector<256x16xf32>
    %c0_1 = arith.constant 0 : index
    %c0_2 = arith.constant 0 : index
    %1 = vector.load %arg2[%c0_1, %c0_2] : memref<1x16xf32, #tpu.memory_space<vmem>>, vector<1x16xf32>
    %2 = vector.broadcast %1 : vector<1x16xf32> to vector<256x16xf32>
    %3 = arith.mulf %0, %2 : vector<256x16xf32>
    %c0_3 = arith.constant 0 : index
    %c0_4 = arith.constant 0 : index
    %4 = vector.load %arg3[%c0_3, %c0_4] : memref<1x16xf32, #tpu.memory_space<vmem>>, vector<1x16xf32>
    %5 = vector.broadcast %4 : vector<1x16xf32> to vector<256x16xf32>
    %6 = arith.addf %3, %5 : vector<256x16xf32>
    %cst = arith.constant 0.000000e+00 : f32
    %7 = vector.broadcast %cst : f32 to vector<256x16xf32>
    %8 = arith.maximumf %6, %7 : vector<256x16xf32>
    %cst_5 = arith.constant 0.000000e+00 : f32
    %9 = vector.broadcast %cst_5 : f32 to vector<18x18x16xf32>
    %c0_6 = arith.constant 0 : index
    %c0_7 = arith.constant 0 : index
    %c0_8 = arith.constant 0 : index
    %10 = vector.load %arg8[%c0_6, %c0_7, %c0_8] : memref<18x18x16xf32, #tpu.memory_space<vmem>>, vector<18x18x16xf32>
    tpu.vector_store %arg8[%c0_6, %c0_7, %c0_8], %9 {strides = array<i32>} : memref<18x18x16xf32, #tpu.memory_space<vmem>>, vector<18x18x16xf32>,
    %11 = vector.shape_cast %8 : vector<256x16xf32> to vector<16x16x16xf32>
    %c1 = arith.constant 1 : index
    %c1_9 = arith.constant 1 : index
    %c0_10 = arith.constant 0 : index
    %12 = vector.load %arg8[%c1, %c1_9, %c0_10] : memref<18x18x16xf32, #tpu.memory_space<vmem>>, vector<16x16x16xf32>
    tpu.vector_store %arg8[%c1, %c1_9, %c0_10], %11 {strides = array<i32>} : memref<18x18x16xf32, #tpu.memory_space<vmem>>, vector<16x16x16xf32>,
    %c0_11 = arith.constant 0 : index
    %c0_12 = arith.constant 0 : index
    %c0_13 = arith.constant 0 : index
    %13 = vector.load %arg8[%c0_11, %c0_12, %c0_13] : memref<18x18x16xf32, #tpu.memory_space<vmem>>, vector<16x16x16xf32>
    %14 = vector.shape_cast %13 : vector<16x16x16xf32> to vector<256x16xf32>
    %c0_14 = arith.constant 0 : index
    %c1_15 = arith.constant 1 : index
    %c0_16 = arith.constant 0 : index
    %15 = vector.load %arg8[%c0_14, %c1_15, %c0_16] : memref<18x18x16xf32, #tpu.memory_space<vmem>>, vector<16x16x16xf32>
    %16 = vector.shape_cast %15 : vector<16x16x16xf32> to vector<256x16xf32>
    %c0_17 = arith.constant 0 : index
    %c2 = arith.constant 2 : index
    %c0_18 = arith.constant 0 : index
    %17 = vector.load %arg8[%c0_17, %c2, %c0_18] : memref<18x18x16xf32, #tpu.memory_space<vmem>>, vector<16x16x16xf32>
    %18 = vector.shape_cast %17 : vector<16x16x16xf32> to vector<256x16xf32>
    %c1_19 = arith.constant 1 : index
    %c0_20 = arith.constant 0 : index
    %c0_21 = arith.constant 0 : index
    %19 = vector.load %arg8[%c1_19, %c0_20, %c0_21] : memref<18x18x16xf32, #tpu.memory_space<vmem>>, vector<16x16x16xf32>
    %20 = vector.shape_cast %19 : vector<16x16x16xf32> to vector<256x16xf32>
    %c1_22 = arith.constant 1 : index
    %c1_23 = arith.constant 1 : index
    %c0_24 = arith.constant 0 : index
    %21 = vector.load %arg8[%c1_22, %c1_23, %c0_24] : memref<18x18x16xf32, #tpu.memory_space<vmem>>, vector<16x16x16xf32>
    %22 = vector.shape_cast %21 : vector<16x16x16xf32> to vector<256x16xf32>
    %c1_25 = arith.constant 1 : index
    %c2_26 = arith.constant 2 : index
    %c0_27 = arith.constant 0 : index
    %23 = vector.load %arg8[%c1_25, %c2_26, %c0_27] : memref<18x18x16xf32, #tpu.memory_space<vmem>>, vector<16x16x16xf32>
    %24 = vector.shape_cast %23 : vector<16x16x16xf32> to vector<256x16xf32>
    %c2_28 = arith.constant 2 : index
    %c0_29 = arith.constant 0 : index
    %c0_30 = arith.constant 0 : index
    %25 = vector.load %arg8[%c2_28, %c0_29, %c0_30] : memref<18x18x16xf32, #tpu.memory_space<vmem>>, vector<16x16x16xf32>
    %26 = vector.shape_cast %25 : vector<16x16x16xf32> to vector<256x16xf32>
    %c2_31 = arith.constant 2 : index
    %c1_32 = arith.constant 1 : index
    %c0_33 = arith.constant 0 : index
    %27 = vector.load %arg8[%c2_31, %c1_32, %c0_33] : memref<18x18x16xf32, #tpu.memory_space<vmem>>, vector<16x16x16xf32>
    %28 = vector.shape_cast %27 : vector<16x16x16xf32> to vector<256x16xf32>
    %c2_34 = arith.constant 2 : index
    %c2_35 = arith.constant 2 : index
    %c0_36 = arith.constant 0 : index
    %29 = vector.load %arg8[%c2_34, %c2_35, %c0_36] : memref<18x18x16xf32, #tpu.memory_space<vmem>>, vector<16x16x16xf32>
    %30 = vector.shape_cast %29 : vector<16x16x16xf32> to vector<256x16xf32>
    %cst_37 = arith.constant 0.000000e+00 : f32
    %31 = vector.broadcast %cst_37 : f32 to vector<256x4xf32>
    %32 = arith.truncf %14 : vector<256x16xf32> to vector<256x16xbf16>
    %c0_38 = arith.constant 0 : index
    %c0_39 = arith.constant 0 : index
    %33 = vector.load %arg4[%c0_38, %c0_39] : memref<144x4xbf16, #tpu.memory_space<vmem>>, vector<16x4xbf16>
    %cst_40 = arith.constant dense<0.000000e+00> : vector<256x4xf32>
    %34 = tpu.matmul %32, %33, %cst_40 {dimension_numbers = #tpu.dot_dimension_numbers<[1], [0], [0], [1], [0, 0, 1, 1], [], []>} : vector<256x16xbf16>, vector<16x4xbf16>, vector<256x4xf32> -> vector<256x4xf32>
    %35 = arith.addf %31, %34 : vector<256x4xf32>
    %36 = arith.truncf %16 : vector<256x16xf32> to vector<256x16xbf16>
    %c16 = arith.constant 16 : index
    %c0_41 = arith.constant 0 : index
    %37 = vector.load %arg4[%c16, %c0_41] : memref<144x4xbf16, #tpu.memory_space<vmem>>, vector<16x4xbf16>
    %cst_42 = arith.constant dense<0.000000e+00> : vector<256x4xf32>
    %38 = tpu.matmul %36, %37, %cst_42 {dimension_numbers = #tpu.dot_dimension_numbers<[1], [0], [0], [1], [0, 0, 1, 1], [], []>} : vector<256x16xbf16>, vector<16x4xbf16>, vector<256x4xf32> -> vector<256x4xf32>
    %39 = arith.addf %35, %38 : vector<256x4xf32>
    %40 = arith.truncf %18 : vector<256x16xf32> to vector<256x16xbf16>
    %c32 = arith.constant 32 : index
    %c0_43 = arith.constant 0 : index
    %41 = vector.load %arg4[%c32, %c0_43] : memref<144x4xbf16, #tpu.memory_space<vmem>>, vector<16x4xbf16>
    %cst_44 = arith.constant dense<0.000000e+00> : vector<256x4xf32>
    %42 = tpu.matmul %40, %41, %cst_44 {dimension_numbers = #tpu.dot_dimension_numbers<[1], [0], [0], [1], [0, 0, 1, 1], [], []>} : vector<256x16xbf16>, vector<16x4xbf16>, vector<256x4xf32> -> vector<256x4xf32>
    %43 = arith.addf %39, %42 : vector<256x4xf32>
    %44 = arith.truncf %20 : vector<256x16xf32> to vector<256x16xbf16>
    %c48 = arith.constant 48 : index
    %c0_45 = arith.constant 0 : index
    %45 = vector.load %arg4[%c48, %c0_45] : memref<144x4xbf16, #tpu.memory_space<vmem>>, vector<16x4xbf16>
    %cst_46 = arith.constant dense<0.000000e+00> : vector<256x4xf32>
    %46 = tpu.matmul %44, %45, %cst_46 {dimension_numbers = #tpu.dot_dimension_numbers<[1], [0], [0], [1], [0, 0, 1, 1], [], []>} : vector<256x16xbf16>, vector<16x4xbf16>, vector<256x4xf32> -> vector<256x4xf32>
    %47 = arith.addf %43, %46 : vector<256x4xf32>
    %48 = arith.truncf %22 : vector<256x16xf32> to vector<256x16xbf16>
    %c64 = arith.constant 64 : index
    %c0_47 = arith.constant 0 : index
    %49 = vector.load %arg4[%c64, %c0_47] : memref<144x4xbf16, #tpu.memory_space<vmem>>, vector<16x4xbf16>
    %cst_48 = arith.constant dense<0.000000e+00> : vector<256x4xf32>
    %50 = tpu.matmul %48, %49, %cst_48 {dimension_numbers = #tpu.dot_dimension_numbers<[1], [0], [0], [1], [0, 0, 1, 1], [], []>} : vector<256x16xbf16>, vector<16x4xbf16>, vector<256x4xf32> -> vector<256x4xf32>
    %51 = arith.addf %47, %50 : vector<256x4xf32>
    %52 = arith.truncf %24 : vector<256x16xf32> to vector<256x16xbf16>
    %c80 = arith.constant 80 : index
    %c0_49 = arith.constant 0 : index
    %53 = vector.load %arg4[%c80, %c0_49] : memref<144x4xbf16, #tpu.memory_space<vmem>>, vector<16x4xbf16>
    %cst_50 = arith.constant dense<0.000000e+00> : vector<256x4xf32>
    %54 = tpu.matmul %52, %53, %cst_50 {dimension_numbers = #tpu.dot_dimension_numbers<[1], [0], [0], [1], [0, 0, 1, 1], [], []>} : vector<256x16xbf16>, vector<16x4xbf16>, vector<256x4xf32> -> vector<256x4xf32>
    %55 = arith.addf %51, %54 : vector<256x4xf32>
    %56 = arith.truncf %26 : vector<256x16xf32> to vector<256x16xbf16>
    %c96 = arith.constant 96 : index
    %c0_51 = arith.constant 0 : index
    %57 = vector.load %arg4[%c96, %c0_51] : memref<144x4xbf16, #tpu.memory_space<vmem>>, vector<16x4xbf16>
    %cst_52 = arith.constant dense<0.000000e+00> : vector<256x4xf32>
    %58 = tpu.matmul %56, %57, %cst_52 {dimension_numbers = #tpu.dot_dimension_numbers<[1], [0], [0], [1], [0, 0, 1, 1], [], []>} : vector<256x16xbf16>, vector<16x4xbf16>, vector<256x4xf32> -> vector<256x4xf32>
    %59 = arith.addf %55, %58 : vector<256x4xf32>
    %60 = arith.truncf %28 : vector<256x16xf32> to vector<256x16xbf16>
    %c112 = arith.constant 112 : index
    %c0_53 = arith.constant 0 : index
    %61 = vector.load %arg4[%c112, %c0_53] : memref<144x4xbf16, #tpu.memory_space<vmem>>, vector<16x4xbf16>
    %cst_54 = arith.constant dense<0.000000e+00> : vector<256x4xf32>
    %62 = tpu.matmul %60, %61, %cst_54 {dimension_numbers = #tpu.dot_dimension_numbers<[1], [0], [0], [1], [0, 0, 1, 1], [], []>} : vector<256x16xbf16>, vector<16x4xbf16>, vector<256x4xf32> -> vector<256x4xf32>
    %63 = arith.addf %59, %62 : vector<256x4xf32>
    %64 = arith.truncf %30 : vector<256x16xf32> to vector<256x16xbf16>
    %c128 = arith.constant 128 : index
    %c0_55 = arith.constant 0 : index
    %65 = vector.load %arg4[%c128, %c0_55] : memref<144x4xbf16, #tpu.memory_space<vmem>>, vector<16x4xbf16>
    %cst_56 = arith.constant dense<0.000000e+00> : vector<256x4xf32>
    %66 = tpu.matmul %64, %65, %cst_56 {dimension_numbers = #tpu.dot_dimension_numbers<[1], [0], [0], [1], [0, 0, 1, 1], [], []>} : vector<256x16xbf16>, vector<16x4xbf16>, vector<256x4xf32> -> vector<256x4xf32>
    %67 = arith.addf %63, %66 : vector<256x4xf32>
    %c0_57 = arith.constant 0 : index
    %c0_58 = arith.constant 0 : index
    %68 = vector.load %arg5[%c0_57, %c0_58] : memref<256x4xf32, #tpu.memory_space<vmem>>, vector<256x4xf32>
    tpu.vector_store %arg5[%c0_57, %c0_58], %67 {strides = array<i32>} : memref<256x4xf32, #tpu.memory_space<vmem>>, vector<256x4xf32>,
    %cst_59 = arith.constant dense<0.000000e+00> : vector<4xf32>
    %69 = vector.multi_reduction <add>, %67, %cst_59 [0] : vector<256x4xf32> to vector<4xf32>
    %70 = vector.shape_cast %69 : vector<4xf32> to vector<1x4xf32>
    %71 = vector.shape_cast %70 : vector<1x4xf32> to vector<1x1x4xf32>
    %c0_60 = arith.constant 0 : index
    %c0_61 = arith.constant 0 : index
    %c0_62 = arith.constant 0 : index
    %72 = vector.load %arg6[%c0_60, %c0_61, %c0_62] : memref<1x1x4xf32, #tpu.memory_space<vmem>>, vector<1x1x4xf32>
    tpu.vector_store %arg6[%c0_60, %c0_61, %c0_62], %71 {strides = array<i32>} : memref<1x1x4xf32, #tpu.memory_space<vmem>>, vector<1x1x4xf32>,
    %73 = arith.mulf %67, %67 : vector<256x4xf32>
    %cst_63 = arith.constant dense<0.000000e+00> : vector<4xf32>
    %74 = vector.multi_reduction <add>, %73, %cst_63 [0] : vector<256x4xf32> to vector<4xf32>
    %75 = vector.shape_cast %74 : vector<4xf32> to vector<1x4xf32>
    %76 = vector.shape_cast %75 : vector<1x4xf32> to vector<1x1x4xf32>
    %c0_64 = arith.constant 0 : index
    %c0_65 = arith.constant 0 : index
    %c0_66 = arith.constant 0 : index
    %77 = vector.load %arg7[%c0_64, %c0_65, %c0_66] : memref<1x1x4xf32, #tpu.memory_space<vmem>>, vector<1x1x4xf32>
    tpu.vector_store %arg7[%c0_64, %c0_65, %c0_66], %76 {strides = array<i32>} : memref<1x1x4xf32, #tpu.memory_space<vmem>>, vector<1x1x4xf32>,
    return
  }
  func.func @transform_0(%arg0: i32) -> (i32, i32) {
    %c0_i32 = arith.constant 0 : i32
    %c0_i32_0 = arith.constant 0 : i32
    return %arg0, %c0_i32 : i32, i32
  }
  func.func @transform_1(%arg0: i32) -> (i32, i32) {
    %c0_i32 = arith.constant 0 : i32
    %c0_i32_0 = arith.constant 0 : i32
    %c0_i32_1 = arith.constant 0 : i32
    return %c0_i32, %c0_i32_0 : i32, i32
  }
  func.func @transform_2(%arg0: i32) -> (i32, i32) {
    %c0_i32 = arith.constant 0 : i32
    %c0_i32_0 = arith.constant 0 : i32
    %c0_i32_1 = arith.constant 0 : i32
    return %c0_i32, %c0_i32_0 : i32, i32
  }
  func.func @transform_3(%arg0: i32) -> (i32, i32) {
    %c0_i32 = arith.constant 0 : i32
    %c0_i32_0 = arith.constant 0 : i32
    %c0_i32_1 = arith.constant 0 : i32
    return %c0_i32, %c0_i32_0 : i32, i32
  }
  func.func @transform_4(%arg0: i32) -> (i32, i32) {
    %c0_i32 = arith.constant 0 : i32
    %c0_i32_0 = arith.constant 0 : i32
    return %arg0, %c0_i32 : i32, i32
  }
  func.func @transform_5(%arg0: i32) -> (i32, i32, i32) {
    %c0_i32 = arith.constant 0 : i32
    %c0_i32_0 = arith.constant 0 : i32
    %c0_i32_1 = arith.constant 0 : i32
    return %arg0, %c0_i32, %c0_i32_0 : i32, i32, i32
  }
  func.func @transform_6(%arg0: i32) -> (i32, i32, i32) {
    %c0_i32 = arith.constant 0 : i32
    %c0_i32_0 = arith.constant 0 : i32
    %c0_i32_1 = arith.constant 0 : i32
    return %arg0, %c0_i32, %c0_i32_0 : i32, i32, i32
  }
}

module attributes {stable_mosaic.version = 11 : i64} {
  func.func @kernel(%arg0: i32, %arg1: memref<512x4xf32, #tpu.memory_space<vmem>>, %arg2: memref<512x4xf32, #tpu.memory_space<vmem>>, %arg3: memref<512x4xf32, #tpu.memory_space<vmem>>, %arg4: memref<1x4xf32, #tpu.memory_space<vmem>>, %arg5: memref<1x4xf32, #tpu.memory_space<vmem>>, %arg6: memref<1x4xf32, #tpu.memory_space<vmem>>, %arg7: memref<1x4xf32, #tpu.memory_space<vmem>>, %arg8: memref<1x4xf32, #tpu.memory_space<vmem>>, %arg9: memref<1x4xf32, #tpu.memory_space<vmem>>, %arg10: memref<4x16xbf16, #tpu.memory_space<vmem>>, %arg11: memref<4x16xbf16, #tpu.memory_space<vmem>>, %arg12: memref<4x16xbf16, #tpu.memory_space<vmem>>, %arg13: memref<512x16xf32, #tpu.memory_space<vmem>>, %arg14: memref<1x1x16xf32, #tpu.memory_space<vmem>>, %arg15: memref<1x1x16xf32, #tpu.memory_space<vmem>>) attributes {dimension_semantics = [#tpu.dimension_semantics<parallel>], iteration_bounds = array<i64: 1>, scalar_prefetch = 0 : i64, scratch_operands = 0 : i64, tpu.core_type = #tpu.core_type<tc>, window_params = [{transform_indices = @transform_0, window_bounds = array<i64: 512, 4>}, {transform_indices = @transform_1, window_bounds = array<i64: 512, 4>}, {transform_indices = @transform_2, window_bounds = array<i64: 512, 4>}, {pipeline_mode = #tpu.pipeline_mode<synchronous>, transform_indices = @transform_3, window_bounds = array<i64: 1, 4>}, {pipeline_mode = #tpu.pipeline_mode<synchronous>, transform_indices = @transform_4, window_bounds = array<i64: 1, 4>}, {pipeline_mode = #tpu.pipeline_mode<synchronous>, transform_indices = @transform_5, window_bounds = array<i64: 1, 4>}, {pipeline_mode = #tpu.pipeline_mode<synchronous>, transform_indices = @transform_6, window_bounds = array<i64: 1, 4>}, {pipeline_mode = #tpu.pipeline_mode<synchronous>, transform_indices = @transform_7, window_bounds = array<i64: 1, 4>}, {pipeline_mode = #tpu.pipeline_mode<synchronous>, transform_indices = @transform_8, window_bounds = array<i64: 1, 4>}, {pipeline_mode = #tpu.pipeline_mode<synchronous>, transform_indices = @transform_9, window_bounds = array<i64: 4, 16>}, {pipeline_mode = #tpu.pipeline_mode<synchronous>, transform_indices = @transform_10, window_bounds = array<i64: 4, 16>}, {pipeline_mode = #tpu.pipeline_mode<synchronous>, transform_indices = @transform_11, window_bounds = array<i64: 4, 16>}, {transform_indices = @transform_12, window_bounds = array<i64: 512, 16>}, {transform_indices = @transform_13, window_bounds = array<i64: 1, 1, 16>}, {transform_indices = @transform_14, window_bounds = array<i64: 1, 1, 16>}]} {
    %cst = arith.constant 0.000000e+00 : f32
    %0 = vector.broadcast %cst : f32 to vector<512x16xf32>
    %c0 = arith.constant 0 : index
    %c0_0 = arith.constant 0 : index
    %1 = vector.load %arg1[%c0, %c0_0] : memref<512x4xf32, #tpu.memory_space<vmem>>, vector<512x4xf32>
    %c0_1 = arith.constant 0 : index
    %c0_2 = arith.constant 0 : index
    %2 = vector.load %arg4[%c0_1, %c0_2] : memref<1x4xf32, #tpu.memory_space<vmem>>, vector<1x4xf32>
    %3 = vector.broadcast %2 : vector<1x4xf32> to vector<512x4xf32>
    %4 = arith.mulf %1, %3 : vector<512x4xf32>
    %c0_3 = arith.constant 0 : index
    %c0_4 = arith.constant 0 : index
    %5 = vector.load %arg7[%c0_3, %c0_4] : memref<1x4xf32, #tpu.memory_space<vmem>>, vector<1x4xf32>
    %6 = vector.broadcast %5 : vector<1x4xf32> to vector<512x4xf32>
    %7 = arith.addf %4, %6 : vector<512x4xf32>
    %cst_5 = arith.constant 0.000000e+00 : f32
    %8 = vector.broadcast %cst_5 : f32 to vector<512x4xf32>
    %9 = arith.maximumf %7, %8 : vector<512x4xf32>
    %10 = arith.truncf %9 : vector<512x4xf32> to vector<512x4xbf16>
    %c0_6 = arith.constant 0 : index
    %c0_7 = arith.constant 0 : index
    %11 = vector.load %arg10[%c0_6, %c0_7] : memref<4x16xbf16, #tpu.memory_space<vmem>>, vector<4x16xbf16>
    %cst_8 = arith.constant dense<0.000000e+00> : vector<512x16xf32>
    %12 = tpu.matmul %10, %11, %cst_8 {dimension_numbers = #tpu.dot_dimension_numbers<[1], [0], [0], [1], [0, 0, 1, 1], [], []>} : vector<512x4xbf16>, vector<4x16xbf16>, vector<512x16xf32> -> vector<512x16xf32>
    %13 = arith.addf %0, %12 : vector<512x16xf32>
    %c0_9 = arith.constant 0 : index
    %c0_10 = arith.constant 0 : index
    %14 = vector.load %arg2[%c0_9, %c0_10] : memref<512x4xf32, #tpu.memory_space<vmem>>, vector<512x4xf32>
    %c0_11 = arith.constant 0 : index
    %c0_12 = arith.constant 0 : index
    %15 = vector.load %arg5[%c0_11, %c0_12] : memref<1x4xf32, #tpu.memory_space<vmem>>, vector<1x4xf32>
    %16 = vector.broadcast %15 : vector<1x4xf32> to vector<512x4xf32>
    %17 = arith.mulf %14, %16 : vector<512x4xf32>
    %c0_13 = arith.constant 0 : index
    %c0_14 = arith.constant 0 : index
    %18 = vector.load %arg8[%c0_13, %c0_14] : memref<1x4xf32, #tpu.memory_space<vmem>>, vector<1x4xf32>
    %19 = vector.broadcast %18 : vector<1x4xf32> to vector<512x4xf32>
    %20 = arith.addf %17, %19 : vector<512x4xf32>
    %cst_15 = arith.constant 0.000000e+00 : f32
    %21 = vector.broadcast %cst_15 : f32 to vector<512x4xf32>
    %22 = arith.maximumf %20, %21 : vector<512x4xf32>
    %23 = arith.truncf %22 : vector<512x4xf32> to vector<512x4xbf16>
    %c0_16 = arith.constant 0 : index
    %c0_17 = arith.constant 0 : index
    %24 = vector.load %arg11[%c0_16, %c0_17] : memref<4x16xbf16, #tpu.memory_space<vmem>>, vector<4x16xbf16>
    %cst_18 = arith.constant dense<0.000000e+00> : vector<512x16xf32>
    %25 = tpu.matmul %23, %24, %cst_18 {dimension_numbers = #tpu.dot_dimension_numbers<[1], [0], [0], [1], [0, 0, 1, 1], [], []>} : vector<512x4xbf16>, vector<4x16xbf16>, vector<512x16xf32> -> vector<512x16xf32>
    %26 = arith.addf %13, %25 : vector<512x16xf32>
    %c0_19 = arith.constant 0 : index
    %c0_20 = arith.constant 0 : index
    %27 = vector.load %arg3[%c0_19, %c0_20] : memref<512x4xf32, #tpu.memory_space<vmem>>, vector<512x4xf32>
    %c0_21 = arith.constant 0 : index
    %c0_22 = arith.constant 0 : index
    %28 = vector.load %arg6[%c0_21, %c0_22] : memref<1x4xf32, #tpu.memory_space<vmem>>, vector<1x4xf32>
    %29 = vector.broadcast %28 : vector<1x4xf32> to vector<512x4xf32>
    %30 = arith.mulf %27, %29 : vector<512x4xf32>
    %c0_23 = arith.constant 0 : index
    %c0_24 = arith.constant 0 : index
    %31 = vector.load %arg9[%c0_23, %c0_24] : memref<1x4xf32, #tpu.memory_space<vmem>>, vector<1x4xf32>
    %32 = vector.broadcast %31 : vector<1x4xf32> to vector<512x4xf32>
    %33 = arith.addf %30, %32 : vector<512x4xf32>
    %cst_25 = arith.constant 0.000000e+00 : f32
    %34 = vector.broadcast %cst_25 : f32 to vector<512x4xf32>
    %35 = arith.maximumf %33, %34 : vector<512x4xf32>
    %36 = arith.truncf %35 : vector<512x4xf32> to vector<512x4xbf16>
    %c0_26 = arith.constant 0 : index
    %c0_27 = arith.constant 0 : index
    %37 = vector.load %arg12[%c0_26, %c0_27] : memref<4x16xbf16, #tpu.memory_space<vmem>>, vector<4x16xbf16>
    %cst_28 = arith.constant dense<0.000000e+00> : vector<512x16xf32>
    %38 = tpu.matmul %36, %37, %cst_28 {dimension_numbers = #tpu.dot_dimension_numbers<[1], [0], [0], [1], [0, 0, 1, 1], [], []>} : vector<512x4xbf16>, vector<4x16xbf16>, vector<512x16xf32> -> vector<512x16xf32>
    %39 = arith.addf %26, %38 : vector<512x16xf32>
    %c0_29 = arith.constant 0 : index
    %c0_30 = arith.constant 0 : index
    %40 = vector.load %arg13[%c0_29, %c0_30] : memref<512x16xf32, #tpu.memory_space<vmem>>, vector<512x16xf32>
    tpu.vector_store %arg13[%c0_29, %c0_30], %39 {strides = array<i32>} : memref<512x16xf32, #tpu.memory_space<vmem>>, vector<512x16xf32>,
    %cst_31 = arith.constant dense<0.000000e+00> : vector<16xf32>
    %41 = vector.multi_reduction <add>, %39, %cst_31 [0] : vector<512x16xf32> to vector<16xf32>
    %42 = vector.shape_cast %41 : vector<16xf32> to vector<1x16xf32>
    %43 = vector.shape_cast %42 : vector<1x16xf32> to vector<1x1x16xf32>
    %c0_32 = arith.constant 0 : index
    %c0_33 = arith.constant 0 : index
    %c0_34 = arith.constant 0 : index
    %44 = vector.load %arg14[%c0_32, %c0_33, %c0_34] : memref<1x1x16xf32, #tpu.memory_space<vmem>>, vector<1x1x16xf32>
    tpu.vector_store %arg14[%c0_32, %c0_33, %c0_34], %43 {strides = array<i32>} : memref<1x1x16xf32, #tpu.memory_space<vmem>>, vector<1x1x16xf32>,
    %45 = arith.mulf %39, %39 : vector<512x16xf32>
    %cst_35 = arith.constant dense<0.000000e+00> : vector<16xf32>
    %46 = vector.multi_reduction <add>, %45, %cst_35 [0] : vector<512x16xf32> to vector<16xf32>
    %47 = vector.shape_cast %46 : vector<16xf32> to vector<1x16xf32>
    %48 = vector.shape_cast %47 : vector<1x16xf32> to vector<1x1x16xf32>
    %c0_36 = arith.constant 0 : index
    %c0_37 = arith.constant 0 : index
    %c0_38 = arith.constant 0 : index
    %49 = vector.load %arg15[%c0_36, %c0_37, %c0_38] : memref<1x1x16xf32, #tpu.memory_space<vmem>>, vector<1x1x16xf32>
    tpu.vector_store %arg15[%c0_36, %c0_37, %c0_38], %48 {strides = array<i32>} : memref<1x1x16xf32, #tpu.memory_space<vmem>>, vector<1x1x16xf32>,
    return
  }
  func.func @transform_0(%arg0: i32) -> (i32, i32) {
    %c0_i32 = arith.constant 0 : i32
    %c0_i32_0 = arith.constant 0 : i32
    return %arg0, %c0_i32 : i32, i32
  }
  func.func @transform_1(%arg0: i32) -> (i32, i32) {
    %c0_i32 = arith.constant 0 : i32
    %c0_i32_0 = arith.constant 0 : i32
    return %arg0, %c0_i32 : i32, i32
  }
  func.func @transform_2(%arg0: i32) -> (i32, i32) {
    %c0_i32 = arith.constant 0 : i32
    %c0_i32_0 = arith.constant 0 : i32
    return %arg0, %c0_i32 : i32, i32
  }
  func.func @transform_3(%arg0: i32) -> (i32, i32) {
    %c0_i32 = arith.constant 0 : i32
    %c0_i32_0 = arith.constant 0 : i32
    %c0_i32_1 = arith.constant 0 : i32
    return %c0_i32, %c0_i32_0 : i32, i32
  }
  func.func @transform_4(%arg0: i32) -> (i32, i32) {
    %c0_i32 = arith.constant 0 : i32
    %c0_i32_0 = arith.constant 0 : i32
    %c0_i32_1 = arith.constant 0 : i32
    return %c0_i32, %c0_i32_0 : i32, i32
  }
  func.func @transform_5(%arg0: i32) -> (i32, i32) {
    %c0_i32 = arith.constant 0 : i32
    %c0_i32_0 = arith.constant 0 : i32
    %c0_i32_1 = arith.constant 0 : i32
    return %c0_i32, %c0_i32_0 : i32, i32
  }
  func.func @transform_6(%arg0: i32) -> (i32, i32) {
    %c0_i32 = arith.constant 0 : i32
    %c0_i32_0 = arith.constant 0 : i32
    %c0_i32_1 = arith.constant 0 : i32
    return %c0_i32, %c0_i32_0 : i32, i32
  }
  func.func @transform_7(%arg0: i32) -> (i32, i32) {
    %c0_i32 = arith.constant 0 : i32
    %c0_i32_0 = arith.constant 0 : i32
    %c0_i32_1 = arith.constant 0 : i32
    return %c0_i32, %c0_i32_0 : i32, i32
  }
  func.func @transform_8(%arg0: i32) -> (i32, i32) {
    %c0_i32 = arith.constant 0 : i32
    %c0_i32_0 = arith.constant 0 : i32
    %c0_i32_1 = arith.constant 0 : i32
    return %c0_i32, %c0_i32_0 : i32, i32
  }
  func.func @transform_9(%arg0: i32) -> (i32, i32) {
    %c0_i32 = arith.constant 0 : i32
    %c0_i32_0 = arith.constant 0 : i32
    %c0_i32_1 = arith.constant 0 : i32
    return %c0_i32, %c0_i32_0 : i32, i32
  }
  func.func @transform_10(%arg0: i32) -> (i32, i32) {
    %c0_i32 = arith.constant 0 : i32
    %c0_i32_0 = arith.constant 0 : i32
    %c0_i32_1 = arith.constant 0 : i32
    return %c0_i32, %c0_i32_0 : i32, i32
  }
  func.func @transform_11(%arg0: i32) -> (i32, i32) {
    %c0_i32 = arith.constant 0 : i32
    %c0_i32_0 = arith.constant 0 : i32
    %c0_i32_1 = arith.constant 0 : i32
    return %c0_i32, %c0_i32_0 : i32, i32
  }
  func.func @transform_12(%arg0: i32) -> (i32, i32) {
    %c0_i32 = arith.constant 0 : i32
    %c0_i32_0 = arith.constant 0 : i32
    return %arg0, %c0_i32 : i32, i32
  }
  func.func @transform_13(%arg0: i32) -> (i32, i32, i32) {
    %c0_i32 = arith.constant 0 : i32
    %c0_i32_0 = arith.constant 0 : i32
    %c0_i32_1 = arith.constant 0 : i32
    return %arg0, %c0_i32, %c0_i32_0 : i32, i32, i32
  }
  func.func @transform_14(%arg0: i32) -> (i32, i32, i32) {
    %c0_i32 = arith.constant 0 : i32
    %c0_i32_0 = arith.constant 0 : i32
    %c0_i32_1 = arith.constant 0 : i32
    return %arg0, %c0_i32, %c0_i32_0 : i32, i32, i32
  }
}

module attributes {stable_mosaic.version = 11 : i64} {
  func.func @kernel(%arg0: i32, %arg1: memref<256x16xf32, #tpu.memory_space<vmem>>, %arg2: memref<1x16xf32, #tpu.memory_space<vmem>>, %arg3: memref<1x16xf32, #tpu.memory_space<vmem>>, %arg4: memref<144x4xbf16, #tpu.memory_space<vmem>>, %arg5: memref<256x4xf32, #tpu.memory_space<vmem>>, %arg6: memref<1x1x4xf32, #tpu.memory_space<vmem>>, %arg7: memref<1x1x4xf32, #tpu.memory_space<vmem>>, %arg8: memref<18x18x16xf32, #tpu.memory_space<vmem>>) attributes {dimension_semantics = [#tpu.dimension_semantics<parallel>], iteration_bounds = array<i64: 2>, scalar_prefetch = 0 : i64, scratch_operands = 1 : i64, tpu.core_type = #tpu.core_type<tc>, window_params = [{transform_indices = @transform_0, window_bounds = array<i64: 256, 16>}, {pipeline_mode = #tpu.pipeline_mode<synchronous>, transform_indices = @transform_1, window_bounds = array<i64: 1, 16>}, {pipeline_mode = #tpu.pipeline_mode<synchronous>, transform_indices = @transform_2, window_bounds = array<i64: 1, 16>}, {pipeline_mode = #tpu.pipeline_mode<synchronous>, transform_indices = @transform_3, window_bounds = array<i64: 144, 4>}, {transform_indices = @transform_4, window_bounds = array<i64: 256, 4>}, {transform_indices = @transform_5, window_bounds = array<i64: 1, 1, 4>}, {transform_indices = @transform_6, window_bounds = array<i64: 1, 1, 4>}]} {
    %c0 = arith.constant 0 : index
    %c0_0 = arith.constant 0 : index
    %0 = vector.load %arg1[%c0, %c0_0] : memref<256x16xf32, #tpu.memory_space<vmem>>, vector<256x16xf32>
    %c0_1 = arith.constant 0 : index
    %c0_2 = arith.constant 0 : index
    %1 = vector.load %arg2[%c0_1, %c0_2] : memref<1x16xf32, #tpu.memory_space<vmem>>, vector<1x16xf32>
    %2 = vector.broadcast %1 : vector<1x16xf32> to vector<256x16xf32>
    %3 = arith.mulf %0, %2 : vector<256x16xf32>
    %c0_3 = arith.constant 0 : index
    %c0_4 = arith.constant 0 : index
    %4 = vector.load %arg3[%c0_3, %c0_4] : memref<1x16xf32, #tpu.memory_space<vmem>>, vector<1x16xf32>
    %5 = vector.broadcast %4 : vector<1x16xf32> to vector<256x16xf32>
    %6 = arith.addf %3, %5 : vector<256x16xf32>
    %cst = arith.constant 0.000000e+00 : f32
    %7 = vector.broadcast %cst : f32 to vector<256x16xf32>
    %8 = arith.maximumf %6, %7 : vector<256x16xf32>
    %cst_5 = arith.constant 0.000000e+00 : f32
    %9 = vector.broadcast %cst_5 : f32 to vector<18x18x16xf32>
    %c0_6 = arith.constant 0 : index
    %c0_7 = arith.constant 0 : index
    %c0_8 = arith.constant 0 : index
    %10 = vector.load %arg8[%c0_6, %c0_7, %c0_8] : memref<18x18x16xf32, #tpu.memory_space<vmem>>, vector<18x18x16xf32>
    tpu.vector_store %arg8[%c0_6, %c0_7, %c0_8], %9 {strides = array<i32>} : memref<18x18x16xf32, #tpu.memory_space<vmem>>, vector<18x18x16xf32>,
    %11 = vector.shape_cast %8 : vector<256x16xf32> to vector<16x16x16xf32>
    %c1 = arith.constant 1 : index
    %c1_9 = arith.constant 1 : index
    %c0_10 = arith.constant 0 : index
    %12 = vector.load %arg8[%c1, %c1_9, %c0_10] : memref<18x18x16xf32, #tpu.memory_space<vmem>>, vector<16x16x16xf32>
    tpu.vector_store %arg8[%c1, %c1_9, %c0_10], %11 {strides = array<i32>} : memref<18x18x16xf32, #tpu.memory_space<vmem>>, vector<16x16x16xf32>,
    %c0_11 = arith.constant 0 : index
    %c0_12 = arith.constant 0 : index
    %c0_13 = arith.constant 0 : index
    %13 = vector.load %arg8[%c0_11, %c0_12, %c0_13] : memref<18x18x16xf32, #tpu.memory_space<vmem>>, vector<16x16x16xf32>
    %14 = vector.shape_cast %13 : vector<16x16x16xf32> to vector<256x16xf32>
    %c0_14 = arith.constant 0 : index
    %c1_15 = arith.constant 1 : index
    %c0_16 = arith.constant 0 : index
    %15 = vector.load %arg8[%c0_14, %c1_15, %c0_16] : memref<18x18x16xf32, #tpu.memory_space<vmem>>, vector<16x16x16xf32>
    %16 = vector.shape_cast %15 : vector<16x16x16xf32> to vector<256x16xf32>
    %c0_17 = arith.constant 0 : index
    %c2 = arith.constant 2 : index
    %c0_18 = arith.constant 0 : index
    %17 = vector.load %arg8[%c0_17, %c2, %c0_18] : memref<18x18x16xf32, #tpu.memory_space<vmem>>, vector<16x16x16xf32>
    %18 = vector.shape_cast %17 : vector<16x16x16xf32> to vector<256x16xf32>
    %c1_19 = arith.constant 1 : index
    %c0_20 = arith.constant 0 : index
    %c0_21 = arith.constant 0 : index
    %19 = vector.load %arg8[%c1_19, %c0_20, %c0_21] : memref<18x18x16xf32, #tpu.memory_space<vmem>>, vector<16x16x16xf32>
    %20 = vector.shape_cast %19 : vector<16x16x16xf32> to vector<256x16xf32>
    %c1_22 = arith.constant 1 : index
    %c1_23 = arith.constant 1 : index
    %c0_24 = arith.constant 0 : index
    %21 = vector.load %arg8[%c1_22, %c1_23, %c0_24] : memref<18x18x16xf32, #tpu.memory_space<vmem>>, vector<16x16x16xf32>
    %22 = vector.shape_cast %21 : vector<16x16x16xf32> to vector<256x16xf32>
    %c1_25 = arith.constant 1 : index
    %c2_26 = arith.constant 2 : index
    %c0_27 = arith.constant 0 : index
    %23 = vector.load %arg8[%c1_25, %c2_26, %c0_27] : memref<18x18x16xf32, #tpu.memory_space<vmem>>, vector<16x16x16xf32>
    %24 = vector.shape_cast %23 : vector<16x16x16xf32> to vector<256x16xf32>
    %c2_28 = arith.constant 2 : index
    %c0_29 = arith.constant 0 : index
    %c0_30 = arith.constant 0 : index
    %25 = vector.load %arg8[%c2_28, %c0_29, %c0_30] : memref<18x18x16xf32, #tpu.memory_space<vmem>>, vector<16x16x16xf32>
    %26 = vector.shape_cast %25 : vector<16x16x16xf32> to vector<256x16xf32>
    %c2_31 = arith.constant 2 : index
    %c1_32 = arith.constant 1 : index
    %c0_33 = arith.constant 0 : index
    %27 = vector.load %arg8[%c2_31, %c1_32, %c0_33] : memref<18x18x16xf32, #tpu.memory_space<vmem>>, vector<16x16x16xf32>
    %28 = vector.shape_cast %27 : vector<16x16x16xf32> to vector<256x16xf32>
    %c2_34 = arith.constant 2 : index
    %c2_35 = arith.constant 2 : index
    %c0_36 = arith.constant 0 : index
    %29 = vector.load %arg8[%c2_34, %c2_35, %c0_36] : memref<18x18x16xf32, #tpu.memory_space<vmem>>, vector<16x16x16xf32>
    %30 = vector.shape_cast %29 : vector<16x16x16xf32> to vector<256x16xf32>
    %cst_37 = arith.constant 0.000000e+00 : f32
    %31 = vector.broadcast %cst_37 : f32 to vector<256x4xf32>
    %32 = arith.truncf %14 : vector<256x16xf32> to vector<256x16xbf16>
    %c0_38 = arith.constant 0 : index
    %c0_39 = arith.constant 0 : index
    %33 = vector.load %arg4[%c0_38, %c0_39] : memref<144x4xbf16, #tpu.memory_space<vmem>>, vector<16x4xbf16>
    %cst_40 = arith.constant dense<0.000000e+00> : vector<256x4xf32>
    %34 = tpu.matmul %32, %33, %cst_40 {dimension_numbers = #tpu.dot_dimension_numbers<[1], [0], [0], [1], [0, 0, 1, 1], [], []>} : vector<256x16xbf16>, vector<16x4xbf16>, vector<256x4xf32> -> vector<256x4xf32>
    %35 = arith.addf %31, %34 : vector<256x4xf32>
    %36 = arith.truncf %16 : vector<256x16xf32> to vector<256x16xbf16>
    %c16 = arith.constant 16 : index
    %c0_41 = arith.constant 0 : index
    %37 = vector.load %arg4[%c16, %c0_41] : memref<144x4xbf16, #tpu.memory_space<vmem>>, vector<16x4xbf16>
    %cst_42 = arith.constant dense<0.000000e+00> : vector<256x4xf32>
    %38 = tpu.matmul %36, %37, %cst_42 {dimension_numbers = #tpu.dot_dimension_numbers<[1], [0], [0], [1], [0, 0, 1, 1], [], []>} : vector<256x16xbf16>, vector<16x4xbf16>, vector<256x4xf32> -> vector<256x4xf32>
    %39 = arith.addf %35, %38 : vector<256x4xf32>
    %40 = arith.truncf %18 : vector<256x16xf32> to vector<256x16xbf16>
    %c32 = arith.constant 32 : index
    %c0_43 = arith.constant 0 : index
    %41 = vector.load %arg4[%c32, %c0_43] : memref<144x4xbf16, #tpu.memory_space<vmem>>, vector<16x4xbf16>
    %cst_44 = arith.constant dense<0.000000e+00> : vector<256x4xf32>
    %42 = tpu.matmul %40, %41, %cst_44 {dimension_numbers = #tpu.dot_dimension_numbers<[1], [0], [0], [1], [0, 0, 1, 1], [], []>} : vector<256x16xbf16>, vector<16x4xbf16>, vector<256x4xf32> -> vector<256x4xf32>
    %43 = arith.addf %39, %42 : vector<256x4xf32>
    %44 = arith.truncf %20 : vector<256x16xf32> to vector<256x16xbf16>
    %c48 = arith.constant 48 : index
    %c0_45 = arith.constant 0 : index
    %45 = vector.load %arg4[%c48, %c0_45] : memref<144x4xbf16, #tpu.memory_space<vmem>>, vector<16x4xbf16>
    %cst_46 = arith.constant dense<0.000000e+00> : vector<256x4xf32>
    %46 = tpu.matmul %44, %45, %cst_46 {dimension_numbers = #tpu.dot_dimension_numbers<[1], [0], [0], [1], [0, 0, 1, 1], [], []>} : vector<256x16xbf16>, vector<16x4xbf16>, vector<256x4xf32> -> vector<256x4xf32>
    %47 = arith.addf %43, %46 : vector<256x4xf32>
    %48 = arith.truncf %22 : vector<256x16xf32> to vector<256x16xbf16>
    %c64 = arith.constant 64 : index
    %c0_47 = arith.constant 0 : index
    %49 = vector.load %arg4[%c64, %c0_47] : memref<144x4xbf16, #tpu.memory_space<vmem>>, vector<16x4xbf16>
    %cst_48 = arith.constant dense<0.000000e+00> : vector<256x4xf32>
    %50 = tpu.matmul %48, %49, %cst_48 {dimension_numbers = #tpu.dot_dimension_numbers<[1], [0], [0], [1], [0, 0, 1, 1], [], []>} : vector<256x16xbf16>, vector<16x4xbf16>, vector<256x4xf32> -> vector<256x4xf32>
    %51 = arith.addf %47, %50 : vector<256x4xf32>
    %52 = arith.truncf %24 : vector<256x16xf32> to vector<256x16xbf16>
    %c80 = arith.constant 80 : index
    %c0_49 = arith.constant 0 : index
    %53 = vector.load %arg4[%c80, %c0_49] : memref<144x4xbf16, #tpu.memory_space<vmem>>, vector<16x4xbf16>
    %cst_50 = arith.constant dense<0.000000e+00> : vector<256x4xf32>
    %54 = tpu.matmul %52, %53, %cst_50 {dimension_numbers = #tpu.dot_dimension_numbers<[1], [0], [0], [1], [0, 0, 1, 1], [], []>} : vector<256x16xbf16>, vector<16x4xbf16>, vector<256x4xf32> -> vector<256x4xf32>
    %55 = arith.addf %51, %54 : vector<256x4xf32>
    %56 = arith.truncf %26 : vector<256x16xf32> to vector<256x16xbf16>
    %c96 = arith.constant 96 : index
    %c0_51 = arith.constant 0 : index
    %57 = vector.load %arg4[%c96, %c0_51] : memref<144x4xbf16, #tpu.memory_space<vmem>>, vector<16x4xbf16>
    %cst_52 = arith.constant dense<0.000000e+00> : vector<256x4xf32>
    %58 = tpu.matmul %56, %57, %cst_52 {dimension_numbers = #tpu.dot_dimension_numbers<[1], [0], [0], [1], [0, 0, 1, 1], [], []>} : vector<256x16xbf16>, vector<16x4xbf16>, vector<256x4xf32> -> vector<256x4xf32>
    %59 = arith.addf %55, %58 : vector<256x4xf32>
    %60 = arith.truncf %28 : vector<256x16xf32> to vector<256x16xbf16>
    %c112 = arith.constant 112 : index
    %c0_53 = arith.constant 0 : index
    %61 = vector.load %arg4[%c112, %c0_53] : memref<144x4xbf16, #tpu.memory_space<vmem>>, vector<16x4xbf16>
    %cst_54 = arith.constant dense<0.000000e+00> : vector<256x4xf32>
    %62 = tpu.matmul %60, %61, %cst_54 {dimension_numbers = #tpu.dot_dimension_numbers<[1], [0], [0], [1], [0, 0, 1, 1], [], []>} : vector<256x16xbf16>, vector<16x4xbf16>, vector<256x4xf32> -> vector<256x4xf32>
    %63 = arith.addf %59, %62 : vector<256x4xf32>
    %64 = arith.truncf %30 : vector<256x16xf32> to vector<256x16xbf16>
    %c128 = arith.constant 128 : index
    %c0_55 = arith.constant 0 : index
    %65 = vector.load %arg4[%c128, %c0_55] : memref<144x4xbf16, #tpu.memory_space<vmem>>, vector<16x4xbf16>
    %cst_56 = arith.constant dense<0.000000e+00> : vector<256x4xf32>
    %66 = tpu.matmul %64, %65, %cst_56 {dimension_numbers = #tpu.dot_dimension_numbers<[1], [0], [0], [1], [0, 0, 1, 1], [], []>} : vector<256x16xbf16>, vector<16x4xbf16>, vector<256x4xf32> -> vector<256x4xf32>
    %67 = arith.addf %63, %66 : vector<256x4xf32>
    %c0_57 = arith.constant 0 : index
    %c0_58 = arith.constant 0 : index
    %68 = vector.load %arg5[%c0_57, %c0_58] : memref<256x4xf32, #tpu.memory_space<vmem>>, vector<256x4xf32>
    tpu.vector_store %arg5[%c0_57, %c0_58], %67 {strides = array<i32>} : memref<256x4xf32, #tpu.memory_space<vmem>>, vector<256x4xf32>,
    %cst_59 = arith.constant dense<0.000000e+00> : vector<4xf32>
    %69 = vector.multi_reduction <add>, %67, %cst_59 [0] : vector<256x4xf32> to vector<4xf32>
    %70 = vector.shape_cast %69 : vector<4xf32> to vector<1x4xf32>
    %71 = vector.shape_cast %70 : vector<1x4xf32> to vector<1x1x4xf32>
    %c0_60 = arith.constant 0 : index
    %c0_61 = arith.constant 0 : index
    %c0_62 = arith.constant 0 : index
    %72 = vector.load %arg6[%c0_60, %c0_61, %c0_62] : memref<1x1x4xf32, #tpu.memory_space<vmem>>, vector<1x1x4xf32>
    tpu.vector_store %arg6[%c0_60, %c0_61, %c0_62], %71 {strides = array<i32>} : memref<1x1x4xf32, #tpu.memory_space<vmem>>, vector<1x1x4xf32>,
    %73 = arith.mulf %67, %67 : vector<256x4xf32>
    %cst_63 = arith.constant dense<0.000000e+00> : vector<4xf32>
    %74 = vector.multi_reduction <add>, %73, %cst_63 [0] : vector<256x4xf32> to vector<4xf32>
    %75 = vector.shape_cast %74 : vector<4xf32> to vector<1x4xf32>
    %76 = vector.shape_cast %75 : vector<1x4xf32> to vector<1x1x4xf32>
    %c0_64 = arith.constant 0 : index
    %c0_65 = arith.constant 0 : index
    %c0_66 = arith.constant 0 : index
    %77 = vector.load %arg7[%c0_64, %c0_65, %c0_66] : memref<1x1x4xf32, #tpu.memory_space<vmem>>, vector<1x1x4xf32>
    tpu.vector_store %arg7[%c0_64, %c0_65, %c0_66], %76 {strides = array<i32>} : memref<1x1x4xf32, #tpu.memory_space<vmem>>, vector<1x1x4xf32>,
    return
  }
  func.func @transform_0(%arg0: i32) -> (i32, i32) {
    %c0_i32 = arith.constant 0 : i32
    %c0_i32_0 = arith.constant 0 : i32
    return %arg0, %c0_i32 : i32, i32
  }
  func.func @transform_1(%arg0: i32) -> (i32, i32) {
    %c0_i32 = arith.constant 0 : i32
    %c0_i32_0 = arith.constant 0 : i32
    %c0_i32_1 = arith.constant 0 : i32
    return %c0_i32, %c0_i32_0 : i32, i32
  }
  func.func @transform_2(%arg0: i32) -> (i32, i32) {
    %c0_i32 = arith.constant 0 : i32
    %c0_i32_0 = arith.constant 0 : i32
    %c0_i32_1 = arith.constant 0 : i32
    return %c0_i32, %c0_i32_0 : i32, i32
  }
  func.func @transform_3(%arg0: i32) -> (i32, i32) {
    %c0_i32 = arith.constant 0 : i32
    %c0_i32_0 = arith.constant 0 : i32
    %c0_i32_1 = arith.constant 0 : i32
    return %c0_i32, %c0_i32_0 : i32, i32
  }
  func.func @transform_4(%arg0: i32) -> (i32, i32) {
    %c0_i32 = arith.constant 0 : i32
    %c0_i32_0 = arith.constant 0 : i32
    return %arg0, %c0_i32 : i32, i32
  }
  func.func @transform_5(%arg0: i32) -> (i32, i32, i32) {
    %c0_i32 = arith.constant 0 : i32
    %c0_i32_0 = arith.constant 0 : i32
    %c0_i32_1 = arith.constant 0 : i32
    return %arg0, %c0_i32, %c0_i32_0 : i32, i32, i32
  }
  func.func @transform_6(%arg0: i32) -> (i32, i32, i32) {
    %c0_i32 = arith.constant 0 : i32
    %c0_i32_0 = arith.constant 0 : i32
    %c0_i32_1 = arith.constant 0 : i32
    return %arg0, %c0_i32, %c0_i32_0 : i32, i32, i32
  }
}

</mosaic_0001>

<llo_original>
// kernel: dense_block_forward.7
$region0: #{dense_block_forward.7}
  #allocation0 [shape = 'u32[]', space=smem, size = 0x4, offset = 0x4, fixed_abs, tag = 'smem constant byte address 0x4 - core index']
  #allocation1 [shape = 'u32[72,128]{1,0:T(1,128)}', space=vmem, size = 0x9000, scoped, tag = 'internal scratch']
  %s0 = inlined_call_operand.vmem [shape: f32[512,4], index: 0, kind: input, shape index: {}]
  %s1 = inlined_call_operand.vmem [shape: f32[1,1,4], index: 1, kind: output, shape index: {0}]
  %s2 = inlined_call_operand.vmem [shape: f32[1,1,4], index: 2, kind: output, shape index: {1}]
  %3 = xla_tuple %s1, %s2
  %s4 = sld [smem:[#allocation0]]
  $region22: #{dense_block_forward.7} parent=0
    _
  %s6 = ssub.s32 1, %s4
  %s7 = scalar_select 0, %s6, %s4
  // Predicated region
  $region2: #{dense_block_forward.7} parent=0 // pred_check
    _
  $region3: #{dense_block_forward.7} parent=0 // pred_check_branch
    %9 = sbr.rel (0) target = $region5
  $region4: #{dense_block_forward.7} parent=0 // pred_region
    _
  $region5: #{dense_block_forward.7} parent=0 // pred_fallthru
    _
  %v10 = vld [vmem:[%s0] sm:$0xff]
  %v11 = vld [vmem:[%s0 + $0x8] sm:$0xff]
  %v12 = vld [vmem:[%s0 + $0x10] sm:$0xff]
  %v13 = vld [vmem:[%s0 + $0x18] sm:$0xff]
  %v14 = vld [vmem:[%s0 + $0x20] sm:$0xff]
  %v15 = vld [vmem:[%s0 + $0x28] sm:$0xff]
  %v16 = vld [vmem:[%s0 + $0x30] sm:$0xff]
  %v17 = vld [vmem:[%s0 + $0x38] sm:$0xff]
  %v18 = vld [vmem:[%s0 + $0x40] sm:$0xff]
  %v19 = vld [vmem:[%s0 + $0x48] sm:$0xff]
  %v20 = vld [vmem:[%s0 + $0x50] sm:$0xff]
  %v21 = vld [vmem:[%s0 + $0x58] sm:$0xff]
  %v22 = vld [vmem:[%s0 + $0x60] sm:$0xff]
  %v23 = vld [vmem:[%s0 + $0x68] sm:$0xff]
  %v24 = vld [vmem:[%s0 + $0x70] sm:$0xff]
  %v25 = vld [vmem:[%s0 + $0x78] sm:$0xff]
  %v26 = vld [vmem:[%s0 + $0x80] sm:$0xff]
  %v27 = vld [vmem:[%s0 + $0x88] sm:$0xff]
  %v28 = vld [vmem:[%s0 + $0x90] sm:$0xff]
  %v29 = vld [vmem:[%s0 + $0x98] sm:$0xff]
  %v30 = vld [vmem:[%s0 + $0xa0] sm:$0xff]
  %v31 = vld [vmem:[%s0 + $0xa8] sm:$0xff]
  %v32 = vld [vmem:[%s0 + $0xb0] sm:$0xff]
  %v33 = vld [vmem:[%s0 + $0xb8] sm:$0xff]
  %v34 = vld [vmem:[%s0 + $0xc0] sm:$0xff]
  %v35 = vld [vmem:[%s0 + $0xc8] sm:$0xff]
  %v36 = vld [vmem:[%s0 + $0xd0] sm:$0xff]
  %v37 = vld [vmem:[%s0 + $0xd8] sm:$0xff]
  %v38 = vld [vmem:[%s0 + $0xe0] sm:$0xff]
  %v39 = vld [vmem:[%s0 + $0xe8] sm:$0xff]
  %v40 = vld [vmem:[%s0 + $0xf0] sm:$0xff]
  %v41 = vld [vmem:[%s0 + $0xf8] sm:$0xff]
  %v42 = vld [vmem:[%s0 + $0x100] sm:$0xff]
  %v43 = vld [vmem:[%s0 + $0x108] sm:$0xff]
  %v44 = vld [vmem:[%s0 + $0x110] sm:$0xff]
  %v45 = vld [vmem:[%s0 + $0x118] sm:$0xff]
  %v46 = vld [vmem:[%s0 + $0x120] sm:$0xff]
  %v47 = vld [vmem:[%s0 + $0x128] sm:$0xff]
  %v48 = vld [vmem:[%s0 + $0x130] sm:$0xff]
  %v49 = vld [vmem:[%s0 + $0x138] sm:$0xff]
  %v50 = vld [vmem:[%s0 + $0x140] sm:$0xff]
  %v51 = vld [vmem:[%s0 + $0x148] sm:$0xff]
  %v52 = vld [vmem:[%s0 + $0x150] sm:$0xff]
  %v53 = vld [vmem:[%s0 + $0x158] sm:$0xff]
  %v54 = vld [vmem:[%s0 + $0x160] sm:$0xff]
  %v55 = vld [vmem:[%s0 + $0x168] sm:$0xff]
  %v56 = vld [vmem:[%s0 + $0x170] sm:$0xff]
  %v57 = vld [vmem:[%s0 + $0x178] sm:$0xff]
  %v58 = vld [vmem:[%s0 + $0x180] sm:$0xff]
  %v59 = vld [vmem:[%s0 + $0x188] sm:$0xff]
  %v60 = vld [vmem:[%s0 + $0x190] sm:$0xff]
  %v61 = vld [vmem:[%s0 + $0x198] sm:$0xff]
  %v62 = vld [vmem:[%s0 + $0x1a0] sm:$0xff]
  %v63 = vld [vmem:[%s0 + $0x1a8] sm:$0xff]
  %v64 = vld [vmem:[%s0 + $0x1b0] sm:$0xff]
  %v65 = vld [vmem:[%s0 + $0x1b8] sm:$0xff]
  %v66 = vld [vmem:[%s0 + $0x1c0] sm:$0xff]
  %v67 = vld [vmem:[%s0 + $0x1c8] sm:$0xff]
  %v68 = vld [vmem:[%s0 + $0x1d0] sm:$0xff]
  %v69 = vld [vmem:[%s0 + $0x1d8] sm:$0xff]
  %v70 = vld [vmem:[%s0 + $0x1e0] sm:$0xff]
  %v71 = vld [vmem:[%s0 + $0x1e8] sm:$0xff]
  %v72 = vld [vmem:[%s0 + $0x1f0] sm:$0xff]
  %v73 = vld [vmem:[%s0 + $0x1f8] sm:$0xff]
  %vm74 = vcmask 31744
  %v75 = vsel %vm74, %v10, 0.0
  %v76 = vsel %vm74, %v11, 0.0
  %v77 = vadd.f32 %v75, %v76
  %v78 = vsel %vm74, %v12, 0.0
  %v79 = vadd.f32 %v77, %v78
  %v80 = vsel %vm74, %v13, 0.0
  %v81 = vadd.f32 %v79, %v80
  %v82 = vsel %vm74, %v14, 0.0
  %v83 = vadd.f32 %v81, %v82
  %v84 = vsel %vm74, %v15, 0.0
  %v85 = vadd.f32 %v83, %v84
  %v86 = vsel %vm74, %v16, 0.0
  %v87 = vadd.f32 %v85, %v86
  %v88 = vsel %vm74, %v17, 0.0
  %v89 = vadd.f32 %v87, %v88
  %v90 = vsel %vm74, %v18, 0.0
  %v91 = vadd.f32 %v89, %v90
  %v92 = vsel %vm74, %v19, 0.0
  %v93 = vadd.f32 %v91, %v92
  %v94 = vsel %vm74, %v20, 0.0
  %v95 = vadd.f32 %v93, %v94
  %v96 = vsel %vm74, %v21, 0.0
  %v97 = vadd.f32 %v95, %v96
  %v98 = vsel %vm74, %v22, 0.0
  %v99 = vadd.f32 %v97, %v98
  %v100 = vsel %vm74, %v23, 0.0
  %v101 = vadd.f32 %v99, %v100
  %v102 = vsel %vm74, %v24, 0.0
  %v103 = vadd.f32 %v101, %v102
  %v104 = vsel %vm74, %v25, 0.0
  %v105 = vadd.f32 %v103, %v104
  %v106 = vsel %vm74, %v26, 0.0
  %v107 = vadd.f32 %v105, %v106
  %v108 = vsel %vm74, %v27, 0.0
  %v109 = vadd.f32 %v107, %v108
  %v110 = vsel %vm74, %v28, 0.0
  %v111 = vadd.f32 %v109, %v110
  %v112 = vsel %vm74, %v29, 0.0
  %v113 = vadd.f32 %v111, %v112
  %v114 = vsel %vm74, %v30, 0.0
  %v115 = vadd.f32 %v113, %v114
  %v116 = vsel %vm74, %v31, 0.0
  %v117 = vadd.f32 %v115, %v116
  %v118 = vsel %vm74, %v32, 0.0
  %v119 = vadd.f32 %v117, %v118
  %v120 = vsel %vm74, %v33, 0.0
  %v121 = vadd.f32 %v119, %v120
  %v122 = vsel %vm74, %v34, 0.0
  %v123 = vadd.f32 %v121, %v122
  %v124 = vsel %vm74, %v35, 0.0
  %v125 = vadd.f32 %v123, %v124
  %v126 = vsel %vm74, %v36, 0.0
  %v127 = vadd.f32 %v125, %v126
  %v128 = vsel %vm74, %v37, 0.0
  %v129 = vadd.f32 %v127, %v128
  %v130 = vsel %vm74, %v38, 0.0
  %v131 = vadd.f32 %v129, %v130
  %v132 = vsel %vm74, %v39, 0.0
  %v133 = vadd.f32 %v131, %v132
  %v134 = vsel %vm74, %v40, 0.0
  %v135 = vadd.f32 %v133, %v134
  %v136 = vsel %vm74, %v41, 0.0
  %v137 = vadd.f32 %v135, %v136
  %v138 = vsel %vm74, %v42, 0.0
  %v139 = vadd.f32 %v137, %v138
  %v140 = vsel %vm74, %v43, 0.0
  %v141 = vadd.f32 %v139, %v140
  %v142 = vsel %vm74, %v44, 0.0
  %v143 = vadd.f32 %v141, %v142
  %v144 = vsel %vm74, %v45, 0.0
  %v145 = vadd.f32 %v143, %v144
  %v146 = vsel %vm74, %v46, 0.0
  %v147 = vadd.f32 %v145, %v146
  %v148 = vsel %vm74, %v47, 0.0
  %v149 = vadd.f32 %v147, %v148
  %v150 = vsel %vm74, %v48, 0.0
  %v151 = vadd.f32 %v149, %v150
  %v152 = vsel %vm74, %v49, 0.0
  %v153 = vadd.f32 %v151, %v152
  %v154 = vsel %vm74, %v50, 0.0
  %v155 = vadd.f32 %v153, %v154
  %v156 = vsel %vm74, %v51, 0.0
  %v157 = vadd.f32 %v155, %v156
  %v158 = vsel %vm74, %v52, 0.0
  %v159 = vadd.f32 %v157, %v158
  %v160 = vsel %vm74, %v53, 0.0
  %v161 = vadd.f32 %v159, %v160
  %v162 = vsel %vm74, %v54, 0.0
  %v163 = vadd.f32 %v161, %v162
  %v164 = vsel %vm74, %v55, 0.0
  %v165 = vadd.f32 %v163, %v164
  %v166 = vsel %vm74, %v56, 0.0
  %v167 = vadd.f32 %v165, %v166
  %v168 = vsel %vm74, %v57, 0.0
  %v169 = vadd.f32 %v167, %v168
  %v170 = vsel %vm74, %v58, 0.0
  %v171 = vadd.f32 %v169, %v170
  %v172 = vsel %vm74, %v59, 0.0
  %v173 = vadd.f32 %v171, %v172
  %v174 = vsel %vm74, %v60, 0.0
  %v175 = vadd.f32 %v173, %v174
  %v176 = vsel %vm74, %v61, 0.0
  %v177 = vadd.f32 %v175, %v176
  %v178 = vsel %vm74, %v62, 0.0
  %v179 = vadd.f32 %v177, %v178
  %v180 = vsel %vm74, %v63, 0.0
  %v181 = vadd.f32 %v179, %v180
  %v182 = vsel %vm74, %v64, 0.0
  %v183 = vadd.f32 %v181, %v182
  %v184 = vsel %vm74, %v65, 0.0
  %v185 = vadd.f32 %v183, %v184
  %v186 = vsel %vm74, %v66, 0.0
  %v187 = vadd.f32 %v185, %v186
  %v188 = vsel %vm74, %v67, 0.0
  %v189 = vadd.f32 %v187, %v188
  %v190 = vsel %vm74, %v68, 0.0
  %v191 = vadd.f32 %v189, %v190
  %v192 = vsel %vm74, %v69, 0.0
  %v193 = vadd.f32 %v191, %v192
  %v194 = vsel %vm74, %v70, 0.0
  %v195 = vadd.f32 %v193, %v194
  %v196 = vsel %vm74, %v71, 0.0
  %v197 = vadd.f32 %v195, %v196
  %v198 = vsel %vm74, %v72, 0.0
  %v199 = vadd.f32 %v197, %v198
  %v200 = vsel %vm74, %v73, 0.0
  %v201 = vadd.f32 %v199, %v200
  %v202 = vrot.slane %v201, 4
  %v203 = vadd.f32 %v201, %v202
  %v204 = vrot.slane %v203, 2
  %v205 = vadd.f32 %v203, %v204
  %v206 = vrot.slane %v205, 1
  %v207 = vadd.f32 %v205, %v206
  %vm208 = vcmask 24576
  %209 = vst.msk [vmem:[%s1] sm:$0x1] %vm208, %v207
  %v210 = vmul.f32 %v10, %v10
  %v211 = vmul.f32 %v11, %v11
  %v212 = vmul.f32 %v12, %v12
  %v213 = vmul.f32 %v13, %v13
  %v214 = vmul.f32 %v14, %v14
  %v215 = vmul.f32 %v15, %v15
  %v216 = vmul.f32 %v16, %v16
  %v217 = vmul.f32 %v17, %v17
  %v218 = vmul.f32 %v18, %v18
  %v219 = vmul.f32 %v19, %v19
  %v220 = vmul.f32 %v20, %v20
  %v221 = vmul.f32 %v21, %v21
  %v222 = vmul.f32 %v22, %v22
  %v223 = vmul.f32 %v23, %v23
  %v224 = vmul.f32 %v24, %v24
  %v225 = vmul.f32 %v25, %v25
  %v226 = vmul.f32 %v26, %v26
  %v227 = vmul.f32 %v27, %v27
  %v228 = vmul.f32 %v28, %v28
  %v229 = vmul.f32 %v29, %v29
  %v230 = vmul.f32 %v30, %v30
  %v231 = vmul.f32 %v31, %v31
  %v232 = vmul.f32 %v32, %v32
  %v233 = vmul.f32 %v33, %v33
  %v234 = vmul.f32 %v34, %v34
  %v235 = vmul.f32 %v35, %v35
  %v236 = vmul.f32 %v36, %v36
  %v237 = vmul.f32 %v37, %v37
  %v238 = vmul.f32 %v38, %v38
  %v239 = vmul.f32 %v39, %v39
  %v240 = vmul.f32 %v40, %v40
  %v241 = vmul.f32 %v41, %v41
  %v242 = vmul.f32 %v42, %v42
  %v243 = vmul.f32 %v43, %v43
  %v244 = vmul.f32 %v44, %v44
  %v245 = vmul.f32 %v45, %v45
  %v246 = vmul.f32 %v46, %v46
  %v247 = vmul.f32 %v47, %v47
  %v248 = vmul.f32 %v48, %v48
  %v249 = vmul.f32 %v49, %v49
  %v250 = vmul.f32 %v50, %v50
  %v251 = vmul.f32 %v51, %v51
  %v252 = vmul.f32 %v52, %v52
  %v253 = vmul.f32 %v53, %v53
  %v254 = vmul.f32 %v54, %v54
  %v255 = vmul.f32 %v55, %v55
  %v256 = vmul.f32 %v56, %v56
  %v257 = vmul.f32 %v57, %v57
  %v258 = vmul.f32 %v58, %v58
  %v259 = vmul.f32 %v59, %v59
  %v260 = vmul.f32 %v60, %v60
  %v261 = vmul.f32 %v61, %v61
  %v262 = vmul.f32 %v62, %v62
  %v263 = vmul.f32 %v63, %v63
  %v264 = vmul.f32 %v64, %v64
  %v265 = vmul.f32 %v65, %v65
  %v266 = vmul.f32 %v66, %v66
  %v267 = vmul.f32 %v67, %v67
  %v268 = vmul.f32 %v68, %v68
  %v269 = vmul.f32 %v69, %v69
  %v270 = vmul.f32 %v70, %v70
  %v271 = vmul.f32 %v71, %v71
  %v272 = vmul.f32 %v72, %v72
  %v273 = vmul.f32 %v73, %v73
  %v274 = vsel %vm74, %v210, 0.0
  %v275 = vsel %vm74, %v211, 0.0
  %v276 = vadd.f32 %v274, %v275
  %v277 = vsel %vm74, %v212, 0.0
  %v278 = vadd.f32 %v276, %v277
  %v279 = vsel %vm74, %v213, 0.0
  %v280 = vadd.f32 %v278, %v279
  %v281 = vsel %vm74, %v214, 0.0
  %v282 = vadd.f32 %v280, %v281
  %v283 = vsel %vm74, %v215, 0.0
  %v284 = vadd.f32 %v282, %v283
  %v285 = vsel %vm74, %v216, 0.0
  %v286 = vadd.f32 %v284, %v285
  %v287 = vsel %vm74, %v217, 0.0
  %v288 = vadd.f32 %v286, %v287
  %v289 = vsel %vm74, %v218, 0.0
  %v290 = vadd.f32 %v288, %v289
  %v291 = vsel %vm74, %v219, 0.0
  %v292 = vadd.f32 %v290, %v291
  %v293 = vsel %vm74, %v220, 0.0
  %v294 = vadd.f32 %v292, %v293
  %v295 = vsel %vm74, %v221, 0.0
  %v296 = vadd.f32 %v294, %v295
  %v297 = vsel %vm74, %v222, 0.0
  %v298 = vadd.f32 %v296, %v297
  %v299 = vsel %vm74, %v223, 0.0
  %v300 = vadd.f32 %v298, %v299
  %v301 = vsel %vm74, %v224, 0.0
  %v302 = vadd.f32 %v300, %v301
  %v303 = vsel %vm74, %v225, 0.0
  %v304 = vadd.f32 %v302, %v303
  %v305 = vsel %vm74, %v226, 0.0
  %v306 = vadd.f32 %v304, %v305
  %v307 = vsel %vm74, %v227, 0.0
  %v308 = vadd.f32 %v306, %v307
  %v309 = vsel %vm74, %v228, 0.0
  %v310 = vadd.f32 %v308, %v309
  %v311 = vsel %vm74, %v229, 0.0
  %v312 = vadd.f32 %v310, %v311
  %v313 = vsel %vm74, %v230, 0.0
  %v314 = vadd.f32 %v312, %v313
  %v315 = vsel %vm74, %v231, 0.0
  %v316 = vadd.f32 %v314, %v315
  %v317 = vsel %vm74, %v232, 0.0
  %v318 = vadd.f32 %v316, %v317
  %v319 = vsel %vm74, %v233, 0.0
  %v320 = vadd.f32 %v318, %v319
  %v321 = vsel %vm74, %v234, 0.0
  %v322 = vadd.f32 %v320, %v321
  %v323 = vsel %vm74, %v235, 0.0
  %v324 = vadd.f32 %v322, %v323
  %v325 = vsel %vm74, %v236, 0.0
  %v326 = vadd.f32 %v324, %v325
  %v327 = vsel %vm74, %v237, 0.0
  %v328 = vadd.f32 %v326, %v327
  %v329 = vsel %vm74, %v238, 0.0
  %v330 = vadd.f32 %v328, %v329
  %v331 = vsel %vm74, %v239, 0.0
  %v332 = vadd.f32 %v330, %v331
  %v333 = vsel %vm74, %v240, 0.0
  %v334 = vadd.f32 %v332, %v333
  %v335 = vsel %vm74, %v241, 0.0
  %v336 = vadd.f32 %v334, %v335
  %v337 = vsel %vm74, %v242, 0.0
  %v338 = vadd.f32 %v336, %v337
  %v339 = vsel %vm74, %v243, 0.0
  %v340 = vadd.f32 %v338, %v339
  %v341 = vsel %vm74, %v244, 0.0
  %v342 = vadd.f32 %v340, %v341
  %v343 = vsel %vm74, %v245, 0.0
  %v344 = vadd.f32 %v342, %v343
  %v345 = vsel %vm74, %v246, 0.0
  %v346 = vadd.f32 %v344, %v345
  %v347 = vsel %vm74, %v247, 0.0
  %v348 = vadd.f32 %v346, %v347
  %v349 = vsel %vm74, %v248, 0.0
  %v350 = vadd.f32 %v348, %v349
  %v351 = vsel %vm74, %v249, 0.0
  %v352 = vadd.f32 %v350, %v351
  %v353 = vsel %vm74, %v250, 0.0
  %v354 = vadd.f32 %v352, %v353
  %v355 = vsel %vm74, %v251, 0.0
  %v356 = vadd.f32 %v354, %v355
  %v357 = vsel %vm74, %v252, 0.0
  %v358 = vadd.f32 %v356, %v357
  %v359 = vsel %vm74, %v253, 0.0
  %v360 = vadd.f32 %v358, %v359
  %v361 = vsel %vm74, %v254, 0.0
  %v362 = vadd.f32 %v360, %v361
  %v363 = vsel %vm74, %v255, 0.0
  %v364 = vadd.f32 %v362, %v363
  %v365 = vsel %vm74, %v256, 0.0
  %v366 = vadd.f32 %v364, %v365
  %v367 = vsel %vm74, %v257, 0.0
  %v368 = vadd.f32 %v366, %v367
  %v369 = vsel %vm74, %v258, 0.0
  %v370 = vadd.f32 %v368, %v369
  %v371 = vsel %vm74, %v259, 0.0
  %v372 = vadd.f32 %v370, %v371
  %v373 = vsel %vm74, %v260, 0.0
  %v374 = vadd.f32 %v372, %v373
  %v375 = vsel %vm74, %v261, 0.0
  %v376 = vadd.f32 %v374, %v375
  %v377 = vsel %vm74, %v262, 0.0
  %v378 = vadd.f32 %v376, %v377
  %v379 = vsel %vm74, %v263, 0.0
  %v380 = vadd.f32 %v378, %v379
  %v381 = vsel %vm74, %v264, 0.0
  %v382 = vadd.f32 %v380, %v381
  %v383 = vsel %vm74, %v265, 0.0
  %v384 = vadd.f32 %v382, %v383
  %v385 = vsel %vm74, %v266, 0.0
  %v386 = vadd.f32 %v384, %v385
  %v387 = vsel %vm74, %v267, 0.0
  %v388 = vadd.f32 %v386, %v387
  %v389 = vsel %vm74, %v268, 0.0
  %v390 = vadd.f32 %v388, %v389
  %v391 = vsel %vm74, %v269, 0.0
  %v392 = vadd.f32 %v390, %v391
  %v393 = vsel %vm74, %v270, 0.0
  %v394 = vadd.f32 %v392, %v393
  %v395 = vsel %vm74, %v271, 0.0
  %v396 = vadd.f32 %v394, %v395
  %v397 = vsel %vm74, %v272, 0.0
  %v398 = vadd.f32 %v396, %v397
  %v399 = vsel %vm74, %v273, 0.0
  %v400 = vadd.f32 %v398, %v399
  %v401 = vrot.slane %v400, 4
  %v402 = vadd.f32 %v400, %v401
  %v403 = vrot.slane %v402, 2
  %v404 = vadd.f32 %v402, %v403
  %v405 = vrot.slane %v404, 1
  %v406 = vadd.f32 %v404, %v405
  %407 = vst.msk [vmem:[%s2] sm:$0x1] %vm208, %v406
  // Predicated region
  $region6: #{dense_block_forward.7} parent=0 // pred_check
    _
  $region7: #{dense_block_forward.7} parent=0 // pred_check_branch
    %409 = sbr.rel (0) target = $region9
  $region8: #{dense_block_forward.7} parent=0 // pred_region
    _
  $region9: #{dense_block_forward.7} parent=0 // pred_fallthru
    _
  // Predicated region
  $region10: #{dense_block_forward.7} parent=0 // pred_check
    _
  $region11: #{dense_block_forward.7} parent=0 // pred_check_branch
    %411 = sbr.rel (0) target = $region13
  $region12: #{dense_block_forward.7} parent=0 // pred_region
    _
  $region13: #{dense_block_forward.7} parent=0 // pred_fallthru
    _
  // Predicated region
  $region14: #{dense_block_forward.7} parent=0 // pred_check
    _
  $region15: #{dense_block_forward.7} parent=0 // pred_check_branch
    %413 = sbr.rel (0) target = $region17
  $region16: #{dense_block_forward.7} parent=0 // pred_region
    _
  $region17: #{dense_block_forward.7} parent=0 // pred_fallthru
    _
  // Predicated region
  $region18: #{dense_block_forward.7} parent=0 // pred_check
    _
  $region19: #{dense_block_forward.7} parent=0 // pred_check_branch
    %415 = sbr.rel (0) target = $region21
  $region20: #{dense_block_forward.7} parent=0 // pred_region
    _
  $region21: #{dense_block_forward.7} parent=0 // pred_fallthru
    _

// kernel: dense_block_forward.8
$region0: #{dense_block_forward.8}
  #allocation0 [shape = 'u32[]', space=smem, size = 0x4, offset = 0x4, fixed_abs, tag = 'smem constant byte address 0x4 - core index']
  #allocation1 [shape = 'u32[72,128]{1,0:T(1,128)}', space=vmem, size = 0x9000, scoped, tag = 'internal scratch']
  %s0 = inlined_call_operand.vmem [shape: f32[512,4], index: 0, kind: input, shape index: {}]
  %s1 = inlined_call_operand.vmem [shape: f32[1,4], index: 1, kind: input, shape index: {}]
  %s2 = inlined_call_operand.vmem [shape: f32[1,4], index: 2, kind: input, shape index: {}]
  %s3 = inlined_call_operand.vmem [shape: bf16[4,16], index: 3, kind: input, shape index: {}]
  %s4 = inlined_call_operand.vmem [shape: f32[512,16], index: 4, kind: output, shape index: {0}]
  %s5 = inlined_call_operand.vmem [shape: f32[1,1,16], index: 5, kind: output, shape index: {1}]
  %s6 = inlined_call_operand.vmem [shape: f32[1,1,16], index: 6, kind: output, shape index: {2}]
  %7 = xla_tuple %s4, %s5, %s6
  %s8 = sld [smem:[#allocation0]]
  $region42: #{dense_block_forward.8} parent=0
    _
  %s10 = ssub.s32 1, %s8
  %s11 = scalar_select 0, %s10, %s8
  // Predicated region
  $region2: #{dense_block_forward.8} parent=0 // pred_check
    _
  $region3: #{dense_block_forward.8} parent=0 // pred_check_branch
    %13 = sbr.rel (0) target = $region5
  $region4: #{dense_block_forward.8} parent=0 // pred_region
    _
  $region5: #{dense_block_forward.8} parent=0 // pred_fallthru
    _
  // Predicated region
  $region6: #{dense_block_forward.8} parent=0 // pred_check
    _
  $region7: #{dense_block_forward.8} parent=0 // pred_check_branch
    %15 = sbr.rel (0) target = $region9
  $region8: #{dense_block_forward.8} parent=0 // pred_region
    _
  $region9: #{dense_block_forward.8} parent=0 // pred_fallthru
    _
  // Predicated region
  $region10: #{dense_block_forward.8} parent=0 // pred_check
    _
  $region11: #{dense_block_forward.8} parent=0 // pred_check_branch
    %17 = sbr.rel (0) target = $region13
  $region12: #{dense_block_forward.8} parent=0 // pred_region
    _
  $region13: #{dense_block_forward.8} parent=0 // pred_fallthru
    _
  // Predicated region
  $region14: #{dense_block_forward.8} parent=0 // pred_check
    _
  $region15: #{dense_block_forward.8} parent=0 // pred_check_branch
    %19 = sbr.rel (0) target = $region17
  $region16: #{dense_block_forward.8} parent=0 // pred_region
    _
  $region17: #{dense_block_forward.8} parent=0 // pred_fallthru
    _
  %v21 = vld [vmem:[%s0] sm:$0xff]
  %v22 = vld [vmem:[%s0 + $0x8] sm:$0xff]
  %v23 = vld [vmem:[%s0 + $0x10] sm:$0xff]
  %v24 = vld [vmem:[%s0 + $0x18] sm:$0xff]
  %v25 = vld [vmem:[%s0 + $0x20] sm:$0xff]
  %v26 = vld [vmem:[%s0 + $0x28] sm:$0xff]
  %v27 = vld [vmem:[%s0 + $0x30] sm:$0xff]
  %v28 = vld [vmem:[%s0 + $0x38] sm:$0xff]
  %v29 = vld [vmem:[%s0 + $0x40] sm:$0xff]
  %v30 = vld [vmem:[%s0 + $0x48] sm:$0xff]
  %v31 = vld [vmem:[%s0 + $0x50] sm:$0xff]
  %v32 = vld [vmem:[%s0 + $0x58] sm:$0xff]
  %v33 = vld [vmem:[%s0 + $0x60] sm:$0xff]
  %v34 = vld [vmem:[%s0 + $0x68] sm:$0xff]
  %v35 = vld [vmem:[%s0 + $0x70] sm:$0xff]
  %v36 = vld [vmem:[%s0 + $0x78] sm:$0xff]
  %v37 = vld [vmem:[%s0 + $0x80] sm:$0xff]
  %v38 = vld [vmem:[%s0 + $0x88] sm:$0xff]
  %v39 = vld [vmem:[%s0 + $0x90] sm:$0xff]
  %v40 = vld [vmem:[%s0 + $0x98] sm:$0xff]
  %v41 = vld [vmem:[%s0 + $0xa0] sm:$0xff]
  %v42 = vld [vmem:[%s0 + $0xa8] sm:$0xff]
  %v43 = vld [vmem:[%s0 + $0xb0] sm:$0xff]
  %v44 = vld [vmem:[%s0 + $0xb8] sm:$0xff]
  %v45 = vld [vmem:[%s0 + $0xc0] sm:$0xff]
  %v46 = vld [vmem:[%s0 + $0xc8] sm:$0xff]
  %v47 = vld [vmem:[%s0 + $0xd0] sm:$0xff]
  %v48 = vld [vmem:[%s0 + $0xd8] sm:$0xff]
  %v49 = vld [vmem:[%s0 + $0xe0] sm:$0xff]
  %v50 = vld [vmem:[%s0 + $0xe8] sm:$0xff]
  %v51 = vld [vmem:[%s0 + $0xf0] sm:$0xff]
  %v52 = vld [vmem:[%s0 + $0xf8] sm:$0xff]
  %v53 = vld [vmem:[%s0 + $0x100] sm:$0xff]
  %v54 = vld [vmem:[%s0 + $0x108] sm:$0xff]
  %v55 = vld [vmem:[%s0 + $0x110] sm:$0xff]
  %v56 = vld [vmem:[%s0 + $0x118] sm:$0xff]
  %v57 = vld [vmem:[%s0 + $0x120] sm:$0xff]
  %v58 = vld [vmem:[%s0 + $0x128] sm:$0xff]
  %v59 = vld [vmem:[%s0 + $0x130] sm:$0xff]
  %v60 = vld [vmem:[%s0 + $0x138] sm:$0xff]
  %v61 = vld [vmem:[%s0 + $0x140] sm:$0xff]
  %v62 = vld [vmem:[%s0 + $0x148] sm:$0xff]
  %v63 = vld [vmem:[%s0 + $0x150] sm:$0xff]
  %v64 = vld [vmem:[%s0 + $0x158] sm:$0xff]
  %v65 = vld [vmem:[%s0 + $0x160] sm:$0xff]
  %v66 = vld [vmem:[%s0 + $0x168] sm:$0xff]
  %v67 = vld [vmem:[%s0 + $0x170] sm:$0xff]
  %v68 = vld [vmem:[%s0 + $0x178] sm:$0xff]
  %v69 = vld [vmem:[%s0 + $0x180] sm:$0xff]
  %v70 = vld [vmem:[%s0 + $0x188] sm:$0xff]
  %v71 = vld [vmem:[%s0 + $0x190] sm:$0xff]
  %v72 = vld [vmem:[%s0 + $0x198] sm:$0xff]
  %v73 = vld [vmem:[%s0 + $0x1a0] sm:$0xff]
  %v74 = vld [vmem:[%s0 + $0x1a8] sm:$0xff]
  %v75 = vld [vmem:[%s0 + $0x1b0] sm:$0xff]
  %v76 = vld [vmem:[%s0 + $0x1b8] sm:$0xff]
  %v77 = vld [vmem:[%s0 + $0x1c0] sm:$0xff]
  %v78 = vld [vmem:[%s0 + $0x1c8] sm:$0xff]
  %v79 = vld [vmem:[%s0 + $0x1d0] sm:$0xff]
  %v80 = vld [vmem:[%s0 + $0x1d8] sm:$0xff]
  %v81 = vld [vmem:[%s0 + $0x1e0] sm:$0xff]
  %v82 = vld [vmem:[%s0 + $0x1e8] sm:$0xff]
  %v83 = vld [vmem:[%s0 + $0x1f0] sm:$0xff]
  %v84 = vld [vmem:[%s0 + $0x1f8] sm:$0xff]
  %v85 = vld [vmem:[%s1] sm:$0x1]
  %v87 = vperm.slane %v85, 0
  %v89 = vmul.f32 %v21, %v87
  %v90 = vmul.f32 %v22, %v87
  %v91 = vmul.f32 %v23, %v87
  %v92 = vmul.f32 %v24, %v87
  %v93 = vmul.f32 %v25, %v87
  %v94 = vmul.f32 %v26, %v87
  %v95 = vmul.f32 %v27, %v87
  %v96 = vmul.f32 %v28, %v87
  %v97 = vmul.f32 %v29, %v87
  %v98 = vmul.f32 %v30, %v87
  %v99 = vmul.f32 %v31, %v87
  %v100 = vmul.f32 %v32, %v87
  %v101 = vmul.f32 %v33, %v87
  %v102 = vmul.f32 %v34, %v87
  %v103 = vmul.f32 %v35, %v87
  %v104 = vmul.f32 %v36, %v87
  %v105 = vmul.f32 %v37, %v87
  %v106 = vmul.f32 %v38, %v87
  %v107 = vmul.f32 %v39, %v87
  %v108 = vmul.f32 %v40, %v87
  %v109 = vmul.f32 %v41, %v87
  %v110 = vmul.f32 %v42, %v87
  %v111 = vmul.f32 %v43, %v87
  %v112 = vmul.f32 %v44, %v87
  %v113 = vmul.f32 %v45, %v87
  %v114 = vmul.f32 %v46, %v87
  %v115 = vmul.f32 %v47, %v87
  %v116 = vmul.f32 %v48, %v87
  %v117 = vmul.f32 %v49, %v87
  %v118 = vmul.f32 %v50, %v87
  %v119 = vmul.f32 %v51, %v87
  %v120 = vmul.f32 %v52, %v87
  %v121 = vmul.f32 %v53, %v87
  %v122 = vmul.f32 %v54, %v87
  %v123 = vmul.f32 %v55, %v87
  %v124 = vmul.f32 %v56, %v87
  %v125 = vmul.f32 %v57, %v87
  %v126 = vmul.f32 %v58, %v87
  %v127 = vmul.f32 %v59, %v87
  %v128 = vmul.f32 %v60, %v87
  %v129 = vmul.f32 %v61, %v87
  %v130 = vmul.f32 %v62, %v87
  %v131 = vmul.f32 %v63, %v87
  %v132 = vmul.f32 %v64, %v87
  %v133 = vmul.f32 %v65, %v87
  %v134 = vmul.f32 %v66, %v87
  %v135 = vmul.f32 %v67, %v87
  %v136 = vmul.f32 %v68, %v87
  %v137 = vmul.f32 %v69, %v87
  %v138 = vmul.f32 %v70, %v87
  %v139 = vmul.f32 %v71, %v87
  %v140 = vmul.f32 %v72, %v87
  %v141 = vmul.f32 %v73, %v87
  %v142 = vmul.f32 %v74, %v87
  %v143 = vmul.f32 %v75, %v87
  %v144 = vmul.f32 %v76, %v87
  %v145 = vmul.f32 %v77, %v87
  %v146 = vmul.f32 %v78, %v87
  %v147 = vmul.f32 %v79, %v87
  %v148 = vmul.f32 %v80, %v87
  %v149 = vmul.f32 %v81, %v87
  %v150 = vmul.f32 %v82, %v87
  %v151 = vmul.f32 %v83, %v87
  %v152 = vmul.f32 %v84, %v87
  %v153 = vld [vmem:[%s2] sm:$0x1]
  %v155 = vperm.slane %v153, 0
  %v157 = vadd.f32 %v89, %v155
  %v158 = vadd.f32 %v90, %v155
  %v159 = vadd.f32 %v91, %v155
  %v160 = vadd.f32 %v92, %v155
  %v161 = vadd.f32 %v93, %v155
  %v162 = vadd.f32 %v94, %v155
  %v163 = vadd.f32 %v95, %v155
  %v164 = vadd.f32 %v96, %v155
  %v165 = vadd.f32 %v97, %v155
  %v166 = vadd.f32 %v98, %v155
  %v167 = vadd.f32 %v99, %v155
  %v168 = vadd.f32 %v100, %v155
  %v169 = vadd.f32 %v101, %v155
  %v170 = vadd.f32 %v102, %v155
  %v171 = vadd.f32 %v103, %v155
  %v172 = vadd.f32 %v104, %v155
  %v173 = vadd.f32 %v105, %v155
  %v174 = vadd.f32 %v106, %v155
  %v175 = vadd.f32 %v107, %v155
  %v176 = vadd.f32 %v108, %v155
  %v177 = vadd.f32 %v109, %v155
  %v178 = vadd.f32 %v110, %v155
  %v179 = vadd.f32 %v111, %v155
  %v180 = vadd.f32 %v112, %v155
  %v181 = vadd.f32 %v113, %v155
  %v182 = vadd.f32 %v114, %v155
  %v183 = vadd.f32 %v115, %v155
  %v184 = vadd.f32 %v116, %v155
  %v185 = vadd.f32 %v117, %v155
  %v186 = vadd.f32 %v118, %v155
  %v187 = vadd.f32 %v119, %v155
  %v188 = vadd.f32 %v120, %v155
  %v189 = vadd.f32 %v121, %v155
  %v190 = vadd.f32 %v122, %v155
  %v191 = vadd.f32 %v123, %v155
  %v192 = vadd.f32 %v124, %v155
  %v193 = vadd.f32 %v125, %v155
  %v194 = vadd.f32 %v126, %v155
  %v195 = vadd.f32 %v127, %v155
  %v196 = vadd.f32 %v128, %v155
  %v197 = vadd.f32 %v129, %v155
  %v198 = vadd.f32 %v130, %v155
  %v199 = vadd.f32 %v131, %v155
  %v200 = vadd.f32 %v132, %v155
  %v201 = vadd.f32 %v133, %v155
  %v202 = vadd.f32 %v134, %v155
  %v203 = vadd.f32 %v135, %v155
  %v204 = vadd.f32 %v136, %v155
  %v205 = vadd.f32 %v137, %v155
  %v206 = vadd.f32 %v138, %v155
  %v207 = vadd.f32 %v139, %v155
  %v208 = vadd.f32 %v140, %v155
  %v209 = vadd.f32 %v141, %v155
  %v210 = vadd.f32 %v142, %v155
  %v211 = vadd.f32 %v143, %v155
  %v212 = vadd.f32 %v144, %v155
  %v213 = vadd.f32 %v145, %v155
  %v214 = vadd.f32 %v146, %v155
  %v215 = vadd.f32 %v147, %v155
  %v216 = vadd.f32 %v148, %v155
  %v217 = vadd.f32 %v149, %v155
  %v218 = vadd.f32 %v150, %v155
  %v219 = vadd.f32 %v151, %v155
  %v220 = vadd.f32 %v152, %v155
  %v221 = vmax.f32 %v157, 0.0
  %v222 = vmax.f32 %v158, 0.0
  %v223 = vmax.f32 %v159, 0.0
  %v224 = vmax.f32 %v160, 0.0
  %v225 = vmax.f32 %v161, 0.0
  %v226 = vmax.f32 %v162, 0.0
  %v227 = vmax.f32 %v163, 0.0
  %v228 = vmax.f32 %v164, 0.0
  %v229 = vmax.f32 %v165, 0.0
  %v230 = vmax.f32 %v166, 0.0
  %v231 = vmax.f32 %v167, 0.0
  %v232 = vmax.f32 %v168, 0.0
  %v233 = vmax.f32 %v169, 0.0
  %v234 = vmax.f32 %v170, 0.0
  %v235 = vmax.f32 %v171, 0.0
  %v236 = vmax.f32 %v172, 0.0
  %v237 = vmax.f32 %v173, 0.0
  %v238 = vmax.f32 %v174, 0.0
  %v239 = vmax.f32 %v175, 0.0
  %v240 = vmax.f32 %v176, 0.0
  %v241 = vmax.f32 %v177, 0.0
  %v242 = vmax.f32 %v178, 0.0
  %v243 = vmax.f32 %v179, 0.0
  %v244 = vmax.f32 %v180, 0.0
  %v245 = vmax.f32 %v181, 0.0
  %v246 = vmax.f32 %v182, 0.0
  %v247 = vmax.f32 %v183, 0.0
  %v248 = vmax.f32 %v184, 0.0
  %v249 = vmax.f32 %v185, 0.0
  %v250 = vmax.f32 %v186, 0.0
  %v251 = vmax.f32 %v187, 0.0
  %v252 = vmax.f32 %v188, 0.0
  %v253 = vmax.f32 %v189, 0.0
  %v254 = vmax.f32 %v190, 0.0
  %v255 = vmax.f32 %v191, 0.0
  %v256 = vmax.f32 %v192, 0.0
  %v257 = vmax.f32 %v193, 0.0
  %v258 = vmax.f32 %v194, 0.0
  %v259 = vmax.f32 %v195, 0.0
  %v260 = vmax.f32 %v196, 0.0
  %v261 = vmax.f32 %v197, 0.0
  %v262 = vmax.f32 %v198, 0.0
  %v263 = vmax.f32 %v199, 0.0
  %v264 = vmax.f32 %v200, 0.0
  %v265 = vmax.f32 %v201, 0.0
  %v266 = vmax.f32 %v202, 0.0
  %v267 = vmax.f32 %v203, 0.0
  %v268 = vmax.f32 %v204, 0.0
  %v269 = vmax.f32 %v205, 0.0
  %v270 = vmax.f32 %v206, 0.0
  %v271 = vmax.f32 %v207, 0.0
  %v272 = vmax.f32 %v208, 0.0
  %v273 = vmax.f32 %v209, 0.0
  %v274 = vmax.f32 %v210, 0.0
  %v275 = vmax.f32 %v211, 0.0
  %v276 = vmax.f32 %v212, 0.0
  %v277 = vmax.f32 %v213, 0.0
  %v278 = vmax.f32 %v214, 0.0
  %v279 = vmax.f32 %v215, 0.0
  %v280 = vmax.f32 %v216, 0.0
  %v281 = vmax.f32 %v217, 0.0
  %v282 = vmax.f32 %v218, 0.0
  %v283 = vmax.f32 %v219, 0.0
  %v284 = vmax.f32 %v220, 0.0
  %v285 = vpack.c.bf16 %v222, %v221
  %v286 = vpack.c.bf16 %v224, %v223
  %v287 = vpack.c.bf16 %v226, %v225
  %v288 = vpack.c.bf16 %v228, %v227
  %v289 = vpack.c.bf16 %v230, %v229
  %v290 = vpack.c.bf16 %v232, %v231
  %v291 = vpack.c.bf16 %v234, %v233
  %v292 = vpack.c.bf16 %v236, %v235
  %v293 = vpack.c.bf16 %v238, %v237
  %v294 = vpack.c.bf16 %v240, %v239
  %v295 = vpack.c.bf16 %v242, %v241
  %v296 = vpack.c.bf16 %v244, %v243
  %v297 = vpack.c.bf16 %v246, %v245
  %v298 = vpack.c.bf16 %v248, %v247
  %v299 = vpack.c.bf16 %v250, %v249
  %v300 = vpack.c.bf16 %v252, %v251
  %v301 = vpack.c.bf16 %v254, %v253
  %v302 = vpack.c.bf16 %v256, %v255
  %v303 = vpack.c.bf16 %v258, %v257
  %v304 = vpack.c.bf16 %v260, %v259
  %v305 = vpack.c.bf16 %v262, %v261
  %v306 = vpack.c.bf16 %v264, %v263
  %v307 = vpack.c.bf16 %v266, %v265
  %v308 = vpack.c.bf16 %v268, %v267
  %v309 = vpack.c.bf16 %v270, %v269
  %v310 = vpack.c.bf16 %v272, %v271
  %v311 = vpack.c.bf16 %v274, %v273
  %v312 = vpack.c.bf16 %v276, %v275
  %v313 = vpack.c.bf16 %v278, %v277
  %v314 = vpack.c.bf16 %v280, %v279
  %v315 = vpack.c.bf16 %v282, %v281
  %v316 = vpack.c.bf16 %v284, %v283
  %v317 = vld [vmem:[%s3] sm:$0x3]
  %vm318 = vcmask 31744
  %v320 = vsel %vm318, %v285, 0
  %v323 = vsel %vm318, %v286, 0
  %v326 = vsel %vm318, %v287, 0
  %v329 = vsel %vm318, %v288, 0
  %v332 = vsel %vm318, %v289, 0
  %v335 = vsel %vm318, %v290, 0
  %v338 = vsel %vm318, %v291, 0
  %v341 = vsel %vm318, %v292, 0
  %v344 = vsel %vm318, %v293, 0
  %v347 = vsel %vm318, %v294, 0
  %v350 = vsel %vm318, %v295, 0
  %v353 = vsel %vm318, %v296, 0
  %v356 = vsel %vm318, %v297, 0
  %v359 = vsel %vm318, %v298, 0
  %v362 = vsel %vm318, %v299, 0
  %v365 = vsel %vm318, %v300, 0
  %v368 = vsel %vm318, %v301, 0
  %v371 = vsel %vm318, %v302, 0
  %v374 = vsel %vm318, %v303, 0
  %v377 = vsel %vm318, %v304, 0
  %v380 = vsel %vm318, %v305, 0
  %v383 = vsel %vm318, %v306, 0
  %v386 = vsel %vm318, %v307, 0
  %v389 = vsel %vm318, %v308, 0
  %v392 = vsel %vm318, %v309, 0
  %v395 = vsel %vm318, %v310, 0
  %v398 = vsel %vm318, %v311, 0
  %v401 = vsel %vm318, %v312, 0
  %v404 = vsel %vm318, %v313, 0
  %v407 = vsel %vm318, %v314, 0
  %v410 = vsel %vm318, %v315, 0
  %v413 = vsel %vm318, %v316, 0
  %vm415 = vcmask 1041408
  %v417 = vsel %vm415, %v317, 0
  %419 = vmatpush.bf16.msra.mxu0 0
  %420 = vmatpush.bf16.msra.mxu0 0
  %421 = vmatpush.bf16.msra.mxu0 0
  %422 = vmatpush.bf16.msra.mxu0 0
  %423 = vmatpush.bf16.msra.mxu0 0
  %424 = vmatpush.bf16.msra.mxu0 0
  %425 = vmatpush.bf16.msra.mxu0 0
  %426 = vmatpush.bf16.msra.mxu0 %v417
  %427 = vmatmul.bf16.gmra.mxu0 %v320
  %v428 = vpop.f32.mrf.mxu0
  %v429 = vadd.f32 0.0, %v428
  %v430 = vpop.f32.mrf.mxu0
  %v431 = vadd.f32 0.0, %v430
  %432 = vmatmul.bf16.gmra.mxu0 %v323
  %v433 = vpop.f32.mrf.mxu0
  %v434 = vadd.f32 0.0, %v433
  %v435 = vpop.f32.mrf.mxu0
  %v436 = vadd.f32 0.0, %v435
  %437 = vmatmul.bf16.gmra.mxu0 %v326
  %v438 = vpop.f32.mrf.mxu0
  %v439 = vadd.f32 0.0, %v438
  %v440 = vpop.f32.mrf.mxu0
  %v441 = vadd.f32 0.0, %v440
  %442 = vmatmul.bf16.gmra.mxu0 %v329
  %v443 = vpop.f32.mrf.mxu0
  %v444 = vadd.f32 0.0, %v443
  %v445 = vpop.f32.mrf.mxu0
  %v446 = vadd.f32 0.0, %v445
  %447 = vmatmul.bf16.gmra.mxu0 %v332
  %v448 = vpop.f32.mrf.mxu0
  %v449 = vadd.f32 0.0, %v448
  %v450 = vpop.f32.mrf.mxu0
  %v451 = vadd.f32 0.0, %v450
  %452 = vmatmul.bf16.gmra.mxu0 %v335
  %v453 = vpop.f32.mrf.mxu0
  %v454 = vadd.f32 0.0, %v453
  %v455 = vpop.f32.mrf.mxu0
  %v456 = vadd.f32 0.0, %v455
  %457 = vmatmul.bf16.gmra.mxu0 %v338
  %v458 = vpop.f32.mrf.mxu0
  %v459 = vadd.f32 0.0, %v458
  %v460 = vpop.f32.mrf.mxu0
  %v461 = vadd.f32 0.0, %v460
  %462 = vmatmul.bf16.gmra.mxu0 %v341
  %v463 = vpop.f32.mrf.mxu0
  %v464 = vadd.f32 0.0, %v463
  %v465 = vpop.f32.mrf.mxu0
  %v466 = vadd.f32 0.0, %v465
  %467 = vmatmul.bf16.gmra.mxu0 %v344
  %v468 = vpop.f32.mrf.mxu0
  %v469 = vadd.f32 0.0, %v468
  %v470 = vpop.f32.mrf.mxu0
  %v471 = vadd.f32 0.0, %v470
  %472 = vmatmul.bf16.gmra.mxu0 %v347
  %v473 = vpop.f32.mrf.mxu0
  %v474 = vadd.f32 0.0, %v473
  %v475 = vpop.f32.mrf.mxu0
  %v476 = vadd.f32 0.0, %v475
  %477 = vmatmul.bf16.gmra.mxu0 %v350
  %v478 = vpop.f32.mrf.mxu0
  %v479 = vadd.f32 0.0, %v478
  %v480 = vpop.f32.mrf.mxu0
  %v481 = vadd.f32 0.0, %v480
  %482 = vmatmul.bf16.gmra.mxu0 %v353
  %v483 = vpop.f32.mrf.mxu0
  %v484 = vadd.f32 0.0, %v483
  %v485 = vpop.f32.mrf.mxu0
  %v486 = vadd.f32 0.0, %v485
  %487 = vmatmul.bf16.gmra.mxu0 %v356
  %v488 = vpop.f32.mrf.mxu0
  %v489 = vadd.f32 0.0, %v488
  %v490 = vpop.f32.mrf.mxu0
  %v491 = vadd.f32 0.0, %v490
  %492 = vmatmul.bf16.gmra.mxu0 %v359
  %v493 = vpop.f32.mrf.mxu0
  %v494 = vadd.f32 0.0, %v493
  %v495 = vpop.f32.mrf.mxu0
  %v496 = vadd.f32 0.0, %v495
  %497 = vmatmul.bf16.gmra.mxu0 %v362
  %v498 = vpop.f32.mrf.mxu0
  %v499 = vadd.f32 0.0, %v498
  %v500 = vpop.f32.mrf.mxu0
  %v501 = vadd.f32 0.0, %v500
  %502 = vmatmul.bf16.gmra.mxu0 %v365
  %v503 = vpop.f32.mrf.mxu0
  %v504 = vadd.f32 0.0, %v503
  %v505 = vpop.f32.mrf.mxu0
  %v506 = vadd.f32 0.0, %v505
  %507 = vmatmul.bf16.gmra.mxu0 %v368
  %v508 = vpop.f32.mrf.mxu0
  %v509 = vadd.f32 0.0, %v508
  %v510 = vpop.f32.mrf.mxu0
  %v511 = vadd.f32 0.0, %v510
  %512 = vmatmul.bf16.gmra.mxu0 %v371
  %v513 = vpop.f32.mrf.mxu0
  %v514 = vadd.f32 0.0, %v513
  %v515 = vpop.f32.mrf.mxu0
  %v516 = vadd.f32 0.0, %v515
  %517 = vmatmul.bf16.gmra.mxu0 %v374
  %v518 = vpop.f32.mrf.mxu0
  %v519 = vadd.f32 0.0, %v518
  %v520 = vpop.f32.mrf.mxu0
  %v521 = vadd.f32 0.0, %v520
  %522 = vmatmul.bf16.gmra.mxu0 %v377
  %v523 = vpop.f32.mrf.mxu0
  %v524 = vadd.f32 0.0, %v523
  %v525 = vpop.f32.mrf.mxu0
  %v526 = vadd.f32 0.0, %v525
  %527 = vmatmul.bf16.gmra.mxu0 %v380
  %v528 = vpop.f32.mrf.mxu0
  %v529 = vadd.f32 0.0, %v528
  %v530 = vpop.f32.mrf.mxu0
  %v531 = vadd.f32 0.0, %v530
  %532 = vmatmul.bf16.gmra.mxu0 %v383
  %v533 = vpop.f32.mrf.mxu0
  %v534 = vadd.f32 0.0, %v533
  %v535 = vpop.f32.mrf.mxu0
  %v536 = vadd.f32 0.0, %v535
  %537 = vmatmul.bf16.gmra.mxu0 %v386
  %v538 = vpop.f32.mrf.mxu0
  %v539 = vadd.f32 0.0, %v538
  %v540 = vpop.f32.mrf.mxu0
  %v541 = vadd.f32 0.0, %v540
  %542 = vmatmul.bf16.gmra.mxu0 %v389
  %v543 = vpop.f32.mrf.mxu0
  %v544 = vadd.f32 0.0, %v543
  %v545 = vpop.f32.mrf.mxu0
  %v546 = vadd.f32 0.0, %v545
  %547 = vmatmul.bf16.gmra.mxu0 %v392
  %v548 = vpop.f32.mrf.mxu0
  %v549 = vadd.f32 0.0, %v548
  %v550 = vpop.f32.mrf.mxu0
  %v551 = vadd.f32 0.0, %v550
  %552 = vmatmul.bf16.gmra.mxu0 %v395
  %v553 = vpop.f32.mrf.mxu0
  %v554 = vadd.f32 0.0, %v553
  %v555 = vpop.f32.mrf.mxu0
  %v556 = vadd.f32 0.0, %v555
  %557 = vmatmul.bf16.gmra.mxu0 %v398
  %v558 = vpop.f32.mrf.mxu0
  %v559 = vadd.f32 0.0, %v558
  %v560 = vpop.f32.mrf.mxu0
  %v561 = vadd.f32 0.0, %v560
  %562 = vmatmul.bf16.gmra.mxu0 %v401
  %v563 = vpop.f32.mrf.mxu0
  %v564 = vadd.f32 0.0, %v563
  %v565 = vpop.f32.mrf.mxu0
  %v566 = vadd.f32 0.0, %v565
  %567 = vmatmul.bf16.gmra.mxu0 %v404
  %v568 = vpop.f32.mrf.mxu0
  %v569 = vadd.f32 0.0, %v568
  %v570 = vpop.f32.mrf.mxu0
  %v571 = vadd.f32 0.0, %v570
  %572 = vmatmul.bf16.gmra.mxu0 %v407
  %v573 = vpop.f32.mrf.mxu0
  %v574 = vadd.f32 0.0, %v573
  %v575 = vpop.f32.mrf.mxu0
  %v576 = vadd.f32 0.0, %v575
  %577 = vmatmul.bf16.gmra.mxu0 %v410
  %v578 = vpop.f32.mrf.mxu0
  %v579 = vadd.f32 0.0, %v578
  %v580 = vpop.f32.mrf.mxu0
  %v581 = vadd.f32 0.0, %v580
  %582 = vmatmul.bf16.gmra.mxu0 %v413
  %v583 = vpop.f32.mrf.mxu0
  %v584 = vadd.f32 0.0, %v583
  %v585 = vpop.f32.mrf.mxu0
  %v586 = vadd.f32 0.0, %v585
  %587 = vdwg.mxu0
  %vm588 = vcmask 130048
  %589 = vst.msk [vmem:[%s4] sm:$0xff] %vm588, %v429
  %590 = vst.msk [vmem:[%s4 + $0x8] sm:$0xff] %vm588, %v431
  %591 = vst.msk [vmem:[%s4 + $0x10] sm:$0xff] %vm588, %v434
  %592 = vst.msk [vmem:[%s4 + $0x18] sm:$0xff] %vm588, %v436
  %593 = vst.msk [vmem:[%s4 + $0x20] sm:$0xff] %vm588, %v439
  %594 = vst.msk [vmem:[%s4 + $0x28] sm:$0xff] %vm588, %v441
  %595 = vst.msk [vmem:[%s4 + $0x30] sm:$0xff] %vm588, %v444
  %596 = vst.msk [vmem:[%s4 + $0x38] sm:$0xff] %vm588, %v446
  %597 = vst.msk [vmem:[%s4 + $0x40] sm:$0xff] %vm588, %v449
  %598 = vst.msk [vmem:[%s4 + $0x48] sm:$0xff] %vm588, %v451
  %599 = vst.msk [vmem:[%s4 + $0x50] sm:$0xff] %vm588, %v454
  %600 = vst.msk [vmem:[%s4 + $0x58] sm:$0xff] %vm588, %v456
  %601 = vst.msk [vmem:[%s4 + $0x60] sm:$0xff] %vm588, %v459
  %602 = vst.msk [vmem:[%s4 + $0x68] sm:$0xff] %vm588, %v461
  %603 = vst.msk [vmem:[%s4 + $0x70] sm:$0xff] %vm588, %v464
  %604 = vst.msk [vmem:[%s4 + $0x78] sm:$0xff] %vm588, %v466
  %605 = vst.msk [vmem:[%s4 + $0x80] sm:$0xff] %vm588, %v469
  %606 = vst.msk [vmem:[%s4 + $0x88] sm:$0xff] %vm588, %v471
  %607 = vst.msk [vmem:[%s4 + $0x90] sm:$0xff] %vm588, %v474
  %608 = vst.msk [vmem:[%s4 + $0x98] sm:$0xff] %vm588, %v476
  %609 = vst.msk [vmem:[%s4 + $0xa0] sm:$0xff] %vm588, %v479
  %610 = vst.msk [vmem:[%s4 + $0xa8] sm:$0xff] %vm588, %v481
  %611 = vst.msk [vmem:[%s4 + $0xb0] sm:$0xff] %vm588, %v484
  %612 = vst.msk [vmem:[%s4 + $0xb8] sm:$0xff] %vm588, %v486
  %613 = vst.msk [vmem:[%s4 + $0xc0] sm:$0xff] %vm588, %v489
  %614 = vst.msk [vmem:[%s4 + $0xc8] sm:$0xff] %vm588, %v491
  %615 = vst.msk [vmem:[%s4 + $0xd0] sm:$0xff] %vm588, %v494
  %616 = vst.msk [vmem:[%s4 + $0xd8] sm:$0xff] %vm588, %v496
  %617 = vst.msk [vmem:[%s4 + $0xe0] sm:$0xff] %vm588, %v499
  %618 = vst.msk [vmem:[%s4 + $0xe8] sm:$0xff] %vm588, %v501
  %619 = vst.msk [vmem:[%s4 + $0xf0] sm:$0xff] %vm588, %v504
  %620 = vst.msk [vmem:[%s4 + $0xf8] sm:$0xff] %vm588, %v506
  %621 = vst.msk [vmem:[%s4 + $0x100] sm:$0xff] %vm588, %v509
  %622 = vst.msk [vmem:[%s4 + $0x108] sm:$0xff] %vm588, %v511
  %623 = vst.msk [vmem:[%s4 + $0x110] sm:$0xff] %vm588, %v514
  %624 = vst.msk [vmem:[%s4 + $0x118] sm:$0xff] %vm588, %v516
  %625 = vst.msk [vmem:[%s4 + $0x120] sm:$0xff] %vm588, %v519
  %626 = vst.msk [vmem:[%s4 + $0x128] sm:$0xff] %vm588, %v521
  %627 = vst.msk [vmem:[%s4 + $0x130] sm:$0xff] %vm588, %v524
  %628 = vst.msk [vmem:[%s4 + $0x138] sm:$0xff] %vm588, %v526
  %629 = vst.msk [vmem:[%s4 + $0x140] sm:$0xff] %vm588, %v529
  %630 = vst.msk [vmem:[%s4 + $0x148] sm:$0xff] %vm588, %v531
  %631 = vst.msk [vmem:[%s4 + $0x150] sm:$0xff] %vm588, %v534
  %632 = vst.msk [vmem:[%s4 + $0x158] sm:$0xff] %vm588, %v536
  %633 = vst.msk [vmem:[%s4 + $0x160] sm:$0xff] %vm588, %v539
  %634 = vst.msk [vmem:[%s4 + $0x168] sm:$0xff] %vm588, %v541
  %635 = vst.msk [vmem:[%s4 + $0x170] sm:$0xff] %vm588, %v544
  %636 = vst.msk [vmem:[%s4 + $0x178] sm:$0xff] %vm588, %v546
  %637 = vst.msk [vmem:[%s4 + $0x180] sm:$0xff] %vm588, %v549
  %638 = vst.msk [vmem:[%s4 + $0x188] sm:$0xff] %vm588, %v551
  %639 = vst.msk [vmem:[%s4 + $0x190] sm:$0xff] %vm588, %v554
  %640 = vst.msk [vmem:[%s4 + $0x198] sm:$0xff] %vm588, %v556
  %641 = vst.msk [vmem:[%s4 + $0x1a0] sm:$0xff] %vm588, %v559
  %642 = vst.msk [vmem:[%s4 + $0x1a8] sm:$0xff] %vm588, %v561
  %643 = vst.msk [vmem:[%s4 + $0x1b0] sm:$0xff] %vm588, %v564
  %644 = vst.msk [vmem:[%s4 + $0x1b8] sm:$0xff] %vm588, %v566
  %645 = vst.msk [vmem:[%s4 + $0x1c0] sm:$0xff] %vm588, %v569
  %646 = vst.msk [vmem:[%s4 + $0x1c8] sm:$0xff] %vm588, %v571
  %647 = vst.msk [vmem:[%s4 + $0x1d0] sm:$0xff] %vm588, %v574
  %648 = vst.msk [vmem:[%s4 + $0x1d8] sm:$0xff] %vm588, %v576
  %649 = vst.msk [vmem:[%s4 + $0x1e0] sm:$0xff] %vm588, %v579
  %650 = vst.msk [vmem:[%s4 + $0x1e8] sm:$0xff] %vm588, %v581
  %651 = vst.msk [vmem:[%s4 + $0x1f0] sm:$0xff] %vm588, %v584
  %652 = vst.msk [vmem:[%s4 + $0x1f8] sm:$0xff] %vm588, %v586
  %v653 = vsel %vm588, %v429, 0.0
  %v654 = vsel %vm588, %v431, 0.0
  %v655 = vadd.f32 %v653, %v654
  %v656 = vsel %vm588, %v434, 0.0
  %v657 = vadd.f32 %v655, %v656
  %v658 = vsel %vm588, %v436, 0.0
  %v659 = vadd.f32 %v657, %v658
  %v660 = vsel %vm588, %v439, 0.0
  %v661 = vadd.f32 %v659, %v660
  %v662 = vsel %vm588, %v441, 0.0
  %v663 = vadd.f32 %v661, %v662
  %v664 = vsel %vm588, %v444, 0.0
  %v665 = vadd.f32 %v663, %v664
  %v666 = vsel %vm588, %v446, 0.0
  %v667 = vadd.f32 %v665, %v666
  %v668 = vsel %vm588, %v449, 0.0
  %v669 = vadd.f32 %v667, %v668
  %v670 = vsel %vm588, %v451, 0.0
  %v671 = vadd.f32 %v669, %v670
  %v672 = vsel %vm588, %v454, 0.0
  %v673 = vadd.f32 %v671, %v672
  %v674 = vsel %vm588, %v456, 0.0
  %v675 = vadd.f32 %v673, %v674
  %v676 = vsel %vm588, %v459, 0.0
  %v677 = vadd.f32 %v675, %v676
  %v678 = vsel %vm588, %v461, 0.0
  %v679 = vadd.f32 %v677, %v678
  %v680 = vsel %vm588, %v464, 0.0
  %v681 = vadd.f32 %v679, %v680
  %v682 = vsel %vm588, %v466, 0.0
  %v683 = vadd.f32 %v681, %v682
  %v684 = vsel %vm588, %v469, 0.0
  %v685 = vadd.f32 %v683, %v684
  %v686 = vsel %vm588, %v471, 0.0
  %v687 = vadd.f32 %v685, %v686
  %v688 = vsel %vm588, %v474, 0.0
  %v689 = vadd.f32 %v687, %v688
  %v690 = vsel %vm588, %v476, 0.0
  %v691 = vadd.f32 %v689, %v690
  %v692 = vsel %vm588, %v479, 0.0
  %v693 = vadd.f32 %v691, %v692
  %v694 = vsel %vm588, %v481, 0.0
  %v695 = vadd.f32 %v693, %v694
  %v696 = vsel %vm588, %v484, 0.0
  %v697 = vadd.f32 %v695, %v696
  %v698 = vsel %vm588, %v486, 0.0
  %v699 = vadd.f32 %v697, %v698
  %v700 = vsel %vm588, %v489, 0.0
  %v701 = vadd.f32 %v699, %v700
  %v702 = vsel %vm588, %v491, 0.0
  %v703 = vadd.f32 %v701, %v702
  %v704 = vsel %vm588, %v494, 0.0
  %v705 = vadd.f32 %v703, %v704
  %v706 = vsel %vm588, %v496, 0.0
  %v707 = vadd.f32 %v705, %v706
  %v708 = vsel %vm588, %v499, 0.0
  %v709 = vadd.f32 %v707, %v708
  %v710 = vsel %vm588, %v501, 0.0
  %v711 = vadd.f32 %v709, %v710
  %v712 = vsel %vm588, %v504, 0.0
  %v713 = vadd.f32 %v711, %v712
  %v714 = vsel %vm588, %v506, 0.0
  %v715 = vadd.f32 %v713, %v714
  %v716 = vsel %vm588, %v509, 0.0
  %v717 = vadd.f32 %v715, %v716
  %v718 = vsel %vm588, %v511, 0.0
  %v719 = vadd.f32 %v717, %v718
  %v720 = vsel %vm588, %v514, 0.0
  %v721 = vadd.f32 %v719, %v720
  %v722 = vsel %vm588, %v516, 0.0
  %v723 = vadd.f32 %v721, %v722
  %v724 = vsel %vm588, %v519, 0.0
  %v725 = vadd.f32 %v723, %v724
  %v726 = vsel %vm588, %v521, 0.0
  %v727 = vadd.f32 %v725, %v726
  %v728 = vsel %vm588, %v524, 0.0
  %v729 = vadd.f32 %v727, %v728
  %v730 = vsel %vm588, %v526, 0.0
  %v731 = vadd.f32 %v729, %v730
  %v732 = vsel %vm588, %v529, 0.0
  %v733 = vadd.f32 %v731, %v732
  %v734 = vsel %vm588, %v531, 0.0
  %v735 = vadd.f32 %v733, %v734
  %v736 = vsel %vm588, %v534, 0.0
  %v737 = vadd.f32 %v735, %v736
  %v738 = vsel %vm588, %v536, 0.0
  %v739 = vadd.f32 %v737, %v738
  %v740 = vsel %vm588, %v539, 0.0
  %v741 = vadd.f32 %v739, %v740
  %v742 = vsel %vm588, %v541, 0.0
  %v743 = vadd.f32 %v741, %v742
  %v744 = vsel %vm588, %v544, 0.0
  %v745 = vadd.f32 %v743, %v744
  %v746 = vsel %vm588, %v546, 0.0
  %v747 = vadd.f32 %v745, %v746
  %v748 = vsel %vm588, %v549, 0.0
  %v749 = vadd.f32 %v747, %v748
  %v750 = vsel %vm588, %v551, 0.0
  %v751 = vadd.f32 %v749, %v750
  %v752 = vsel %vm588, %v554, 0.0
  %v753 = vadd.f32 %v751, %v752
  %v754 = vsel %vm588, %v556, 0.0
  %v755 = vadd.f32 %v753, %v754
  %v756 = vsel %vm588, %v559, 0.0
  %v757 = vadd.f32 %v755, %v756
  %v758 = vsel %vm588, %v561, 0.0
  %v759 = vadd.f32 %v757, %v758
  %v760 = vsel %vm588, %v564, 0.0
  %v761 = vadd.f32 %v759, %v760
  %v762 = vsel %vm588, %v566, 0.0
  %v763 = vadd.f32 %v761, %v762
  %v764 = vsel %vm588, %v569, 0.0
  %v765 = vadd.f32 %v763, %v764
  %v766 = vsel %vm588, %v571, 0.0
  %v767 = vadd.f32 %v765, %v766
  %v768 = vsel %vm588, %v574, 0.0
  %v769 = vadd.f32 %v767, %v768
  %v770 = vsel %vm588, %v576, 0.0
  %v771 = vadd.f32 %v769, %v770
  %v772 = vsel %vm588, %v579, 0.0
  %v773 = vadd.f32 %v771, %v772
  %v774 = vsel %vm588, %v581, 0.0
  %v775 = vadd.f32 %v773, %v774
  %v776 = vsel %vm588, %v584, 0.0
  %v777 = vadd.f32 %v775, %v776
  %v778 = vsel %vm588, %v586, 0.0
  %v779 = vadd.f32 %v777, %v778
  %v780 = vrot.slane %v779, 4
  %v781 = vadd.f32 %v779, %v780
  %v782 = vrot.slane %v781, 2
  %v783 = vadd.f32 %v781, %v782
  %v784 = vrot.slane %v783, 1
  %v785 = vadd.f32 %v783, %v784
  %vm786 = vcmask 122880
  %787 = vst.msk [vmem:[%s5] sm:$0x1] %vm786, %v785
  %v788 = vmul.f32 %v429, %v429
  %v789 = vmul.f32 %v431, %v431
  %v790 = vmul.f32 %v434, %v434
  %v791 = vmul.f32 %v436, %v436
  %v792 = vmul.f32 %v439, %v439
  %v793 = vmul.f32 %v441, %v441
  %v794 = vmul.f32 %v444, %v444
  %v795 = vmul.f32 %v446, %v446
  %v796 = vmul.f32 %v449, %v449
  %v797 = vmul.f32 %v451, %v451
  %v798 = vmul.f32 %v454, %v454
  %v799 = vmul.f32 %v456, %v456
  %v800 = vmul.f32 %v459, %v459
  %v801 = vmul.f32 %v461, %v461
  %v802 = vmul.f32 %v464, %v464
  %v803 = vmul.f32 %v466, %v466
  %v804 = vmul.f32 %v469, %v469
  %v805 = vmul.f32 %v471, %v471
  %v806 = vmul.f32 %v474, %v474
  %v807 = vmul.f32 %v476, %v476
  %v808 = vmul.f32 %v479, %v479
  %v809 = vmul.f32 %v481, %v481
  %v810 = vmul.f32 %v484, %v484
  %v811 = vmul.f32 %v486, %v486
  %v812 = vmul.f32 %v489, %v489
  %v813 = vmul.f32 %v491, %v491
  %v814 = vmul.f32 %v494, %v494
  %v815 = vmul.f32 %v496, %v496
  %v816 = vmul.f32 %v499, %v499
  %v817 = vmul.f32 %v501, %v501
  %v818 = vmul.f32 %v504, %v504
  %v819 = vmul.f32 %v506, %v506
  %v820 = vmul.f32 %v509, %v509
  %v821 = vmul.f32 %v511, %v511
  %v822 = vmul.f32 %v514, %v514
  %v823 = vmul.f32 %v516, %v516
  %v824 = vmul.f32 %v519, %v519
  %v825 = vmul.f32 %v521, %v521
  %v826 = vmul.f32 %v524, %v524
  %v827 = vmul.f32 %v526, %v526
  %v828 = vmul.f32 %v529, %v529
  %v829 = vmul.f32 %v531, %v531
  %v830 = vmul.f32 %v534, %v534
  %v831 = vmul.f32 %v536, %v536
  %v832 = vmul.f32 %v539, %v539
  %v833 = vmul.f32 %v541, %v541
  %v834 = vmul.f32 %v544, %v544
  %v835 = vmul.f32 %v546, %v546
  %v836 = vmul.f32 %v549, %v549
  %v837 = vmul.f32 %v551, %v551
  %v838 = vmul.f32 %v554, %v554
  %v839 = vmul.f32 %v556, %v556
  %v840 = vmul.f32 %v559, %v559
  %v841 = vmul.f32 %v561, %v561
  %v842 = vmul.f32 %v564, %v564
  %v843 = vmul.f32 %v566, %v566
  %v844 = vmul.f32 %v569, %v569
  %v845 = vmul.f32 %v571, %v571
  %v846 = vmul.f32 %v574, %v574
  %v847 = vmul.f32 %v576, %v576
  %v848 = vmul.f32 %v579, %v579
  %v849 = vmul.f32 %v581, %v581
  %v850 = vmul.f32 %v584, %v584
  %v851 = vmul.f32 %v586, %v586
  %v852 = vsel %vm588, %v788, 0.0
  %v853 = vsel %vm588, %v789, 0.0
  %v854 = vadd.f32 %v852, %v853
  %v855 = vsel %vm588, %v790, 0.0
  %v856 = vadd.f32 %v854, %v855
  %v857 = vsel %vm588, %v791, 0.0
  %v858 = vadd.f32 %v856, %v857
  %v859 = vsel %vm588, %v792, 0.0
  %v860 = vadd.f32 %v858, %v859
  %v861 = vsel %vm588, %v793, 0.0
  %v862 = vadd.f32 %v860, %v861
  %v863 = vsel %vm588, %v794, 0.0
  %v864 = vadd.f32 %v862, %v863
  %v865 = vsel %vm588, %v795, 0.0
  %v866 = vadd.f32 %v864, %v865
  %v867 = vsel %vm588, %v796, 0.0
  %v868 = vadd.f32 %v866, %v867
  %v869 = vsel %vm588, %v797, 0.0
  %v870 = vadd.f32 %v868, %v869
  %v871 = vsel %vm588, %v798, 0.0
  %v872 = vadd.f32 %v870, %v871
  %v873 = vsel %vm588, %v799, 0.0
  %v874 = vadd.f32 %v872, %v873
  %v875 = vsel %vm588, %v800, 0.0
  %v876 = vadd.f32 %v874, %v875
  %v877 = vsel %vm588, %v801, 0.0
  %v878 = vadd.f32 %v876, %v877
  %v879 = vsel %vm588, %v802, 0.0
  %v880 = vadd.f32 %v878, %v879
  %v881 = vsel %vm588, %v803, 0.0
  %v882 = vadd.f32 %v880, %v881
  %v883 = vsel %vm588, %v804, 0.0
  %v884 = vadd.f32 %v882, %v883
  %v885 = vsel %vm588, %v805, 0.0
  %v886 = vadd.f32 %v884, %v885
  %v887 = vsel %vm588, %v806, 0.0
  %v888 = vadd.f32 %v886, %v887
  %v889 = vsel %vm588, %v807, 0.0
  %v890 = vadd.f32 %v888, %v889
  %v891 = vsel %vm588, %v808, 0.0
  %v892 = vadd.f32 %v890, %v891
  %v893 = vsel %vm588, %v809, 0.0
  %v894 = vadd.f32 %v892, %v893
  %v895 = vsel %vm588, %v810, 0.0
  %v896 = vadd.f32 %v894, %v895
  %v897 = vsel %vm588, %v811, 0.0
  %v898 = vadd.f32 %v896, %v897
  %v899 = vsel %vm588, %v812, 0.0
  %v900 = vadd.f32 %v898, %v899
  %v901 = vsel %vm588, %v813, 0.0
  %v902 = vadd.f32 %v900, %v901
  %v903 = vsel %vm588, %v814, 0.0
  %v904 = vadd.f32 %v902, %v903
  %v905 = vsel %vm588, %v815, 0.0
  %v906 = vadd.f32 %v904, %v905
  %v907 = vsel %vm588, %v816, 0.0
  %v908 = vadd.f32 %v906, %v907
  %v909 = vsel %vm588, %v817, 0.0
  %v910 = vadd.f32 %v908, %v909
  %v911 = vsel %vm588, %v818, 0.0
  %v912 = vadd.f32 %v910, %v911
  %v913 = vsel %vm588, %v819, 0.0
  %v914 = vadd.f32 %v912, %v913
  %v915 = vsel %vm588, %v820, 0.0
  %v916 = vadd.f32 %v914, %v915
  %v917 = vsel %vm588, %v821, 0.0
  %v918 = vadd.f32 %v916, %v917
  %v919 = vsel %vm588, %v822, 0.0
  %v920 = vadd.f32 %v918, %v919
  %v921 = vsel %vm588, %v823, 0.0
  %v922 = vadd.f32 %v920, %v921
  %v923 = vsel %vm588, %v824, 0.0
  %v924 = vadd.f32 %v922, %v923
  %v925 = vsel %vm588, %v825, 0.0
  %v926 = vadd.f32 %v924, %v925
  %v927 = vsel %vm588, %v826, 0.0
  %v928 = vadd.f32 %v926, %v927
  %v929 = vsel %vm588, %v827, 0.0
  %v930 = vadd.f32 %v928, %v929
  %v931 = vsel %vm588, %v828, 0.0
  %v932 = vadd.f32 %v930, %v931
  %v933 = vsel %vm588, %v829, 0.0
  %v934 = vadd.f32 %v932, %v933
  %v935 = vsel %vm588, %v830, 0.0
  %v936 = vadd.f32 %v934, %v935
  %v937 = vsel %vm588, %v831, 0.0
  %v938 = vadd.f32 %v936, %v937
  %v939 = vsel %vm588, %v832, 0.0
  %v940 = vadd.f32 %v938, %v939
  %v941 = vsel %vm588, %v833, 0.0
  %v942 = vadd.f32 %v940, %v941
  %v943 = vsel %vm588, %v834, 0.0
  %v944 = vadd.f32 %v942, %v943
  %v945 = vsel %vm588, %v835, 0.0
  %v946 = vadd.f32 %v944, %v945
  %v947 = vsel %vm588, %v836, 0.0
  %v948 = vadd.f32 %v946, %v947
  %v949 = vsel %vm588, %v837, 0.0
  %v950 = vadd.f32 %v948, %v949
  %v951 = vsel %vm588, %v838, 0.0
  %v952 = vadd.f32 %v950, %v951
  %v953 = vsel %vm588, %v839, 0.0
  %v954 = vadd.f32 %v952, %v953
  %v955 = vsel %vm588, %v840, 0.0
  %v956 = vadd.f32 %v954, %v955
  %v957 = vsel %vm588, %v841, 0.0
  %v958 = vadd.f32 %v956, %v957
  %v959 = vsel %vm588, %v842, 0.0
  %v960 = vadd.f32 %v958, %v959
  %v961 = vsel %vm588, %v843, 0.0
  %v962 = vadd.f32 %v960, %v961
  %v963 = vsel %vm588, %v844, 0.0
  %v964 = vadd.f32 %v962, %v963
  %v965 = vsel %vm588, %v845, 0.0
  %v966 = vadd.f32 %v964, %v965
  %v967 = vsel %vm588, %v846, 0.0
  %v968 = vadd.f32 %v966, %v967
  %v969 = vsel %vm588, %v847, 0.0
  %v970 = vadd.f32 %v968, %v969
  %v971 = vsel %vm588, %v848, 0.0
  %v972 = vadd.f32 %v970, %v971
  %v973 = vsel %vm588, %v849, 0.0
  %v974 = vadd.f32 %v972, %v973
  %v975 = vsel %vm588, %v850, 0.0
  %v976 = vadd.f32 %v974, %v975
  %v977 = vsel %vm588, %v851, 0.0
  %v978 = vadd.f32 %v976, %v977
  %v979 = vrot.slane %v978, 4
  %v980 = vadd.f32 %v978, %v979
  %v981 = vrot.slane %v980, 2
  %v982 = vadd.f32 %v980, %v981
  %v983 = vrot.slane %v982, 1
  %v984 = vadd.f32 %v982, %v983
  %985 = vst.msk [vmem:[%s6] sm:$0x1] %vm786, %v984
  // Predicated region
  $region18: #{dense_block_forward.8} parent=0 // pred_check
    _
  $region19: #{dense_block_forward.8} parent=0 // pred_check_branch
    %987 = sbr.rel (0) target = $region21
  $region20: #{dense_block_forward.8} parent=0 // pred_region
    _
  $region21: #{dense_block_forward.8} parent=0 // pred_fallthru
    _
  // Predicated region
  $region22: #{dense_block_forward.8} parent=0 // pred_check
    _
  $region23: #{dense_block_forward.8} parent=0 // pred_check_branch
    %989 = sbr.rel (0) target = $region25
  $region24: #{dense_block_forward.8} parent=0 // pred_region
    _
  $region25: #{dense_block_forward.8} parent=0 // pred_fallthru
    _
  // Predicated region
  $region26: #{dense_block_forward.8} parent=0 // pred_check
    _
  $region27: #{dense_block_forward.8} parent=0 // pred_check_branch
    %991 = sbr.rel (0) target = $region29
  $region28: #{dense_block_forward.8} parent=0 // pred_region
    _
  $region29: #{dense_block_forward.8} parent=0 // pred_fallthru
    _
  // Predicated region
  $region30: #{dense_block_forward.8} parent=0 // pred_check
    _
  $region31: #{dense_block_forward.8} parent=0 // pred_check_branch
    %993 = sbr.rel (0) target = $region33
  $region32: #{dense_block_forward.8} parent=0 // pred_region
    _
  $region33: #{dense_block_forward.8} parent=0 // pred_fallthru
    _
  // Predicated region
  $region34: #{dense_block_forward.8} parent=0 // pred_check
    _
  $region35: #{dense_block_forward.8} parent=0 // pred_check_branch
    %995 = sbr.rel (0) target = $region37
  $region36: #{dense_block_forward.8} parent=0 // pred_region
    _
  $region37: #{dense_block_forward.8} parent=0 // pred_fallthru
    _
  // Predicated region
  $region38: #{dense_block_forward.8} parent=0 // pred_check
    _
  $region39: #{dense_block_forward.8} parent=0 // pred_check_branch
    %997 = sbr.rel (0) target = $region41
  $region40: #{dense_block_forward.8} parent=0 // pred_region
    _
  $region41: #{dense_block_forward.8} parent=0 // pred_fallthru
    _

// kernel: dense_block_forward.10
$region0: #{dense_block_forward.10}
  #allocation0 [shape = 'u32[]', space=smem, size = 0x4, offset = 0x4, fixed_abs, tag = 'smem constant byte address 0x4 - core index']
  #allocation1 [shape = 'u32[72,128]{1,0:T(1,128)}', space=vmem, size = 0x9000, scoped, tag = 'internal scratch']
  %s0 = inlined_call_operand.vmem [shape: f32[512,4], index: 0, kind: input, shape index: {}]
  %s1 = inlined_call_operand.vmem [shape: f32[512,4], index: 1, kind: input, shape index: {}]
  %s2 = inlined_call_operand.vmem [shape: f32[1,4], index: 2, kind: input, shape index: {}]
  %s3 = inlined_call_operand.vmem [shape: f32[1,4], index: 3, kind: input, shape index: {}]
  %s4 = inlined_call_operand.vmem [shape: f32[1,4], index: 4, kind: input, shape index: {}]
  %s5 = inlined_call_operand.vmem [shape: f32[1,4], index: 5, kind: input, shape index: {}]
  %s6 = inlined_call_operand.vmem [shape: bf16[4,16], index: 6, kind: input, shape index: {}]
  %s7 = inlined_call_operand.vmem [shape: bf16[4,16], index: 7, kind: input, shape index: {}]
  %s8 = inlined_call_operand.vmem [shape: f32[512,16], index: 8, kind: output, shape index: {0}]
  %s9 = inlined_call_operand.vmem [shape: f32[1,1,16], index: 9, kind: output, shape index: {1}]
  %s10 = inlined_call_operand.vmem [shape: f32[1,1,16], index: 10, kind: output, shape index: {2}]
  %11 = xla_tuple %s8, %s9, %s10
  %s12 = sld [smem:[#allocation0]]
  $region58: #{dense_block_forward.10} parent=0
    _
  %s14 = ssub.s32 1, %s12
  %s15 = scalar_select 0, %s14, %s12
  // Predicated region
  $region2: #{dense_block_forward.10} parent=0 // pred_check
    _
  $region3: #{dense_block_forward.10} parent=0 // pred_check_branch
    %17 = sbr.rel (0) target = $region5
  $region4: #{dense_block_forward.10} parent=0 // pred_region
    _
  $region5: #{dense_block_forward.10} parent=0 // pred_fallthru
    _
  // Predicated region
  $region6: #{dense_block_forward.10} parent=0 // pred_check
    _
  $region7: #{dense_block_forward.10} parent=0 // pred_check_branch
    %19 = sbr.rel (0) target = $region9
  $region8: #{dense_block_forward.10} parent=0 // pred_region
    _
  $region9: #{dense_block_forward.10} parent=0 // pred_fallthru
    _
  // Predicated region
  $region10: #{dense_block_forward.10} parent=0 // pred_check
    _
  $region11: #{dense_block_forward.10} parent=0 // pred_check_branch
    %21 = sbr.rel (0) target = $region13
  $region12: #{dense_block_forward.10} parent=0 // pred_region
    _
  $region13: #{dense_block_forward.10} parent=0 // pred_fallthru
    _
  // Predicated region
  $region14: #{dense_block_forward.10} parent=0 // pred_check
    _
  $region15: #{dense_block_forward.10} parent=0 // pred_check_branch
    %23 = sbr.rel (0) target = $region17
  $region16: #{dense_block_forward.10} parent=0 // pred_region
    _
  $region17: #{dense_block_forward.10} parent=0 // pred_fallthru
    _
  // Predicated region
  $region18: #{dense_block_forward.10} parent=0 // pred_check
    _
  $region19: #{dense_block_forward.10} parent=0 // pred_check_branch
    %25 = sbr.rel (0) target = $region21
  $region20: #{dense_block_forward.10} parent=0 // pred_region
    _
  $region21: #{dense_block_forward.10} parent=0 // pred_fallthru
    _
  // Predicated region
  $region22: #{dense_block_forward.10} parent=0 // pred_check
    _
  $region23: #{dense_block_forward.10} parent=0 // pred_check_branch
    %27 = sbr.rel (0) target = $region25
  $region24: #{dense_block_forward.10} parent=0 // pred_region
    _
  $region25: #{dense_block_forward.10} parent=0 // pred_fallthru
    _
  // Predicated region
  $region26: #{dense_block_forward.10} parent=0 // pred_check
    _
  $region27: #{dense_block_forward.10} parent=0 // pred_check_branch
    %29 = sbr.rel (0) target = $region29
  $region28: #{dense_block_forward.10} parent=0 // pred_region
    _
  $region29: #{dense_block_forward.10} parent=0 // pred_fallthru
    _
  // Predicated region
  $region30: #{dense_block_forward.10} parent=0 // pred_check
    _
  $region31: #{dense_block_forward.10} parent=0 // pred_check_branch
    %31 = sbr.rel (0) target = $region33
  $region32: #{dense_block_forward.10} parent=0 // pred_region
    _
  $region33: #{dense_block_forward.10} parent=0 // pred_fallthru
    _
  %v33 = vld [vmem:[%s0] sm:$0xff]
  %v34 = vld [vmem:[%s0 + $0x8] sm:$0xff]
  %v35 = vld [vmem:[%s0 + $0x10] sm:$0xff]
  %v36 = vld [vmem:[%s0 + $0x18] sm:$0xff]
  %v37 = vld [vmem:[%s0 + $0x20] sm:$0xff]
  %v38 = vld [vmem:[%s0 + $0x28] sm:$0xff]
  %v39 = vld [vmem:[%s0 + $0x30] sm:$0xff]
  %v40 = vld [vmem:[%s0 + $0x38] sm:$0xff]
  %v41 = vld [vmem:[%s0 + $0x40] sm:$0xff]
  %v42 = vld [vmem:[%s0 + $0x48] sm:$0xff]
  %v43 = vld [vmem:[%s0 + $0x50] sm:$0xff]
  %v44 = vld [vmem:[%s0 + $0x58] sm:$0xff]
  %v45 = vld [vmem:[%s0 + $0x60] sm:$0xff]
  %v46 = vld [vmem:[%s0 + $0x68] sm:$0xff]
  %v47 = vld [vmem:[%s0 + $0x70] sm:$0xff]
  %v48 = vld [vmem:[%s0 + $0x78] sm:$0xff]
  %v49 = vld [vmem:[%s0 + $0x80] sm:$0xff]
  %v50 = vld [vmem:[%s0 + $0x88] sm:$0xff]
  %v51 = vld [vmem:[%s0 + $0x90] sm:$0xff]
  %v52 = vld [vmem:[%s0 + $0x98] sm:$0xff]
  %v53 = vld [vmem:[%s0 + $0xa0] sm:$0xff]
  %v54 = vld [vmem:[%s0 + $0xa8] sm:$0xff]
  %v55 = vld [vmem:[%s0 + $0xb0] sm:$0xff]
  %v56 = vld [vmem:[%s0 + $0xb8] sm:$0xff]
  %v57 = vld [vmem:[%s0 + $0xc0] sm:$0xff]
  %v58 = vld [vmem:[%s0 + $0xc8] sm:$0xff]
  %v59 = vld [vmem:[%s0 + $0xd0] sm:$0xff]
  %v60 = vld [vmem:[%s0 + $0xd8] sm:$0xff]
  %v61 = vld [vmem:[%s0 + $0xe0] sm:$0xff]
  %v62 = vld [vmem:[%s0 + $0xe8] sm:$0xff]
  %v63 = vld [vmem:[%s0 + $0xf0] sm:$0xff]
  %v64 = vld [vmem:[%s0 + $0xf8] sm:$0xff]
  %v65 = vld [vmem:[%s0 + $0x100] sm:$0xff]
  %v66 = vld [vmem:[%s0 + $0x108] sm:$0xff]
  %v67 = vld [vmem:[%s0 + $0x110] sm:$0xff]
  %v68 = vld [vmem:[%s0 + $0x118] sm:$0xff]
  %v69 = vld [vmem:[%s0 + $0x120] sm:$0xff]
  %v70 = vld [vmem:[%s0 + $0x128] sm:$0xff]
  %v71 = vld [vmem:[%s0 + $0x130] sm:$0xff]
  %v72 = vld [vmem:[%s0 + $0x138] sm:$0xff]
  %v73 = vld [vmem:[%s0 + $0x140] sm:$0xff]
  %v74 = vld [vmem:[%s0 + $0x148] sm:$0xff]
  %v75 = vld [vmem:[%s0 + $0x150] sm:$0xff]
  %v76 = vld [vmem:[%s0 + $0x158] sm:$0xff]
  %v77 = vld [vmem:[%s0 + $0x160] sm:$0xff]
  %v78 = vld [vmem:[%s0 + $0x168] sm:$0xff]
  %v79 = vld [vmem:[%s0 + $0x170] sm:$0xff]
  %v80 = vld [vmem:[%s0 + $0x178] sm:$0xff]
  %v81 = vld [vmem:[%s0 + $0x180] sm:$0xff]
  %v82 = vld [vmem:[%s0 + $0x188] sm:$0xff]
  %v83 = vld [vmem:[%s0 + $0x190] sm:$0xff]
  %v84 = vld [vmem:[%s0 + $0x198] sm:$0xff]
  %v85 = vld [vmem:[%s0 + $0x1a0] sm:$0xff]
  %v86 = vld [vmem:[%s0 + $0x1a8] sm:$0xff]
  %v87 = vld [vmem:[%s0 + $0x1b0] sm:$0xff]
  %v88 = vld [vmem:[%s0 + $0x1b8] sm:$0xff]
  %v89 = vld [vmem:[%s0 + $0x1c0] sm:$0xff]
  %v90 = vld [vmem:[%s0 + $0x1c8] sm:$0xff]
  %v91 = vld [vmem:[%s0 + $0x1d0] sm:$0xff]
  %v92 = vld [vmem:[%s0 + $0x1d8] sm:$0xff]
  %v93 = vld [vmem:[%s0 + $0x1e0] sm:$0xff]
  %v94 = vld [vmem:[%s0 + $0x1e8] sm:$0xff]
  %v95 = vld [vmem:[%s0 + $0x1f0] sm:$0xff]
  %v96 = vld [vmem:[%s0 + $0x1f8] sm:$0xff]
  %v97 = vld [vmem:[%s2] sm:$0x1]
  %v99 = vperm.slane %v97, 0
  %v101 = vmul.f32 %v33, %v99
  %v102 = vmul.f32 %v34, %v99
  %v103 = vmul.f32 %v35, %v99
  %v104 = vmul.f32 %v36, %v99
  %v105 = vmul.f32 %v37, %v99
  %v106 = vmul.f32 %v38, %v99
  %v107 = vmul.f32 %v39, %v99
  %v108 = vmul.f32 %v40, %v99
  %v109 = vmul.f32 %v41, %v99
  %v110 = vmul.f32 %v42, %v99
  %v111 = vmul.f32 %v43, %v99
  %v112 = vmul.f32 %v44, %v99
  %v113 = vmul.f32 %v45, %v99
  %v114 = vmul.f32 %v46, %v99
  %v115 = vmul.f32 %v47, %v99
  %v116 = vmul.f32 %v48, %v99
  %v117 = vmul.f32 %v49, %v99
  %v118 = vmul.f32 %v50, %v99
  %v119 = vmul.f32 %v51, %v99
  %v120 = vmul.f32 %v52, %v99
  %v121 = vmul.f32 %v53, %v99
  %v122 = vmul.f32 %v54, %v99
  %v123 = vmul.f32 %v55, %v99
  %v124 = vmul.f32 %v56, %v99
  %v125 = vmul.f32 %v57, %v99
  %v126 = vmul.f32 %v58, %v99
  %v127 = vmul.f32 %v59, %v99
  %v128 = vmul.f32 %v60, %v99
  %v129 = vmul.f32 %v61, %v99
  %v130 = vmul.f32 %v62, %v99
  %v131 = vmul.f32 %v63, %v99
  %v132 = vmul.f32 %v64, %v99
  %v133 = vmul.f32 %v65, %v99
  %v134 = vmul.f32 %v66, %v99
  %v135 = vmul.f32 %v67, %v99
  %v136 = vmul.f32 %v68, %v99
  %v137 = vmul.f32 %v69, %v99
  %v138 = vmul.f32 %v70, %v99
  %v139 = vmul.f32 %v71, %v99
  %v140 = vmul.f32 %v72, %v99
  %v141 = vmul.f32 %v73, %v99
  %v142 = vmul.f32 %v74, %v99
  %v143 = vmul.f32 %v75, %v99
  %v144 = vmul.f32 %v76, %v99
  %v145 = vmul.f32 %v77, %v99
  %v146 = vmul.f32 %v78, %v99
  %v147 = vmul.f32 %v79, %v99
  %v148 = vmul.f32 %v80, %v99
  %v149 = vmul.f32 %v81, %v99
  %v150 = vmul.f32 %v82, %v99
  %v151 = vmul.f32 %v83, %v99
  %v152 = vmul.f32 %v84, %v99
  %v153 = vmul.f32 %v85, %v99
  %v154 = vmul.f32 %v86, %v99
  %v155 = vmul.f32 %v87, %v99
  %v156 = vmul.f32 %v88, %v99
  %v157 = vmul.f32 %v89, %v99
  %v158 = vmul.f32 %v90, %v99
  %v159 = vmul.f32 %v91, %v99
  %v160 = vmul.f32 %v92, %v99
  %v161 = vmul.f32 %v93, %v99
  %v162 = vmul.f32 %v94, %v99
  %v163 = vmul.f32 %v95, %v99
  %v164 = vmul.f32 %v96, %v99
  %v165 = vld [vmem:[%s4] sm:$0x1]
  %v167 = vperm.slane %v165, 0
  %v169 = vadd.f32 %v101, %v167
  %v170 = vadd.f32 %v102, %v167
  %v171 = vadd.f32 %v103, %v167
  %v172 = vadd.f32 %v104, %v167
  %v173 = vadd.f32 %v105, %v167
  %v174 = vadd.f32 %v106, %v167
  %v175 = vadd.f32 %v107, %v167
  %v176 = vadd.f32 %v108, %v167
  %v177 = vadd.f32 %v109, %v167
  %v178 = vadd.f32 %v110, %v167
  %v179 = vadd.f32 %v111, %v167
  %v180 = vadd.f32 %v112, %v167
  %v181 = vadd.f32 %v113, %v167
  %v182 = vadd.f32 %v114, %v167
  %v183 = vadd.f32 %v115, %v167
  %v184 = vadd.f32 %v116, %v167
  %v185 = vadd.f32 %v117, %v167
  %v186 = vadd.f32 %v118, %v167
  %v187 = vadd.f32 %v119, %v167
  %v188 = vadd.f32 %v120, %v167
  %v189 = vadd.f32 %v121, %v167
  %v190 = vadd.f32 %v122, %v167
  %v191 = vadd.f32 %v123, %v167
  %v192 = vadd.f32 %v124, %v167
  %v193 = vadd.f32 %v125, %v167
  %v194 = vadd.f32 %v126, %v167
  %v195 = vadd.f32 %v127, %v167
  %v196 = vadd.f32 %v128, %v167
  %v197 = vadd.f32 %v129, %v167
  %v198 = vadd.f32 %v130, %v167
  %v199 = vadd.f32 %v131, %v167
  %v200 = vadd.f32 %v132, %v167
  %v201 = vadd.f32 %v133, %v167
  %v202 = vadd.f32 %v134, %v167
  %v203 = vadd.f32 %v135, %v167
  %v204 = vadd.f32 %v136, %v167
  %v205 = vadd.f32 %v137, %v167
  %v206 = vadd.f32 %v138, %v167
  %v207 = vadd.f32 %v139, %v167
  %v208 = vadd.f32 %v140, %v167
  %v209 = vadd.f32 %v141, %v167
  %v210 = vadd.f32 %v142, %v167
  %v211 = vadd.f32 %v143, %v167
  %v212 = vadd.f32 %v144, %v167
  %v213 = vadd.f32 %v145, %v167
  %v214 = vadd.f32 %v146, %v167
  %v215 = vadd.f32 %v147, %v167
  %v216 = vadd.f32 %v148, %v167
  %v217 = vadd.f32 %v149, %v167
  %v218 = vadd.f32 %v150, %v167
  %v219 = vadd.f32 %v151, %v167
  %v220 = vadd.f32 %v152, %v167
  %v221 = vadd.f32 %v153, %v167
  %v222 = vadd.f32 %v154, %v167
  %v223 = vadd.f32 %v155, %v167
  %v224 = vadd.f32 %v156, %v167
  %v225 = vadd.f32 %v157, %v167
  %v226 = vadd.f32 %v158, %v167
  %v227 = vadd.f32 %v159, %v167
  %v228 = vadd.f32 %v160, %v167
  %v229 = vadd.f32 %v161, %v167
  %v230 = vadd.f32 %v162, %v167
  %v231 = vadd.f32 %v163, %v167
  %v232 = vadd.f32 %v164, %v167
  %v233 = vmax.f32 %v169, 0.0
  %v234 = vmax.f32 %v170, 0.0
  %v235 = vmax.f32 %v171, 0.0
  %v236 = vmax.f32 %v172, 0.0
  %v237 = vmax.f32 %v173, 0.0
  %v238 = vmax.f32 %v174, 0.0
  %v239 = vmax.f32 %v175, 0.0
  %v240 = vmax.f32 %v176, 0.0
  %v241 = vmax.f32 %v177, 0.0
  %v242 = vmax.f32 %v178, 0.0
  %v243 = vmax.f32 %v179, 0.0
  %v244 = vmax.f32 %v180, 0.0
  %v245 = vmax.f32 %v181, 0.0
  %v246 = vmax.f32 %v182, 0.0
  %v247 = vmax.f32 %v183, 0.0
  %v248 = vmax.f32 %v184, 0.0
  %v249 = vmax.f32 %v185, 0.0
  %v250 = vmax.f32 %v186, 0.0
  %v251 = vmax.f32 %v187, 0.0
  %v252 = vmax.f32 %v188, 0.0
  %v253 = vmax.f32 %v189, 0.0
  %v254 = vmax.f32 %v190, 0.0
  %v255 = vmax.f32 %v191, 0.0
  %v256 = vmax.f32 %v192, 0.0
  %v257 = vmax.f32 %v193, 0.0
  %v258 = vmax.f32 %v194, 0.0
  %v259 = vmax.f32 %v195, 0.0
  %v260 = vmax.f32 %v196, 0.0
  %v261 = vmax.f32 %v197, 0.0
  %v262 = vmax.f32 %v198, 0.0
  %v263 = vmax.f32 %v199, 0.0
  %v264 = vmax.f32 %v200, 0.0
  %v265 = vmax.f32 %v201, 0.0
  %v266 = vmax.f32 %v202, 0.0
  %v267 = vmax.f32 %v203, 0.0
  %v268 = vmax.f32 %v204, 0.0
  %v269 = vmax.f32 %v205, 0.0
  %v270 = vmax.f32 %v206, 0.0
  %v271 = vmax.f32 %v207, 0.0
  %v272 = vmax.f32 %v208, 0.0
  %v273 = vmax.f32 %v209, 0.0
  %v274 = vmax.f32 %v210, 0.0
  %v275 = vmax.f32 %v211, 0.0
  %v276 = vmax.f32 %v212, 0.0
  %v277 = vmax.f32 %v213, 0.0
  %v278 = vmax.f32 %v214, 0.0
  %v279 = vmax.f32 %v215, 0.0
  %v280 = vmax.f32 %v216, 0.0
  %v281 = vmax.f32 %v217, 0.0
  %v282 = vmax.f32 %v218, 0.0
  %v283 = vmax.f32 %v219, 0.0
  %v284 = vmax.f32 %v220, 0.0
  %v285 = vmax.f32 %v221, 0.0
  %v286 = vmax.f32 %v222, 0.0
  %v287 = vmax.f32 %v223, 0.0
  %v288 = vmax.f32 %v224, 0.0
  %v289 = vmax.f32 %v225, 0.0
  %v290 = vmax.f32 %v226, 0.0
  %v291 = vmax.f32 %v227, 0.0
  %v292 = vmax.f32 %v228, 0.0
  %v293 = vmax.f32 %v229, 0.0
  %v294 = vmax.f32 %v230, 0.0
  %v295 = vmax.f32 %v231, 0.0
  %v296 = vmax.f32 %v232, 0.0
  %v297 = vpack.c.bf16 %v234, %v233
  %v298 = vpack.c.bf16 %v236, %v235
  %v299 = vpack.c.bf16 %v238, %v237
  %v300 = vpack.c.bf16 %v240, %v239
  %v301 = vpack.c.bf16 %v242, %v241
  %v302 = vpack.c.bf16 %v244, %v243
  %v303 = vpack.c.bf16 %v246, %v245
  %v304 = vpack.c.bf16 %v248, %v247
  %v305 = vpack.c.bf16 %v250, %v249
  %v306 = vpack.c.bf16 %v252, %v251
  %v307 = vpack.c.bf16 %v254, %v253
  %v308 = vpack.c.bf16 %v256, %v255
  %v309 = vpack.c.bf16 %v258, %v257
  %v310 = vpack.c.bf16 %v260, %v259
  %v311 = vpack.c.bf16 %v262, %v261
  %v312 = vpack.c.bf16 %v264, %v263
  %v313 = vpack.c.bf16 %v266, %v265
  %v314 = vpack.c.bf16 %v268, %v267
  %v315 = vpack.c.bf16 %v270, %v269
  %v316 = vpack.c.bf16 %v272, %v271
  %v317 = vpack.c.bf16 %v274, %v273
  %v318 = vpack.c.bf16 %v276, %v275
  %v319 = vpack.c.bf16 %v278, %v277
  %v320 = vpack.c.bf16 %v280, %v279
  %v321 = vpack.c.bf16 %v282, %v281
  %v322 = vpack.c.bf16 %v284, %v283
  %v323 = vpack.c.bf16 %v286, %v285
  %v324 = vpack.c.bf16 %v288, %v287
  %v325 = vpack.c.bf16 %v290, %v289
  %v326 = vpack.c.bf16 %v292, %v291
  %v327 = vpack.c.bf16 %v294, %v293
  %v328 = vpack.c.bf16 %v296, %v295
  %v329 = vld [vmem:[%s6] sm:$0x3]
  %v330 = vld [vmem:[%s1] sm:$0xff]
  %v331 = vld [vmem:[%s1 + $0x8] sm:$0xff]
  %v332 = vld [vmem:[%s1 + $0x10] sm:$0xff]
  %v333 = vld [vmem:[%s1 + $0x18] sm:$0xff]
  %v334 = vld [vmem:[%s1 + $0x20] sm:$0xff]
  %v335 = vld [vmem:[%s1 + $0x28] sm:$0xff]
  %v336 = vld [vmem:[%s1 + $0x30] sm:$0xff]
  %v337 = vld [vmem:[%s1 + $0x38] sm:$0xff]
  %v338 = vld [vmem:[%s1 + $0x40] sm:$0xff]
  %v339 = vld [vmem:[%s1 + $0x48] sm:$0xff]
  %v340 = vld [vmem:[%s1 + $0x50] sm:$0xff]
  %v341 = vld [vmem:[%s1 + $0x58] sm:$0xff]
  %v342 = vld [vmem:[%s1 + $0x60] sm:$0xff]
  %v343 = vld [vmem:[%s1 + $0x68] sm:$0xff]
  %v344 = vld [vmem:[%s1 + $0x70] sm:$0xff]
  %v345 = vld [vmem:[%s1 + $0x78] sm:$0xff]
  %v346 = vld [vmem:[%s1 + $0x80] sm:$0xff]
  %v347 = vld [vmem:[%s1 + $0x88] sm:$0xff]
  %v348 = vld [vmem:[%s1 + $0x90] sm:$0xff]
  %v349 = vld [vmem:[%s1 + $0x98] sm:$0xff]
  %v350 = vld [vmem:[%s1 + $0xa0] sm:$0xff]
  %v351 = vld [vmem:[%s1 + $0xa8] sm:$0xff]
  %v352 = vld [vmem:[%s1 + $0xb0] sm:$0xff]
  %v353 = vld [vmem:[%s1 + $0xb8] sm:$0xff]
  %v354 = vld [vmem:[%s1 + $0xc0] sm:$0xff]
  %v355 = vld [vmem:[%s1 + $0xc8] sm:$0xff]
  %v356 = vld [vmem:[%s1 + $0xd0] sm:$0xff]
  %v357 = vld [vmem:[%s1 + $0xd8] sm:$0xff]
  %v358 = vld [vmem:[%s1 + $0xe0] sm:$0xff]
  %v359 = vld [vmem:[%s1 + $0xe8] sm:$0xff]
  %v360 = vld [vmem:[%s1 + $0xf0] sm:$0xff]
  %v361 = vld [vmem:[%s1 + $0xf8] sm:$0xff]
  %v362 = vld [vmem:[%s1 + $0x100] sm:$0xff]
  %v363 = vld [vmem:[%s1 + $0x108] sm:$0xff]
  %v364 = vld [vmem:[%s1 + $0x110] sm:$0xff]
  %v365 = vld [vmem:[%s1 + $0x118] sm:$0xff]
  %v366 = vld [vmem:[%s1 + $0x120] sm:$0xff]
  %v367 = vld [vmem:[%s1 + $0x128] sm:$0xff]
  %v368 = vld [vmem:[%s1 + $0x130] sm:$0xff]
  %v369 = vld [vmem:[%s1 + $0x138] sm:$0xff]
  %v370 = vld [vmem:[%s1 + $0x140] sm:$0xff]
  %v371 = vld [vmem:[%s1 + $0x148] sm:$0xff]
  %v372 = vld [vmem:[%s1 + $0x150] sm:$0xff]
  %v373 = vld [vmem:[%s1 + $0x158] sm:$0xff]
  %v374 = vld [vmem:[%s1 + $0x160] sm:$0xff]
  %v375 = vld [vmem:[%s1 + $0x168] sm:$0xff]
  %v376 = vld [vmem:[%s1 + $0x170] sm:$0xff]
  %v377 = vld [vmem:[%s1 + $0x178] sm:$0xff]
  %v378 = vld [vmem:[%s1 + $0x180] sm:$0xff]
  %v379 = vld [vmem:[%s1 + $0x188] sm:$0xff]
  %v380 = vld [vmem:[%s1 + $0x190] sm:$0xff]
  %v381 = vld [vmem:[%s1 + $0x198] sm:$0xff]
  %v382 = vld [vmem:[%s1 + $0x1a0] sm:$0xff]
  %v383 = vld [vmem:[%s1 + $0x1a8] sm:$0xff]
  %v384 = vld [vmem:[%s1 + $0x1b0] sm:$0xff]
  %v385 = vld [vmem:[%s1 + $0x1b8] sm:$0xff]
  %v386 = vld [vmem:[%s1 + $0x1c0] sm:$0xff]
  %v387 = vld [vmem:[%s1 + $0x1c8] sm:$0xff]
  %v388 = vld [vmem:[%s1 + $0x1d0] sm:$0xff]
  %v389 = vld [vmem:[%s1 + $0x1d8] sm:$0xff]
  %v390 = vld [vmem:[%s1 + $0x1e0] sm:$0xff]
  %v391 = vld [vmem:[%s1 + $0x1e8] sm:$0xff]
  %v392 = vld [vmem:[%s1 + $0x1f0] sm:$0xff]
  %v393 = vld [vmem:[%s1 + $0x1f8] sm:$0xff]
  %v394 = vld [vmem:[%s3] sm:$0x1]
  %v396 = vperm.slane %v394, 0
  %v398 = vmul.f32 %v330, %v396
  %v399 = vmul.f32 %v331, %v396
  %v400 = vmul.f32 %v332, %v396
  %v401 = vmul.f32 %v333, %v396
  %v402 = vmul.f32 %v334, %v396
  %v403 = vmul.f32 %v335, %v396
  %v404 = vmul.f32 %v336, %v396
  %v405 = vmul.f32 %v337, %v396
  %v406 = vmul.f32 %v338, %v396
  %v407 = vmul.f32 %v339, %v396
  %v408 = vmul.f32 %v340, %v396
  %v409 = vmul.f32 %v341, %v396
  %v410 = vmul.f32 %v342, %v396
  %v411 = vmul.f32 %v343, %v396
  %v412 = vmul.f32 %v344, %v396
  %v413 = vmul.f32 %v345, %v396
  %v414 = vmul.f32 %v346, %v396
  %v415 = vmul.f32 %v347, %v396
  %v416 = vmul.f32 %v348, %v396
  %v417 = vmul.f32 %v349, %v396
  %v418 = vmul.f32 %v350, %v396
  %v419 = vmul.f32 %v351, %v396
  %v420 = vmul.f32 %v352, %v396
  %v421 = vmul.f32 %v353, %v396
  %v422 = vmul.f32 %v354, %v396
  %v423 = vmul.f32 %v355, %v396
  %v424 = vmul.f32 %v356, %v396
  %v425 = vmul.f32 %v357, %v396
  %v426 = vmul.f32 %v358, %v396
  %v427 = vmul.f32 %v359, %v396
  %v428 = vmul.f32 %v360, %v396
  %v429 = vmul.f32 %v361, %v396
  %v430 = vmul.f32 %v362, %v396
  %v431 = vmul.f32 %v363, %v396
  %v432 = vmul.f32 %v364, %v396
  %v433 = vmul.f32 %v365, %v396
  %v434 = vmul.f32 %v366, %v396
  %v435 = vmul.f32 %v367, %v396
  %v436 = vmul.f32 %v368, %v396
  %v437 = vmul.f32 %v369, %v396
  %v438 = vmul.f32 %v370, %v396
  %v439 = vmul.f32 %v371, %v396
  %v440 = vmul.f32 %v372, %v396
  %v441 = vmul.f32 %v373, %v396
  %v442 = vmul.f32 %v374, %v396
  %v443 = vmul.f32 %v375, %v396
  %v444 = vmul.f32 %v376, %v396
  %v445 = vmul.f32 %v377, %v396
  %v446 = vmul.f32 %v378, %v396
  %v447 = vmul.f32 %v379, %v396
  %v448 = vmul.f32 %v380, %v396
  %v449 = vmul.f32 %v381, %v396
  %v450 = vmul.f32 %v382, %v396
  %v451 = vmul.f32 %v383, %v396
  %v452 = vmul.f32 %v384, %v396
  %v453 = vmul.f32 %v385, %v396
  %v454 = vmul.f32 %v386, %v396
  %v455 = vmul.f32 %v387, %v396
  %v456 = vmul.f32 %v388, %v396
  %v457 = vmul.f32 %v389, %v396
  %v458 = vmul.f32 %v390, %v396
  %v459 = vmul.f32 %v391, %v396
  %v460 = vmul.f32 %v392, %v396
  %v461 = vmul.f32 %v393, %v396
  %v462 = vld [vmem:[%s5] sm:$0x1]
  %v464 = vperm.slane %v462, 0
  %v466 = vadd.f32 %v398, %v464
  %v467 = vadd.f32 %v399, %v464
  %v468 = vadd.f32 %v400, %v464
  %v469 = vadd.f32 %v401, %v464
  %v470 = vadd.f32 %v402, %v464
  %v471 = vadd.f32 %v403, %v464
  %v472 = vadd.f32 %v404, %v464
  %v473 = vadd.f32 %v405, %v464
  %v474 = vadd.f32 %v406, %v464
  %v475 = vadd.f32 %v407, %v464
  %v476 = vadd.f32 %v408, %v464
  %v477 = vadd.f32 %v409, %v464
  %v478 = vadd.f32 %v410, %v464
  %v479 = vadd.f32 %v411, %v464
  %v480 = vadd.f32 %v412, %v464
  %v481 = vadd.f32 %v413, %v464
  %v482 = vadd.f32 %v414, %v464
  %v483 = vadd.f32 %v415, %v464
  %v484 = vadd.f32 %v416, %v464
  %v485 = vadd.f32 %v417, %v464
  %v486 = vadd.f32 %v418, %v464
  %v487 = vadd.f32 %v419, %v464
  %v488 = vadd.f32 %v420, %v464
  %v489 = vadd.f32 %v421, %v464
  %v490 = vadd.f32 %v422, %v464
  %v491 = vadd.f32 %v423, %v464
  %v492 = vadd.f32 %v424, %v464
  %v493 = vadd.f32 %v425, %v464
  %v494 = vadd.f32 %v426, %v464
  %v495 = vadd.f32 %v427, %v464
  %v496 = vadd.f32 %v428, %v464
  %v497 = vadd.f32 %v429, %v464
  %v498 = vadd.f32 %v430, %v464
  %v499 = vadd.f32 %v431, %v464
  %v500 = vadd.f32 %v432, %v464
  %v501 = vadd.f32 %v433, %v464
  %v502 = vadd.f32 %v434, %v464
  %v503 = vadd.f32 %v435, %v464
  %v504 = vadd.f32 %v436, %v464
  %v505 = vadd.f32 %v437, %v464
  %v506 = vadd.f32 %v438, %v464
  %v507 = vadd.f32 %v439, %v464
  %v508 = vadd.f32 %v440, %v464
  %v509 = vadd.f32 %v441, %v464
  %v510 = vadd.f32 %v442, %v464
  %v511 = vadd.f32 %v443, %v464
  %v512 = vadd.f32 %v444, %v464
  %v513 = vadd.f32 %v445, %v464
  %v514 = vadd.f32 %v446, %v464
  %v515 = vadd.f32 %v447, %v464
  %v516 = vadd.f32 %v448, %v464
  %v517 = vadd.f32 %v449, %v464
  %v518 = vadd.f32 %v450, %v464
  %v519 = vadd.f32 %v451, %v464
  %v520 = vadd.f32 %v452, %v464
  %v521 = vadd.f32 %v453, %v464
  %v522 = vadd.f32 %v454, %v464
  %v523 = vadd.f32 %v455, %v464
  %v524 = vadd.f32 %v456, %v464
  %v525 = vadd.f32 %v457, %v464
  %v526 = vadd.f32 %v458, %v464
  %v527 = vadd.f32 %v459, %v464
  %v528 = vadd.f32 %v460, %v464
  %v529 = vadd.f32 %v461, %v464
  %v530 = vmax.f32 %v466, 0.0
  %v531 = vmax.f32 %v467, 0.0
  %v532 = vmax.f32 %v468, 0.0
  %v533 = vmax.f32 %v469, 0.0
  %v534 = vmax.f32 %v470, 0.0
  %v535 = vmax.f32 %v471, 0.0
  %v536 = vmax.f32 %v472, 0.0
  %v537 = vmax.f32 %v473, 0.0
  %v538 = vmax.f32 %v474, 0.0
  %v539 = vmax.f32 %v475, 0.0
  %v540 = vmax.f32 %v476, 0.0
  %v541 = vmax.f32 %v477, 0.0
  %v542 = vmax.f32 %v478, 0.0
  %v543 = vmax.f32 %v479, 0.0
  %v544 = vmax.f32 %v480, 0.0
  %v545 = vmax.f32 %v481, 0.0
  %v546 = vmax.f32 %v482, 0.0
  %v547 = vmax.f32 %v483, 0.0
  %v548 = vmax.f32 %v484, 0.0
  %v549 = vmax.f32 %v485, 0.0
  %v550 = vmax.f32 %v486, 0.0
  %v551 = vmax.f32 %v487, 0.0
  %v552 = vmax.f32 %v488, 0.0
  %v553 = vmax.f32 %v489, 0.0
  %v554 = vmax.f32 %v490, 0.0
  %v555 = vmax.f32 %v491, 0.0
  %v556 = vmax.f32 %v492, 0.0
  %v557 = vmax.f32 %v493, 0.0
  %v558 = vmax.f32 %v494, 0.0
  %v559 = vmax.f32 %v495, 0.0
  %v560 = vmax.f32 %v496, 0.0
  %v561 = vmax.f32 %v497, 0.0
  %v562 = vmax.f32 %v498, 0.0
  %v563 = vmax.f32 %v499, 0.0
  %v564 = vmax.f32 %v500, 0.0
  %v565 = vmax.f32 %v501, 0.0
  %v566 = vmax.f32 %v502, 0.0
  %v567 = vmax.f32 %v503, 0.0
  %v568 = vmax.f32 %v504, 0.0
  %v569 = vmax.f32 %v505, 0.0
  %v570 = vmax.f32 %v506, 0.0
  %v571 = vmax.f32 %v507, 0.0
  %v572 = vmax.f32 %v508, 0.0
  %v573 = vmax.f32 %v509, 0.0
  %v574 = vmax.f32 %v510, 0.0
  %v575 = vmax.f32 %v511, 0.0
  %v576 = vmax.f32 %v512, 0.0
  %v577 = vmax.f32 %v513, 0.0
  %v578 = vmax.f32 %v514, 0.0
  %v579 = vmax.f32 %v515, 0.0
  %v580 = vmax.f32 %v516, 0.0
  %v581 = vmax.f32 %v517, 0.0
  %v582 = vmax.f32 %v518, 0.0
  %v583 = vmax.f32 %v519, 0.0
  %v584 = vmax.f32 %v520, 0.0
  %v585 = vmax.f32 %v521, 0.0
  %v586 = vmax.f32 %v522, 0.0
  %v587 = vmax.f32 %v523, 0.0
  %v588 = vmax.f32 %v524, 0.0
  %v589 = vmax.f32 %v525, 0.0
  %v590 = vmax.f32 %v526, 0.0
  %v591 = vmax.f32 %v527, 0.0
  %v592 = vmax.f32 %v528, 0.0
  %v593 = vmax.f32 %v529, 0.0
  %v594 = vpack.c.bf16 %v531, %v530
  %v595 = vpack.c.bf16 %v533, %v532
  %v596 = vpack.c.bf16 %v535, %v534
  %v597 = vpack.c.bf16 %v537, %v536
  %v598 = vpack.c.bf16 %v539, %v538
  %v599 = vpack.c.bf16 %v541, %v540
  %v600 = vpack.c.bf16 %v543, %v542
  %v601 = vpack.c.bf16 %v545, %v544
  %v602 = vpack.c.bf16 %v547, %v546
  %v603 = vpack.c.bf16 %v549, %v548
  %v604 = vpack.c.bf16 %v551, %v550
  %v605 = vpack.c.bf16 %v553, %v552
  %v606 = vpack.c.bf16 %v555, %v554
  %v607 = vpack.c.bf16 %v557, %v556
  %v608 = vpack.c.bf16 %v559, %v558
  %v609 = vpack.c.bf16 %v561, %v560
  %v610 = vpack.c.bf16 %v563, %v562
  %v611 = vpack.c.bf16 %v565, %v564
  %v612 = vpack.c.bf16 %v567, %v566
  %v613 = vpack.c.bf16 %v569, %v568
  %v614 = vpack.c.bf16 %v571, %v570
  %v615 = vpack.c.bf16 %v573, %v572
  %v616 = vpack.c.bf16 %v575, %v574
  %v617 = vpack.c.bf16 %v577, %v576
  %v618 = vpack.c.bf16 %v579, %v578
  %v619 = vpack.c.bf16 %v581, %v580
  %v620 = vpack.c.bf16 %v583, %v582
  %v621 = vpack.c.bf16 %v585, %v584
  %v622 = vpack.c.bf16 %v587, %v586
  %v623 = vpack.c.bf16 %v589, %v588
  %v624 = vpack.c.bf16 %v591, %v590
  %v625 = vpack.c.bf16 %v593, %v592
  %v626 = vld [vmem:[%s7] sm:$0x3]
  %vm627 = vcmask 31744
  %v629 = vsel %vm627, %v594, 0
  %v632 = vsel %vm627, %v595, 0
  %v635 = vsel %vm627, %v596, 0
  %v638 = vsel %vm627, %v597, 0
  %v641 = vsel %vm627, %v598, 0
  %v644 = vsel %vm627, %v599, 0
  %v647 = vsel %vm627, %v600, 0
  %v650 = vsel %vm627, %v601, 0
  %v653 = vsel %vm627, %v602, 0
  %v656 = vsel %vm627, %v603, 0
  %v659 = vsel %vm627, %v604, 0
  %v662 = vsel %vm627, %v605, 0
  %v665 = vsel %vm627, %v606, 0
  %v668 = vsel %vm627, %v607, 0
  %v671 = vsel %vm627, %v608, 0
  %v674 = vsel %vm627, %v609, 0
  %v677 = vsel %vm627, %v610, 0
  %v680 = vsel %vm627, %v611, 0
  %v683 = vsel %vm627, %v612, 0
  %v686 = vsel %vm627, %v613, 0
  %v689 = vsel %vm627, %v614, 0
  %v692 = vsel %vm627, %v615, 0
  %v695 = vsel %vm627, %v616, 0
  %v698 = vsel %vm627, %v617, 0
  %v701 = vsel %vm627, %v618, 0
  %v704 = vsel %vm627, %v619, 0
  %v707 = vsel %vm627, %v620, 0
  %v710 = vsel %vm627, %v621, 0
  %v713 = vsel %vm627, %v622, 0
  %v716 = vsel %vm627, %v623, 0
  %v719 = vsel %vm627, %v624, 0
  %v722 = vsel %vm627, %v625, 0
  %vm724 = vcmask 1041408
  %v726 = vsel %vm724, %v626, 0
  %728 = vmatpush.bf16.msra.mxu0 0
  %729 = vmatpush.bf16.msra.mxu0 0
  %730 = vmatpush.bf16.msra.mxu0 0
  %731 = vmatpush.bf16.msra.mxu0 0
  %732 = vmatpush.bf16.msra.mxu0 0
  %733 = vmatpush.bf16.msra.mxu0 0
  %734 = vmatpush.bf16.msra.mxu0 0
  %735 = vmatpush.bf16.msra.mxu0 %v726
  %736 = vmatmul.bf16.gmra.mxu0 %v629
  %v737 = vpop.f32.mrf.mxu0
  %v738 = vadd.f32 0.0, %v737
  %v739 = vpop.f32.mrf.mxu0
  %v740 = vadd.f32 0.0, %v739
  %741 = vmatmul.bf16.gmra.mxu0 %v632
  %v742 = vpop.f32.mrf.mxu0
  %v743 = vadd.f32 0.0, %v742
  %v744 = vpop.f32.mrf.mxu0
  %v745 = vadd.f32 0.0, %v744
  %746 = vmatmul.bf16.gmra.mxu0 %v635
  %v747 = vpop.f32.mrf.mxu0
  %v748 = vadd.f32 0.0, %v747
  %v749 = vpop.f32.mrf.mxu0
  %v750 = vadd.f32 0.0, %v749
  %751 = vmatmul.bf16.gmra.mxu0 %v638
  %v752 = vpop.f32.mrf.mxu0
  %v753 = vadd.f32 0.0, %v752
  %v754 = vpop.f32.mrf.mxu0
  %v755 = vadd.f32 0.0, %v754
  %756 = vmatmul.bf16.gmra.mxu0 %v641
  %v757 = vpop.f32.mrf.mxu0
  %v758 = vadd.f32 0.0, %v757
  %v759 = vpop.f32.mrf.mxu0
  %v760 = vadd.f32 0.0, %v759
  %761 = vmatmul.bf16.gmra.mxu0 %v644
  %v762 = vpop.f32.mrf.mxu0
  %v763 = vadd.f32 0.0, %v762
  %v764 = vpop.f32.mrf.mxu0
  %v765 = vadd.f32 0.0, %v764
  %766 = vmatmul.bf16.gmra.mxu0 %v647
  %v767 = vpop.f32.mrf.mxu0
  %v768 = vadd.f32 0.0, %v767
  %v769 = vpop.f32.mrf.mxu0
  %v770 = vadd.f32 0.0, %v769
  %771 = vmatmul.bf16.gmra.mxu0 %v650
  %v772 = vpop.f32.mrf.mxu0
  %v773 = vadd.f32 0.0, %v772
  %v774 = vpop.f32.mrf.mxu0
  %v775 = vadd.f32 0.0, %v774
  %776 = vmatmul.bf16.gmra.mxu0 %v653
  %v777 = vpop.f32.mrf.mxu0
  %v778 = vadd.f32 0.0, %v777
  %v779 = vpop.f32.mrf.mxu0
  %v780 = vadd.f32 0.0, %v779
  %781 = vmatmul.bf16.gmra.mxu0 %v656
  %v782 = vpop.f32.mrf.mxu0
  %v783 = vadd.f32 0.0, %v782
  %v784 = vpop.f32.mrf.mxu0
  %v785 = vadd.f32 0.0, %v784
  %786 = vmatmul.bf16.gmra.mxu0 %v659
  %v787 = vpop.f32.mrf.mxu0
  %v788 = vadd.f32 0.0, %v787
  %v789 = vpop.f32.mrf.mxu0
  %v790 = vadd.f32 0.0, %v789
  %791 = vmatmul.bf16.gmra.mxu0 %v662
  %v792 = vpop.f32.mrf.mxu0
  %v793 = vadd.f32 0.0, %v792
  %v794 = vpop.f32.mrf.mxu0
  %v795 = vadd.f32 0.0, %v794
  %796 = vmatmul.bf16.gmra.mxu0 %v665
  %v797 = vpop.f32.mrf.mxu0
  %v798 = vadd.f32 0.0, %v797
  %v799 = vpop.f32.mrf.mxu0
  %v800 = vadd.f32 0.0, %v799
  %801 = vmatmul.bf16.gmra.mxu0 %v668
  %v802 = vpop.f32.mrf.mxu0
  %v803 = vadd.f32 0.0, %v802
  %v804 = vpop.f32.mrf.mxu0
  %v805 = vadd.f32 0.0, %v804
  %806 = vmatmul.bf16.gmra.mxu0 %v671
  %v807 = vpop.f32.mrf.mxu0
  %v808 = vadd.f32 0.0, %v807
  %v809 = vpop.f32.mrf.mxu0
  %v810 = vadd.f32 0.0, %v809
  %811 = vmatmul.bf16.gmra.mxu0 %v674
  %v812 = vpop.f32.mrf.mxu0
  %v813 = vadd.f32 0.0, %v812
  %v814 = vpop.f32.mrf.mxu0
  %v815 = vadd.f32 0.0, %v814
  %816 = vmatmul.bf16.gmra.mxu0 %v677
  %v817 = vpop.f32.mrf.mxu0
  %v818 = vadd.f32 0.0, %v817
  %v819 = vpop.f32.mrf.mxu0
  %v820 = vadd.f32 0.0, %v819
  %821 = vmatmul.bf16.gmra.mxu0 %v680
  %v822 = vpop.f32.mrf.mxu0
  %v823 = vadd.f32 0.0, %v822
  %v824 = vpop.f32.mrf.mxu0
  %v825 = vadd.f32 0.0, %v824
  %826 = vmatmul.bf16.gmra.mxu0 %v683
  %v827 = vpop.f32.mrf.mxu0
  %v828 = vadd.f32 0.0, %v827
  %v829 = vpop.f32.mrf.mxu0
  %v830 = vadd.f32 0.0, %v829
  %831 = vmatmul.bf16.gmra.mxu0 %v686
  %v832 = vpop.f32.mrf.mxu0
  %v833 = vadd.f32 0.0, %v832
  %v834 = vpop.f32.mrf.mxu0
  %v835 = vadd.f32 0.0, %v834
  %836 = vmatmul.bf16.gmra.mxu0 %v689
  %v837 = vpop.f32.mrf.mxu0
  %v838 = vadd.f32 0.0, %v837
  %v839 = vpop.f32.mrf.mxu0
  %v840 = vadd.f32 0.0, %v839
  %841 = vmatmul.bf16.gmra.mxu0 %v692
  %v842 = vpop.f32.mrf.mxu0
  %v843 = vadd.f32 0.0, %v842
  %v844 = vpop.f32.mrf.mxu0
  %v845 = vadd.f32 0.0, %v844
  %846 = vmatmul.bf16.gmra.mxu0 %v695
  %v847 = vpop.f32.mrf.mxu0
  %v848 = vadd.f32 0.0, %v847
  %v849 = vpop.f32.mrf.mxu0
  %v850 = vadd.f32 0.0, %v849
  %851 = vmatmul.bf16.gmra.mxu0 %v698
  %v852 = vpop.f32.mrf.mxu0
  %v853 = vadd.f32 0.0, %v852
  %v854 = vpop.f32.mrf.mxu0
  %v855 = vadd.f32 0.0, %v854
  %856 = vmatmul.bf16.gmra.mxu0 %v701
  %v857 = vpop.f32.mrf.mxu0
  %v858 = vadd.f32 0.0, %v857
  %v859 = vpop.f32.mrf.mxu0
  %v860 = vadd.f32 0.0, %v859
  %861 = vmatmul.bf16.gmra.mxu0 %v704
  %v862 = vpop.f32.mrf.mxu0
  %v863 = vadd.f32 0.0, %v862
  %v864 = vpop.f32.mrf.mxu0
  %v865 = vadd.f32 0.0, %v864
  %866 = vmatmul.bf16.gmra.mxu0 %v707
  %v867 = vpop.f32.mrf.mxu0
  %v868 = vadd.f32 0.0, %v867
  %v869 = vpop.f32.mrf.mxu0
  %v870 = vadd.f32 0.0, %v869
  %871 = vmatmul.bf16.gmra.mxu0 %v710
  %v872 = vpop.f32.mrf.mxu0
  %v873 = vadd.f32 0.0, %v872
  %v874 = vpop.f32.mrf.mxu0
  %v875 = vadd.f32 0.0, %v874
  %876 = vmatmul.bf16.gmra.mxu0 %v713
  %v877 = vpop.f32.mrf.mxu0
  %v878 = vadd.f32 0.0, %v877
  %v879 = vpop.f32.mrf.mxu0
  %v880 = vadd.f32 0.0, %v879
  %881 = vmatmul.bf16.gmra.mxu0 %v716
  %v882 = vpop.f32.mrf.mxu0
  %v883 = vadd.f32 0.0, %v882
  %v884 = vpop.f32.mrf.mxu0
  %v885 = vadd.f32 0.0, %v884
  %886 = vmatmul.bf16.gmra.mxu0 %v719
  %v887 = vpop.f32.mrf.mxu0
  %v888 = vadd.f32 0.0, %v887
  %v889 = vpop.f32.mrf.mxu0
  %v890 = vadd.f32 0.0, %v889
  %891 = vmatmul.bf16.gmra.mxu0 %v722
  %v892 = vpop.f32.mrf.mxu0
  %v893 = vadd.f32 0.0, %v892
  %v894 = vpop.f32.mrf.mxu0
  %v895 = vadd.f32 0.0, %v894
  %896 = vdwg.mxu0
  %v898 = vsel %vm627, %v297, 0
  %v901 = vsel %vm627, %v298, 0
  %v904 = vsel %vm627, %v299, 0
  %v907 = vsel %vm627, %v300, 0
  %v910 = vsel %vm627, %v301, 0
  %v913 = vsel %vm627, %v302, 0
  %v916 = vsel %vm627, %v303, 0
  %v919 = vsel %vm627, %v304, 0
  %v922 = vsel %vm627, %v305, 0
  %v925 = vsel %vm627, %v306, 0
  %v928 = vsel %vm627, %v307, 0
  %v931 = vsel %vm627, %v308, 0
  %v934 = vsel %vm627, %v309, 0
  %v937 = vsel %vm627, %v310, 0
  %v940 = vsel %vm627, %v311, 0
  %v943 = vsel %vm627, %v312, 0
  %v946 = vsel %vm627, %v313, 0
  %v949 = vsel %vm627, %v314, 0
  %v952 = vsel %vm627, %v315, 0
  %v955 = vsel %vm627, %v316, 0
  %v958 = vsel %vm627, %v317, 0
  %v961 = vsel %vm627, %v318, 0
  %v964 = vsel %vm627, %v319, 0
  %v967 = vsel %vm627, %v320, 0
  %v970 = vsel %vm627, %v321, 0
  %v973 = vsel %vm627, %v322, 0
  %v976 = vsel %vm627, %v323, 0
  %v979 = vsel %vm627, %v324, 0
  %v982 = vsel %vm627, %v325, 0
  %v985 = vsel %vm627, %v326, 0
  %v988 = vsel %vm627, %v327, 0
  %v991 = vsel %vm627, %v328, 0
  %v994 = vsel %vm724, %v329, 0
  %996 = vmatpush.bf16.msra.mxu0 0
  %997 = vmatpush.bf16.msra.mxu0 0
  %998 = vmatpush.bf16.msra.mxu0 0
  %999 = vmatpush.bf16.msra.mxu0 0
  %1000 = vmatpush.bf16.msra.mxu0 0
  %1001 = vmatpush.bf16.msra.mxu0 0
  %1002 = vmatpush.bf16.msra.mxu0 0
  %1003 = vmatpush.bf16.msra.mxu0 %v994
  %1004 = vmatmul.bf16.gmra.mxu0 %v898
  %v1005 = vpop.f32.mrf.mxu0
  %v1006 = vadd.f32 %v738, %v1005
  %v1007 = vpop.f32.mrf.mxu0
  %v1008 = vadd.f32 %v740, %v1007
  %1009 = vmatmul.bf16.gmra.mxu0 %v901
  %v1010 = vpop.f32.mrf.mxu0
  %v1011 = vadd.f32 %v743, %v1010
  %v1012 = vpop.f32.mrf.mxu0
  %v1013 = vadd.f32 %v745, %v1012
  %1014 = vmatmul.bf16.gmra.mxu0 %v904
  %v1015 = vpop.f32.mrf.mxu0
  %v1016 = vadd.f32 %v748, %v1015
  %v1017 = vpop.f32.mrf.mxu0
  %v1018 = vadd.f32 %v750, %v1017
  %1019 = vmatmul.bf16.gmra.mxu0 %v907
  %v1020 = vpop.f32.mrf.mxu0
  %v1021 = vadd.f32 %v753, %v1020
  %v1022 = vpop.f32.mrf.mxu0
  %v1023 = vadd.f32 %v755, %v1022
  %1024 = vmatmul.bf16.gmra.mxu0 %v910
  %v1025 = vpop.f32.mrf.mxu0
  %v1026 = vadd.f32 %v758, %v1025
  %v1027 = vpop.f32.mrf.mxu0
  %v1028 = vadd.f32 %v760, %v1027
  %1029 = vmatmul.bf16.gmra.mxu0 %v913
  %v1030 = vpop.f32.mrf.mxu0
  %v1031 = vadd.f32 %v763, %v1030
  %v1032 = vpop.f32.mrf.mxu0
  %v1033 = vadd.f32 %v765, %v1032
  %1034 = vmatmul.bf16.gmra.mxu0 %v916
  %v1035 = vpop.f32.mrf.mxu0
  %v1036 = vadd.f32 %v768, %v1035
  %v1037 = vpop.f32.mrf.mxu0
  %v1038 = vadd.f32 %v770, %v1037
  %1039 = vmatmul.bf16.gmra.mxu0 %v919
  %v1040 = vpop.f32.mrf.mxu0
  %v1041 = vadd.f32 %v773, %v1040
  %v1042 = vpop.f32.mrf.mxu0
  %v1043 = vadd.f32 %v775, %v1042
  %1044 = vmatmul.bf16.gmra.mxu0 %v922
  %v1045 = vpop.f32.mrf.mxu0
  %v1046 = vadd.f32 %v778, %v1045
  %v1047 = vpop.f32.mrf.mxu0
  %v1048 = vadd.f32 %v780, %v1047
  %1049 = vmatmul.bf16.gmra.mxu0 %v925
  %v1050 = vpop.f32.mrf.mxu0
  %v1051 = vadd.f32 %v783, %v1050
  %v1052 = vpop.f32.mrf.mxu0
  %v1053 = vadd.f32 %v785, %v1052
  %1054 = vmatmul.bf16.gmra.mxu0 %v928
  %v1055 = vpop.f32.mrf.mxu0
  %v1056 = vadd.f32 %v788, %v1055
  %v1057 = vpop.f32.mrf.mxu0
  %v1058 = vadd.f32 %v790, %v1057
  %1059 = vmatmul.bf16.gmra.mxu0 %v931
  %v1060 = vpop.f32.mrf.mxu0
  %v1061 = vadd.f32 %v793, %v1060
  %v1062 = vpop.f32.mrf.mxu0
  %v1063 = vadd.f32 %v795, %v1062
  %1064 = vmatmul.bf16.gmra.mxu0 %v934
  %v1065 = vpop.f32.mrf.mxu0
  %v1066 = vadd.f32 %v798, %v1065
  %v1067 = vpop.f32.mrf.mxu0
  %v1068 = vadd.f32 %v800, %v1067
  %1069 = vmatmul.bf16.gmra.mxu0 %v937
  %v1070 = vpop.f32.mrf.mxu0
  %v1071 = vadd.f32 %v803, %v1070
  %v1072 = vpop.f32.mrf.mxu0
  %v1073 = vadd.f32 %v805, %v1072
  %1074 = vmatmul.bf16.gmra.mxu0 %v940
  %v1075 = vpop.f32.mrf.mxu0
  %v1076 = vadd.f32 %v808, %v1075
  %v1077 = vpop.f32.mrf.mxu0
  %v1078 = vadd.f32 %v810, %v1077
  %1079 = vmatmul.bf16.gmra.mxu0 %v943
  %v1080 = vpop.f32.mrf.mxu0
  %v1081 = vadd.f32 %v813, %v1080
  %v1082 = vpop.f32.mrf.mxu0
  %v1083 = vadd.f32 %v815, %v1082
  %1084 = vmatmul.bf16.gmra.mxu0 %v946
  %v1085 = vpop.f32.mrf.mxu0
  %v1086 = vadd.f32 %v818, %v1085
  %v1087 = vpop.f32.mrf.mxu0
  %v1088 = vadd.f32 %v820, %v1087
  %1089 = vmatmul.bf16.gmra.mxu0 %v949
  %v1090 = vpop.f32.mrf.mxu0
  %v1091 = vadd.f32 %v823, %v1090
  %v1092 = vpop.f32.mrf.mxu0
  %v1093 = vadd.f32 %v825, %v1092
  %1094 = vmatmul.bf16.gmra.mxu0 %v952
  %v1095 = vpop.f32.mrf.mxu0
  %v1096 = vadd.f32 %v828, %v1095
  %v1097 = vpop.f32.mrf.mxu0
  %v1098 = vadd.f32 %v830, %v1097
  %1099 = vmatmul.bf16.gmra.mxu0 %v955
  %v1100 = vpop.f32.mrf.mxu0
  %v1101 = vadd.f32 %v833, %v1100
  %v1102 = vpop.f32.mrf.mxu0
  %v1103 = vadd.f32 %v835, %v1102
  %1104 = vmatmul.bf16.gmra.mxu0 %v958
  %v1105 = vpop.f32.mrf.mxu0
  %v1106 = vadd.f32 %v838, %v1105
  %v1107 = vpop.f32.mrf.mxu0
  %v1108 = vadd.f32 %v840, %v1107
  %1109 = vmatmul.bf16.gmra.mxu0 %v961
  %v1110 = vpop.f32.mrf.mxu0
  %v1111 = vadd.f32 %v843, %v1110
  %v1112 = vpop.f32.mrf.mxu0
  %v1113 = vadd.f32 %v845, %v1112
  %1114 = vmatmul.bf16.gmra.mxu0 %v964
  %v1115 = vpop.f32.mrf.mxu0
  %v1116 = vadd.f32 %v848, %v1115
  %v1117 = vpop.f32.mrf.mxu0
  %v1118 = vadd.f32 %v850, %v1117
  %1119 = vmatmul.bf16.gmra.mxu0 %v967
  %v1120 = vpop.f32.mrf.mxu0
  %v1121 = vadd.f32 %v853, %v1120
  %v1122 = vpop.f32.mrf.mxu0
  %v1123 = vadd.f32 %v855, %v1122
  %1124 = vmatmul.bf16.gmra.mxu0 %v970
  %v1125 = vpop.f32.mrf.mxu0
  %v1126 = vadd.f32 %v858, %v1125
  %v1127 = vpop.f32.mrf.mxu0
  %v1128 = vadd.f32 %v860, %v1127
  %1129 = vmatmul.bf16.gmra.mxu0 %v973
  %v1130 = vpop.f32.mrf.mxu0
  %v1131 = vadd.f32 %v863, %v1130
  %v1132 = vpop.f32.mrf.mxu0
  %v1133 = vadd.f32 %v865, %v1132
  %1134 = vmatmul.bf16.gmra.mxu0 %v976
  %v1135 = vpop.f32.mrf.mxu0
  %v1136 = vadd.f32 %v868, %v1135
  %v1137 = vpop.f32.mrf.mxu0
  %v1138 = vadd.f32 %v870, %v1137
  %1139 = vmatmul.bf16.gmra.mxu0 %v979
  %v1140 = vpop.f32.mrf.mxu0
  %v1141 = vadd.f32 %v873, %v1140
  %v1142 = vpop.f32.mrf.mxu0
  %v1143 = vadd.f32 %v875, %v1142
  %1144 = vmatmul.bf16.gmra.mxu0 %v982
  %v1145 = vpop.f32.mrf.mxu0
  %v1146 = vadd.f32 %v878, %v1145
  %v1147 = vpop.f32.mrf.mxu0
  %v1148 = vadd.f32 %v880, %v1147
  %1149 = vmatmul.bf16.gmra.mxu0 %v985
  %v1150 = vpop.f32.mrf.mxu0
  %v1151 = vadd.f32 %v883, %v1150
  %v1152 = vpop.f32.mrf.mxu0
  %v1153 = vadd.f32 %v885, %v1152
  %1154 = vmatmul.bf16.gmra.mxu0 %v988
  %v1155 = vpop.f32.mrf.mxu0
  %v1156 = vadd.f32 %v888, %v1155
  %v1157 = vpop.f32.mrf.mxu0
  %v1158 = vadd.f32 %v890, %v1157
  %1159 = vmatmul.bf16.gmra.mxu0 %v991
  %v1160 = vpop.f32.mrf.mxu0
  %v1161 = vadd.f32 %v893, %v1160
  %v1162 = vpop.f32.mrf.mxu0
  %v1163 = vadd.f32 %v895, %v1162
  %1164 = vdwg.mxu0
  %vm1165 = vcmask 130048
  %1166 = vst.msk [vmem:[%s8] sm:$0xff] %vm1165, %v1006
  %1167 = vst.msk [vmem:[%s8 + $0x8] sm:$0xff] %vm1165, %v1008
  %1168 = vst.msk [vmem:[%s8 + $0x10] sm:$0xff] %vm1165, %v1011
  %1169 = vst.msk [vmem:[%s8 + $0x18] sm:$0xff] %vm1165, %v1013
  %1170 = vst.msk [vmem:[%s8 + $0x20] sm:$0xff] %vm1165, %v1016
  %1171 = vst.msk [vmem:[%s8 + $0x28] sm:$0xff] %vm1165, %v1018
  %1172 = vst.msk [vmem:[%s8 + $0x30] sm:$0xff] %vm1165, %v1021
  %1173 = vst.msk [vmem:[%s8 + $0x38] sm:$0xff] %vm1165, %v1023
  %1174 = vst.msk [vmem:[%s8 + $0x40] sm:$0xff] %vm1165, %v1026
  %1175 = vst.msk [vmem:[%s8 + $0x48] sm:$0xff] %vm1165, %v1028
  %1176 = vst.msk [vmem:[%s8 + $0x50] sm:$0xff] %vm1165, %v1031
  %1177 = vst.msk [vmem:[%s8 + $0x58] sm:$0xff] %vm1165, %v1033
  %1178 = vst.msk [vmem:[%s8 + $0x60] sm:$0xff] %vm1165, %v1036
  %1179 = vst.msk [vmem:[%s8 + $0x68] sm:$0xff] %vm1165, %v1038
  %1180 = vst.msk [vmem:[%s8 + $0x70] sm:$0xff] %vm1165, %v1041
  %1181 = vst.msk [vmem:[%s8 + $0x78] sm:$0xff] %vm1165, %v1043
  %1182 = vst.msk [vmem:[%s8 + $0x80] sm:$0xff] %vm1165, %v1046
  %1183 = vst.msk [vmem:[%s8 + $0x88] sm:$0xff] %vm1165, %v1048
  %1184 = vst.msk [vmem:[%s8 + $0x90] sm:$0xff] %vm1165, %v1051
  %1185 = vst.msk [vmem:[%s8 + $0x98] sm:$0xff] %vm1165, %v1053
  %1186 = vst.msk [vmem:[%s8 + $0xa0] sm:$0xff] %vm1165, %v1056
  %1187 = vst.msk [vmem:[%s8 + $0xa8] sm:$0xff] %vm1165, %v1058
  %1188 = vst.msk [vmem:[%s8 + $0xb0] sm:$0xff] %vm1165, %v1061
  %1189 = vst.msk [vmem:[%s8 + $0xb8] sm:$0xff] %vm1165, %v1063
  %1190 = vst.msk [vmem:[%s8 + $0xc0] sm:$0xff] %vm1165, %v1066
  %1191 = vst.msk [vmem:[%s8 + $0xc8] sm:$0xff] %vm1165, %v1068
  %1192 = vst.msk [vmem:[%s8 + $0xd0] sm:$0xff] %vm1165, %v1071
  %1193 = vst.msk [vmem:[%s8 + $0xd8] sm:$0xff] %vm1165, %v1073
  %1194 = vst.msk [vmem:[%s8 + $0xe0] sm:$0xff] %vm1165, %v1076
  %1195 = vst.msk [vmem:[%s8 + $0xe8] sm:$0xff] %vm1165, %v1078
  %1196 = vst.msk [vmem:[%s8 + $0xf0] sm:$0xff] %vm1165, %v1081
  %1197 = vst.msk [vmem:[%s8 + $0xf8] sm:$0xff] %vm1165, %v1083
  %1198 = vst.msk [vmem:[%s8 + $0x100] sm:$0xff] %vm1165, %v1086
  %1199 = vst.msk [vmem:[%s8 + $0x108] sm:$0xff] %vm1165, %v1088
  %1200 = vst.msk [vmem:[%s8 + $0x110] sm:$0xff] %vm1165, %v1091
  %1201 = vst.msk [vmem:[%s8 + $0x118] sm:$0xff] %vm1165, %v1093
  %1202 = vst.msk [vmem:[%s8 + $0x120] sm:$0xff] %vm1165, %v1096
  %1203 = vst.msk [vmem:[%s8 + $0x128] sm:$0xff] %vm1165, %v1098
  %1204 = vst.msk [vmem:[%s8 + $0x130] sm:$0xff] %vm1165, %v1101
  %1205 = vst.msk [vmem:[%s8 + $0x138] sm:$0xff] %vm1165, %v1103
  %1206 = vst.msk [vmem:[%s8 + $0x140] sm:$0xff] %vm1165, %v1106
  %1207 = vst.msk [vmem:[%s8 + $0x148] sm:$0xff] %vm1165, %v1108
  %1208 = vst.msk [vmem:[%s8 + $0x150] sm:$0xff] %vm1165, %v1111
  %1209 = vst.msk [vmem:[%s8 + $0x158] sm:$0xff] %vm1165, %v1113
  %1210 = vst.msk [vmem:[%s8 + $0x160] sm:$0xff] %vm1165, %v1116
  %1211 = vst.msk [vmem:[%s8 + $0x168] sm:$0xff] %vm1165, %v1118
  %1212 = vst.msk [vmem:[%s8 + $0x170] sm:$0xff] %vm1165, %v1121
  %1213 = vst.msk [vmem:[%s8 + $0x178] sm:$0xff] %vm1165, %v1123
  %1214 = vst.msk [vmem:[%s8 + $0x180] sm:$0xff] %vm1165, %v1126
  %1215 = vst.msk [vmem:[%s8 + $0x188] sm:$0xff] %vm1165, %v1128
  %1216 = vst.msk [vmem:[%s8 + $0x190] sm:$0xff] %vm1165, %v1131
  %1217 = vst.msk [vmem:[%s8 + $0x198] sm:$0xff] %vm1165, %v1133
  %1218 = vst.msk [vmem:[%s8 + $0x1a0] sm:$0xff] %vm1165, %v1136
  %1219 = vst.msk [vmem:[%s8 + $0x1a8] sm:$0xff] %vm1165, %v1138
  %1220 = vst.msk [vmem:[%s8 + $0x1b0] sm:$0xff] %vm1165, %v1141
  %1221 = vst.msk [vmem:[%s8 + $0x1b8] sm:$0xff] %vm1165, %v1143
  %1222 = vst.msk [vmem:[%s8 + $0x1c0] sm:$0xff] %vm1165, %v1146
  %1223 = vst.msk [vmem:[%s8 + $0x1c8] sm:$0xff] %vm1165, %v1148
  %1224 = vst.msk [vmem:[%s8 + $0x1d0] sm:$0xff] %vm1165, %v1151
  %1225 = vst.msk [vmem:[%s8 + $0x1d8] sm:$0xff] %vm1165, %v1153
  %1226 = vst.msk [vmem:[%s8 + $0x1e0] sm:$0xff] %vm1165, %v1156
  %1227 = vst.msk [vmem:[%s8 + $0x1e8] sm:$0xff] %vm1165, %v1158
  %1228 = vst.msk [vmem:[%s8 + $0x1f0] sm:$0xff] %vm1165, %v1161
  %1229 = vst.msk [vmem:[%s8 + $0x1f8] sm:$0xff] %vm1165, %v1163
  %v1230 = vsel %vm1165, %v1006, 0.0
  %v1231 = vsel %vm1165, %v1008, 0.0
  %v1232 = vadd.f32 %v1230, %v1231
  %v1233 = vsel %vm1165, %v1011, 0.0
  %v1234 = vadd.f32 %v1232, %v1233
  %v1235 = vsel %vm1165, %v1013, 0.0
  %v1236 = vadd.f32 %v1234, %v1235
  %v1237 = vsel %vm1165, %v1016, 0.0
  %v1238 = vadd.f32 %v1236, %v1237
  %v1239 = vsel %vm1165, %v1018, 0.0
  %v1240 = vadd.f32 %v1238, %v1239
  %v1241 = vsel %vm1165, %v1021, 0.0
  %v1242 = vadd.f32 %v1240, %v1241
  %v1243 = vsel %vm1165, %v1023, 0.0
  %v1244 = vadd.f32 %v1242, %v1243
  %v1245 = vsel %vm1165, %v1026, 0.0
  %v1246 = vadd.f32 %v1244, %v1245
  %v1247 = vsel %vm1165, %v1028, 0.0
  %v1248 = vadd.f32 %v1246, %v1247
  %v1249 = vsel %vm1165, %v1031, 0.0
  %v1250 = vadd.f32 %v1248, %v1249
  %v1251 = vsel %vm1165, %v1033, 0.0
  %v1252 = vadd.f32 %v1250, %v1251
  %v1253 = vsel %vm1165, %v1036, 0.0
  %v1254 = vadd.f32 %v1252, %v1253
  %v1255 = vsel %vm1165, %v1038, 0.0
  %v1256 = vadd.f32 %v1254, %v1255
  %v1257 = vsel %vm1165, %v1041, 0.0
  %v1258 = vadd.f32 %v1256, %v1257
  %v1259 = vsel %vm1165, %v1043, 0.0
  %v1260 = vadd.f32 %v1258, %v1259
  %v1261 = vsel %vm1165, %v1046, 0.0
  %v1262 = vadd.f32 %v1260, %v1261
  %v1263 = vsel %vm1165, %v1048, 0.0
  %v1264 = vadd.f32 %v1262, %v1263
  %v1265 = vsel %vm1165, %v1051, 0.0
  %v1266 = vadd.f32 %v1264, %v1265
  %v1267 = vsel %vm1165, %v1053, 0.0
  %v1268 = vadd.f32 %v1266, %v1267
  %v1269 = vsel %vm1165, %v1056, 0.0
  %v1270 = vadd.f32 %v1268, %v1269
  %v1271 = vsel %vm1165, %v1058, 0.0
  %v1272 = vadd.f32 %v1270, %v1271
  %v1273 = vsel %vm1165, %v1061, 0.0
  %v1274 = vadd.f32 %v1272, %v1273
  %v1275 = vsel %vm1165, %v1063, 0.0
  %v1276 = vadd.f32 %v1274, %v1275
  %v1277 = vsel %vm1165, %v1066, 0.0
  %v1278 = vadd.f32 %v1276, %v1277
  %v1279 = vsel %vm1165, %v1068, 0.0
  %v1280 = vadd.f32 %v1278, %v1279
  %v1281 = vsel %vm1165, %v1071, 0.0
  %v1282 = vadd.f32 %v1280, %v1281
  %v1283 = vsel %vm1165, %v1073, 0.0
  %v1284 = vadd.f32 %v1282, %v1283
  %v1285 = vsel %vm1165, %v1076, 0.0
  %v1286 = vadd.f32 %v1284, %v1285
  %v1287 = vsel %vm1165, %v1078, 0.0
  %v1288 = vadd.f32 %v1286, %v1287
  %v1289 = vsel %vm1165, %v1081, 0.0
  %v1290 = vadd.f32 %v1288, %v1289
  %v1291 = vsel %vm1165, %v1083, 0.0
  %v1292 = vadd.f32 %v1290, %v1291
  %v1293 = vsel %vm1165, %v1086, 0.0
  %v1294 = vadd.f32 %v1292, %v1293
  %v1295 = vsel %vm1165, %v1088, 0.0
  %v1296 = vadd.f32 %v1294, %v1295
  %v1297 = vsel %vm1165, %v1091, 0.0
  %v1298 = vadd.f32 %v1296, %v1297
  %v1299 = vsel %vm1165, %v1093, 0.0
  %v1300 = vadd.f32 %v1298, %v1299
  %v1301 = vsel %vm1165, %v1096, 0.0
  %v1302 = vadd.f32 %v1300, %v1301
  %v1303 = vsel %vm1165, %v1098, 0.0
  %v1304 = vadd.f32 %v1302, %v1303
  %v1305 = vsel %vm1165, %v1101, 0.0
  %v1306 = vadd.f32 %v1304, %v1305
  %v1307 = vsel %vm1165, %v1103, 0.0
  %v1308 = vadd.f32 %v1306, %v1307
  %v1309 = vsel %vm1165, %v1106, 0.0
  %v1310 = vadd.f32 %v1308, %v1309
  %v1311 = vsel %vm1165, %v1108, 0.0
  %v1312 = vadd.f32 %v1310, %v1311
  %v1313 = vsel %vm1165, %v1111, 0.0
  %v1314 = vadd.f32 %v1312, %v1313
  %v1315 = vsel %vm1165, %v1113, 0.0
  %v1316 = vadd.f32 %v1314, %v1315
  %v1317 = vsel %vm1165, %v1116, 0.0
  %v1318 = vadd.f32 %v1316, %v1317
  %v1319 = vsel %vm1165, %v1118, 0.0
  %v1320 = vadd.f32 %v1318, %v1319
  %v1321 = vsel %vm1165, %v1121, 0.0
  %v1322 = vadd.f32 %v1320, %v1321
  %v1323 = vsel %vm1165, %v1123, 0.0
  %v1324 = vadd.f32 %v1322, %v1323
  %v1325 = vsel %vm1165, %v1126, 0.0
  %v1326 = vadd.f32 %v1324, %v1325
  %v1327 = vsel %vm1165, %v1128, 0.0
  %v1328 = vadd.f32 %v1326, %v1327
  %v1329 = vsel %vm1165, %v1131, 0.0
  %v1330 = vadd.f32 %v1328, %v1329
  %v1331 = vsel %vm1165, %v1133, 0.0
  %v1332 = vadd.f32 %v1330, %v1331
  %v1333 = vsel %vm1165, %v1136, 0.0
  %v1334 = vadd.f32 %v1332, %v1333
  %v1335 = vsel %vm1165, %v1138, 0.0
  %v1336 = vadd.f32 %v1334, %v1335
  %v1337 = vsel %vm1165, %v1141, 0.0
  %v1338 = vadd.f32 %v1336, %v1337
  %v1339 = vsel %vm1165, %v1143, 0.0
  %v1340 = vadd.f32 %v1338, %v1339
  %v1341 = vsel %vm1165, %v1146, 0.0
  %v1342 = vadd.f32 %v1340, %v1341
  %v1343 = vsel %vm1165, %v1148, 0.0
  %v1344 = vadd.f32 %v1342, %v1343
  %v1345 = vsel %vm1165, %v1151, 0.0
  %v1346 = vadd.f32 %v1344, %v1345
  %v1347 = vsel %vm1165, %v1153, 0.0
  %v1348 = vadd.f32 %v1346, %v1347
  %v1349 = vsel %vm1165, %v1156, 0.0
  %v1350 = vadd.f32 %v1348, %v1349
  %v1351 = vsel %vm1165, %v1158, 0.0
  %v1352 = vadd.f32 %v1350, %v1351
  %v1353 = vsel %vm1165, %v1161, 0.0
  %v1354 = vadd.f32 %v1352, %v1353
  %v1355 = vsel %vm1165, %v1163, 0.0
  %v1356 = vadd.f32 %v1354, %v1355
  %v1357 = vrot.slane %v1356, 4
  %v1358 = vadd.f32 %v1356, %v1357
  %v1359 = vrot.slane %v1358, 2
  %v1360 = vadd.f32 %v1358, %v1359
  %v1361 = vrot.slane %v1360, 1
  %v1362 = vadd.f32 %v1360, %v1361
  %vm1363 = vcmask 122880
  %1364 = vst.msk [vmem:[%s9] sm:$0x1] %vm1363, %v1362
  %v1365 = vmul.f32 %v1006, %v1006
  %v1366 = vmul.f32 %v1008, %v1008
  %v1367 = vmul.f32 %v1011, %v1011
  %v1368 = vmul.f32 %v1013, %v1013
  %v1369 = vmul.f32 %v1016, %v1016
  %v1370 = vmul.f32 %v1018, %v1018
  %v1371 = vmul.f32 %v1021, %v1021
  %v1372 = vmul.f32 %v1023, %v1023
  %v1373 = vmul.f32 %v1026, %v1026
  %v1374 = vmul.f32 %v1028, %v1028
  %v1375 = vmul.f32 %v1031, %v1031
  %v1376 = vmul.f32 %v1033, %v1033
  %v1377 = vmul.f32 %v1036, %v1036
  %v1378 = vmul.f32 %v1038, %v1038
  %v1379 = vmul.f32 %v1041, %v1041
  %v1380 = vmul.f32 %v1043, %v1043
  %v1381 = vmul.f32 %v1046, %v1046
  %v1382 = vmul.f32 %v1048, %v1048
  %v1383 = vmul.f32 %v1051, %v1051
  %v1384 = vmul.f32 %v1053, %v1053
  %v1385 = vmul.f32 %v1056, %v1056
  %v1386 = vmul.f32 %v1058, %v1058
  %v1387 = vmul.f32 %v1061, %v1061
  %v1388 = vmul.f32 %v1063, %v1063
  %v1389 = vmul.f32 %v1066, %v1066
  %v1390 = vmul.f32 %v1068, %v1068
  %v1391 = vmul.f32 %v1071, %v1071
  %v1392 = vmul.f32 %v1073, %v1073
  %v1393 = vmul.f32 %v1076, %v1076
  %v1394 = vmul.f32 %v1078, %v1078
  %v1395 = vmul.f32 %v1081, %v1081
  %v1396 = vmul.f32 %v1083, %v1083
  %v1397 = vmul.f32 %v1086, %v1086
  %v1398 = vmul.f32 %v1088, %v1088
  %v1399 = vmul.f32 %v1091, %v1091
  %v1400 = vmul.f32 %v1093, %v1093
  %v1401 = vmul.f32 %v1096, %v1096
  %v1402 = vmul.f32 %v1098, %v1098
  %v1403 = vmul.f32 %v1101, %v1101
  %v1404 = vmul.f32 %v1103, %v1103
  %v1405 = vmul.f32 %v1106, %v1106
  %v1406 = vmul.f32 %v1108, %v1108
  %v1407 = vmul.f32 %v1111, %v1111
  %v1408 = vmul.f32 %v1113, %v1113
  %v1409 = vmul.f32 %v1116, %v1116
  %v1410 = vmul.f32 %v1118, %v1118
  %v1411 = vmul.f32 %v1121, %v1121
  %v1412 = vmul.f32 %v1123, %v1123
  %v1413 = vmul.f32 %v1126, %v1126
  %v1414 = vmul.f32 %v1128, %v1128
  %v1415 = vmul.f32 %v1131, %v1131
  %v1416 = vmul.f32 %v1133, %v1133
  %v1417 = vmul.f32 %v1136, %v1136
  %v1418 = vmul.f32 %v1138, %v1138
  %v1419 = vmul.f32 %v1141, %v1141
  %v1420 = vmul.f32 %v1143, %v1143
  %v1421 = vmul.f32 %v1146, %v1146
  %v1422 = vmul.f32 %v1148, %v1148
  %v1423 = vmul.f32 %v1151, %v1151
  %v1424 = vmul.f32 %v1153, %v1153
  %v1425 = vmul.f32 %v1156, %v1156
  %v1426 = vmul.f32 %v1158, %v1158
  %v1427 = vmul.f32 %v1161, %v1161
  %v1428 = vmul.f32 %v1163, %v1163
  %v1429 = vsel %vm1165, %v1365, 0.0
  %v1430 = vsel %vm1165, %v1366, 0.0
  %v1431 = vadd.f32 %v1429, %v1430
  %v1432 = vsel %vm1165, %v1367, 0.0
  %v1433 = vadd.f32 %v1431, %v1432
  %v1434 = vsel %vm1165, %v1368, 0.0
  %v1435 = vadd.f32 %v1433, %v1434
  %v1436 = vsel %vm1165, %v1369, 0.0
  %v1437 = vadd.f32 %v1435, %v1436
  %v1438 = vsel %vm1165, %v1370, 0.0
  %v1439 = vadd.f32 %v1437, %v1438
  %v1440 = vsel %vm1165, %v1371, 0.0
  %v1441 = vadd.f32 %v1439, %v1440
  %v1442 = vsel %vm1165, %v1372, 0.0
  %v1443 = vadd.f32 %v1441, %v1442
  %v1444 = vsel %vm1165, %v1373, 0.0
  %v1445 = vadd.f32 %v1443, %v1444
  %v1446 = vsel %vm1165, %v1374, 0.0
  %v1447 = vadd.f32 %v1445, %v1446
  %v1448 = vsel %vm1165, %v1375, 0.0
  %v1449 = vadd.f32 %v1447, %v1448
  %v1450 = vsel %vm1165, %v1376, 0.0
  %v1451 = vadd.f32 %v1449, %v1450
  %v1452 = vsel %vm1165, %v1377, 0.0
  %v1453 = vadd.f32 %v1451, %v1452
  %v1454 = vsel %vm1165, %v1378, 0.0
  %v1455 = vadd.f32 %v1453, %v1454
  %v1456 = vsel %vm1165, %v1379, 0.0
  %v1457 = vadd.f32 %v1455, %v1456
  %v1458 = vsel %vm1165, %v1380, 0.0
  %v1459 = vadd.f32 %v1457, %v1458
  %v1460 = vsel %vm1165, %v1381, 0.0
  %v1461 = vadd.f32 %v1459, %v1460
  %v1462 = vsel %vm1165, %v1382, 0.0
  %v1463 = vadd.f32 %v1461, %v1462
  %v1464 = vsel %vm1165, %v1383, 0.0
  %v1465 = vadd.f32 %v1463, %v1464
  %v1466 = vsel %vm1165, %v1384, 0.0
  %v1467 = vadd.f32 %v1465, %v1466
  %v1468 = vsel %vm1165, %v1385, 0.0
  %v1469 = vadd.f32 %v1467, %v1468
  %v1470 = vsel %vm1165, %v1386, 0.0
  %v1471 = vadd.f32 %v1469, %v1470
  %v1472 = vsel %vm1165, %v1387, 0.0
  %v1473 = vadd.f32 %v1471, %v1472
  %v1474 = vsel %vm1165, %v1388, 0.0
  %v1475 = vadd.f32 %v1473, %v1474
  %v1476 = vsel %vm1165, %v1389, 0.0
  %v1477 = vadd.f32 %v1475, %v1476
  %v1478 = vsel %vm1165, %v1390, 0.0
  %v1479 = vadd.f32 %v1477, %v1478
  %v1480 = vsel %vm1165, %v1391, 0.0
  %v1481 = vadd.f32 %v1479, %v1480
  %v1482 = vsel %vm1165, %v1392, 0.0
  %v1483 = vadd.f32 %v1481, %v1482
  %v1484 = vsel %vm1165, %v1393, 0.0
  %v1485 = vadd.f32 %v1483, %v1484
  %v1486 = vsel %vm1165, %v1394, 0.0
  %v1487 = vadd.f32 %v1485, %v1486
  %v1488 = vsel %vm1165, %v1395, 0.0
  %v1489 = vadd.f32 %v1487, %v1488
  %v1490 = vsel %vm1165, %v1396, 0.0
  %v1491 = vadd.f32 %v1489, %v1490
  %v1492 = vsel %vm1165, %v1397, 0.0
  %v1493 = vadd.f32 %v1491, %v1492
  %v1494 = vsel %vm1165, %v1398, 0.0
  %v1495 = vadd.f32 %v1493, %v1494
  %v1496 = vsel %vm1165, %v1399, 0.0
  %v1497 = vadd.f32 %v1495, %v1496
  %v1498 = vsel %vm1165, %v1400, 0.0
  %v1499 = vadd.f32 %v1497, %v1498
  %v1500 = vsel %vm1165, %v1401, 0.0
  %v1501 = vadd.f32 %v1499, %v1500
  %v1502 = vsel %vm1165, %v1402, 0.0
  %v1503 = vadd.f32 %v1501, %v1502
  %v1504 = vsel %vm1165, %v1403, 0.0
  %v1505 = vadd.f32 %v1503, %v1504
  %v1506 = vsel %vm1165, %v1404, 0.0
  %v1507 = vadd.f32 %v1505, %v1506
  %v1508 = vsel %vm1165, %v1405, 0.0
  %v1509 = vadd.f32 %v1507, %v1508
  %v1510 = vsel %vm1165, %v1406, 0.0
  %v1511 = vadd.f32 %v1509, %v1510
  %v1512 = vsel %vm1165, %v1407, 0.0
  %v1513 = vadd.f32 %v1511, %v1512
  %v1514 = vsel %vm1165, %v1408, 0.0
  %v1515 = vadd.f32 %v1513, %v1514
  %v1516 = vsel %vm1165, %v1409, 0.0
  %v1517 = vadd.f32 %v1515, %v1516
  %v1518 = vsel %vm1165, %v1410, 0.0
  %v1519 = vadd.f32 %v1517, %v1518
  %v1520 = vsel %vm1165, %v1411, 0.0
  %v1521 = vadd.f32 %v1519, %v1520
  %v1522 = vsel %vm1165, %v1412, 0.0
  %v1523 = vadd.f32 %v1521, %v1522
  %v1524 = vsel %vm1165, %v1413, 0.0
  %v1525 = vadd.f32 %v1523, %v1524
  %v1526 = vsel %vm1165, %v1414, 0.0
  %v1527 = vadd.f32 %v1525, %v1526
  %v1528 = vsel %vm1165, %v1415, 0.0
  %v1529 = vadd.f32 %v1527, %v1528
  %v1530 = vsel %vm1165, %v1416, 0.0
  %v1531 = vadd.f32 %v1529, %v1530
  %v1532 = vsel %vm1165, %v1417, 0.0
  %v1533 = vadd.f32 %v1531, %v1532
  %v1534 = vsel %vm1165, %v1418, 0.0
  %v1535 = vadd.f32 %v1533, %v1534
  %v1536 = vsel %vm1165, %v1419, 0.0
  %v1537 = vadd.f32 %v1535, %v1536
  %v1538 = vsel %vm1165, %v1420, 0.0
  %v1539 = vadd.f32 %v1537, %v1538
  %v1540 = vsel %vm1165, %v1421, 0.0
  %v1541 = vadd.f32 %v1539, %v1540
  %v1542 = vsel %vm1165, %v1422, 0.0
  %v1543 = vadd.f32 %v1541, %v1542
  %v1544 = vsel %vm1165, %v1423, 0.0
  %v1545 = vadd.f32 %v1543, %v1544
  %v1546 = vsel %vm1165, %v1424, 0.0
  %v1547 = vadd.f32 %v1545, %v1546
  %v1548 = vsel %vm1165, %v1425, 0.0
  %v1549 = vadd.f32 %v1547, %v1548
  %v1550 = vsel %vm1165, %v1426, 0.0
  %v1551 = vadd.f32 %v1549, %v1550
  %v1552 = vsel %vm1165, %v1427, 0.0
  %v1553 = vadd.f32 %v1551, %v1552
  %v1554 = vsel %vm1165, %v1428, 0.0
  %v1555 = vadd.f32 %v1553, %v1554
  %v1556 = vrot.slane %v1555, 4
  %v1557 = vadd.f32 %v1555, %v1556
  %v1558 = vrot.slane %v1557, 2
  %v1559 = vadd.f32 %v1557, %v1558
  %v1560 = vrot.slane %v1559, 1
  %v1561 = vadd.f32 %v1559, %v1560
  %1562 = vst.msk [vmem:[%s10] sm:$0x1] %vm1363, %v1561
  // Predicated region
  $region34: #{dense_block_forward.10} parent=0 // pred_check
    _
  $region35: #{dense_block_forward.10} parent=0 // pred_check_branch
    %1564 = sbr.rel (0) target = $region37
  $region36: #{dense_block_forward.10} parent=0 // pred_region
    _
  $region37: #{dense_block_forward.10} parent=0 // pred_fallthru
    _
  // Predicated region
  $region38: #{dense_block_forward.10} parent=0 // pred_check
    _
  $region39: #{dense_block_forward.10} parent=0 // pred_check_branch
    %1566 = sbr.rel (0) target = $region41
  $region40: #{dense_block_forward.10} parent=0 // pred_region
    _
  $region41: #{dense_block_forward.10} parent=0 // pred_fallthru
    _
  // Predicated region
  $region42: #{dense_block_forward.10} parent=0 // pred_check
    _
  $region43: #{dense_block_forward.10} parent=0 // pred_check_branch
    %1568 = sbr.rel (0) target = $region45
  $region44: #{dense_block_forward.10} parent=0 // pred_region
    _
  $region45: #{dense_block_forward.10} parent=0 // pred_fallthru
    _
  // Predicated region
  $region46: #{dense_block_forward.10} parent=0 // pred_check
    _
  $region47: #{dense_block_forward.10} parent=0 // pred_check_branch
    %1570 = sbr.rel (0) target = $region49
  $region48: #{dense_block_forward.10} parent=0 // pred_region
    _
  $region49: #{dense_block_forward.10} parent=0 // pred_fallthru
    _
  // Predicated region
  $region50: #{dense_block_forward.10} parent=0 // pred_check
    _
  $region51: #{dense_block_forward.10} parent=0 // pred_check_branch
    %1572 = sbr.rel (0) target = $region53
  $region52: #{dense_block_forward.10} parent=0 // pred_region
    _
  $region53: #{dense_block_forward.10} parent=0 // pred_fallthru
    _
  // Predicated region
  $region54: #{dense_block_forward.10} parent=0 // pred_check
    _
  $region55: #{dense_block_forward.10} parent=0 // pred_check_branch
    %1574 = sbr.rel (0) target = $region57
  $region56: #{dense_block_forward.10} parent=0 // pred_region
    _
  $region57: #{dense_block_forward.10} parent=0 // pred_fallthru
    _

// kernel: dense_block_forward.9
$region0: #{dense_block_forward.9}
  #allocation0 [shape = 'u32[]', space=smem, size = 0x4, offset = 0x4, fixed_abs, tag = 'smem constant byte address 0x4 - core index']
  #allocation1 [shape = 'u32[72,128]{1,0:T(1,128)}', space=vmem, size = 0x9000, scoped, tag = 'internal scratch']
  #allocation2 [shape = 'f32[18,18,16]{2,1,0:T(8,128)}', space=vmem, size = 0x36000, scoped, tag = 'scratch operand']
  %s0 = inlined_call_operand.vmem [shape: f32[512,16], index: 0, kind: input, shape index: {}]
  %s1 = inlined_call_operand.vmem [shape: f32[1,16], index: 1, kind: input, shape index: {}]
  %s2 = inlined_call_operand.vmem [shape: f32[1,16], index: 2, kind: input, shape index: {}]
  %s3 = inlined_call_operand.vmem [shape: bf16[144,4], index: 3, kind: input, shape index: {}]
  %s4 = inlined_call_operand.vmem [shape: f32[512,4], index: 4, kind: output, shape index: {0}]
  %s5 = inlined_call_operand.vmem [shape: f32[2,1,4], index: 5, kind: output, shape index: {1}]
  %s6 = inlined_call_operand.vmem [shape: f32[2,1,4], index: 6, kind: output, shape index: {2}]
  %7 = xla_tuple %s4, %s5, %s6
  %s8 = sld [smem:[#allocation0]]
  $region65: #{dense_block_forward.9} parent=0
    _
  %s10 = ssub.s32 1, %s8
  %s11 = scalar_select 0, %s10, %s8
  loop: start=0, step=1, limit=4
  $region2: #{dense_block_forward.9} parent=0 // loop_pre_header
    _
  $region3: #{dense_block_forward.9} parent=0 // loop_header
    %s13 = sphi 0, %s17
    %p14 = scmp.ge.s32.totalorder %s13, 4
    %s23 = sphi 0, %s25
    %s26 = sphi 0, %s23
    %s27 = sphi 0, %s26
    %s43 = sphi 0, %s27
    %s47 = sphi 0, %s47
    %s49 = sphi 0, %s47
    %s50 = sphi 0, %s49
    %s64 = sphi 0, %s50
    %s68 = sphi 0, %s68
    %s70 = sphi 0, %s68
    %s71 = sphi 0, %s70
    %s85 = sphi 0, %s71
    %s89 = sphi 0, %s89
    %s91 = sphi 0, %s89
    %s92 = sphi 0, %s91
    %s106 = sphi 0, %s92
    %s112 = sphi 0, %s114
    %s115 = sphi 0, %s112
    %s116 = sphi 0, %s115
    %s132 = sphi 0, %s116
    %s138 = sphi 0, %s140
    %s141 = sphi 0, %s138
    %s142 = sphi 0, %s141
    %s158 = sphi 0, %s142
    %s164 = sphi 0, %s166
    %s167 = sphi 0, %s164
    %s168 = sphi 0, %s167
    %s184 = sphi 0, %s168
  $region4: #{dense_block_forward.9} parent=0 // loop_header_branch
    %16 = sbr.rel (%p14) target = $region8
  $region5: #{dense_block_forward.9} parent=0 // loop_body
    %s18 = ssub.s32 %s13, 1
    %s19 = ssub.s32 %s13, 2
    %s20 = sadd.s32 %s13, 1
    %s21 = ssub.s32 %s13, %s20
    %p22 = scmp.eq.s32.totalorder %s21, 0
    %s24 = sadd.s32 %s23, 1
    %s25 = scalar_select %p22, %s23, %s24
    %p28 = pneg %p22
    %p29 = scmp.eq.s32.totalorder %s13, 1
    %p30 = por %p28, %p29
    %p31 = scmp.ne.s32.totalorder %s23, %s26
    %p32 = scmp.eq.s32.totalorder %s13, 0
    %p33 = por %p31, %p32
    %p34 = scmp.ne.s32.totalorder %s23, %s26
    %p35 = scmp.eq.s32.totalorder %s18, 1
    %p36 = por %p34, %p35
    %p37 = scmp.ne.s32.totalorder %s26, %s27
    %p38 = scmp.eq.s32.totalorder %s18, 0
    %p39 = por %p37, %p38
    %p40 = scmp.ne.s32.totalorder %s26, %s27
    %p41 = scmp.eq.s32.totalorder %s19, 1
    %p42 = por %p40, %p41
    %p44 = scmp.ne.s32.totalorder %s27, %s43
    %p45 = scmp.eq.s32.totalorder %s19, 0
    %p46 = por %p44, %p45
    %s48 = sadd.s32 %s47, 1
    %p51 = scmp.eq.s32.totalorder %s13, 1
    %p52 = scmp.ne.s32.totalorder %s47, %s49
    %p53 = scmp.eq.s32.totalorder %s13, 0
    %p54 = por %p52, %p53
    %p55 = scmp.ne.s32.totalorder %s47, %s49
    %p56 = scmp.eq.s32.totalorder %s18, 1
    %p57 = por %p55, %p56
    %p58 = scmp.ne.s32.totalorder %s49, %s50
    %p59 = scmp.eq.s32.totalorder %s18, 0
    %p60 = por %p58, %p59
    %p61 = scmp.ne.s32.totalorder %s49, %s50
    %p62 = scmp.eq.s32.totalorder %s19, 1
    %p63 = por %p61, %p62
    %p65 = scmp.ne.s32.totalorder %s50, %s64
    %p66 = scmp.eq.s32.totalorder %s19, 0
    %p67 = por %p65, %p66
    %s69 = sadd.s32 %s68, 1
    %p72 = scmp.eq.s32.totalorder %s13, 1
    %p73 = scmp.ne.s32.totalorder %s68, %s70
    %p74 = scmp.eq.s32.totalorder %s13, 0
    %p75 = por %p73, %p74
    %p76 = scmp.ne.s32.totalorder %s68, %s70
    %p77 = scmp.eq.s32.totalorder %s18, 1
    %p78 = por %p76, %p77
    %p79 = scmp.ne.s32.totalorder %s70, %s71
    %p80 = scmp.eq.s32.totalorder %s18, 0
    %p81 = por %p79, %p80
    %p82 = scmp.ne.s32.totalorder %s70, %s71
    %p83 = scmp.eq.s32.totalorder %s19, 1
    %p84 = por %p82, %p83
    %p86 = scmp.ne.s32.totalorder %s71, %s85
    %p87 = scmp.eq.s32.totalorder %s19, 0
    %p88 = por %p86, %p87
    %s90 = sadd.s32 %s89, 1
    %p93 = scmp.eq.s32.totalorder %s13, 1
    %p94 = scmp.ne.s32.totalorder %s89, %s91
    %p95 = scmp.eq.s32.totalorder %s13, 0
    %p96 = por %p94, %p95
    %p97 = scmp.ne.s32.totalorder %s89, %s91
    %p98 = scmp.eq.s32.totalorder %s18, 1
    %p99 = por %p97, %p98
    %p100 = scmp.ne.s32.totalorder %s91, %s92
    %p101 = scmp.eq.s32.totalorder %s18, 0
    %p102 = por %p100, %p101
    %p103 = scmp.ne.s32.totalorder %s91, %s92
    %p104 = scmp.eq.s32.totalorder %s19, 1
    %p105 = por %p103, %p104
    %p107 = scmp.ne.s32.totalorder %s92, %s106
    %p108 = scmp.eq.s32.totalorder %s19, 0
    %p109 = por %p107, %p108
    %s110 = ssub.s32 %s13, %s20
    %p111 = scmp.eq.s32.totalorder %s110, 0
    %s113 = sadd.s32 %s112, 1
    %s114 = scalar_select %p111, %s112, %s113
    %p117 = pneg %p111
    %p118 = scmp.eq.s32.totalorder %s13, 1
    %p119 = por %p117, %p118
    %p120 = scmp.ne.s32.totalorder %s112, %s115
    %p121 = scmp.eq.s32.totalorder %s13, 0
    %p122 = por %p120, %p121
    %p123 = scmp.ne.s32.totalorder %s112, %s115
    %p124 = scmp.eq.s32.totalorder %s18, 1
    %p125 = por %p123, %p124
    %p126 = scmp.ne.s32.totalorder %s115, %s116
    %p127 = scmp.eq.s32.totalorder %s18, 0
    %p128 = por %p126, %p127
    %p129 = scmp.ne.s32.totalorder %s115, %s116
    %p130 = scmp.eq.s32.totalorder %s19, 1
    %p131 = por %p129, %p130
    %p133 = scmp.ne.s32.totalorder %s116, %s132
    %p134 = scmp.eq.s32.totalorder %s19, 0
    %p135 = por %p133, %p134
    %s136 = ssub.s32 %s13, %s20
    %p137 = scmp.eq.s32.totalorder %s136, 0
    %s139 = sadd.s32 %s138, 1
    %s140 = scalar_select %p137, %s138, %s139
    %p143 = pneg %p137
    %p144 = scmp.eq.s32.totalorder %s13, 1
    %p145 = por %p143, %p144
    %p146 = scmp.ne.s32.totalorder %s138, %s141
    %p147 = scmp.eq.s32.totalorder %s13, 0
    %p148 = por %p146, %p147
    %p149 = scmp.ne.s32.totalorder %s138, %s141
    %p150 = scmp.eq.s32.totalorder %s18, 1
    %p151 = por %p149, %p150
    %p152 = scmp.ne.s32.totalorder %s141, %s142
    %p153 = scmp.eq.s32.totalorder %s18, 0
    %p154 = por %p152, %p153
    %p155 = scmp.ne.s32.totalorder %s141, %s142
    %p156 = scmp.eq.s32.totalorder %s19, 1
    %p157 = por %p155, %p156
    %p159 = scmp.ne.s32.totalorder %s142, %s158
    %p160 = scmp.eq.s32.totalorder %s19, 0
    %p161 = por %p159, %p160
    %s162 = ssub.s32 %s13, %s20
    %p163 = scmp.eq.s32.totalorder %s162, 0
    %s165 = sadd.s32 %s164, 1
    %s166 = scalar_select %p163, %s164, %s165
    %p169 = pneg %p163
    %p170 = scmp.eq.s32.totalorder %s13, 1
    %p171 = por %p169, %p170
    %p172 = scmp.ne.s32.totalorder %s164, %s167
    %p173 = scmp.eq.s32.totalorder %s13, 0
    %p174 = por %p172, %p173
    %p175 = scmp.ne.s32.totalorder %s164, %s167
    %p176 = scmp.eq.s32.totalorder %s18, 1
    %p177 = por %p175, %p176
    %p178 = scmp.ne.s32.totalorder %s167, %s168
    %p179 = scmp.eq.s32.totalorder %s18, 0
    %p180 = por %p178, %p179
    %p181 = scmp.ne.s32.totalorder %s167, %s168
    %p182 = scmp.eq.s32.totalorder %s19, 1
    %p183 = por %p181, %p182
    %p185 = scmp.ne.s32.totalorder %s168, %s184
    %p186 = scmp.eq.s32.totalorder %s19, 0
    %p187 = por %p185, %p186
    %p188 = scmp.le.s32.totalorder 1, %s13
    %p189 = scmp.lt.s32.totalorder %s13, 3
    %p190 = pnand %p188, %p189
    %p191 = pneg %p190
    // Predicated region
    $region9: #{dense_block_forward.9} parent=5 // pred_check
      _
    $region10: #{dense_block_forward.9} parent=5 // pred_check_branch
      %193 = sbr.rel (%p190) target = $region12
    $region11: #{dense_block_forward.9} parent=5 // pred_region
      %s194 = ssub.s32 %s13, 1
      // Predicated region
      $region13: #{dense_block_forward.9} parent=11 // pred_check
        %p195 = pneg %p60
      $region14: #{dense_block_forward.9} parent=11 // pred_check_branch
        %197 = sbr.rel (%p195) target = $region16
      $region15: #{dense_block_forward.9} parent=11 // pred_region
        _
      $region16: #{dense_block_forward.9} parent=11 // pred_fallthru
        _
      // Predicated region
      $region17: #{dense_block_forward.9} parent=11 // pred_check
        %p198 = pneg %p81
      $region18: #{dense_block_forward.9} parent=11 // pred_check_branch
        %200 = sbr.rel (%p198) target = $region20
      $region19: #{dense_block_forward.9} parent=11 // pred_region
        _
      $region20: #{dense_block_forward.9} parent=11 // pred_fallthru
        _
      // Predicated region
      $region21: #{dense_block_forward.9} parent=11 // pred_check
        %p201 = pneg %p102
      $region22: #{dense_block_forward.9} parent=11 // pred_check_branch
        %203 = sbr.rel (%p201) target = $region24
      $region23: #{dense_block_forward.9} parent=11 // pred_region
        _
      $region24: #{dense_block_forward.9} parent=11 // pred_fallthru
        _
    $region12: #{dense_block_forward.9} parent=5 // pred_fallthru
      _
    %p204 = scmp.lt.s32.totalorder %s13, 2
    // Predicated region
    $region25: #{dense_block_forward.9} parent=5 // pred_check
      %p205 = pneg %p204
    $region26: #{dense_block_forward.9} parent=5 // pred_check_branch
      %207 = sbr.rel (%p205) target = $region28
    $region27: #{dense_block_forward.9} parent=5 // pred_region
      // Predicated region
      $region29: #{dense_block_forward.9} parent=27 // pred_check
        %p208 = pneg %p33
      $region30: #{dense_block_forward.9} parent=27 // pred_check_branch
        %210 = sbr.rel (%p208) target = $region32
      $region31: #{dense_block_forward.9} parent=27 // pred_region
        %s211 = smul.u32 32, %s13
        %p212 = scmp.lt.s32.totalorder %s211, 63
        %s213 = scalar_select %p212, %s211, 63
        %s214 = smul.addr %s213, 8
        %s215 = scalar_lea.vmem %s0, %s214
        %s216 = smul.u32 32, %s13
      $region32: #{dense_block_forward.9} parent=27 // pred_fallthru
        _
    $region28: #{dense_block_forward.9} parent=5 // pred_fallthru
      _
    %p217 = scmp.le.s32.totalorder 1, %s13
    %p218 = scmp.lt.s32.totalorder %s13, 3
    %p219 = pnand %p217, %p218
    %p220 = pneg %p219
    // Predicated region
    $region33: #{dense_block_forward.9} parent=5 // pred_check
      _
    $region34: #{dense_block_forward.9} parent=5 // pred_check_branch
      %222 = sbr.rel (%p219) target = $region36
    $region35: #{dense_block_forward.9} parent=5 // pred_region
      %s223 = ssub.s32 %s13, 1
      %s224 = smul.u32 32, %s18
      %p225 = scmp.lt.s32.totalorder %s224, 63
      %s226 = scalar_select %p225, %s224, 63
      %s227 = smul.addr %s226, 8
      %s228 = scalar_lea.vmem %s0, %s227
      %p229 = pneg %p39
      %p230 = pneg %p36
      %p231 = pneg %p60
      %p232 = pneg %p57
      %p233 = pneg %p81
      %p234 = pneg %p78
      %p235 = pneg %p102
      %p236 = pneg %p99
      %p237 = pneg %p128
      %p238 = pneg %p125
      %s239 = smul.u32 32, %s18
      %p240 = scmp.lt.s32.totalorder %s239, 63
      %s241 = scalar_select %p240, %s239, 63
      %s242 = smul.addr %s241, 8
      %s243 = scalar_lea.vmem %s4, %s242
      %p244 = pneg %p154
      %p245 = pneg %p151
      %p246 = scmp.lt.s32.totalorder %s18, 1
      %s247 = scalar_select %p246, %s18, 1
      %s248 = scalar_lea.vmem %s5, %s247
      %p249 = pneg %p180
      %p250 = pneg %p177
      %p251 = scmp.lt.s32.totalorder %s18, 1
      %s252 = scalar_select %p251, %s18, 1
      %s253 = scalar_lea.vmem %s6, %s252
      %s254 = smul.u32 32, %s18
      %p255 = scmp.lt.s32.totalorder %s254, 63
      %s256 = scalar_select %p255, %s254, 63
      %s257 = smul.addr %s256, 8
      %s258 = scalar_lea.vmem %s0, %s257
      %s259 = smul.u32 32, %s18
      %s260 = smul.u32 32, %s18
      %p261 = scmp.lt.s32.totalorder %s260, 63
      %s262 = scalar_select %p261, %s260, 63
      %s263 = smul.addr %s262, 8
      %s264 = scalar_lea.vmem %s4, %s263
      %s265 = smul.u32 32, %s18
      %p266 = scmp.lt.s32.totalorder %s18, 1
      %s267 = scalar_select %p266, %s18, 1
      %s268 = scalar_lea.vmem %s5, %s267
      %p269 = scmp.lt.s32.totalorder %s18, 1
      %s270 = scalar_select %p269, %s18, 1
      %s271 = scalar_lea.vmem %s6, %s270
      %v273 = vld [vmem:[%s258] sm:$0xff]
      %v274 = vld [vmem:[%s258 + $0x8] sm:$0xff]
      %v275 = vld [vmem:[%s258 + $0x10] sm:$0xff]
      %v276 = vld [vmem:[%s258 + $0x18] sm:$0xff]
      %v277 = vld [vmem:[%s258 + $0x20] sm:$0xff]
      %v278 = vld [vmem:[%s258 + $0x28] sm:$0xff]
      %v279 = vld [vmem:[%s258 + $0x30] sm:$0xff]
      %v280 = vld [vmem:[%s258 + $0x38] sm:$0xff]
      %v281 = vld [vmem:[%s258 + $0x40] sm:$0xff]
      %v282 = vld [vmem:[%s258 + $0x48] sm:$0xff]
      %v283 = vld [vmem:[%s258 + $0x50] sm:$0xff]
      %v284 = vld [vmem:[%s258 + $0x58] sm:$0xff]
      %v285 = vld [vmem:[%s258 + $0x60] sm:$0xff]
      %v286 = vld [vmem:[%s258 + $0x68] sm:$0xff]
      %v287 = vld [vmem:[%s258 + $0x70] sm:$0xff]
      %v288 = vld [vmem:[%s258 + $0x78] sm:$0xff]
      %v289 = vld [vmem:[%s258 + $0x80] sm:$0xff]
      %v290 = vld [vmem:[%s258 + $0x88] sm:$0xff]
      %v291 = vld [vmem:[%s258 + $0x90] sm:$0xff]
      %v292 = vld [vmem:[%s258 + $0x98] sm:$0xff]
      %v293 = vld [vmem:[%s258 + $0xa0] sm:$0xff]
      %v294 = vld [vmem:[%s258 + $0xa8] sm:$0xff]
      %v295 = vld [vmem:[%s258 + $0xb0] sm:$0xff]
      %v296 = vld [vmem:[%s258 + $0xb8] sm:$0xff]
      %v297 = vld [vmem:[%s258 + $0xc0] sm:$0xff]
      %v298 = vld [vmem:[%s258 + $0xc8] sm:$0xff]
      %v299 = vld [vmem:[%s258 + $0xd0] sm:$0xff]
      %v300 = vld [vmem:[%s258 + $0xd8] sm:$0xff]
      %v301 = vld [vmem:[%s258 + $0xe0] sm:$0xff]
      %v302 = vld [vmem:[%s258 + $0xe8] sm:$0xff]
      %v303 = vld [vmem:[%s258 + $0xf0] sm:$0xff]
      %v304 = vld [vmem:[%s258 + $0xf8] sm:$0xff]
      %v305 = vld [vmem:[%s1] sm:$0x1]
      %v307 = vperm.slane %v305, 0
      %v309 = vmul.f32 %v273, %v307
      %v310 = vmul.f32 %v274, %v307
      %v311 = vmul.f32 %v275, %v307
      %v312 = vmul.f32 %v276, %v307
      %v313 = vmul.f32 %v277, %v307
      %v314 = vmul.f32 %v278, %v307
      %v315 = vmul.f32 %v279, %v307
      %v316 = vmul.f32 %v280, %v307
      %v317 = vmul.f32 %v281, %v307
      %v318 = vmul.f32 %v282, %v307
      %v319 = vmul.f32 %v283, %v307
      %v320 = vmul.f32 %v284, %v307
      %v321 = vmul.f32 %v285, %v307
      %v322 = vmul.f32 %v286, %v307
      %v323 = vmul.f32 %v287, %v307
      %v324 = vmul.f32 %v288, %v307
      %v325 = vmul.f32 %v289, %v307
      %v326 = vmul.f32 %v290, %v307
      %v327 = vmul.f32 %v291, %v307
      %v328 = vmul.f32 %v292, %v307
      %v329 = vmul.f32 %v293, %v307
      %v330 = vmul.f32 %v294, %v307
      %v331 = vmul.f32 %v295, %v307
      %v332 = vmul.f32 %v296, %v307
      %v333 = vmul.f32 %v297, %v307
      %v334 = vmul.f32 %v298, %v307
      %v335 = vmul.f32 %v299, %v307
      %v336 = vmul.f32 %v300, %v307
      %v337 = vmul.f32 %v301, %v307
      %v338 = vmul.f32 %v302, %v307
      %v339 = vmul.f32 %v303, %v307
      %v340 = vmul.f32 %v304, %v307
      %v341 = vld [vmem:[%s2] sm:$0x1]
      %v343 = vperm.slane %v341, 0
      %v345 = vadd.f32 %v309, %v343
      %v346 = vadd.f32 %v310, %v343
      %v347 = vadd.f32 %v311, %v343
      %v348 = vadd.f32 %v312, %v343
      %v349 = vadd.f32 %v313, %v343
      %v350 = vadd.f32 %v314, %v343
      %v351 = vadd.f32 %v315, %v343
      %v352 = vadd.f32 %v316, %v343
      %v353 = vadd.f32 %v317, %v343
      %v354 = vadd.f32 %v318, %v343
      %v355 = vadd.f32 %v319, %v343
      %v356 = vadd.f32 %v320, %v343
      %v357 = vadd.f32 %v321, %v343
      %v358 = vadd.f32 %v322, %v343
      %v359 = vadd.f32 %v323, %v343
      %v360 = vadd.f32 %v324, %v343
      %v361 = vadd.f32 %v325, %v343
      %v362 = vadd.f32 %v326, %v343
      %v363 = vadd.f32 %v327, %v343
      %v364 = vadd.f32 %v328, %v343
      %v365 = vadd.f32 %v329, %v343
      %v366 = vadd.f32 %v330, %v343
      %v367 = vadd.f32 %v331, %v343
      %v368 = vadd.f32 %v332, %v343
      %v369 = vadd.f32 %v333, %v343
      %v370 = vadd.f32 %v334, %v343
      %v371 = vadd.f32 %v335, %v343
      %v372 = vadd.f32 %v336, %v343
      %v373 = vadd.f32 %v337, %v343
      %v374 = vadd.f32 %v338, %v343
      %v375 = vadd.f32 %v339, %v343
      %v376 = vadd.f32 %v340, %v343
      %v377 = vmax.f32 %v345, 0.0
      %v378 = vmax.f32 %v346, 0.0
      %v379 = vmax.f32 %v347, 0.0
      %v380 = vmax.f32 %v348, 0.0
      %v381 = vmax.f32 %v349, 0.0
      %v382 = vmax.f32 %v350, 0.0
      %v383 = vmax.f32 %v351, 0.0
      %v384 = vmax.f32 %v352, 0.0
      %v385 = vmax.f32 %v353, 0.0
      %v386 = vmax.f32 %v354, 0.0
      %v387 = vmax.f32 %v355, 0.0
      %v388 = vmax.f32 %v356, 0.0
      %v389 = vmax.f32 %v357, 0.0
      %v390 = vmax.f32 %v358, 0.0
      %v391 = vmax.f32 %v359, 0.0
      %v392 = vmax.f32 %v360, 0.0
      %v393 = vmax.f32 %v361, 0.0
      %v394 = vmax.f32 %v362, 0.0
      %v395 = vmax.f32 %v363, 0.0
      %v396 = vmax.f32 %v364, 0.0
      %v397 = vmax.f32 %v365, 0.0
      %v398 = vmax.f32 %v366, 0.0
      %v399 = vmax.f32 %v367, 0.0
      %v400 = vmax.f32 %v368, 0.0
      %v401 = vmax.f32 %v369, 0.0
      %v402 = vmax.f32 %v370, 0.0
      %v403 = vmax.f32 %v371, 0.0
      %v404 = vmax.f32 %v372, 0.0
      %v405 = vmax.f32 %v373, 0.0
      %v406 = vmax.f32 %v374, 0.0
      %v407 = vmax.f32 %v375, 0.0
      %v408 = vmax.f32 %v376, 0.0
      %vm409 = vcmask 130048
      %410 = vst.msk [vmem:[#allocation2] sm:$0xff] %vm409, 0.0
      %411 = vst.msk [vmem:[#allocation2 + $0x8] sm:$0xff] %vm409, 0.0
      %vm412 = vcmask 123904
      %413 = vst.msk [vmem:[#allocation2 + $0x10] sm:$0x3] %vm412, 0.0
      %414 = vst.msk [vmem:[#allocation2 + $0x18] sm:$0xff] %vm409, 0.0
      %415 = vst.msk [vmem:[#allocation2 + $0x20] sm:$0xff] %vm409, 0.0
      %416 = vst.msk [vmem:[#allocation2 + $0x28] sm:$0x3] %vm412, 0.0
      %417 = vst.msk [vmem:[#allocation2 + $0x30] sm:$0xff] %vm409, 0.0
      %418 = vst.msk [vmem:[#allocation2 + $0x38] sm:$0xff] %vm409, 0.0
      %419 = vst.msk [vmem:[#allocation2 + $0x40] sm:$0x3] %vm412, 0.0
      %420 = vst.msk [vmem:[#allocation2 + $0x48] sm:$0xff] %vm409, 0.0
      %421 = vst.msk [vmem:[#allocation2 + $0x50] sm:$0xff] %vm409, 0.0
      %422 = vst.msk [vmem:[#allocation2 + $0x58] sm:$0x3] %vm412, 0.0
      %423 = vst.msk [vmem:[#allocation2 + $0x60] sm:$0xff] %vm409, 0.0
      %424 = vst.msk [vmem:[#allocation2 + $0x68] sm:$0xff] %vm409, 0.0
      %425 = vst.msk [vmem:[#allocation2 + $0x70] sm:$0x3] %vm412, 0.0
      %426 = vst.msk [vmem:[#allocation2 + $0x78] sm:$0xff] %vm409, 0.0
      %427 = vst.msk [vmem:[#allocation2 + $0x80] sm:$0xff] %vm409, 0.0
      %428 = vst.msk [vmem:[#allocation2 + $0x88] sm:$0x3] %vm412, 0.0
      %429 = vst.msk [vmem:[#allocation2 + $0x90] sm:$0xff] %vm409, 0.0
      %430 = vst.msk [vmem:[#allocation2 + $0x98] sm:$0xff] %vm409, 0.0
      %431 = vst.msk [vmem:[#allocation2 + $0xa0] sm:$0x3] %vm412, 0.0
      %432 = vst.msk [vmem:[#allocation2 + $0xa8] sm:$0xff] %vm409, 0.0
      %433 = vst.msk [vmem:[#allocation2 + $0xb0] sm:$0xff] %vm409, 0.0
      %434 = vst.msk [vmem:[#allocation2 + $0xb8] sm:$0x3] %vm412, 0.0
      %435 = vst.msk [vmem:[#allocation2 + $0xc0] sm:$0xff] %vm409, 0.0
      %436 = vst.msk [vmem:[#allocation2 + $0xc8] sm:$0xff] %vm409, 0.0
      %437 = vst.msk [vmem:[#allocation2 + $0xd0] sm:$0x3] %vm412, 0.0
      %438 = vst.msk [vmem:[#allocation2 + $0xd8] sm:$0xff] %vm409, 0.0
      %439 = vst.msk [vmem:[#allocation2 + $0xe0] sm:$0xff] %vm409, 0.0
      %440 = vst.msk [vmem:[#allocation2 + $0xe8] sm:$0x3] %vm412, 0.0
      %441 = vst.msk [vmem:[#allocation2 + $0xf0] sm:$0xff] %vm409, 0.0
      %442 = vst.msk [vmem:[#allocation2 + $0xf8] sm:$0xff] %vm409, 0.0
      %443 = vst.msk [vmem:[#allocation2 + $0x100] sm:$0x3] %vm412, 0.0
      %444 = vst.msk [vmem:[#allocation2 + $0x108] sm:$0xff] %vm409, 0.0
      %445 = vst.msk [vmem:[#allocation2 + $0x110] sm:$0xff] %vm409, 0.0
      %446 = vst.msk [vmem:[#allocation2 + $0x118] sm:$0x3] %vm412, 0.0
      %447 = vst.msk [vmem:[#allocation2 + $0x120] sm:$0xff] %vm409, 0.0
      %448 = vst.msk [vmem:[#allocation2 + $0x128] sm:$0xff] %vm409, 0.0
      %449 = vst.msk [vmem:[#allocation2 + $0x130] sm:$0x3] %vm412, 0.0
      %450 = vst.msk [vmem:[#allocation2 + $0x138] sm:$0xff] %vm409, 0.0
      %451 = vst.msk [vmem:[#allocation2 + $0x140] sm:$0xff] %vm409, 0.0
      %452 = vst.msk [vmem:[#allocation2 + $0x148] sm:$0x3] %vm412, 0.0
      %453 = vst.msk [vmem:[#allocation2 + $0x150] sm:$0xff] %vm409, 0.0
      %454 = vst.msk [vmem:[#allocation2 + $0x158] sm:$0xff] %vm409, 0.0
      %455 = vst.msk [vmem:[#allocation2 + $0x160] sm:$0x3] %vm412, 0.0
      %456 = vst.msk [vmem:[#allocation2 + $0x168] sm:$0xff] %vm409, 0.0
      %457 = vst.msk [vmem:[#allocation2 + $0x170] sm:$0xff] %vm409, 0.0
      %458 = vst.msk [vmem:[#allocation2 + $0x178] sm:$0x3] %vm412, 0.0
      %459 = vst.msk [vmem:[#allocation2 + $0x180] sm:$0xff] %vm409, 0.0
      %460 = vst.msk [vmem:[#allocation2 + $0x188] sm:$0xff] %vm409, 0.0
      %461 = vst.msk [vmem:[#allocation2 + $0x190] sm:$0x3] %vm412, 0.0
      %462 = vst.msk [vmem:[#allocation2 + $0x198] sm:$0xff] %vm409, 0.0
      %463 = vst.msk [vmem:[#allocation2 + $0x1a0] sm:$0xff] %vm409, 0.0
      %464 = vst.msk [vmem:[#allocation2 + $0x1a8] sm:$0x3] %vm412, 0.0
      %s465 = scalar_lea.vmem [#allocation2], 24
      %466 = vst.msk [vmem:[%s465 + $0x1] sm:$0xff] %vm409, %v377
      %467 = vst.msk [vmem:[%s465 + $0x9] sm:$0xff] %vm409, %v378
      %468 = vst.msk [vmem:[%s465 + $0x19] sm:$0xff] %vm409, %v379
      %469 = vst.msk [vmem:[%s465 + $0x21] sm:$0xff] %vm409, %v380
      %470 = vst.msk [vmem:[%s465 + $0x31] sm:$0xff] %vm409, %v381
      %471 = vst.msk [vmem:[%s465 + $0x39] sm:$0xff] %vm409, %v382
      %472 = vst.msk [vmem:[%s465 + $0x49] sm:$0xff] %vm409, %v383
      %473 = vst.msk [vmem:[%s465 + $0x51] sm:$0xff] %vm409, %v384
      %474 = vst.msk [vmem:[%s465 + $0x61] sm:$0xff] %vm409, %v385
      %475 = vst.msk [vmem:[%s465 + $0x69] sm:$0xff] %vm409, %v386
      %476 = vst.msk [vmem:[%s465 + $0x79] sm:$0xff] %vm409, %v387
      %477 = vst.msk [vmem:[%s465 + $0x81] sm:$0xff] %vm409, %v388
      %478 = vst.msk [vmem:[%s465 + $0x91] sm:$0xff] %vm409, %v389
      %479 = vst.msk [vmem:[%s465 + $0x99] sm:$0xff] %vm409, %v390
      %480 = vst.msk [vmem:[%s465 + $0xa9] sm:$0xff] %vm409, %v391
      %481 = vst.msk [vmem:[%s465 + $0xb1] sm:$0xff] %vm409, %v392
      %482 = vst.msk [vmem:[%s465 + $0xc1] sm:$0xff] %vm409, %v393
      %483 = vst.msk [vmem:[%s465 + $0xc9] sm:$0xff] %vm409, %v394
      %484 = vst.msk [vmem:[%s465 + $0xd9] sm:$0xff] %vm409, %v395
      %485 = vst.msk [vmem:[%s465 + $0xe1] sm:$0xff] %vm409, %v396
      %486 = vst.msk [vmem:[%s465 + $0xf1] sm:$0xff] %vm409, %v397
      %487 = vst.msk [vmem:[%s465 + $0xf9] sm:$0xff] %vm409, %v398
      %488 = vst.msk [vmem:[%s465 + $0x109] sm:$0xff] %vm409, %v399
      %489 = vst.msk [vmem:[%s465 + $0x111] sm:$0xff] %vm409, %v400
      %490 = vst.msk [vmem:[%s465 + $0x121] sm:$0xff] %vm409, %v401
      %491 = vst.msk [vmem:[%s465 + $0x129] sm:$0xff] %vm409, %v402
      %492 = vst.msk [vmem:[%s465 + $0x139] sm:$0xff] %vm409, %v403
      %493 = vst.msk [vmem:[%s465 + $0x141] sm:$0xff] %vm409, %v404
      %494 = vst.msk [vmem:[%s465 + $0x151] sm:$0xff] %vm409, %v405
      %495 = vst.msk [vmem:[%s465 + $0x159] sm:$0xff] %vm409, %v406
      %496 = vst.msk [vmem:[%s465 + $0x169] sm:$0xff] %vm409, %v407
      %497 = vst.msk [vmem:[%s465 + $0x171] sm:$0xff] %vm409, %v408
      %v498 = vld [vmem:[#allocation2] sm:$0xff]
      %v499 = vld [vmem:[#allocation2 + $0x8] sm:$0xff]
      %v500 = vld [vmem:[#allocation2 + $0x18] sm:$0xff]
      %v501 = vld [vmem:[#allocation2 + $0x20] sm:$0xff]
      %v502 = vld [vmem:[#allocation2 + $0x30] sm:$0xff]
      %v503 = vld [vmem:[#allocation2 + $0x38] sm:$0xff]
      %v504 = vld [vmem:[#allocation2 + $0x48] sm:$0xff]
      %v505 = vld [vmem:[#allocation2 + $0x50] sm:$0xff]
      %v506 = vld [vmem:[#allocation2 + $0x60] sm:$0xff]
      %v507 = vld [vmem:[#allocation2 + $0x68] sm:$0xff]
      %v508 = vld [vmem:[#allocation2 + $0x78] sm:$0xff]
      %v509 = vld [vmem:[#allocation2 + $0x80] sm:$0xff]
      %v510 = vld [vmem:[#allocation2 + $0x90] sm:$0xff]
      %v511 = vld [vmem:[#allocation2 + $0x98] sm:$0xff]
      %v512 = vld [vmem:[#allocation2 + $0xa8] sm:$0xff]
      %v513 = vld [vmem:[#allocation2 + $0xb0] sm:$0xff]
      %v514 = vld [vmem:[#allocation2 + $0xc0] sm:$0xff]
      %v515 = vld [vmem:[#allocation2 + $0xc8] sm:$0xff]
      %v516 = vld [vmem:[#allocation2 + $0xd8] sm:$0xff]
      %v517 = vld [vmem:[#allocation2 + $0xe0] sm:$0xff]
      %v518 = vld [vmem:[#allocation2 + $0xf0] sm:$0xff]
      %v519 = vld [vmem:[#allocation2 + $0xf8] sm:$0xff]
      %v520 = vld [vmem:[#allocation2 + $0x108] sm:$0xff]
      %v521 = vld [vmem:[#allocation2 + $0x110] sm:$0xff]
      %v522 = vld [vmem:[#allocation2 + $0x120] sm:$0xff]
      %v523 = vld [vmem:[#allocation2 + $0x128] sm:$0xff]
      %v524 = vld [vmem:[#allocation2 + $0x138] sm:$0xff]
      %v525 = vld [vmem:[#allocation2 + $0x140] sm:$0xff]
      %v526 = vld [vmem:[#allocation2 + $0x150] sm:$0xff]
      %v527 = vld [vmem:[#allocation2 + $0x158] sm:$0xff]
      %v528 = vld [vmem:[#allocation2 + $0x168] sm:$0xff]
      %v529 = vld [vmem:[#allocation2 + $0x170] sm:$0xff]
      %v530 = vld [vmem:[#allocation2 + $0x1] sm:$0xff]
      %v531 = vld [vmem:[#allocation2 + $0x9] sm:$0xff]
      %v532 = vld [vmem:[#allocation2 + $0x19] sm:$0xff]
      %v533 = vld [vmem:[#allocation2 + $0x21] sm:$0xff]
      %v534 = vld [vmem:[#allocation2 + $0x31] sm:$0xff]
      %v535 = vld [vmem:[#allocation2 + $0x39] sm:$0xff]
      %v536 = vld [vmem:[#allocation2 + $0x49] sm:$0xff]
      %v537 = vld [vmem:[#allocation2 + $0x51] sm:$0xff]
      %v538 = vld [vmem:[#allocation2 + $0x61] sm:$0xff]
      %v539 = vld [vmem:[#allocation2 + $0x69] sm:$0xff]
      %v540 = vld [vmem:[#allocation2 + $0x79] sm:$0xff]
      %v541 = vld [vmem:[#allocation2 + $0x81] sm:$0xff]
      %v542 = vld [vmem:[#allocation2 + $0x91] sm:$0xff]
      %v543 = vld [vmem:[#allocation2 + $0x99] sm:$0xff]
      %v544 = vld [vmem:[#allocation2 + $0xa9] sm:$0xff]
      %v545 = vld [vmem:[#allocation2 + $0xb1] sm:$0xff]
      %v546 = vld [vmem:[#allocation2 + $0xc1] sm:$0xff]
      %v547 = vld [vmem:[#allocation2 + $0xc9] sm:$0xff]
      %v548 = vld [vmem:[#allocation2 + $0xd9] sm:$0xff]
      %v549 = vld [vmem:[#allocation2 + $0xe1] sm:$0xff]
      %v550 = vld [vmem:[#allocation2 + $0xf1] sm:$0xff]
      %v551 = vld [vmem:[#allocation2 + $0xf9] sm:$0xff]
      %v552 = vld [vmem:[#allocation2 + $0x109] sm:$0xff]
      %v553 = vld [vmem:[#allocation2 + $0x111] sm:$0xff]
      %v554 = vld [vmem:[#allocation2 + $0x121] sm:$0xff]
      %v555 = vld [vmem:[#allocation2 + $0x129] sm:$0xff]
      %v556 = vld [vmem:[#allocation2 + $0x139] sm:$0xff]
      %v557 = vld [vmem:[#allocation2 + $0x141] sm:$0xff]
      %v558 = vld [vmem:[#allocation2 + $0x151] sm:$0xff]
      %v559 = vld [vmem:[#allocation2 + $0x159] sm:$0xff]
      %v560 = vld [vmem:[#allocation2 + $0x169] sm:$0xff]
      %v561 = vld [vmem:[#allocation2 + $0x171] sm:$0xff]
      %v562 = vld [vmem:[#allocation2 + $0x2] sm:$0xff]
      %v563 = vld [vmem:[#allocation2 + $0xa] sm:$0xff]
      %v564 = vld [vmem:[#allocation2 + $0x1a] sm:$0xff]
      %v565 = vld [vmem:[#allocation2 + $0x22] sm:$0xff]
      %v566 = vld [vmem:[#allocation2 + $0x32] sm:$0xff]
      %v567 = vld [vmem:[#allocation2 + $0x3a] sm:$0xff]
      %v568 = vld [vmem:[#allocation2 + $0x4a] sm:$0xff]
      %v569 = vld [vmem:[#allocation2 + $0x52] sm:$0xff]
      %v570 = vld [vmem:[#allocation2 + $0x62] sm:$0xff]
      %v571 = vld [vmem:[#allocation2 + $0x6a] sm:$0xff]
      %v572 = vld [vmem:[#allocation2 + $0x7a] sm:$0xff]
      %v573 = vld [vmem:[#allocation2 + $0x82] sm:$0xff]
      %v574 = vld [vmem:[#allocation2 + $0x92] sm:$0xff]
      %v575 = vld [vmem:[#allocation2 + $0x9a] sm:$0xff]
      %v576 = vld [vmem:[#allocation2 + $0xaa] sm:$0xff]
      %v577 = vld [vmem:[#allocation2 + $0xb2] sm:$0xff]
      %v578 = vld [vmem:[#allocation2 + $0xc2] sm:$0xff]
      %v579 = vld [vmem:[#allocation2 + $0xca] sm:$0xff]
      %v580 = vld [vmem:[#allocation2 + $0xda] sm:$0xff]
      %v581 = vld [vmem:[#allocation2 + $0xe2] sm:$0xff]
      %v582 = vld [vmem:[#allocation2 + $0xf2] sm:$0xff]
      %v583 = vld [vmem:[#allocation2 + $0xfa] sm:$0xff]
      %v584 = vld [vmem:[#allocation2 + $0x10a] sm:$0xff]
      %v585 = vld [vmem:[#allocation2 + $0x112] sm:$0xff]
      %v586 = vld [vmem:[#allocation2 + $0x122] sm:$0xff]
      %v587 = vld [vmem:[#allocation2 + $0x12a] sm:$0xff]
      %v588 = vld [vmem:[#allocation2 + $0x13a] sm:$0xff]
      %v589 = vld [vmem:[#allocation2 + $0x142] sm:$0xff]
      %v590 = vld [vmem:[#allocation2 + $0x152] sm:$0xff]
      %v591 = vld [vmem:[#allocation2 + $0x15a] sm:$0xff]
      %v592 = vld [vmem:[#allocation2 + $0x16a] sm:$0xff]
      %v593 = vld [vmem:[#allocation2 + $0x172] sm:$0xff]
      %v594 = vld [vmem:[%s465] sm:$0xff]
      %v595 = vld [vmem:[%s465 + $0x8] sm:$0xff]
      %v596 = vld [vmem:[%s465 + $0x18] sm:$0xff]
      %v597 = vld [vmem:[%s465 + $0x20] sm:$0xff]
      %v598 = vld [vmem:[%s465 + $0x30] sm:$0xff]
      %v599 = vld [vmem:[%s465 + $0x38] sm:$0xff]
      %v600 = vld [vmem:[%s465 + $0x48] sm:$0xff]
      %v601 = vld [vmem:[%s465 + $0x50] sm:$0xff]
      %v602 = vld [vmem:[%s465 + $0x60] sm:$0xff]
      %v603 = vld [vmem:[%s465 + $0x68] sm:$0xff]
      %v604 = vld [vmem:[%s465 + $0x78] sm:$0xff]
      %v605 = vld [vmem:[%s465 + $0x80] sm:$0xff]
      %v606 = vld [vmem:[%s465 + $0x90] sm:$0xff]
      %v607 = vld [vmem:[%s465 + $0x98] sm:$0xff]
      %v608 = vld [vmem:[%s465 + $0xa8] sm:$0xff]
      %v609 = vld [vmem:[%s465 + $0xb0] sm:$0xff]
      %v610 = vld [vmem:[%s465 + $0xc0] sm:$0xff]
      %v611 = vld [vmem:[%s465 + $0xc8] sm:$0xff]
      %v612 = vld [vmem:[%s465 + $0xd8] sm:$0xff]
      %v613 = vld [vmem:[%s465 + $0xe0] sm:$0xff]
      %v614 = vld [vmem:[%s465 + $0xf0] sm:$0xff]
      %v615 = vld [vmem:[%s465 + $0xf8] sm:$0xff]
      %v616 = vld [vmem:[%s465 + $0x108] sm:$0xff]
      %v617 = vld [vmem:[%s465 + $0x110] sm:$0xff]
      %v618 = vld [vmem:[%s465 + $0x120] sm:$0xff]
      %v619 = vld [vmem:[%s465 + $0x128] sm:$0xff]
      %v620 = vld [vmem:[%s465 + $0x138] sm:$0xff]
      %v621 = vld [vmem:[%s465 + $0x140] sm:$0xff]
      %v622 = vld [vmem:[%s465 + $0x150] sm:$0xff]
      %v623 = vld [vmem:[%s465 + $0x158] sm:$0xff]
      %v624 = vld [vmem:[%s465 + $0x168] sm:$0xff]
      %v625 = vld [vmem:[%s465 + $0x170] sm:$0xff]
      %v626 = vld [vmem:[%s465 + $0x1] sm:$0xff]
      %v627 = vld [vmem:[%s465 + $0x9] sm:$0xff]
      %v628 = vld [vmem:[%s465 + $0x19] sm:$0xff]
      %v629 = vld [vmem:[%s465 + $0x21] sm:$0xff]
      %v630 = vld [vmem:[%s465 + $0x31] sm:$0xff]
      %v631 = vld [vmem:[%s465 + $0x39] sm:$0xff]
      %v632 = vld [vmem:[%s465 + $0x49] sm:$0xff]
      %v633 = vld [vmem:[%s465 + $0x51] sm:$0xff]
      %v634 = vld [vmem:[%s465 + $0x61] sm:$0xff]
      %v635 = vld [vmem:[%s465 + $0x69] sm:$0xff]
      %v636 = vld [vmem:[%s465 + $0x79] sm:$0xff]
      %v637 = vld [vmem:[%s465 + $0x81] sm:$0xff]
      %v638 = vld [vmem:[%s465 + $0x91] sm:$0xff]
      %v639 = vld [vmem:[%s465 + $0x99] sm:$0xff]
      %v640 = vld [vmem:[%s465 + $0xa9] sm:$0xff]
      %v641 = vld [vmem:[%s465 + $0xb1] sm:$0xff]
      %v642 = vld [vmem:[%s465 + $0xc1] sm:$0xff]
      %v643 = vld [vmem:[%s465 + $0xc9] sm:$0xff]
      %v644 = vld [vmem:[%s465 + $0xd9] sm:$0xff]
      %v645 = vld [vmem:[%s465 + $0xe1] sm:$0xff]
      %v646 = vld [vmem:[%s465 + $0xf1] sm:$0xff]
      %v647 = vld [vmem:[%s465 + $0xf9] sm:$0xff]
      %v648 = vld [vmem:[%s465 + $0x109] sm:$0xff]
      %v649 = vld [vmem:[%s465 + $0x111] sm:$0xff]
      %v650 = vld [vmem:[%s465 + $0x121] sm:$0xff]
      %v651 = vld [vmem:[%s465 + $0x129] sm:$0xff]
      %v652 = vld [vmem:[%s465 + $0x139] sm:$0xff]
      %v653 = vld [vmem:[%s465 + $0x141] sm:$0xff]
      %v654 = vld [vmem:[%s465 + $0x151] sm:$0xff]
      %v655 = vld [vmem:[%s465 + $0x159] sm:$0xff]
      %v656 = vld [vmem:[%s465 + $0x169] sm:$0xff]
      %v657 = vld [vmem:[%s465 + $0x171] sm:$0xff]
      %v658 = vld [vmem:[%s465 + $0x2] sm:$0xff]
      %v659 = vld [vmem:[%s465 + $0xa] sm:$0xff]
      %v660 = vld [vmem:[%s465 + $0x1a] sm:$0xff]
      %v661 = vld [vmem:[%s465 + $0x22] sm:$0xff]
      %v662 = vld [vmem:[%s465 + $0x32] sm:$0xff]
      %v663 = vld [vmem:[%s465 + $0x3a] sm:$0xff]
      %v664 = vld [vmem:[%s465 + $0x4a] sm:$0xff]
      %v665 = vld [vmem:[%s465 + $0x52] sm:$0xff]
      %v666 = vld [vmem:[%s465 + $0x62] sm:$0xff]
      %v667 = vld [vmem:[%s465 + $0x6a] sm:$0xff]
      %v668 = vld [vmem:[%s465 + $0x7a] sm:$0xff]
      %v669 = vld [vmem:[%s465 + $0x82] sm:$0xff]
      %v670 = vld [vmem:[%s465 + $0x92] sm:$0xff]
      %v671 = vld [vmem:[%s465 + $0x9a] sm:$0xff]
      %v672 = vld [vmem:[%s465 + $0xaa] sm:$0xff]
      %v673 = vld [vmem:[%s465 + $0xb2] sm:$0xff]
      %v674 = vld [vmem:[%s465 + $0xc2] sm:$0xff]
      %v675 = vld [vmem:[%s465 + $0xca] sm:$0xff]
      %v676 = vld [vmem:[%s465 + $0xda] sm:$0xff]
      %v677 = vld [vmem:[%s465 + $0xe2] sm:$0xff]
      %v678 = vld [vmem:[%s465 + $0xf2] sm:$0xff]
      %v679 = vld [vmem:[%s465 + $0xfa] sm:$0xff]
      %v680 = vld [vmem:[%s465 + $0x10a] sm:$0xff]
      %v681 = vld [vmem:[%s465 + $0x112] sm:$0xff]
      %v682 = vld [vmem:[%s465 + $0x122] sm:$0xff]
      %v683 = vld [vmem:[%s465 + $0x12a] sm:$0xff]
      %v684 = vld [vmem:[%s465 + $0x13a] sm:$0xff]
      %v685 = vld [vmem:[%s465 + $0x142] sm:$0xff]
      %v686 = vld [vmem:[%s465 + $0x152] sm:$0xff]
      %v687 = vld [vmem:[%s465 + $0x15a] sm:$0xff]
      %v688 = vld [vmem:[%s465 + $0x16a] sm:$0xff]
      %v689 = vld [vmem:[%s465 + $0x172] sm:$0xff]
      %s690 = scalar_lea.vmem [#allocation2], 48
      %v691 = vld [vmem:[%s690] sm:$0xff]
      %v692 = vld [vmem:[%s690 + $0x8] sm:$0xff]
      %v693 = vld [vmem:[%s690 + $0x18] sm:$0xff]
      %v694 = vld [vmem:[%s690 + $0x20] sm:$0xff]
      %v695 = vld [vmem:[%s690 + $0x30] sm:$0xff]
      %v696 = vld [vmem:[%s690 + $0x38] sm:$0xff]
      %v697 = vld [vmem:[%s690 + $0x48] sm:$0xff]
      %v698 = vld [vmem:[%s690 + $0x50] sm:$0xff]
      %v699 = vld [vmem:[%s690 + $0x60] sm:$0xff]
      %v700 = vld [vmem:[%s690 + $0x68] sm:$0xff]
      %v701 = vld [vmem:[%s690 + $0x78] sm:$0xff]
      %v702 = vld [vmem:[%s690 + $0x80] sm:$0xff]
      %v703 = vld [vmem:[%s690 + $0x90] sm:$0xff]
      %v704 = vld [vmem:[%s690 + $0x98] sm:$0xff]
      %v705 = vld [vmem:[%s690 + $0xa8] sm:$0xff]
      %v706 = vld [vmem:[%s690 + $0xb0] sm:$0xff]
      %v707 = vld [vmem:[%s690 + $0xc0] sm:$0xff]
      %v708 = vld [vmem:[%s690 + $0xc8] sm:$0xff]
      %v709 = vld [vmem:[%s690 + $0xd8] sm:$0xff]
      %v710 = vld [vmem:[%s690 + $0xe0] sm:$0xff]
      %v711 = vld [vmem:[%s690 + $0xf0] sm:$0xff]
      %v712 = vld [vmem:[%s690 + $0xf8] sm:$0xff]
      %v713 = vld [vmem:[%s690 + $0x108] sm:$0xff]
      %v714 = vld [vmem:[%s690 + $0x110] sm:$0xff]
      %v715 = vld [vmem:[%s690 + $0x120] sm:$0xff]
      %v716 = vld [vmem:[%s690 + $0x128] sm:$0xff]
      %v717 = vld [vmem:[%s690 + $0x138] sm:$0xff]
      %v718 = vld [vmem:[%s690 + $0x140] sm:$0xff]
      %v719 = vld [vmem:[%s690 + $0x150] sm:$0xff]
      %v720 = vld [vmem:[%s690 + $0x158] sm:$0xff]
      %v721 = vld [vmem:[%s690 + $0x168] sm:$0xff]
      %v722 = vld [vmem:[%s690 + $0x170] sm:$0xff]
      %v723 = vld [vmem:[%s690 + $0x1] sm:$0xff]
      %v724 = vld [vmem:[%s690 + $0x9] sm:$0xff]
      %v725 = vld [vmem:[%s690 + $0x19] sm:$0xff]
      %v726 = vld [vmem:[%s690 + $0x21] sm:$0xff]
      %v727 = vld [vmem:[%s690 + $0x31] sm:$0xff]
      %v728 = vld [vmem:[%s690 + $0x39] sm:$0xff]
      %v729 = vld [vmem:[%s690 + $0x49] sm:$0xff]
      %v730 = vld [vmem:[%s690 + $0x51] sm:$0xff]
      %v731 = vld [vmem:[%s690 + $0x61] sm:$0xff]
      %v732 = vld [vmem:[%s690 + $0x69] sm:$0xff]
      %v733 = vld [vmem:[%s690 + $0x79] sm:$0xff]
      %v734 = vld [vmem:[%s690 + $0x81] sm:$0xff]
      %v735 = vld [vmem:[%s690 + $0x91] sm:$0xff]
      %v736 = vld [vmem:[%s690 + $0x99] sm:$0xff]
      %v737 = vld [vmem:[%s690 + $0xa9] sm:$0xff]
      %v738 = vld [vmem:[%s690 + $0xb1] sm:$0xff]
      %v739 = vld [vmem:[%s690 + $0xc1] sm:$0xff]
      %v740 = vld [vmem:[%s690 + $0xc9] sm:$0xff]
      %v741 = vld [vmem:[%s690 + $0xd9] sm:$0xff]
      %v742 = vld [vmem:[%s690 + $0xe1] sm:$0xff]
      %v743 = vld [vmem:[%s690 + $0xf1] sm:$0xff]
      %v744 = vld [vmem:[%s690 + $0xf9] sm:$0xff]
      %v745 = vld [vmem:[%s690 + $0x109] sm:$0xff]
      %v746 = vld [vmem:[%s690 + $0x111] sm:$0xff]
      %v747 = vld [vmem:[%s690 + $0x121] sm:$0xff]
      %v748 = vld [vmem:[%s690 + $0x129] sm:$0xff]
      %v749 = vld [vmem:[%s690 + $0x139] sm:$0xff]
      %v750 = vld [vmem:[%s690 + $0x141] sm:$0xff]
      %v751 = vld [vmem:[%s690 + $0x151] sm:$0xff]
      %v752 = vld [vmem:[%s690 + $0x159] sm:$0xff]
      %v753 = vld [vmem:[%s690 + $0x169] sm:$0xff]
      %v754 = vld [vmem:[%s690 + $0x171] sm:$0xff]
      %v755 = vld [vmem:[%s690 + $0x2] sm:$0xff]
      %v756 = vld [vmem:[%s690 + $0xa] sm:$0xff]
      %v757 = vld [vmem:[%s690 + $0x1a] sm:$0xff]
      %v758 = vld [vmem:[%s690 + $0x22] sm:$0xff]
      %v759 = vld [vmem:[%s690 + $0x32] sm:$0xff]
      %v760 = vld [vmem:[%s690 + $0x3a] sm:$0xff]
      %v761 = vld [vmem:[%s690 + $0x4a] sm:$0xff]
      %v762 = vld [vmem:[%s690 + $0x52] sm:$0xff]
      %v763 = vld [vmem:[%s690 + $0x62] sm:$0xff]
      %v764 = vld [vmem:[%s690 + $0x6a] sm:$0xff]
      %v765 = vld [vmem:[%s690 + $0x7a] sm:$0xff]
      %v766 = vld [vmem:[%s690 + $0x82] sm:$0xff]
      %v767 = vld [vmem:[%s690 + $0x92] sm:$0xff]
      %v768 = vld [vmem:[%s690 + $0x9a] sm:$0xff]
      %v769 = vld [vmem:[%s690 + $0xaa] sm:$0xff]
      %v770 = vld [vmem:[%s690 + $0xb2] sm:$0xff]
      %v771 = vld [vmem:[%s690 + $0xc2] sm:$0xff]
      %v772 = vld [vmem:[%s690 + $0xca] sm:$0xff]
      %v773 = vld [vmem:[%s690 + $0xda] sm:$0xff]
      %v774 = vld [vmem:[%s690 + $0xe2] sm:$0xff]
      %v775 = vld [vmem:[%s690 + $0xf2] sm:$0xff]
      %v776 = vld [vmem:[%s690 + $0xfa] sm:$0xff]
      %v777 = vld [vmem:[%s690 + $0x10a] sm:$0xff]
      %v778 = vld [vmem:[%s690 + $0x112] sm:$0xff]
      %v779 = vld [vmem:[%s690 + $0x122] sm:$0xff]
      %v780 = vld [vmem:[%s690 + $0x12a] sm:$0xff]
      %v781 = vld [vmem:[%s690 + $0x13a] sm:$0xff]
      %v782 = vld [vmem:[%s690 + $0x142] sm:$0xff]
      %v783 = vld [vmem:[%s690 + $0x152] sm:$0xff]
      %v784 = vld [vmem:[%s690 + $0x15a] sm:$0xff]
      %v785 = vld [vmem:[%s690 + $0x16a] sm:$0xff]
      %v786 = vld [vmem:[%s690 + $0x172] sm:$0xff]
      %v787 = vpack.c.bf16 %v499, %v498
      %v788 = vpack.c.bf16 %v501, %v500
      %v789 = vpack.c.bf16 %v503, %v502
      %v790 = vpack.c.bf16 %v505, %v504
      %v791 = vpack.c.bf16 %v507, %v506
      %v792 = vpack.c.bf16 %v509, %v508
      %v793 = vpack.c.bf16 %v511, %v510
      %v794 = vpack.c.bf16 %v513, %v512
      %v795 = vpack.c.bf16 %v515, %v514
      %v796 = vpack.c.bf16 %v517, %v516
      %v797 = vpack.c.bf16 %v519, %v518
      %v798 = vpack.c.bf16 %v521, %v520
      %v799 = vpack.c.bf16 %v523, %v522
      %v800 = vpack.c.bf16 %v525, %v524
      %v801 = vpack.c.bf16 %v527, %v526
      %v802 = vpack.c.bf16 %v529, %v528
      %v803 = vld [vmem:[%s3] sm:$0xf]
      %v804 = vld [vmem:[%s3 + $0x4] sm:$0xf]
      %v805 = vpack.c.bf16 %v531, %v530
      %v806 = vpack.c.bf16 %v533, %v532
      %v807 = vpack.c.bf16 %v535, %v534
      %v808 = vpack.c.bf16 %v537, %v536
      %v809 = vpack.c.bf16 %v539, %v538
      %v810 = vpack.c.bf16 %v541, %v540
      %v811 = vpack.c.bf16 %v543, %v542
      %v812 = vpack.c.bf16 %v545, %v544
      %v813 = vpack.c.bf16 %v547, %v546
      %v814 = vpack.c.bf16 %v549, %v548
      %v815 = vpack.c.bf16 %v551, %v550
      %v816 = vpack.c.bf16 %v553, %v552
      %v817 = vpack.c.bf16 %v555, %v554
      %v818 = vpack.c.bf16 %v557, %v556
      %v819 = vpack.c.bf16 %v559, %v558
      %v820 = vpack.c.bf16 %v561, %v560
      %v821 = vld [vmem:[%s3 + $0x8] sm:$0xf]
      %v822 = vld [vmem:[%s3 + $0xc] sm:$0xf]
      %v825 = vunpack.c.l.b16 %v821
      %v826 = vunpack.c.l.b16 %v822
      %v827 = vpack.c.b16 %v826, %v825
      %v830 = vsel %vm409, %v805, 0
      %v833 = vsel %vm409, %v806, 0
      %v836 = vsel %vm409, %v807, 0
      %v839 = vsel %vm409, %v808, 0
      %v842 = vsel %vm409, %v809, 0
      %v845 = vsel %vm409, %v810, 0
      %v848 = vsel %vm409, %v811, 0
      %v851 = vsel %vm409, %v812, 0
      %v854 = vsel %vm409, %v813, 0
      %v857 = vsel %vm409, %v814, 0
      %v860 = vsel %vm409, %v815, 0
      %v863 = vsel %vm409, %v816, 0
      %v866 = vsel %vm409, %v817, 0
      %v869 = vsel %vm409, %v818, 0
      %v872 = vsel %vm409, %v819, 0
      %v875 = vsel %vm409, %v820, 0
      %877 = vmatpush.bf16.msra.mxu0 0
      %878 = vmatpush.bf16.msra.mxu0 0
      %879 = vmatpush.bf16.msra.mxu0 0
      %880 = vmatpush.bf16.msra.mxu0 0
      %881 = vmatpush.bf16.msra.mxu0 0
      %882 = vmatpush.bf16.msra.mxu0 0
      %883 = vmatpush.bf16.msra.mxu0 0
      %884 = vmatpush.bf16.msra.mxu0 %v827
      %885 = vmatmul.bf16.gmra.mxu0 %v830
      %v886 = vpop.f32.mrf.mxu0
      %v887 = vadd.f32 0.0, %v886
      %v888 = vpop.f32.mrf.mxu0
      %v889 = vadd.f32 0.0, %v888
      %890 = vmatmul.bf16.gmra.mxu0 %v833
      %v891 = vpop.f32.mrf.mxu0
      %v892 = vadd.f32 0.0, %v891
      %v893 = vpop.f32.mrf.mxu0
      %v894 = vadd.f32 0.0, %v893
      %895 = vmatmul.bf16.gmra.mxu0 %v836
      %v896 = vpop.f32.mrf.mxu0
      %v897 = vadd.f32 0.0, %v896
      %v898 = vpop.f32.mrf.mxu0
      %v899 = vadd.f32 0.0, %v898
      %900 = vmatmul.bf16.gmra.mxu0 %v839
      %v901 = vpop.f32.mrf.mxu0
      %v902 = vadd.f32 0.0, %v901
      %v903 = vpop.f32.mrf.mxu0
      %v904 = vadd.f32 0.0, %v903
      %905 = vmatmul.bf16.gmra.mxu0 %v842
      %v906 = vpop.f32.mrf.mxu0
      %v907 = vadd.f32 0.0, %v906
      %v908 = vpop.f32.mrf.mxu0
      %v909 = vadd.f32 0.0, %v908
      %910 = vmatmul.bf16.gmra.mxu0 %v845
      %v911 = vpop.f32.mrf.mxu0
      %v912 = vadd.f32 0.0, %v911
      %v913 = vpop.f32.mrf.mxu0
      %v914 = vadd.f32 0.0, %v913
      %915 = vmatmul.bf16.gmra.mxu0 %v848
      %v916 = vpop.f32.mrf.mxu0
      %v917 = vadd.f32 0.0, %v916
      %v918 = vpop.f32.mrf.mxu0
      %v919 = vadd.f32 0.0, %v918
      %920 = vmatmul.bf16.gmra.mxu0 %v851
      %v921 = vpop.f32.mrf.mxu0
      %v922 = vadd.f32 0.0, %v921
      %v923 = vpop.f32.mrf.mxu0
      %v924 = vadd.f32 0.0, %v923
      %925 = vmatmul.bf16.gmra.mxu0 %v854
      %v926 = vpop.f32.mrf.mxu0
      %v927 = vadd.f32 0.0, %v926
      %v928 = vpop.f32.mrf.mxu0
      %v929 = vadd.f32 0.0, %v928
      %930 = vmatmul.bf16.gmra.mxu0 %v857
      %v931 = vpop.f32.mrf.mxu0
      %v932 = vadd.f32 0.0, %v931
      %v933 = vpop.f32.mrf.mxu0
      %v934 = vadd.f32 0.0, %v933
      %935 = vmatmul.bf16.gmra.mxu0 %v860
      %v936 = vpop.f32.mrf.mxu0
      %v937 = vadd.f32 0.0, %v936
      %v938 = vpop.f32.mrf.mxu0
      %v939 = vadd.f32 0.0, %v938
      %940 = vmatmul.bf16.gmra.mxu0 %v863
      %v941 = vpop.f32.mrf.mxu0
      %v942 = vadd.f32 0.0, %v941
      %v943 = vpop.f32.mrf.mxu0
      %v944 = vadd.f32 0.0, %v943
      %945 = vmatmul.bf16.gmra.mxu0 %v866
      %v946 = vpop.f32.mrf.mxu0
      %v947 = vadd.f32 0.0, %v946
      %v948 = vpop.f32.mrf.mxu0
      %v949 = vadd.f32 0.0, %v948
      %950 = vmatmul.bf16.gmra.mxu0 %v869
      %v951 = vpop.f32.mrf.mxu0
      %v952 = vadd.f32 0.0, %v951
      %v953 = vpop.f32.mrf.mxu0
      %v954 = vadd.f32 0.0, %v953
      %955 = vmatmul.bf16.gmra.mxu0 %v872
      %v956 = vpop.f32.mrf.mxu0
      %v957 = vadd.f32 0.0, %v956
      %v958 = vpop.f32.mrf.mxu0
      %v959 = vadd.f32 0.0, %v958
      %960 = vmatmul.bf16.gmra.mxu0 %v875
      %v961 = vpop.f32.mrf.mxu0
      %v962 = vadd.f32 0.0, %v961
      %v963 = vpop.f32.mrf.mxu0
      %v964 = vadd.f32 0.0, %v963
      %965 = vdwg.mxu0
      %v968 = vunpack.c.l.b16 %v803
      %v969 = vunpack.c.l.b16 %v804
      %v970 = vpack.c.b16 %v969, %v968
      %v973 = vsel %vm409, %v787, 0
      %v976 = vsel %vm409, %v788, 0
      %v979 = vsel %vm409, %v789, 0
      %v982 = vsel %vm409, %v790, 0
      %v985 = vsel %vm409, %v791, 0
      %v988 = vsel %vm409, %v792, 0
      %v991 = vsel %vm409, %v793, 0
      %v994 = vsel %vm409, %v794, 0
      %v997 = vsel %vm409, %v795, 0
      %v1000 = vsel %vm409, %v796, 0
      %v1003 = vsel %vm409, %v797, 0
      %v1006 = vsel %vm409, %v798, 0
      %v1009 = vsel %vm409, %v799, 0
      %v1012 = vsel %vm409, %v800, 0
      %v1015 = vsel %vm409, %v801, 0
      %v1018 = vsel %vm409, %v802, 0
      %1020 = vmatpush.bf16.msra.mxu0 0
      %1021 = vmatpush.bf16.msra.mxu0 0
      %1022 = vmatpush.bf16.msra.mxu0 0
      %1023 = vmatpush.bf16.msra.mxu0 0
      %1024 = vmatpush.bf16.msra.mxu0 0
      %1025 = vmatpush.bf16.msra.mxu0 0
      %1026 = vmatpush.bf16.msra.mxu0 0
      %1027 = vmatpush.bf16.msra.mxu0 %v970
      %1028 = vmatmul.bf16.gmra.mxu0 %v973
      %v1029 = vpop.f32.mrf.mxu0
      %v1030 = vadd.f32 %v887, %v1029
      %v1031 = vpop.f32.mrf.mxu0
      %v1032 = vadd.f32 %v889, %v1031
      %1033 = vmatmul.bf16.gmra.mxu0 %v976
      %v1034 = vpop.f32.mrf.mxu0
      %v1035 = vadd.f32 %v892, %v1034
      %v1036 = vpop.f32.mrf.mxu0
      %v1037 = vadd.f32 %v894, %v1036
      %1038 = vmatmul.bf16.gmra.mxu0 %v979
      %v1039 = vpop.f32.mrf.mxu0
      %v1040 = vadd.f32 %v897, %v1039
      %v1041 = vpop.f32.mrf.mxu0
      %v1042 = vadd.f32 %v899, %v1041
      %1043 = vmatmul.bf16.gmra.mxu0 %v982
      %v1044 = vpop.f32.mrf.mxu0
      %v1045 = vadd.f32 %v902, %v1044
      %v1046 = vpop.f32.mrf.mxu0
      %v1047 = vadd.f32 %v904, %v1046
      %1048 = vmatmul.bf16.gmra.mxu0 %v985
      %v1049 = vpop.f32.mrf.mxu0
      %v1050 = vadd.f32 %v907, %v1049
      %v1051 = vpop.f32.mrf.mxu0
      %v1052 = vadd.f32 %v909, %v1051
      %1053 = vmatmul.bf16.gmra.mxu0 %v988
      %v1054 = vpop.f32.mrf.mxu0
      %v1055 = vadd.f32 %v912, %v1054
      %v1056 = vpop.f32.mrf.mxu0
      %v1057 = vadd.f32 %v914, %v1056
      %1058 = vmatmul.bf16.gmra.mxu0 %v991
      %v1059 = vpop.f32.mrf.mxu0
      %v1060 = vadd.f32 %v917, %v1059
      %v1061 = vpop.f32.mrf.mxu0
      %v1062 = vadd.f32 %v919, %v1061
      %1063 = vmatmul.bf16.gmra.mxu0 %v994
      %v1064 = vpop.f32.mrf.mxu0
      %v1065 = vadd.f32 %v922, %v1064
      %v1066 = vpop.f32.mrf.mxu0
      %v1067 = vadd.f32 %v924, %v1066
      %1068 = vmatmul.bf16.gmra.mxu0 %v997
      %v1069 = vpop.f32.mrf.mxu0
      %v1070 = vadd.f32 %v927, %v1069
      %v1071 = vpop.f32.mrf.mxu0
      %v1072 = vadd.f32 %v929, %v1071
      %1073 = vmatmul.bf16.gmra.mxu0 %v1000
      %v1074 = vpop.f32.mrf.mxu0
      %v1075 = vadd.f32 %v932, %v1074
      %v1076 = vpop.f32.mrf.mxu0
      %v1077 = vadd.f32 %v934, %v1076
      %1078 = vmatmul.bf16.gmra.mxu0 %v1003
      %v1079 = vpop.f32.mrf.mxu0
      %v1080 = vadd.f32 %v937, %v1079
      %v1081 = vpop.f32.mrf.mxu0
      %v1082 = vadd.f32 %v939, %v1081
      %1083 = vmatmul.bf16.gmra.mxu0 %v1006
      %v1084 = vpop.f32.mrf.mxu0
      %v1085 = vadd.f32 %v942, %v1084
      %v1086 = vpop.f32.mrf.mxu0
      %v1087 = vadd.f32 %v944, %v1086
      %1088 = vmatmul.bf16.gmra.mxu0 %v1009
      %v1089 = vpop.f32.mrf.mxu0
      %v1090 = vadd.f32 %v947, %v1089
      %v1091 = vpop.f32.mrf.mxu0
      %v1092 = vadd.f32 %v949, %v1091
      %1093 = vmatmul.bf16.gmra.mxu0 %v1012
      %v1094 = vpop.f32.mrf.mxu0
      %v1095 = vadd.f32 %v952, %v1094
      %v1096 = vpop.f32.mrf.mxu0
      %v1097 = vadd.f32 %v954, %v1096
      %1098 = vmatmul.bf16.gmra.mxu0 %v1015
      %v1099 = vpop.f32.mrf.mxu0
      %v1100 = vadd.f32 %v957, %v1099
      %v1101 = vpop.f32.mrf.mxu0
      %v1102 = vadd.f32 %v959, %v1101
      %1103 = vmatmul.bf16.gmra.mxu0 %v1018
      %v1104 = vpop.f32.mrf.mxu0
      %v1105 = vadd.f32 %v962, %v1104
      %v1106 = vpop.f32.mrf.mxu0
      %v1107 = vadd.f32 %v964, %v1106
      %1108 = vdwg.mxu0
      %v1109 = vpack.c.bf16 %v563, %v562
      %v1110 = vpack.c.bf16 %v565, %v564
      %v1111 = vpack.c.bf16 %v567, %v566
      %v1112 = vpack.c.bf16 %v569, %v568
      %v1113 = vpack.c.bf16 %v571, %v570
      %v1114 = vpack.c.bf16 %v573, %v572
      %v1115 = vpack.c.bf16 %v575, %v574
      %v1116 = vpack.c.bf16 %v577, %v576
      %v1117 = vpack.c.bf16 %v579, %v578
      %v1118 = vpack.c.bf16 %v581, %v580
      %v1119 = vpack.c.bf16 %v583, %v582
      %v1120 = vpack.c.bf16 %v585, %v584
      %v1121 = vpack.c.bf16 %v587, %v586
      %v1122 = vpack.c.bf16 %v589, %v588
      %v1123 = vpack.c.bf16 %v591, %v590
      %v1124 = vpack.c.bf16 %v593, %v592
      %v1125 = vld [vmem:[%s3 + $0x10] sm:$0xf]
      %v1126 = vld [vmem:[%s3 + $0x14] sm:$0xf]
      %v1129 = vunpack.c.l.b16 %v1125
      %v1130 = vunpack.c.l.b16 %v1126
      %v1131 = vpack.c.b16 %v1130, %v1129
      %v1134 = vsel %vm409, %v1109, 0
      %v1137 = vsel %vm409, %v1110, 0
      %v1140 = vsel %vm409, %v1111, 0
      %v1143 = vsel %vm409, %v1112, 0
      %v1146 = vsel %vm409, %v1113, 0
      %v1149 = vsel %vm409, %v1114, 0
      %v1152 = vsel %vm409, %v1115, 0
      %v1155 = vsel %vm409, %v1116, 0
      %v1158 = vsel %vm409, %v1117, 0
      %v1161 = vsel %vm409, %v1118, 0
      %v1164 = vsel %vm409, %v1119, 0
      %v1167 = vsel %vm409, %v1120, 0
      %v1170 = vsel %vm409, %v1121, 0
      %v1173 = vsel %vm409, %v1122, 0
      %v1176 = vsel %vm409, %v1123, 0
      %v1179 = vsel %vm409, %v1124, 0
      %1181 = vmatpush.bf16.msra.mxu0 0
      %1182 = vmatpush.bf16.msra.mxu0 0
      %1183 = vmatpush.bf16.msra.mxu0 0
      %1184 = vmatpush.bf16.msra.mxu0 0
      %1185 = vmatpush.bf16.msra.mxu0 0
      %1186 = vmatpush.bf16.msra.mxu0 0
      %1187 = vmatpush.bf16.msra.mxu0 0
      %1188 = vmatpush.bf16.msra.mxu0 %v1131
      %1189 = vmatmul.bf16.gmra.mxu0 %v1134
      %v1190 = vpop.f32.mrf.mxu0
      %v1191 = vadd.f32 0.0, %v1190
      %v1192 = vpop.f32.mrf.mxu0
      %v1193 = vadd.f32 0.0, %v1192
      %1194 = vmatmul.bf16.gmra.mxu0 %v1137
      %v1195 = vpop.f32.mrf.mxu0
      %v1196 = vadd.f32 0.0, %v1195
      %v1197 = vpop.f32.mrf.mxu0
      %v1198 = vadd.f32 0.0, %v1197
      %1199 = vmatmul.bf16.gmra.mxu0 %v1140
      %v1200 = vpop.f32.mrf.mxu0
      %v1201 = vadd.f32 0.0, %v1200
      %v1202 = vpop.f32.mrf.mxu0
      %v1203 = vadd.f32 0.0, %v1202
      %1204 = vmatmul.bf16.gmra.mxu0 %v1143
      %v1205 = vpop.f32.mrf.mxu0
      %v1206 = vadd.f32 0.0, %v1205
      %v1207 = vpop.f32.mrf.mxu0
      %v1208 = vadd.f32 0.0, %v1207
      %1209 = vmatmul.bf16.gmra.mxu0 %v1146
      %v1210 = vpop.f32.mrf.mxu0
      %v1211 = vadd.f32 0.0, %v1210
      %v1212 = vpop.f32.mrf.mxu0
      %v1213 = vadd.f32 0.0, %v1212
      %1214 = vmatmul.bf16.gmra.mxu0 %v1149
      %v1215 = vpop.f32.mrf.mxu0
      %v1216 = vadd.f32 0.0, %v1215
      %v1217 = vpop.f32.mrf.mxu0
      %v1218 = vadd.f32 0.0, %v1217
      %1219 = vmatmul.bf16.gmra.mxu0 %v1152
      %v1220 = vpop.f32.mrf.mxu0
      %v1221 = vadd.f32 0.0, %v1220
      %v1222 = vpop.f32.mrf.mxu0
      %v1223 = vadd.f32 0.0, %v1222
      %1224 = vmatmul.bf16.gmra.mxu0 %v1155
      %v1225 = vpop.f32.mrf.mxu0
      %v1226 = vadd.f32 0.0, %v1225
      %v1227 = vpop.f32.mrf.mxu0
      %v1228 = vadd.f32 0.0, %v1227
      %1229 = vmatmul.bf16.gmra.mxu0 %v1158
      %v1230 = vpop.f32.mrf.mxu0
      %v1231 = vadd.f32 0.0, %v1230
      %v1232 = vpop.f32.mrf.mxu0
      %v1233 = vadd.f32 0.0, %v1232
      %1234 = vmatmul.bf16.gmra.mxu0 %v1161
      %v1235 = vpop.f32.mrf.mxu0
      %v1236 = vadd.f32 0.0, %v1235
      %v1237 = vpop.f32.mrf.mxu0
      %v1238 = vadd.f32 0.0, %v1237
      %1239 = vmatmul.bf16.gmra.mxu0 %v1164
      %v1240 = vpop.f32.mrf.mxu0
      %v1241 = vadd.f32 0.0, %v1240
      %v1242 = vpop.f32.mrf.mxu0
      %v1243 = vadd.f32 0.0, %v1242
      %1244 = vmatmul.bf16.gmra.mxu0 %v1167
      %v1245 = vpop.f32.mrf.mxu0
      %v1246 = vadd.f32 0.0, %v1245
      %v1247 = vpop.f32.mrf.mxu0
      %v1248 = vadd.f32 0.0, %v1247
      %1249 = vmatmul.bf16.gmra.mxu0 %v1170
      %v1250 = vpop.f32.mrf.mxu0
      %v1251 = vadd.f32 0.0, %v1250
      %v1252 = vpop.f32.mrf.mxu0
      %v1253 = vadd.f32 0.0, %v1252
      %1254 = vmatmul.bf16.gmra.mxu0 %v1173
      %v1255 = vpop.f32.mrf.mxu0
      %v1256 = vadd.f32 0.0, %v1255
      %v1257 = vpop.f32.mrf.mxu0
      %v1258 = vadd.f32 0.0, %v1257
      %1259 = vmatmul.bf16.gmra.mxu0 %v1176
      %v1260 = vpop.f32.mrf.mxu0
      %v1261 = vadd.f32 0.0, %v1260
      %v1262 = vpop.f32.mrf.mxu0
      %v1263 = vadd.f32 0.0, %v1262
      %1264 = vmatmul.bf16.gmra.mxu0 %v1179
      %v1265 = vpop.f32.mrf.mxu0
      %v1266 = vadd.f32 0.0, %v1265
      %v1267 = vpop.f32.mrf.mxu0
      %v1268 = vadd.f32 0.0, %v1267
      %1269 = vdwg.mxu0
      %v1270 = vadd.f32 %v1030, %v1191
      %v1271 = vadd.f32 %v1032, %v1193
      %v1272 = vadd.f32 %v1035, %v1196
      %v1273 = vadd.f32 %v1037, %v1198
      %v1274 = vadd.f32 %v1040, %v1201
      %v1275 = vadd.f32 %v1042, %v1203
      %v1276 = vadd.f32 %v1045, %v1206
      %v1277 = vadd.f32 %v1047, %v1208
      %v1278 = vadd.f32 %v1050, %v1211
      %v1279 = vadd.f32 %v1052, %v1213
      %v1280 = vadd.f32 %v1055, %v1216
      %v1281 = vadd.f32 %v1057, %v1218
      %v1282 = vadd.f32 %v1060, %v1221
      %v1283 = vadd.f32 %v1062, %v1223
      %v1284 = vadd.f32 %v1065, %v1226
      %v1285 = vadd.f32 %v1067, %v1228
      %v1286 = vadd.f32 %v1070, %v1231
      %v1287 = vadd.f32 %v1072, %v1233
      %v1288 = vadd.f32 %v1075, %v1236
      %v1289 = vadd.f32 %v1077, %v1238
      %v1290 = vadd.f32 %v1080, %v1241
      %v1291 = vadd.f32 %v1082, %v1243
      %v1292 = vadd.f32 %v1085, %v1246
      %v1293 = vadd.f32 %v1087, %v1248
      %v1294 = vadd.f32 %v1090, %v1251
      %v1295 = vadd.f32 %v1092, %v1253
      %v1296 = vadd.f32 %v1095, %v1256
      %v1297 = vadd.f32 %v1097, %v1258
      %v1298 = vadd.f32 %v1100, %v1261
      %v1299 = vadd.f32 %v1102, %v1263
      %v1300 = vadd.f32 %v1105, %v1266
      %v1301 = vadd.f32 %v1107, %v1268
      %v1302 = vpack.c.bf16 %v595, %v594
      %v1303 = vpack.c.bf16 %v597, %v596
      %v1304 = vpack.c.bf16 %v599, %v598
      %v1305 = vpack.c.bf16 %v601, %v600
      %v1306 = vpack.c.bf16 %v603, %v602
      %v1307 = vpack.c.bf16 %v605, %v604
      %v1308 = vpack.c.bf16 %v607, %v606
      %v1309 = vpack.c.bf16 %v609, %v608
      %v1310 = vpack.c.bf16 %v611, %v610
      %v1311 = vpack.c.bf16 %v613, %v612
      %v1312 = vpack.c.bf16 %v615, %v614
      %v1313 = vpack.c.bf16 %v617, %v616
      %v1314 = vpack.c.bf16 %v619, %v618
      %v1315 = vpack.c.bf16 %v621, %v620
      %v1316 = vpack.c.bf16 %v623, %v622
      %v1317 = vpack.c.bf16 %v625, %v624
      %v1318 = vld [vmem:[%s3 + $0x18] sm:$0xf]
      %v1319 = vld [vmem:[%s3 + $0x1c] sm:$0xf]
      %v1322 = vunpack.c.l.b16 %v1318
      %v1323 = vunpack.c.l.b16 %v1319
      %v1324 = vpack.c.b16 %v1323, %v1322
      %v1327 = vsel %vm409, %v1302, 0
      %v1330 = vsel %vm409, %v1303, 0
      %v1333 = vsel %vm409, %v1304, 0
      %v1336 = vsel %vm409, %v1305, 0
      %v1339 = vsel %vm409, %v1306, 0
      %v1342 = vsel %vm409, %v1307, 0
      %v1345 = vsel %vm409, %v1308, 0
      %v1348 = vsel %vm409, %v1309, 0
      %v1351 = vsel %vm409, %v1310, 0
      %v1354 = vsel %vm409, %v1311, 0
      %v1357 = vsel %vm409, %v1312, 0
      %v1360 = vsel %vm409, %v1313, 0
      %v1363 = vsel %vm409, %v1314, 0
      %v1366 = vsel %vm409, %v1315, 0
      %v1369 = vsel %vm409, %v1316, 0
      %v1372 = vsel %vm409, %v1317, 0
      %1374 = vmatpush.bf16.msra.mxu0 0
      %1375 = vmatpush.bf16.msra.mxu0 0
      %1376 = vmatpush.bf16.msra.mxu0 0
      %1377 = vmatpush.bf16.msra.mxu0 0
      %1378 = vmatpush.bf16.msra.mxu0 0
      %1379 = vmatpush.bf16.msra.mxu0 0
      %1380 = vmatpush.bf16.msra.mxu0 0
      %1381 = vmatpush.bf16.msra.mxu0 %v1324
      %1382 = vmatmul.bf16.gmra.mxu0 %v1327
      %v1383 = vpop.f32.mrf.mxu0
      %v1384 = vadd.f32 0.0, %v1383
      %v1385 = vpop.f32.mrf.mxu0
      %v1386 = vadd.f32 0.0, %v1385
      %1387 = vmatmul.bf16.gmra.mxu0 %v1330
      %v1388 = vpop.f32.mrf.mxu0
      %v1389 = vadd.f32 0.0, %v1388
      %v1390 = vpop.f32.mrf.mxu0
      %v1391 = vadd.f32 0.0, %v1390
      %1392 = vmatmul.bf16.gmra.mxu0 %v1333
      %v1393 = vpop.f32.mrf.mxu0
      %v1394 = vadd.f32 0.0, %v1393
      %v1395 = vpop.f32.mrf.mxu0
      %v1396 = vadd.f32 0.0, %v1395
      %1397 = vmatmul.bf16.gmra.mxu0 %v1336
      %v1398 = vpop.f32.mrf.mxu0
      %v1399 = vadd.f32 0.0, %v1398
      %v1400 = vpop.f32.mrf.mxu0
      %v1401 = vadd.f32 0.0, %v1400
      %1402 = vmatmul.bf16.gmra.mxu0 %v1339
      %v1403 = vpop.f32.mrf.mxu0
      %v1404 = vadd.f32 0.0, %v1403
      %v1405 = vpop.f32.mrf.mxu0
      %v1406 = vadd.f32 0.0, %v1405
      %1407 = vmatmul.bf16.gmra.mxu0 %v1342
      %v1408 = vpop.f32.mrf.mxu0
      %v1409 = vadd.f32 0.0, %v1408
      %v1410 = vpop.f32.mrf.mxu0
      %v1411 = vadd.f32 0.0, %v1410
      %1412 = vmatmul.bf16.gmra.mxu0 %v1345
      %v1413 = vpop.f32.mrf.mxu0
      %v1414 = vadd.f32 0.0, %v1413
      %v1415 = vpop.f32.mrf.mxu0
      %v1416 = vadd.f32 0.0, %v1415
      %1417 = vmatmul.bf16.gmra.mxu0 %v1348
      %v1418 = vpop.f32.mrf.mxu0
      %v1419 = vadd.f32 0.0, %v1418
      %v1420 = vpop.f32.mrf.mxu0
      %v1421 = vadd.f32 0.0, %v1420
      %1422 = vmatmul.bf16.gmra.mxu0 %v1351
      %v1423 = vpop.f32.mrf.mxu0
      %v1424 = vadd.f32 0.0, %v1423
      %v1425 = vpop.f32.mrf.mxu0
      %v1426 = vadd.f32 0.0, %v1425
      %1427 = vmatmul.bf16.gmra.mxu0 %v1354
      %v1428 = vpop.f32.mrf.mxu0
      %v1429 = vadd.f32 0.0, %v1428
      %v1430 = vpop.f32.mrf.mxu0
      %v1431 = vadd.f32 0.0, %v1430
      %1432 = vmatmul.bf16.gmra.mxu0 %v1357
      %v1433 = vpop.f32.mrf.mxu0
      %v1434 = vadd.f32 0.0, %v1433
      %v1435 = vpop.f32.mrf.mxu0
      %v1436 = vadd.f32 0.0, %v1435
      %1437 = vmatmul.bf16.gmra.mxu0 %v1360
      %v1438 = vpop.f32.mrf.mxu0
      %v1439 = vadd.f32 0.0, %v1438
      %v1440 = vpop.f32.mrf.mxu0
      %v1441 = vadd.f32 0.0, %v1440
      %1442 = vmatmul.bf16.gmra.mxu0 %v1363
      %v1443 = vpop.f32.mrf.mxu0
      %v1444 = vadd.f32 0.0, %v1443
      %v1445 = vpop.f32.mrf.mxu0
      %v1446 = vadd.f32 0.0, %v1445
      %1447 = vmatmul.bf16.gmra.mxu0 %v1366
      %v1448 = vpop.f32.mrf.mxu0
      %v1449 = vadd.f32 0.0, %v1448
      %v1450 = vpop.f32.mrf.mxu0
      %v1451 = vadd.f32 0.0, %v1450
      %1452 = vmatmul.bf16.gmra.mxu0 %v1369
      %v1453 = vpop.f32.mrf.mxu0
      %v1454 = vadd.f32 0.0, %v1453
      %v1455 = vpop.f32.mrf.mxu0
      %v1456 = vadd.f32 0.0, %v1455
      %1457 = vmatmul.bf16.gmra.mxu0 %v1372
      %v1458 = vpop.f32.mrf.mxu0
      %v1459 = vadd.f32 0.0, %v1458
      %v1460 = vpop.f32.mrf.mxu0
      %v1461 = vadd.f32 0.0, %v1460
      %1462 = vdwg.mxu0
      %v1463 = vadd.f32 %v1270, %v1384
      %v1464 = vadd.f32 %v1271, %v1386
      %v1465 = vadd.f32 %v1272, %v1389
      %v1466 = vadd.f32 %v1273, %v1391
      %v1467 = vadd.f32 %v1274, %v1394
      %v1468 = vadd.f32 %v1275, %v1396
      %v1469 = vadd.f32 %v1276, %v1399
      %v1470 = vadd.f32 %v1277, %v1401
      %v1471 = vadd.f32 %v1278, %v1404
      %v1472 = vadd.f32 %v1279, %v1406
      %v1473 = vadd.f32 %v1280, %v1409
      %v1474 = vadd.f32 %v1281, %v1411
      %v1475 = vadd.f32 %v1282, %v1414
      %v1476 = vadd.f32 %v1283, %v1416
      %v1477 = vadd.f32 %v1284, %v1419
      %v1478 = vadd.f32 %v1285, %v1421
      %v1479 = vadd.f32 %v1286, %v1424
      %v1480 = vadd.f32 %v1287, %v1426
      %v1481 = vadd.f32 %v1288, %v1429
      %v1482 = vadd.f32 %v1289, %v1431
      %v1483 = vadd.f32 %v1290, %v1434
      %v1484 = vadd.f32 %v1291, %v1436
      %v1485 = vadd.f32 %v1292, %v1439
      %v1486 = vadd.f32 %v1293, %v1441
      %v1487 = vadd.f32 %v1294, %v1444
      %v1488 = vadd.f32 %v1295, %v1446
      %v1489 = vadd.f32 %v1296, %v1449
      %v1490 = vadd.f32 %v1297, %v1451
      %v1491 = vadd.f32 %v1298, %v1454
      %v1492 = vadd.f32 %v1299, %v1456
      %v1493 = vadd.f32 %v1300, %v1459
      %v1494 = vadd.f32 %v1301, %v1461
      %v1495 = vpack.c.bf16 %v627, %v626
      %v1496 = vpack.c.bf16 %v629, %v628
      %v1497 = vpack.c.bf16 %v631, %v630
      %v1498 = vpack.c.bf16 %v633, %v632
      %v1499 = vpack.c.bf16 %v635, %v634
      %v1500 = vpack.c.bf16 %v637, %v636
      %v1501 = vpack.c.bf16 %v639, %v638
      %v1502 = vpack.c.bf16 %v641, %v640
      %v1503 = vpack.c.bf16 %v643, %v642
      %v1504 = vpack.c.bf16 %v645, %v644
      %v1505 = vpack.c.bf16 %v647, %v646
      %v1506 = vpack.c.bf16 %v649, %v648
      %v1507 = vpack.c.bf16 %v651, %v650
      %v1508 = vpack.c.bf16 %v653, %v652
      %v1509 = vpack.c.bf16 %v655, %v654
      %v1510 = vpack.c.bf16 %v657, %v656
      %v1511 = vld [vmem:[%s3 + $0x20] sm:$0xf]
      %v1512 = vld [vmem:[%s3 + $0x24] sm:$0xf]
      %v1515 = vunpack.c.l.b16 %v1511
      %v1516 = vunpack.c.l.b16 %v1512
      %v1517 = vpack.c.b16 %v1516, %v1515
      %v1520 = vsel %vm409, %v1495, 0
      %v1523 = vsel %vm409, %v1496, 0
      %v1526 = vsel %vm409, %v1497, 0
      %v1529 = vsel %vm409, %v1498, 0
      %v1532 = vsel %vm409, %v1499, 0
      %v1535 = vsel %vm409, %v1500, 0
      %v1538 = vsel %vm409, %v1501, 0
      %v1541 = vsel %vm409, %v1502, 0
      %v1544 = vsel %vm409, %v1503, 0
      %v1547 = vsel %vm409, %v1504, 0
      %v1550 = vsel %vm409, %v1505, 0
      %v1553 = vsel %vm409, %v1506, 0
      %v1556 = vsel %vm409, %v1507, 0
      %v1559 = vsel %vm409, %v1508, 0
      %v1562 = vsel %vm409, %v1509, 0
      %v1565 = vsel %vm409, %v1510, 0
      %1567 = vmatpush.bf16.msra.mxu0 0
      %1568 = vmatpush.bf16.msra.mxu0 0
      %1569 = vmatpush.bf16.msra.mxu0 0
      %1570 = vmatpush.bf16.msra.mxu0 0
      %1571 = vmatpush.bf16.msra.mxu0 0
      %1572 = vmatpush.bf16.msra.mxu0 0
      %1573 = vmatpush.bf16.msra.mxu0 0
      %1574 = vmatpush.bf16.msra.mxu0 %v1517
      %1575 = vmatmul.bf16.gmra.mxu0 %v1520
      %v1576 = vpop.f32.mrf.mxu0
      %v1577 = vadd.f32 0.0, %v1576
      %v1578 = vpop.f32.mrf.mxu0
      %v1579 = vadd.f32 0.0, %v1578
      %1580 = vmatmul.bf16.gmra.mxu0 %v1523
      %v1581 = vpop.f32.mrf.mxu0
      %v1582 = vadd.f32 0.0, %v1581
      %v1583 = vpop.f32.mrf.mxu0
      %v1584 = vadd.f32 0.0, %v1583
      %1585 = vmatmul.bf16.gmra.mxu0 %v1526
      %v1586 = vpop.f32.mrf.mxu0
      %v1587 = vadd.f32 0.0, %v1586
      %v1588 = vpop.f32.mrf.mxu0
      %v1589 = vadd.f32 0.0, %v1588
      %1590 = vmatmul.bf16.gmra.mxu0 %v1529
      %v1591 = vpop.f32.mrf.mxu0
      %v1592 = vadd.f32 0.0, %v1591
      %v1593 = vpop.f32.mrf.mxu0
      %v1594 = vadd.f32 0.0, %v1593
      %1595 = vmatmul.bf16.gmra.mxu0 %v1532
      %v1596 = vpop.f32.mrf.mxu0
      %v1597 = vadd.f32 0.0, %v1596
      %v1598 = vpop.f32.mrf.mxu0
      %v1599 = vadd.f32 0.0, %v1598
      %1600 = vmatmul.bf16.gmra.mxu0 %v1535
      %v1601 = vpop.f32.mrf.mxu0
      %v1602 = vadd.f32 0.0, %v1601
      %v1603 = vpop.f32.mrf.mxu0
      %v1604 = vadd.f32 0.0, %v1603
      %1605 = vmatmul.bf16.gmra.mxu0 %v1538
      %v1606 = vpop.f32.mrf.mxu0
      %v1607 = vadd.f32 0.0, %v1606
      %v1608 = vpop.f32.mrf.mxu0
      %v1609 = vadd.f32 0.0, %v1608
      %1610 = vmatmul.bf16.gmra.mxu0 %v1541
      %v1611 = vpop.f32.mrf.mxu0
      %v1612 = vadd.f32 0.0, %v1611
      %v1613 = vpop.f32.mrf.mxu0
      %v1614 = vadd.f32 0.0, %v1613
      %1615 = vmatmul.bf16.gmra.mxu0 %v1544
      %v1616 = vpop.f32.mrf.mxu0
      %v1617 = vadd.f32 0.0, %v1616
      %v1618 = vpop.f32.mrf.mxu0
      %v1619 = vadd.f32 0.0, %v1618
      %1620 = vmatmul.bf16.gmra.mxu0 %v1547
      %v1621 = vpop.f32.mrf.mxu0
      %v1622 = vadd.f32 0.0, %v1621
      %v1623 = vpop.f32.mrf.mxu0
      %v1624 = vadd.f32 0.0, %v1623
      %1625 = vmatmul.bf16.gmra.mxu0 %v1550
      %v1626 = vpop.f32.mrf.mxu0
      %v1627 = vadd.f32 0.0, %v1626
      %v1628 = vpop.f32.mrf.mxu0
      %v1629 = vadd.f32 0.0, %v1628
      %1630 = vmatmul.bf16.gmra.mxu0 %v1553
      %v1631 = vpop.f32.mrf.mxu0
      %v1632 = vadd.f32 0.0, %v1631
      %v1633 = vpop.f32.mrf.mxu0
      %v1634 = vadd.f32 0.0, %v1633
      %1635 = vmatmul.bf16.gmra.mxu0 %v1556
      %v1636 = vpop.f32.mrf.mxu0
      %v1637 = vadd.f32 0.0, %v1636
      %v1638 = vpop.f32.mrf.mxu0
      %v1639 = vadd.f32 0.0, %v1638
      %1640 = vmatmul.bf16.gmra.mxu0 %v1559
      %v1641 = vpop.f32.mrf.mxu0
      %v1642 = vadd.f32 0.0, %v1641
      %v1643 = vpop.f32.mrf.mxu0
      %v1644 = vadd.f32 0.0, %v1643
      %1645 = vmatmul.bf16.gmra.mxu0 %v1562
      %v1646 = vpop.f32.mrf.mxu0
      %v1647 = vadd.f32 0.0, %v1646
      %v1648 = vpop.f32.mrf.mxu0
      %v1649 = vadd.f32 0.0, %v1648
      %1650 = vmatmul.bf16.gmra.mxu0 %v1565
      %v1651 = vpop.f32.mrf.mxu0
      %v1652 = vadd.f32 0.0, %v1651
      %v1653 = vpop.f32.mrf.mxu0
      %v1654 = vadd.f32 0.0, %v1653
      %1655 = vdwg.mxu0
      %v1656 = vadd.f32 %v1463, %v1577
      %v1657 = vadd.f32 %v1464, %v1579
      %v1658 = vadd.f32 %v1465, %v1582
      %v1659 = vadd.f32 %v1466, %v1584
      %v1660 = vadd.f32 %v1467, %v1587
      %v1661 = vadd.f32 %v1468, %v1589
      %v1662 = vadd.f32 %v1469, %v1592
      %v1663 = vadd.f32 %v1470, %v1594
      %v1664 = vadd.f32 %v1471, %v1597
      %v1665 = vadd.f32 %v1472, %v1599
      %v1666 = vadd.f32 %v1473, %v1602
      %v1667 = vadd.f32 %v1474, %v1604
      %v1668 = vadd.f32 %v1475, %v1607
      %v1669 = vadd.f32 %v1476, %v1609
      %v1670 = vadd.f32 %v1477, %v1612
      %v1671 = vadd.f32 %v1478, %v1614
      %v1672 = vadd.f32 %v1479, %v1617
      %v1673 = vadd.f32 %v1480, %v1619
      %v1674 = vadd.f32 %v1481, %v1622
      %v1675 = vadd.f32 %v1482, %v1624
      %v1676 = vadd.f32 %v1483, %v1627
      %v1677 = vadd.f32 %v1484, %v1629
      %v1678 = vadd.f32 %v1485, %v1632
      %v1679 = vadd.f32 %v1486, %v1634
      %v1680 = vadd.f32 %v1487, %v1637
      %v1681 = vadd.f32 %v1488, %v1639
      %v1682 = vadd.f32 %v1489, %v1642
      %v1683 = vadd.f32 %v1490, %v1644
      %v1684 = vadd.f32 %v1491, %v1647
      %v1685 = vadd.f32 %v1492, %v1649
      %v1686 = vadd.f32 %v1493, %v1652
      %v1687 = vadd.f32 %v1494, %v1654
      %v1688 = vpack.c.bf16 %v659, %v658
      %v1689 = vpack.c.bf16 %v661, %v660
      %v1690 = vpack.c.bf16 %v663, %v662
      %v1691 = vpack.c.bf16 %v665, %v664
      %v1692 = vpack.c.bf16 %v667, %v666
      %v1693 = vpack.c.bf16 %v669, %v668
      %v1694 = vpack.c.bf16 %v671, %v670
      %v1695 = vpack.c.bf16 %v673, %v672
      %v1696 = vpack.c.bf16 %v675, %v674
      %v1697 = vpack.c.bf16 %v677, %v676
      %v1698 = vpack.c.bf16 %v679, %v678
      %v1699 = vpack.c.bf16 %v681, %v680
      %v1700 = vpack.c.bf16 %v683, %v682
      %v1701 = vpack.c.bf16 %v685, %v684
      %v1702 = vpack.c.bf16 %v687, %v686
      %v1703 = vpack.c.bf16 %v689, %v688
      %v1704 = vld [vmem:[%s3 + $0x28] sm:$0xf]
      %v1705 = vld [vmem:[%s3 + $0x2c] sm:$0xf]
      %v1708 = vunpack.c.l.b16 %v1704
      %v1709 = vunpack.c.l.b16 %v1705
      %v1710 = vpack.c.b16 %v1709, %v1708
      %v1713 = vsel %vm409, %v1688, 0
      %v1716 = vsel %vm409, %v1689, 0
      %v1719 = vsel %vm409, %v1690, 0
      %v1722 = vsel %vm409, %v1691, 0
      %v1725 = vsel %vm409, %v1692, 0
      %v1728 = vsel %vm409, %v1693, 0
      %v1731 = vsel %vm409, %v1694, 0
      %v1734 = vsel %vm409, %v1695, 0
      %v1737 = vsel %vm409, %v1696, 0
      %v1740 = vsel %vm409, %v1697, 0
      %v1743 = vsel %vm409, %v1698, 0
      %v1746 = vsel %vm409, %v1699, 0
      %v1749 = vsel %vm409, %v1700, 0
      %v1752 = vsel %vm409, %v1701, 0
      %v1755 = vsel %vm409, %v1702, 0
      %v1758 = vsel %vm409, %v1703, 0
      %1760 = vmatpush.bf16.msra.mxu0 0
      %1761 = vmatpush.bf16.msra.mxu0 0
      %1762 = vmatpush.bf16.msra.mxu0 0
      %1763 = vmatpush.bf16.msra.mxu0 0
      %1764 = vmatpush.bf16.msra.mxu0 0
      %1765 = vmatpush.bf16.msra.mxu0 0
      %1766 = vmatpush.bf16.msra.mxu0 0
      %1767 = vmatpush.bf16.msra.mxu0 %v1710
      %1768 = vmatmul.bf16.gmra.mxu0 %v1713
      %v1769 = vpop.f32.mrf.mxu0
      %v1770 = vadd.f32 0.0, %v1769
      %v1771 = vpop.f32.mrf.mxu0
      %v1772 = vadd.f32 0.0, %v1771
      %1773 = vmatmul.bf16.gmra.mxu0 %v1716
      %v1774 = vpop.f32.mrf.mxu0
      %v1775 = vadd.f32 0.0, %v1774
      %v1776 = vpop.f32.mrf.mxu0
      %v1777 = vadd.f32 0.0, %v1776
      %1778 = vmatmul.bf16.gmra.mxu0 %v1719
      %v1779 = vpop.f32.mrf.mxu0
      %v1780 = vadd.f32 0.0, %v1779
      %v1781 = vpop.f32.mrf.mxu0
      %v1782 = vadd.f32 0.0, %v1781
      %1783 = vmatmul.bf16.gmra.mxu0 %v1722
      %v1784 = vpop.f32.mrf.mxu0
      %v1785 = vadd.f32 0.0, %v1784
      %v1786 = vpop.f32.mrf.mxu0
      %v1787 = vadd.f32 0.0, %v1786
      %1788 = vmatmul.bf16.gmra.mxu0 %v1725
      %v1789 = vpop.f32.mrf.mxu0
      %v1790 = vadd.f32 0.0, %v1789
      %v1791 = vpop.f32.mrf.mxu0
      %v1792 = vadd.f32 0.0, %v1791
      %1793 = vmatmul.bf16.gmra.mxu0 %v1728
      %v1794 = vpop.f32.mrf.mxu0
      %v1795 = vadd.f32 0.0, %v1794
      %v1796 = vpop.f32.mrf.mxu0
      %v1797 = vadd.f32 0.0, %v1796
      %1798 = vmatmul.bf16.gmra.mxu0 %v1731
      %v1799 = vpop.f32.mrf.mxu0
      %v1800 = vadd.f32 0.0, %v1799
      %v1801 = vpop.f32.mrf.mxu0
      %v1802 = vadd.f32 0.0, %v1801
      %1803 = vmatmul.bf16.gmra.mxu0 %v1734
      %v1804 = vpop.f32.mrf.mxu0
      %v1805 = vadd.f32 0.0, %v1804
      %v1806 = vpop.f32.mrf.mxu0
      %v1807 = vadd.f32 0.0, %v1806
      %1808 = vmatmul.bf16.gmra.mxu0 %v1737
      %v1809 = vpop.f32.mrf.mxu0
      %v1810 = vadd.f32 0.0, %v1809
      %v1811 = vpop.f32.mrf.mxu0
      %v1812 = vadd.f32 0.0, %v1811
      %1813 = vmatmul.bf16.gmra.mxu0 %v1740
      %v1814 = vpop.f32.mrf.mxu0
      %v1815 = vadd.f32 0.0, %v1814
      %v1816 = vpop.f32.mrf.mxu0
      %v1817 = vadd.f32 0.0, %v1816
      %1818 = vmatmul.bf16.gmra.mxu0 %v1743
      %v1819 = vpop.f32.mrf.mxu0
      %v1820 = vadd.f32 0.0, %v1819
      %v1821 = vpop.f32.mrf.mxu0
      %v1822 = vadd.f32 0.0, %v1821
      %1823 = vmatmul.bf16.gmra.mxu0 %v1746
      %v1824 = vpop.f32.mrf.mxu0
      %v1825 = vadd.f32 0.0, %v1824
      %v1826 = vpop.f32.mrf.mxu0
      %v1827 = vadd.f32 0.0, %v1826
      %1828 = vmatmul.bf16.gmra.mxu0 %v1749
      %v1829 = vpop.f32.mrf.mxu0
      %v1830 = vadd.f32 0.0, %v1829
      %v1831 = vpop.f32.mrf.mxu0
      %v1832 = vadd.f32 0.0, %v1831
      %1833 = vmatmul.bf16.gmra.mxu0 %v1752
      %v1834 = vpop.f32.mrf.mxu0
      %v1835 = vadd.f32 0.0, %v1834
      %v1836 = vpop.f32.mrf.mxu0
      %v1837 = vadd.f32 0.0, %v1836
      %1838 = vmatmul.bf16.gmra.mxu0 %v1755
      %v1839 = vpop.f32.mrf.mxu0
      %v1840 = vadd.f32 0.0, %v1839
      %v1841 = vpop.f32.mrf.mxu0
      %v1842 = vadd.f32 0.0, %v1841
      %1843 = vmatmul.bf16.gmra.mxu0 %v1758
      %v1844 = vpop.f32.mrf.mxu0
      %v1845 = vadd.f32 0.0, %v1844
      %v1846 = vpop.f32.mrf.mxu0
      %v1847 = vadd.f32 0.0, %v1846
      %1848 = vdwg.mxu0
      %v1849 = vadd.f32 %v1656, %v1770
      %v1850 = vadd.f32 %v1657, %v1772
      %v1851 = vadd.f32 %v1658, %v1775
      %v1852 = vadd.f32 %v1659, %v1777
      %v1853 = vadd.f32 %v1660, %v1780
      %v1854 = vadd.f32 %v1661, %v1782
      %v1855 = vadd.f32 %v1662, %v1785
      %v1856 = vadd.f32 %v1663, %v1787
      %v1857 = vadd.f32 %v1664, %v1790
      %v1858 = vadd.f32 %v1665, %v1792
      %v1859 = vadd.f32 %v1666, %v1795
      %v1860 = vadd.f32 %v1667, %v1797
      %v1861 = vadd.f32 %v1668, %v1800
      %v1862 = vadd.f32 %v1669, %v1802
      %v1863 = vadd.f32 %v1670, %v1805
      %v1864 = vadd.f32 %v1671, %v1807
      %v1865 = vadd.f32 %v1672, %v1810
      %v1866 = vadd.f32 %v1673, %v1812
      %v1867 = vadd.f32 %v1674, %v1815
      %v1868 = vadd.f32 %v1675, %v1817
      %v1869 = vadd.f32 %v1676, %v1820
      %v1870 = vadd.f32 %v1677, %v1822
      %v1871 = vadd.f32 %v1678, %v1825
      %v1872 = vadd.f32 %v1679, %v1827
      %v1873 = vadd.f32 %v1680, %v1830
      %v1874 = vadd.f32 %v1681, %v1832
      %v1875 = vadd.f32 %v1682, %v1835
      %v1876 = vadd.f32 %v1683, %v1837
      %v1877 = vadd.f32 %v1684, %v1840
      %v1878 = vadd.f32 %v1685, %v1842
      %v1879 = vadd.f32 %v1686, %v1845
      %v1880 = vadd.f32 %v1687, %v1847
      %v1881 = vpack.c.bf16 %v692, %v691
      %v1882 = vpack.c.bf16 %v694, %v693
      %v1883 = vpack.c.bf16 %v696, %v695
      %v1884 = vpack.c.bf16 %v698, %v697
      %v1885 = vpack.c.bf16 %v700, %v699
      %v1886 = vpack.c.bf16 %v702, %v701
      %v1887 = vpack.c.bf16 %v704, %v703
      %v1888 = vpack.c.bf16 %v706, %v705
      %v1889 = vpack.c.bf16 %v708, %v707
      %v1890 = vpack.c.bf16 %v710, %v709
      %v1891 = vpack.c.bf16 %v712, %v711
      %v1892 = vpack.c.bf16 %v714, %v713
      %v1893 = vpack.c.bf16 %v716, %v715
      %v1894 = vpack.c.bf16 %v718, %v717
      %v1895 = vpack.c.bf16 %v720, %v719
      %v1896 = vpack.c.bf16 %v722, %v721
      %v1897 = vld [vmem:[%s3 + $0x30] sm:$0xf]
      %v1898 = vld [vmem:[%s3 + $0x34] sm:$0xf]
      %v1901 = vunpack.c.l.b16 %v1897
      %v1902 = vunpack.c.l.b16 %v1898
      %v1903 = vpack.c.b16 %v1902, %v1901
      %v1906 = vsel %vm409, %v1881, 0
      %v1909 = vsel %vm409, %v1882, 0
      %v1912 = vsel %vm409, %v1883, 0
      %v1915 = vsel %vm409, %v1884, 0
      %v1918 = vsel %vm409, %v1885, 0
      %v1921 = vsel %vm409, %v1886, 0
      %v1924 = vsel %vm409, %v1887, 0
      %v1927 = vsel %vm409, %v1888, 0
      %v1930 = vsel %vm409, %v1889, 0
      %v1933 = vsel %vm409, %v1890, 0
      %v1936 = vsel %vm409, %v1891, 0
      %v1939 = vsel %vm409, %v1892, 0
      %v1942 = vsel %vm409, %v1893, 0
      %v1945 = vsel %vm409, %v1894, 0
      %v1948 = vsel %vm409, %v1895, 0
      %v1951 = vsel %vm409, %v1896, 0
      %1953 = vmatpush.bf16.msra.mxu0 0
      %1954 = vmatpush.bf16.msra.mxu0 0
      %1955 = vmatpush.bf16.msra.mxu0 0
      %1956 = vmatpush.bf16.msra.mxu0 0
      %1957 = vmatpush.bf16.msra.mxu0 0
      %1958 = vmatpush.bf16.msra.mxu0 0
      %1959 = vmatpush.bf16.msra.mxu0 0
      %1960 = vmatpush.bf16.msra.mxu0 %v1903
      %1961 = vmatmul.bf16.gmra.mxu0 %v1906
      %v1962 = vpop.f32.mrf.mxu0
      %v1963 = vadd.f32 0.0, %v1962
      %v1964 = vpop.f32.mrf.mxu0
      %v1965 = vadd.f32 0.0, %v1964
      %1966 = vmatmul.bf16.gmra.mxu0 %v1909
      %v1967 = vpop.f32.mrf.mxu0
      %v1968 = vadd.f32 0.0, %v1967
      %v1969 = vpop.f32.mrf.mxu0
      %v1970 = vadd.f32 0.0, %v1969
      %1971 = vmatmul.bf16.gmra.mxu0 %v1912
      %v1972 = vpop.f32.mrf.mxu0
      %v1973 = vadd.f32 0.0, %v1972
      %v1974 = vpop.f32.mrf.mxu0
      %v1975 = vadd.f32 0.0, %v1974
      %1976 = vmatmul.bf16.gmra.mxu0 %v1915
      %v1977 = vpop.f32.mrf.mxu0
      %v1978 = vadd.f32 0.0, %v1977
      %v1979 = vpop.f32.mrf.mxu0
      %v1980 = vadd.f32 0.0, %v1979
      %1981 = vmatmul.bf16.gmra.mxu0 %v1918
      %v1982 = vpop.f32.mrf.mxu0
      %v1983 = vadd.f32 0.0, %v1982
      %v1984 = vpop.f32.mrf.mxu0
      %v1985 = vadd.f32 0.0, %v1984
      %1986 = vmatmul.bf16.gmra.mxu0 %v1921
      %v1987 = vpop.f32.mrf.mxu0
      %v1988 = vadd.f32 0.0, %v1987
      %v1989 = vpop.f32.mrf.mxu0
      %v1990 = vadd.f32 0.0, %v1989
      %1991 = vmatmul.bf16.gmra.mxu0 %v1924
      %v1992 = vpop.f32.mrf.mxu0
      %v1993 = vadd.f32 0.0, %v1992
      %v1994 = vpop.f32.mrf.mxu0
      %v1995 = vadd.f32 0.0, %v1994
      %1996 = vmatmul.bf16.gmra.mxu0 %v1927
      %v1997 = vpop.f32.mrf.mxu0
      %v1998 = vadd.f32 0.0, %v1997
      %v1999 = vpop.f32.mrf.mxu0
      %v2000 = vadd.f32 0.0, %v1999
      %2001 = vmatmul.bf16.gmra.mxu0 %v1930
      %v2002 = vpop.f32.mrf.mxu0
      %v2003 = vadd.f32 0.0, %v2002
      %v2004 = vpop.f32.mrf.mxu0
      %v2005 = vadd.f32 0.0, %v2004
      %2006 = vmatmul.bf16.gmra.mxu0 %v1933
      %v2007 = vpop.f32.mrf.mxu0
      %v2008 = vadd.f32 0.0, %v2007
      %v2009 = vpop.f32.mrf.mxu0
      %v2010 = vadd.f32 0.0, %v2009
      %2011 = vmatmul.bf16.gmra.mxu0 %v1936
      %v2012 = vpop.f32.mrf.mxu0
      %v2013 = vadd.f32 0.0, %v2012
      %v2014 = vpop.f32.mrf.mxu0
      %v2015 = vadd.f32 0.0, %v2014
      %2016 = vmatmul.bf16.gmra.mxu0 %v1939
      %v2017 = vpop.f32.mrf.mxu0
      %v2018 = vadd.f32 0.0, %v2017
      %v2019 = vpop.f32.mrf.mxu0
      %v2020 = vadd.f32 0.0, %v2019
      %2021 = vmatmul.bf16.gmra.mxu0 %v1942
      %v2022 = vpop.f32.mrf.mxu0
      %v2023 = vadd.f32 0.0, %v2022
      %v2024 = vpop.f32.mrf.mxu0
      %v2025 = vadd.f32 0.0, %v2024
      %2026 = vmatmul.bf16.gmra.mxu0 %v1945
      %v2027 = vpop.f32.mrf.mxu0
      %v2028 = vadd.f32 0.0, %v2027
      %v2029 = vpop.f32.mrf.mxu0
      %v2030 = vadd.f32 0.0, %v2029
      %2031 = vmatmul.bf16.gmra.mxu0 %v1948
      %v2032 = vpop.f32.mrf.mxu0
      %v2033 = vadd.f32 0.0, %v2032
      %v2034 = vpop.f32.mrf.mxu0
      %v2035 = vadd.f32 0.0, %v2034
      %2036 = vmatmul.bf16.gmra.mxu0 %v1951
      %v2037 = vpop.f32.mrf.mxu0
      %v2038 = vadd.f32 0.0, %v2037
      %v2039 = vpop.f32.mrf.mxu0
      %v2040 = vadd.f32 0.0, %v2039
      %2041 = vdwg.mxu0
      %v2042 = vadd.f32 %v1849, %v1963
      %v2043 = vadd.f32 %v1850, %v1965
      %v2044 = vadd.f32 %v1851, %v1968
      %v2045 = vadd.f32 %v1852, %v1970
      %v2046 = vadd.f32 %v1853, %v1973
      %v2047 = vadd.f32 %v1854, %v1975
      %v2048 = vadd.f32 %v1855, %v1978
      %v2049 = vadd.f32 %v1856, %v1980
      %v2050 = vadd.f32 %v1857, %v1983
      %v2051 = vadd.f32 %v1858, %v1985
      %v2052 = vadd.f32 %v1859, %v1988
      %v2053 = vadd.f32 %v1860, %v1990
      %v2054 = vadd.f32 %v1861, %v1993
      %v2055 = vadd.f32 %v1862, %v1995
      %v2056 = vadd.f32 %v1863, %v1998
      %v2057 = vadd.f32 %v1864, %v2000
      %v2058 = vadd.f32 %v1865, %v2003
      %v2059 = vadd.f32 %v1866, %v2005
      %v2060 = vadd.f32 %v1867, %v2008
      %v2061 = vadd.f32 %v1868, %v2010
      %v2062 = vadd.f32 %v1869, %v2013
      %v2063 = vadd.f32 %v1870, %v2015
      %v2064 = vadd.f32 %v1871, %v2018
      %v2065 = vadd.f32 %v1872, %v2020
      %v2066 = vadd.f32 %v1873, %v2023
      %v2067 = vadd.f32 %v1874, %v2025
      %v2068 = vadd.f32 %v1875, %v2028
      %v2069 = vadd.f32 %v1876, %v2030
      %v2070 = vadd.f32 %v1877, %v2033
      %v2071 = vadd.f32 %v1878, %v2035
      %v2072 = vadd.f32 %v1879, %v2038
      %v2073 = vadd.f32 %v1880, %v2040
      %v2074 = vpack.c.bf16 %v724, %v723
      %v2075 = vpack.c.bf16 %v726, %v725
      %v2076 = vpack.c.bf16 %v728, %v727
      %v2077 = vpack.c.bf16 %v730, %v729
      %v2078 = vpack.c.bf16 %v732, %v731
      %v2079 = vpack.c.bf16 %v734, %v733
      %v2080 = vpack.c.bf16 %v736, %v735
      %v2081 = vpack.c.bf16 %v738, %v737
      %v2082 = vpack.c.bf16 %v740, %v739
      %v2083 = vpack.c.bf16 %v742, %v741
      %v2084 = vpack.c.bf16 %v744, %v743
      %v2085 = vpack.c.bf16 %v746, %v745
      %v2086 = vpack.c.bf16 %v748, %v747
      %v2087 = vpack.c.bf16 %v750, %v749
      %v2088 = vpack.c.bf16 %v752, %v751
      %v2089 = vpack.c.bf16 %v754, %v753
      %v2090 = vld [vmem:[%s3 + $0x38] sm:$0xf]
      %v2091 = vld [vmem:[%s3 + $0x3c] sm:$0xf]
      %v2094 = vunpack.c.l.b16 %v2090
      %v2095 = vunpack.c.l.b16 %v2091
      %v2096 = vpack.c.b16 %v2095, %v2094
      %v2099 = vsel %vm409, %v2074, 0
      %v2102 = vsel %vm409, %v2075, 0
      %v2105 = vsel %vm409, %v2076, 0
      %v2108 = vsel %vm409, %v2077, 0
      %v2111 = vsel %vm409, %v2078, 0
      %v2114 = vsel %vm409, %v2079, 0
      %v2117 = vsel %vm409, %v2080, 0
      %v2120 = vsel %vm409, %v2081, 0
      %v2123 = vsel %vm409, %v2082, 0
      %v2126 = vsel %vm409, %v2083, 0
      %v2129 = vsel %vm409, %v2084, 0
      %v2132 = vsel %vm409, %v2085, 0
      %v2135 = vsel %vm409, %v2086, 0
      %v2138 = vsel %vm409, %v2087, 0
      %v2141 = vsel %vm409, %v2088, 0
      %v2144 = vsel %vm409, %v2089, 0
      %2146 = vmatpush.bf16.msra.mxu0 0
      %2147 = vmatpush.bf16.msra.mxu0 0
      %2148 = vmatpush.bf16.msra.mxu0 0
      %2149 = vmatpush.bf16.msra.mxu0 0
      %2150 = vmatpush.bf16.msra.mxu0 0
      %2151 = vmatpush.bf16.msra.mxu0 0
      %2152 = vmatpush.bf16.msra.mxu0 0
      %2153 = vmatpush.bf16.msra.mxu0 %v2096
      %2154 = vmatmul.bf16.gmra.mxu0 %v2099
      %v2155 = vpop.f32.mrf.mxu0
      %v2156 = vadd.f32 0.0, %v2155
      %v2157 = vpop.f32.mrf.mxu0
      %v2158 = vadd.f32 0.0, %v2157
      %2159 = vmatmul.bf16.gmra.mxu0 %v2102
      %v2160 = vpop.f32.mrf.mxu0
      %v2161 = vadd.f32 0.0, %v2160
      %v2162 = vpop.f32.mrf.mxu0
      %v2163 = vadd.f32 0.0, %v2162
      %2164 = vmatmul.bf16.gmra.mxu0 %v2105
      %v2165 = vpop.f32.mrf.mxu0
      %v2166 = vadd.f32 0.0, %v2165
      %v2167 = vpop.f32.mrf.mxu0
      %v2168 = vadd.f32 0.0, %v2167
      %2169 = vmatmul.bf16.gmra.mxu0 %v2108
      %v2170 = vpop.f32.mrf.mxu0
      %v2171 = vadd.f32 0.0, %v2170
      %v2172 = vpop.f32.mrf.mxu0
      %v2173 = vadd.f32 0.0, %v2172
      %2174 = vmatmul.bf16.gmra.mxu0 %v2111
      %v2175 = vpop.f32.mrf.mxu0
      %v2176 = vadd.f32 0.0, %v2175
      %v2177 = vpop.f32.mrf.mxu0
      %v2178 = vadd.f32 0.0, %v2177
      %2179 = vmatmul.bf16.gmra.mxu0 %v2114
      %v2180 = vpop.f32.mrf.mxu0
      %v2181 = vadd.f32 0.0, %v2180
      %v2182 = vpop.f32.mrf.mxu0
      %v2183 = vadd.f32 0.0, %v2182
      %2184 = vmatmul.bf16.gmra.mxu0 %v2117
      %v2185 = vpop.f32.mrf.mxu0
      %v2186 = vadd.f32 0.0, %v2185
      %v2187 = vpop.f32.mrf.mxu0
      %v2188 = vadd.f32 0.0, %v2187
      %2189 = vmatmul.bf16.gmra.mxu0 %v2120
      %v2190 = vpop.f32.mrf.mxu0
      %v2191 = vadd.f32 0.0, %v2190
      %v2192 = vpop.f32.mrf.mxu0
      %v2193 = vadd.f32 0.0, %v2192
      %2194 = vmatmul.bf16.gmra.mxu0 %v2123
      %v2195 = vpop.f32.mrf.mxu0
      %v2196 = vadd.f32 0.0, %v2195
      %v2197 = vpop.f32.mrf.mxu0
      %v2198 = vadd.f32 0.0, %v2197
      %2199 = vmatmul.bf16.gmra.mxu0 %v2126
      %v2200 = vpop.f32.mrf.mxu0
      %v2201 = vadd.f32 0.0, %v2200
      %v2202 = vpop.f32.mrf.mxu0
      %v2203 = vadd.f32 0.0, %v2202
      %2204 = vmatmul.bf16.gmra.mxu0 %v2129
      %v2205 = vpop.f32.mrf.mxu0
      %v2206 = vadd.f32 0.0, %v2205
      %v2207 = vpop.f32.mrf.mxu0
      %v2208 = vadd.f32 0.0, %v2207
      %2209 = vmatmul.bf16.gmra.mxu0 %v2132
      %v2210 = vpop.f32.mrf.mxu0
      %v2211 = vadd.f32 0.0, %v2210
      %v2212 = vpop.f32.mrf.mxu0
      %v2213 = vadd.f32 0.0, %v2212
      %2214 = vmatmul.bf16.gmra.mxu0 %v2135
      %v2215 = vpop.f32.mrf.mxu0
      %v2216 = vadd.f32 0.0, %v2215
      %v2217 = vpop.f32.mrf.mxu0
      %v2218 = vadd.f32 0.0, %v2217
      %2219 = vmatmul.bf16.gmra.mxu0 %v2138
      %v2220 = vpop.f32.mrf.mxu0
      %v2221 = vadd.f32 0.0, %v2220
      %v2222 = vpop.f32.mrf.mxu0
      %v2223 = vadd.f32 0.0, %v2222
      %2224 = vmatmul.bf16.gmra.mxu0 %v2141
      %v2225 = vpop.f32.mrf.mxu0
      %v2226 = vadd.f32 0.0, %v2225
      %v2227 = vpop.f32.mrf.mxu0
      %v2228 = vadd.f32 0.0, %v2227
      %2229 = vmatmul.bf16.gmra.mxu0 %v2144
      %v2230 = vpop.f32.mrf.mxu0
      %v2231 = vadd.f32 0.0, %v2230
      %v2232 = vpop.f32.mrf.mxu0
      %v2233 = vadd.f32 0.0, %v2232
      %2234 = vdwg.mxu0
      %v2235 = vadd.f32 %v2042, %v2156
      %v2236 = vadd.f32 %v2043, %v2158
      %v2237 = vadd.f32 %v2044, %v2161
      %v2238 = vadd.f32 %v2045, %v2163
      %v2239 = vadd.f32 %v2046, %v2166
      %v2240 = vadd.f32 %v2047, %v2168
      %v2241 = vadd.f32 %v2048, %v2171
      %v2242 = vadd.f32 %v2049, %v2173
      %v2243 = vadd.f32 %v2050, %v2176
      %v2244 = vadd.f32 %v2051, %v2178
      %v2245 = vadd.f32 %v2052, %v2181
      %v2246 = vadd.f32 %v2053, %v2183
      %v2247 = vadd.f32 %v2054, %v2186
      %v2248 = vadd.f32 %v2055, %v2188
      %v2249 = vadd.f32 %v2056, %v2191
      %v2250 = vadd.f32 %v2057, %v2193
      %v2251 = vadd.f32 %v2058, %v2196
      %v2252 = vadd.f32 %v2059, %v2198
      %v2253 = vadd.f32 %v2060, %v2201
      %v2254 = vadd.f32 %v2061, %v2203
      %v2255 = vadd.f32 %v2062, %v2206
      %v2256 = vadd.f32 %v2063, %v2208
      %v2257 = vadd.f32 %v2064, %v2211
      %v2258 = vadd.f32 %v2065, %v2213
      %v2259 = vadd.f32 %v2066, %v2216
      %v2260 = vadd.f32 %v2067, %v2218
      %v2261 = vadd.f32 %v2068, %v2221
      %v2262 = vadd.f32 %v2069, %v2223
      %v2263 = vadd.f32 %v2070, %v2226
      %v2264 = vadd.f32 %v2071, %v2228
      %v2265 = vadd.f32 %v2072, %v2231
      %v2266 = vadd.f32 %v2073, %v2233
      %v2267 = vpack.c.bf16 %v756, %v755
      %v2268 = vpack.c.bf16 %v758, %v757
      %v2269 = vpack.c.bf16 %v760, %v759
      %v2270 = vpack.c.bf16 %v762, %v761
      %v2271 = vpack.c.bf16 %v764, %v763
      %v2272 = vpack.c.bf16 %v766, %v765
      %v2273 = vpack.c.bf16 %v768, %v767
      %v2274 = vpack.c.bf16 %v770, %v769
      %v2275 = vpack.c.bf16 %v772, %v771
      %v2276 = vpack.c.bf16 %v774, %v773
      %v2277 = vpack.c.bf16 %v776, %v775
      %v2278 = vpack.c.bf16 %v778, %v777
      %v2279 = vpack.c.bf16 %v780, %v779
      %v2280 = vpack.c.bf16 %v782, %v781
      %v2281 = vpack.c.bf16 %v784, %v783
      %v2282 = vpack.c.bf16 %v786, %v785
      %v2283 = vld [vmem:[%s3 + $0x40] sm:$0xf]
      %v2284 = vld [vmem:[%s3 + $0x44] sm:$0xf]
      %v2287 = vunpack.c.l.b16 %v2283
      %v2288 = vunpack.c.l.b16 %v2284
      %v2289 = vpack.c.b16 %v2288, %v2287
      %v2292 = vsel %vm409, %v2267, 0
      %v2295 = vsel %vm409, %v2268, 0
      %v2298 = vsel %vm409, %v2269, 0
      %v2301 = vsel %vm409, %v2270, 0
      %v2304 = vsel %vm409, %v2271, 0
      %v2307 = vsel %vm409, %v2272, 0
      %v2310 = vsel %vm409, %v2273, 0
      %v2313 = vsel %vm409, %v2274, 0
      %v2316 = vsel %vm409, %v2275, 0
      %v2319 = vsel %vm409, %v2276, 0
      %v2322 = vsel %vm409, %v2277, 0
      %v2325 = vsel %vm409, %v2278, 0
      %v2328 = vsel %vm409, %v2279, 0
      %v2331 = vsel %vm409, %v2280, 0
      %v2334 = vsel %vm409, %v2281, 0
      %v2337 = vsel %vm409, %v2282, 0
      %2339 = vmatpush.bf16.msra.mxu0 0
      %2340 = vmatpush.bf16.msra.mxu0 0
      %2341 = vmatpush.bf16.msra.mxu0 0
      %2342 = vmatpush.bf16.msra.mxu0 0
      %2343 = vmatpush.bf16.msra.mxu0 0
      %2344 = vmatpush.bf16.msra.mxu0 0
      %2345 = vmatpush.bf16.msra.mxu0 0
      %2346 = vmatpush.bf16.msra.mxu0 %v2289
      %2347 = vmatmul.bf16.gmra.mxu0 %v2292
      %v2348 = vpop.f32.mrf.mxu0
      %v2349 = vadd.f32 0.0, %v2348
      %v2350 = vpop.f32.mrf.mxu0
      %v2351 = vadd.f32 0.0, %v2350
      %2352 = vmatmul.bf16.gmra.mxu0 %v2295
      %v2353 = vpop.f32.mrf.mxu0
      %v2354 = vadd.f32 0.0, %v2353
      %v2355 = vpop.f32.mrf.mxu0
      %v2356 = vadd.f32 0.0, %v2355
      %2357 = vmatmul.bf16.gmra.mxu0 %v2298
      %v2358 = vpop.f32.mrf.mxu0
      %v2359 = vadd.f32 0.0, %v2358
      %v2360 = vpop.f32.mrf.mxu0
      %v2361 = vadd.f32 0.0, %v2360
      %2362 = vmatmul.bf16.gmra.mxu0 %v2301
      %v2363 = vpop.f32.mrf.mxu0
      %v2364 = vadd.f32 0.0, %v2363
      %v2365 = vpop.f32.mrf.mxu0
      %v2366 = vadd.f32 0.0, %v2365
      %2367 = vmatmul.bf16.gmra.mxu0 %v2304
      %v2368 = vpop.f32.mrf.mxu0
      %v2369 = vadd.f32 0.0, %v2368
      %v2370 = vpop.f32.mrf.mxu0
      %v2371 = vadd.f32 0.0, %v2370
      %2372 = vmatmul.bf16.gmra.mxu0 %v2307
      %v2373 = vpop.f32.mrf.mxu0
      %v2374 = vadd.f32 0.0, %v2373
      %v2375 = vpop.f32.mrf.mxu0
      %v2376 = vadd.f32 0.0, %v2375
      %2377 = vmatmul.bf16.gmra.mxu0 %v2310
      %v2378 = vpop.f32.mrf.mxu0
      %v2379 = vadd.f32 0.0, %v2378
      %v2380 = vpop.f32.mrf.mxu0
      %v2381 = vadd.f32 0.0, %v2380
      %2382 = vmatmul.bf16.gmra.mxu0 %v2313
      %v2383 = vpop.f32.mrf.mxu0
      %v2384 = vadd.f32 0.0, %v2383
      %v2385 = vpop.f32.mrf.mxu0
      %v2386 = vadd.f32 0.0, %v2385
      %2387 = vmatmul.bf16.gmra.mxu0 %v2316
      %v2388 = vpop.f32.mrf.mxu0
      %v2389 = vadd.f32 0.0, %v2388
      %v2390 = vpop.f32.mrf.mxu0
      %v2391 = vadd.f32 0.0, %v2390
      %2392 = vmatmul.bf16.gmra.mxu0 %v2319
      %v2393 = vpop.f32.mrf.mxu0
      %v2394 = vadd.f32 0.0, %v2393
      %v2395 = vpop.f32.mrf.mxu0
      %v2396 = vadd.f32 0.0, %v2395
      %2397 = vmatmul.bf16.gmra.mxu0 %v2322
      %v2398 = vpop.f32.mrf.mxu0
      %v2399 = vadd.f32 0.0, %v2398
      %v2400 = vpop.f32.mrf.mxu0
      %v2401 = vadd.f32 0.0, %v2400
      %2402 = vmatmul.bf16.gmra.mxu0 %v2325
      %v2403 = vpop.f32.mrf.mxu0
      %v2404 = vadd.f32 0.0, %v2403
      %v2405 = vpop.f32.mrf.mxu0
      %v2406 = vadd.f32 0.0, %v2405
      %2407 = vmatmul.bf16.gmra.mxu0 %v2328
      %v2408 = vpop.f32.mrf.mxu0
      %v2409 = vadd.f32 0.0, %v2408
      %v2410 = vpop.f32.mrf.mxu0
      %v2411 = vadd.f32 0.0, %v2410
      %2412 = vmatmul.bf16.gmra.mxu0 %v2331
      %v2413 = vpop.f32.mrf.mxu0
      %v2414 = vadd.f32 0.0, %v2413
      %v2415 = vpop.f32.mrf.mxu0
      %v2416 = vadd.f32 0.0, %v2415
      %2417 = vmatmul.bf16.gmra.mxu0 %v2334
      %v2418 = vpop.f32.mrf.mxu0
      %v2419 = vadd.f32 0.0, %v2418
      %v2420 = vpop.f32.mrf.mxu0
      %v2421 = vadd.f32 0.0, %v2420
      %2422 = vmatmul.bf16.gmra.mxu0 %v2337
      %v2423 = vpop.f32.mrf.mxu0
      %v2424 = vadd.f32 0.0, %v2423
      %v2425 = vpop.f32.mrf.mxu0
      %v2426 = vadd.f32 0.0, %v2425
      %2427 = vdwg.mxu0
      %v2428 = vadd.f32 %v2235, %v2349
      %v2429 = vadd.f32 %v2236, %v2351
      %v2430 = vadd.f32 %v2237, %v2354
      %v2431 = vadd.f32 %v2238, %v2356
      %v2432 = vadd.f32 %v2239, %v2359
      %v2433 = vadd.f32 %v2240, %v2361
      %v2434 = vadd.f32 %v2241, %v2364
      %v2435 = vadd.f32 %v2242, %v2366
      %v2436 = vadd.f32 %v2243, %v2369
      %v2437 = vadd.f32 %v2244, %v2371
      %v2438 = vadd.f32 %v2245, %v2374
      %v2439 = vadd.f32 %v2246, %v2376
      %v2440 = vadd.f32 %v2247, %v2379
      %v2441 = vadd.f32 %v2248, %v2381
      %v2442 = vadd.f32 %v2249, %v2384
      %v2443 = vadd.f32 %v2250, %v2386
      %v2444 = vadd.f32 %v2251, %v2389
      %v2445 = vadd.f32 %v2252, %v2391
      %v2446 = vadd.f32 %v2253, %v2394
      %v2447 = vadd.f32 %v2254, %v2396
      %v2448 = vadd.f32 %v2255, %v2399
      %v2449 = vadd.f32 %v2256, %v2401
      %v2450 = vadd.f32 %v2257, %v2404
      %v2451 = vadd.f32 %v2258, %v2406
      %v2452 = vadd.f32 %v2259, %v2409
      %v2453 = vadd.f32 %v2260, %v2411
      %v2454 = vadd.f32 %v2261, %v2414
      %v2455 = vadd.f32 %v2262, %v2416
      %v2456 = vadd.f32 %v2263, %v2419
      %v2457 = vadd.f32 %v2264, %v2421
      %v2458 = vadd.f32 %v2265, %v2424
      %v2459 = vadd.f32 %v2266, %v2426
      %vm2460 = vcmask 31744
      %2461 = vst.msk [vmem:[%s264] sm:$0xff] %vm2460, %v2428
      %2462 = vst.msk [vmem:[%s264 + $0x8] sm:$0xff] %vm2460, %v2429
      %2463 = vst.msk [vmem:[%s264 + $0x10] sm:$0xff] %vm2460, %v2430
      %2464 = vst.msk [vmem:[%s264 + $0x18] sm:$0xff] %vm2460, %v2431
      %2465 = vst.msk [vmem:[%s264 + $0x20] sm:$0xff] %vm2460, %v2432
      %2466 = vst.msk [vmem:[%s264 + $0x28] sm:$0xff] %vm2460, %v2433
      %2467 = vst.msk [vmem:[%s264 + $0x30] sm:$0xff] %vm2460, %v2434
      %2468 = vst.msk [vmem:[%s264 + $0x38] sm:$0xff] %vm2460, %v2435
      %2469 = vst.msk [vmem:[%s264 + $0x40] sm:$0xff] %vm2460, %v2436
      %2470 = vst.msk [vmem:[%s264 + $0x48] sm:$0xff] %vm2460, %v2437
      %2471 = vst.msk [vmem:[%s264 + $0x50] sm:$0xff] %vm2460, %v2438
      %2472 = vst.msk [vmem:[%s264 + $0x58] sm:$0xff] %vm2460, %v2439
      %2473 = vst.msk [vmem:[%s264 + $0x60] sm:$0xff] %vm2460, %v2440
      %2474 = vst.msk [vmem:[%s264 + $0x68] sm:$0xff] %vm2460, %v2441
      %2475 = vst.msk [vmem:[%s264 + $0x70] sm:$0xff] %vm2460, %v2442
      %2476 = vst.msk [vmem:[%s264 + $0x78] sm:$0xff] %vm2460, %v2443
      %2477 = vst.msk [vmem:[%s264 + $0x80] sm:$0xff] %vm2460, %v2444
      %2478 = vst.msk [vmem:[%s264 + $0x88] sm:$0xff] %vm2460, %v2445
      %2479 = vst.msk [vmem:[%s264 + $0x90] sm:$0xff] %vm2460, %v2446
      %2480 = vst.msk [vmem:[%s264 + $0x98] sm:$0xff] %vm2460, %v2447
      %2481 = vst.msk [vmem:[%s264 + $0xa0] sm:$0xff] %vm2460, %v2448
      %2482 = vst.msk [vmem:[%s264 + $0xa8] sm:$0xff] %vm2460, %v2449
      %2483 = vst.msk [vmem:[%s264 + $0xb0] sm:$0xff] %vm2460, %v2450
      %2484 = vst.msk [vmem:[%s264 + $0xb8] sm:$0xff] %vm2460, %v2451
      %2485 = vst.msk [vmem:[%s264 + $0xc0] sm:$0xff] %vm2460, %v2452
      %2486 = vst.msk [vmem:[%s264 + $0xc8] sm:$0xff] %vm2460, %v2453
      %2487 = vst.msk [vmem:[%s264 + $0xd0] sm:$0xff] %vm2460, %v2454
      %2488 = vst.msk [vmem:[%s264 + $0xd8] sm:$0xff] %vm2460, %v2455
      %2489 = vst.msk [vmem:[%s264 + $0xe0] sm:$0xff] %vm2460, %v2456
      %2490 = vst.msk [vmem:[%s264 + $0xe8] sm:$0xff] %vm2460, %v2457
      %2491 = vst.msk [vmem:[%s264 + $0xf0] sm:$0xff] %vm2460, %v2458
      %2492 = vst.msk [vmem:[%s264 + $0xf8] sm:$0xff] %vm2460, %v2459
      %v2493 = vsel %vm2460, %v2428, 0.0
      %v2494 = vsel %vm2460, %v2429, 0.0
      %v2495 = vadd.f32 %v2493, %v2494
      %v2496 = vsel %vm2460, %v2430, 0.0
      %v2497 = vadd.f32 %v2495, %v2496
      %v2498 = vsel %vm2460, %v2431, 0.0
      %v2499 = vadd.f32 %v2497, %v2498
      %v2500 = vsel %vm2460, %v2432, 0.0
      %v2501 = vadd.f32 %v2499, %v2500
      %v2502 = vsel %vm2460, %v2433, 0.0
      %v2503 = vadd.f32 %v2501, %v2502
      %v2504 = vsel %vm2460, %v2434, 0.0
      %v2505 = vadd.f32 %v2503, %v2504
      %v2506 = vsel %vm2460, %v2435, 0.0
      %v2507 = vadd.f32 %v2505, %v2506
      %v2508 = vsel %vm2460, %v2436, 0.0
      %v2509 = vadd.f32 %v2507, %v2508
      %v2510 = vsel %vm2460, %v2437, 0.0
      %v2511 = vadd.f32 %v2509, %v2510
      %v2512 = vsel %vm2460, %v2438, 0.0
      %v2513 = vadd.f32 %v2511, %v2512
      %v2514 = vsel %vm2460, %v2439, 0.0
      %v2515 = vadd.f32 %v2513, %v2514
      %v2516 = vsel %vm2460, %v2440, 0.0
      %v2517 = vadd.f32 %v2515, %v2516
      %v2518 = vsel %vm2460, %v2441, 0.0
      %v2519 = vadd.f32 %v2517, %v2518
      %v2520 = vsel %vm2460, %v2442, 0.0
      %v2521 = vadd.f32 %v2519, %v2520
      %v2522 = vsel %vm2460, %v2443, 0.0
      %v2523 = vadd.f32 %v2521, %v2522
      %v2524 = vsel %vm2460, %v2444, 0.0
      %v2525 = vadd.f32 %v2523, %v2524
      %v2526 = vsel %vm2460, %v2445, 0.0
      %v2527 = vadd.f32 %v2525, %v2526
      %v2528 = vsel %vm2460, %v2446, 0.0
      %v2529 = vadd.f32 %v2527, %v2528
      %v2530 = vsel %vm2460, %v2447, 0.0
      %v2531 = vadd.f32 %v2529, %v2530
      %v2532 = vsel %vm2460, %v2448, 0.0
      %v2533 = vadd.f32 %v2531, %v2532
      %v2534 = vsel %vm2460, %v2449, 0.0
      %v2535 = vadd.f32 %v2533, %v2534
      %v2536 = vsel %vm2460, %v2450, 0.0
      %v2537 = vadd.f32 %v2535, %v2536
      %v2538 = vsel %vm2460, %v2451, 0.0
      %v2539 = vadd.f32 %v2537, %v2538
      %v2540 = vsel %vm2460, %v2452, 0.0
      %v2541 = vadd.f32 %v2539, %v2540
      %v2542 = vsel %vm2460, %v2453, 0.0
      %v2543 = vadd.f32 %v2541, %v2542
      %v2544 = vsel %vm2460, %v2454, 0.0
      %v2545 = vadd.f32 %v2543, %v2544
      %v2546 = vsel %vm2460, %v2455, 0.0
      %v2547 = vadd.f32 %v2545, %v2546
      %v2548 = vsel %vm2460, %v2456, 0.0
      %v2549 = vadd.f32 %v2547, %v2548
      %v2550 = vsel %vm2460, %v2457, 0.0
      %v2551 = vadd.f32 %v2549, %v2550
      %v2552 = vsel %vm2460, %v2458, 0.0
      %v2553 = vadd.f32 %v2551, %v2552
      %v2554 = vsel %vm2460, %v2459, 0.0
      %v2555 = vadd.f32 %v2553, %v2554
      %v2556 = vrot.slane %v2555, 4
      %v2557 = vadd.f32 %v2555, %v2556
      %v2558 = vrot.slane %v2557, 2
      %v2559 = vadd.f32 %v2557, %v2558
      %v2560 = vrot.slane %v2559, 1
      %v2561 = vadd.f32 %v2559, %v2560
      %vm2562 = vcmask 24576
      %2563 = vst.msk [vmem:[%s268] sm:$0x1] %vm2562, %v2561
      %v2564 = vmul.f32 %v2428, %v2428
      %v2565 = vmul.f32 %v2429, %v2429
      %v2566 = vmul.f32 %v2430, %v2430
      %v2567 = vmul.f32 %v2431, %v2431
      %v2568 = vmul.f32 %v2432, %v2432
      %v2569 = vmul.f32 %v2433, %v2433
      %v2570 = vmul.f32 %v2434, %v2434
      %v2571 = vmul.f32 %v2435, %v2435
      %v2572 = vmul.f32 %v2436, %v2436
      %v2573 = vmul.f32 %v2437, %v2437
      %v2574 = vmul.f32 %v2438, %v2438
      %v2575 = vmul.f32 %v2439, %v2439
      %v2576 = vmul.f32 %v2440, %v2440
      %v2577 = vmul.f32 %v2441, %v2441
      %v2578 = vmul.f32 %v2442, %v2442
      %v2579 = vmul.f32 %v2443, %v2443
      %v2580 = vmul.f32 %v2444, %v2444
      %v2581 = vmul.f32 %v2445, %v2445
      %v2582 = vmul.f32 %v2446, %v2446
      %v2583 = vmul.f32 %v2447, %v2447
      %v2584 = vmul.f32 %v2448, %v2448
      %v2585 = vmul.f32 %v2449, %v2449
      %v2586 = vmul.f32 %v2450, %v2450
      %v2587 = vmul.f32 %v2451, %v2451
      %v2588 = vmul.f32 %v2452, %v2452
      %v2589 = vmul.f32 %v2453, %v2453
      %v2590 = vmul.f32 %v2454, %v2454
      %v2591 = vmul.f32 %v2455, %v2455
      %v2592 = vmul.f32 %v2456, %v2456
      %v2593 = vmul.f32 %v2457, %v2457
      %v2594 = vmul.f32 %v2458, %v2458
      %v2595 = vmul.f32 %v2459, %v2459
      %v2596 = vsel %vm2460, %v2564, 0.0
      %v2597 = vsel %vm2460, %v2565, 0.0
      %v2598 = vadd.f32 %v2596, %v2597
      %v2599 = vsel %vm2460, %v2566, 0.0
      %v2600 = vadd.f32 %v2598, %v2599
      %v2601 = vsel %vm2460, %v2567, 0.0
      %v2602 = vadd.f32 %v2600, %v2601
      %v2603 = vsel %vm2460, %v2568, 0.0
      %v2604 = vadd.f32 %v2602, %v2603
      %v2605 = vsel %vm2460, %v2569, 0.0
      %v2606 = vadd.f32 %v2604, %v2605
      %v2607 = vsel %vm2460, %v2570, 0.0
      %v2608 = vadd.f32 %v2606, %v2607
      %v2609 = vsel %vm2460, %v2571, 0.0
      %v2610 = vadd.f32 %v2608, %v2609
      %v2611 = vsel %vm2460, %v2572, 0.0
      %v2612 = vadd.f32 %v2610, %v2611
      %v2613 = vsel %vm2460, %v2573, 0.0
      %v2614 = vadd.f32 %v2612, %v2613
      %v2615 = vsel %vm2460, %v2574, 0.0
      %v2616 = vadd.f32 %v2614, %v2615
      %v2617 = vsel %vm2460, %v2575, 0.0
      %v2618 = vadd.f32 %v2616, %v2617
      %v2619 = vsel %vm2460, %v2576, 0.0
      %v2620 = vadd.f32 %v2618, %v2619
      %v2621 = vsel %vm2460, %v2577, 0.0
      %v2622 = vadd.f32 %v2620, %v2621
      %v2623 = vsel %vm2460, %v2578, 0.0
      %v2624 = vadd.f32 %v2622, %v2623
      %v2625 = vsel %vm2460, %v2579, 0.0
      %v2626 = vadd.f32 %v2624, %v2625
      %v2627 = vsel %vm2460, %v2580, 0.0
      %v2628 = vadd.f32 %v2626, %v2627
      %v2629 = vsel %vm2460, %v2581, 0.0
      %v2630 = vadd.f32 %v2628, %v2629
      %v2631 = vsel %vm2460, %v2582, 0.0
      %v2632 = vadd.f32 %v2630, %v2631
      %v2633 = vsel %vm2460, %v2583, 0.0
      %v2634 = vadd.f32 %v2632, %v2633
      %v2635 = vsel %vm2460, %v2584, 0.0
      %v2636 = vadd.f32 %v2634, %v2635
      %v2637 = vsel %vm2460, %v2585, 0.0
      %v2638 = vadd.f32 %v2636, %v2637
      %v2639 = vsel %vm2460, %v2586, 0.0
      %v2640 = vadd.f32 %v2638, %v2639
      %v2641 = vsel %vm2460, %v2587, 0.0
      %v2642 = vadd.f32 %v2640, %v2641
      %v2643 = vsel %vm2460, %v2588, 0.0
      %v2644 = vadd.f32 %v2642, %v2643
      %v2645 = vsel %vm2460, %v2589, 0.0
      %v2646 = vadd.f32 %v2644, %v2645
      %v2647 = vsel %vm2460, %v2590, 0.0
      %v2648 = vadd.f32 %v2646, %v2647
      %v2649 = vsel %vm2460, %v2591, 0.0
      %v2650 = vadd.f32 %v2648, %v2649
      %v2651 = vsel %vm2460, %v2592, 0.0
      %v2652 = vadd.f32 %v2650, %v2651
      %v2653 = vsel %vm2460, %v2593, 0.0
      %v2654 = vadd.f32 %v2652, %v2653
      %v2655 = vsel %vm2460, %v2594, 0.0
      %v2656 = vadd.f32 %v2654, %v2655
      %v2657 = vsel %vm2460, %v2595, 0.0
      %v2658 = vadd.f32 %v2656, %v2657
      %v2659 = vrot.slane %v2658, 4
      %v2660 = vadd.f32 %v2658, %v2659
      %v2661 = vrot.slane %v2660, 2
      %v2662 = vadd.f32 %v2660, %v2661
      %v2663 = vrot.slane %v2662, 1
      %v2664 = vadd.f32 %v2662, %v2663
      %2665 = vst.msk [vmem:[%s271] sm:$0x1] %vm2562, %v2664
      %s2666 = smul.u32 32, %s18
      %p2667 = scmp.lt.s32.totalorder %s2666, 63
      %s2668 = scalar_select %p2667, %s2666, 63
      %s2669 = smul.addr %s2668, 8
      %s2670 = scalar_lea.vmem %s4, %s2669
      %p2671 = scmp.lt.s32.totalorder %s18, 1
      %s2672 = scalar_select %p2671, %s18, 1
      %s2673 = scalar_lea.vmem %s5, %s2672
      %p2674 = scmp.lt.s32.totalorder %s18, 1
      %s2675 = scalar_select %p2674, %s18, 1
      %s2676 = scalar_lea.vmem %s6, %s2675
      // Predicated region
      $region37: #{dense_block_forward.9} parent=35 // pred_check
        %p2677 = pneg %p125
      $region38: #{dense_block_forward.9} parent=35 // pred_check_branch
        %2679 = sbr.rel (%p2677) target = $region40
      $region39: #{dense_block_forward.9} parent=35 // pred_region
        %s2680 = smul.u32 32, %s18
      $region40: #{dense_block_forward.9} parent=35 // pred_fallthru
        _
      // Predicated region
      $region41: #{dense_block_forward.9} parent=35 // pred_check
        %p2681 = pneg %p151
      $region42: #{dense_block_forward.9} parent=35 // pred_check_branch
        %2683 = sbr.rel (%p2681) target = $region44
      $region43: #{dense_block_forward.9} parent=35 // pred_region
        _
      $region44: #{dense_block_forward.9} parent=35 // pred_fallthru
        _
      // Predicated region
      $region45: #{dense_block_forward.9} parent=35 // pred_check
        %p2684 = pneg %p177
      $region46: #{dense_block_forward.9} parent=35 // pred_check_branch
        %2686 = sbr.rel (%p2684) target = $region48
      $region47: #{dense_block_forward.9} parent=35 // pred_region
        _
      $region48: #{dense_block_forward.9} parent=35 // pred_fallthru
        _
    $region36: #{dense_block_forward.9} parent=5 // pred_fallthru
      _
    %p2687 = scmp.le.s32.totalorder 2, %s13
    // Predicated region
    $region49: #{dense_block_forward.9} parent=5 // pred_check
      %p2688 = pneg %p2687
    $region50: #{dense_block_forward.9} parent=5 // pred_check_branch
      %2690 = sbr.rel (%p2688) target = $region52
    $region51: #{dense_block_forward.9} parent=5 // pred_region
      %s2691 = ssub.s32 %s13, 2
      // Predicated region
      $region53: #{dense_block_forward.9} parent=51 // pred_check
        %p2692 = pneg %p131
      $region54: #{dense_block_forward.9} parent=51 // pred_check_branch
        %2694 = sbr.rel (%p2692) target = $region56
      $region55: #{dense_block_forward.9} parent=51 // pred_region
        %s2695 = smul.u32 32, %s19
        %p2696 = scmp.lt.s32.totalorder %s2695, 63
        %s2697 = scalar_select %p2696, %s2695, 63
        %s2698 = smul.addr %s2697, 8
        %s2699 = scalar_lea.vmem %s4, %s2698
      $region56: #{dense_block_forward.9} parent=51 // pred_fallthru
        _
      // Predicated region
      $region57: #{dense_block_forward.9} parent=51 // pred_check
        %p2700 = pneg %p157
      $region58: #{dense_block_forward.9} parent=51 // pred_check_branch
        %2702 = sbr.rel (%p2700) target = $region60
      $region59: #{dense_block_forward.9} parent=51 // pred_region
        %p2703 = scmp.lt.s32.totalorder %s19, 1
        %s2704 = scalar_select %p2703, %s19, 1
        %s2705 = scalar_lea.vmem %s5, %s2704
      $region60: #{dense_block_forward.9} parent=51 // pred_fallthru
        _
      // Predicated region
      $region61: #{dense_block_forward.9} parent=51 // pred_check
        %p2706 = pneg %p183
      $region62: #{dense_block_forward.9} parent=51 // pred_check_branch
        %2708 = sbr.rel (%p2706) target = $region64
      $region63: #{dense_block_forward.9} parent=51 // pred_region
        %p2709 = scmp.lt.s32.totalorder %s19, 1
        %s2710 = scalar_select %p2709, %s19, 1
        %s2711 = scalar_lea.vmem %s6, %s2710
      $region64: #{dense_block_forward.9} parent=51 // pred_fallthru
        _
    $region52: #{dense_block_forward.9} parent=5 // pred_fallthru
      _
  $region6: #{dense_block_forward.9} parent=0 // loop_footer
    %s17 = sadd.s32 1, %s13
  $region7: #{dense_block_forward.9} parent=0 // loop_footer_branch
    %12 = sbr.rel target = $region3
  $region8: #{dense_block_forward.9} parent=0 // loop_exit
    _

// kernel: dense_block_forward.12
$region0: #{dense_block_forward.12}
  #allocation0 [shape = 'u32[]', space=smem, size = 0x4, offset = 0x4, fixed_abs, tag = 'smem constant byte address 0x4 - core index']
  #allocation1 [shape = 'u32[72,128]{1,0:T(1,128)}', space=vmem, size = 0x9000, scoped, tag = 'internal scratch']
  %s0 = inlined_call_operand.vmem [shape: f32[512,4], index: 0, kind: input, shape index: {}]
  %s1 = inlined_call_operand.vmem [shape: f32[512,4], index: 1, kind: input, shape index: {}]
  %s2 = inlined_call_operand.vmem [shape: f32[512,4], index: 2, kind: input, shape index: {}]
  %s3 = inlined_call_operand.vmem [shape: f32[1,4], index: 3, kind: input, shape index: {}]
  %s4 = inlined_call_operand.vmem [shape: f32[1,4], index: 4, kind: input, shape index: {}]
  %s5 = inlined_call_operand.vmem [shape: f32[1,4], index: 5, kind: input, shape index: {}]
  %s6 = inlined_call_operand.vmem [shape: f32[1,4], index: 6, kind: input, shape index: {}]
  %s7 = inlined_call_operand.vmem [shape: f32[1,4], index: 7, kind: input, shape index: {}]
  %s8 = inlined_call_operand.vmem [shape: f32[1,4], index: 8, kind: input, shape index: {}]
  %s9 = inlined_call_operand.vmem [shape: bf16[4,16], index: 9, kind: input, shape index: {}]
  %s10 = inlined_call_operand.vmem [shape: bf16[4,16], index: 10, kind: input, shape index: {}]
  %s11 = inlined_call_operand.vmem [shape: bf16[4,16], index: 11, kind: input, shape index: {}]
  %s12 = inlined_call_operand.vmem [shape: f32[512,16], index: 12, kind: output, shape index: {0}]
  %s13 = inlined_call_operand.vmem [shape: f32[1,1,16], index: 13, kind: output, shape index: {1}]
  %s14 = inlined_call_operand.vmem [shape: f32[1,1,16], index: 14, kind: output, shape index: {2}]
  %15 = xla_tuple %s12, %s13, %s14
  %s16 = sld [smem:[#allocation0]]
  $region74: #{dense_block_forward.12} parent=0
    _
  %s18 = ssub.s32 1, %s16
  %s19 = scalar_select 0, %s18, %s16
  // Predicated region
  $region2: #{dense_block_forward.12} parent=0 // pred_check
    _
  $region3: #{dense_block_forward.12} parent=0 // pred_check_branch
    %21 = sbr.rel (0) target = $region5
  $region4: #{dense_block_forward.12} parent=0 // pred_region
    _
  $region5: #{dense_block_forward.12} parent=0 // pred_fallthru
    _
  // Predicated region
  $region6: #{dense_block_forward.12} parent=0 // pred_check
    _
  $region7: #{dense_block_forward.12} parent=0 // pred_check_branch
    %23 = sbr.rel (0) target = $region9
  $region8: #{dense_block_forward.12} parent=0 // pred_region
    _
  $region9: #{dense_block_forward.12} parent=0 // pred_fallthru
    _
  // Predicated region
  $region10: #{dense_block_forward.12} parent=0 // pred_check
    _
  $region11: #{dense_block_forward.12} parent=0 // pred_check_branch
    %25 = sbr.rel (0) target = $region13
  $region12: #{dense_block_forward.12} parent=0 // pred_region
    _
  $region13: #{dense_block_forward.12} parent=0 // pred_fallthru
    _
  // Predicated region
  $region14: #{dense_block_forward.12} parent=0 // pred_check
    _
  $region15: #{dense_block_forward.12} parent=0 // pred_check_branch
    %27 = sbr.rel (0) target = $region17
  $region16: #{dense_block_forward.12} parent=0 // pred_region
    _
  $region17: #{dense_block_forward.12} parent=0 // pred_fallthru
    _
  // Predicated region
  $region18: #{dense_block_forward.12} parent=0 // pred_check
    _
  $region19: #{dense_block_forward.12} parent=0 // pred_check_branch
    %29 = sbr.rel (0) target = $region21
  $region20: #{dense_block_forward.12} parent=0 // pred_region
    _
  $region21: #{dense_block_forward.12} parent=0 // pred_fallthru
    _
  // Predicated region
  $region22: #{dense_block_forward.12} parent=0 // pred_check
    _
  $region23: #{dense_block_forward.12} parent=0 // pred_check_branch
    %31 = sbr.rel (0) target = $region25
  $region24: #{dense_block_forward.12} parent=0 // pred_region
    _
  $region25: #{dense_block_forward.12} parent=0 // pred_fallthru
    _
  // Predicated region
  $region26: #{dense_block_forward.12} parent=0 // pred_check
    _
  $region27: #{dense_block_forward.12} parent=0 // pred_check_branch
    %33 = sbr.rel (0) target = $region29
  $region28: #{dense_block_forward.12} parent=0 // pred_region
    _
  $region29: #{dense_block_forward.12} parent=0 // pred_fallthru
    _
  // Predicated region
  $region30: #{dense_block_forward.12} parent=0 // pred_check
    _
  $region31: #{dense_block_forward.12} parent=0 // pred_check_branch
    %35 = sbr.rel (0) target = $region33
  $region32: #{dense_block_forward.12} parent=0 // pred_region
    _
  $region33: #{dense_block_forward.12} parent=0 // pred_fallthru
    _
  // Predicated region
  $region34: #{dense_block_forward.12} parent=0 // pred_check
    _
  $region35: #{dense_block_forward.12} parent=0 // pred_check_branch
    %37 = sbr.rel (0) target = $region37
  $region36: #{dense_block_forward.12} parent=0 // pred_region
    _
  $region37: #{dense_block_forward.12} parent=0 // pred_fallthru
    _
  // Predicated region
  $region38: #{dense_block_forward.12} parent=0 // pred_check
    _
  $region39: #{dense_block_forward.12} parent=0 // pred_check_branch
    %39 = sbr.rel (0) target = $region41
  $region40: #{dense_block_forward.12} parent=0 // pred_region
    _
  $region41: #{dense_block_forward.12} parent=0 // pred_fallthru
    _
  // Predicated region
  $region42: #{dense_block_forward.12} parent=0 // pred_check
    _
  $region43: #{dense_block_forward.12} parent=0 // pred_check_branch
    %41 = sbr.rel (0) target = $region45
  $region44: #{dense_block_forward.12} parent=0 // pred_region
    _
  $region45: #{dense_block_forward.12} parent=0 // pred_fallthru
    _
  // Predicated region
  $region46: #{dense_block_forward.12} parent=0 // pred_check
    _
  $region47: #{dense_block_forward.12} parent=0 // pred_check_branch
    %43 = sbr.rel (0) target = $region49
  $region48: #{dense_block_forward.12} parent=0 // pred_region
    _
  $region49: #{dense_block_forward.12} parent=0 // pred_fallthru
    _
  %v45 = vld [vmem:[%s0] sm:$0xff]
  %v46 = vld [vmem:[%s0 + $0x8] sm:$0xff]
  %v47 = vld [vmem:[%s0 + $0x10] sm:$0xff]
  %v48 = vld [vmem:[%s0 + $0x18] sm:$0xff]
  %v49 = vld [vmem:[%s0 + $0x20] sm:$0xff]
  %v50 = vld [vmem:[%s0 + $0x28] sm:$0xff]
  %v51 = vld [vmem:[%s0 + $0x30] sm:$0xff]
  %v52 = vld [vmem:[%s0 + $0x38] sm:$0xff]
  %v53 = vld [vmem:[%s0 + $0x40] sm:$0xff]
  %v54 = vld [vmem:[%s0 + $0x48] sm:$0xff]
  %v55 = vld [vmem:[%s0 + $0x50] sm:$0xff]
  %v56 = vld [vmem:[%s0 + $0x58] sm:$0xff]
  %v57 = vld [vmem:[%s0 + $0x60] sm:$0xff]
  %v58 = vld [vmem:[%s0 + $0x68] sm:$0xff]
  %v59 = vld [vmem:[%s0 + $0x70] sm:$0xff]
  %v60 = vld [vmem:[%s0 + $0x78] sm:$0xff]
  %v61 = vld [vmem:[%s0 + $0x80] sm:$0xff]
  %v62 = vld [vmem:[%s0 + $0x88] sm:$0xff]
  %v63 = vld [vmem:[%s0 + $0x90] sm:$0xff]
  %v64 = vld [vmem:[%s0 + $0x98] sm:$0xff]
  %v65 = vld [vmem:[%s0 + $0xa0] sm:$0xff]
  %v66 = vld [vmem:[%s0 + $0xa8] sm:$0xff]
  %v67 = vld [vmem:[%s0 + $0xb0] sm:$0xff]
  %v68 = vld [vmem:[%s0 + $0xb8] sm:$0xff]
  %v69 = vld [vmem:[%s0 + $0xc0] sm:$0xff]
  %v70 = vld [vmem:[%s0 + $0xc8] sm:$0xff]
  %v71 = vld [vmem:[%s0 + $0xd0] sm:$0xff]
  %v72 = vld [vmem:[%s0 + $0xd8] sm:$0xff]
  %v73 = vld [vmem:[%s0 + $0xe0] sm:$0xff]
  %v74 = vld [vmem:[%s0 + $0xe8] sm:$0xff]
  %v75 = vld [vmem:[%s0 + $0xf0] sm:$0xff]
  %v76 = vld [vmem:[%s0 + $0xf8] sm:$0xff]
  %v77 = vld [vmem:[%s0 + $0x100] sm:$0xff]
  %v78 = vld [vmem:[%s0 + $0x108] sm:$0xff]
  %v79 = vld [vmem:[%s0 + $0x110] sm:$0xff]
  %v80 = vld [vmem:[%s0 + $0x118] sm:$0xff]
  %v81 = vld [vmem:[%s0 + $0x120] sm:$0xff]
  %v82 = vld [vmem:[%s0 + $0x128] sm:$0xff]
  %v83 = vld [vmem:[%s0 + $0x130] sm:$0xff]
  %v84 = vld [vmem:[%s0 + $0x138] sm:$0xff]
  %v85 = vld [vmem:[%s0 + $0x140] sm:$0xff]
  %v86 = vld [vmem:[%s0 + $0x148] sm:$0xff]
  %v87 = vld [vmem:[%s0 + $0x150] sm:$0xff]
  %v88 = vld [vmem:[%s0 + $0x158] sm:$0xff]
  %v89 = vld [vmem:[%s0 + $0x160] sm:$0xff]
  %v90 = vld [vmem:[%s0 + $0x168] sm:$0xff]
  %v91 = vld [vmem:[%s0 + $0x170] sm:$0xff]
  %v92 = vld [vmem:[%s0 + $0x178] sm:$0xff]
  %v93 = vld [vmem:[%s0 + $0x180] sm:$0xff]
  %v94 = vld [vmem:[%s0 + $0x188] sm:$0xff]
  %v95 = vld [vmem:[%s0 + $0x190] sm:$0xff]
  %v96 = vld [vmem:[%s0 + $0x198] sm:$0xff]
  %v97 = vld [vmem:[%s0 + $0x1a0] sm:$0xff]
  %v98 = vld [vmem:[%s0 + $0x1a8] sm:$0xff]
  %v99 = vld [vmem:[%s0 + $0x1b0] sm:$0xff]
  %v100 = vld [vmem:[%s0 + $0x1b8] sm:$0xff]
  %v101 = vld [vmem:[%s0 + $0x1c0] sm:$0xff]
  %v102 = vld [vmem:[%s0 + $0x1c8] sm:$0xff]
  %v103 = vld [vmem:[%s0 + $0x1d0] sm:$0xff]
  %v104 = vld [vmem:[%s0 + $0x1d8] sm:$0xff]
  %v105 = vld [vmem:[%s0 + $0x1e0] sm:$0xff]
  %v106 = vld [vmem:[%s0 + $0x1e8] sm:$0xff]
  %v107 = vld [vmem:[%s0 + $0x1f0] sm:$0xff]
  %v108 = vld [vmem:[%s0 + $0x1f8] sm:$0xff]
  %v109 = vld [vmem:[%s3] sm:$0x1]
  %v111 = vperm.slane %v109, 0
  %v113 = vmul.f32 %v45, %v111
  %v114 = vmul.f32 %v46, %v111
  %v115 = vmul.f32 %v47, %v111
  %v116 = vmul.f32 %v48, %v111
  %v117 = vmul.f32 %v49, %v111
  %v118 = vmul.f32 %v50, %v111
  %v119 = vmul.f32 %v51, %v111
  %v120 = vmul.f32 %v52, %v111
  %v121 = vmul.f32 %v53, %v111
  %v122 = vmul.f32 %v54, %v111
  %v123 = vmul.f32 %v55, %v111
  %v124 = vmul.f32 %v56, %v111
  %v125 = vmul.f32 %v57, %v111
  %v126 = vmul.f32 %v58, %v111
  %v127 = vmul.f32 %v59, %v111
  %v128 = vmul.f32 %v60, %v111
  %v129 = vmul.f32 %v61, %v111
  %v130 = vmul.f32 %v62, %v111
  %v131 = vmul.f32 %v63, %v111
  %v132 = vmul.f32 %v64, %v111
  %v133 = vmul.f32 %v65, %v111
  %v134 = vmul.f32 %v66, %v111
  %v135 = vmul.f32 %v67, %v111
  %v136 = vmul.f32 %v68, %v111
  %v137 = vmul.f32 %v69, %v111
  %v138 = vmul.f32 %v70, %v111
  %v139 = vmul.f32 %v71, %v111
  %v140 = vmul.f32 %v72, %v111
  %v141 = vmul.f32 %v73, %v111
  %v142 = vmul.f32 %v74, %v111
  %v143 = vmul.f32 %v75, %v111
  %v144 = vmul.f32 %v76, %v111
  %v145 = vmul.f32 %v77, %v111
  %v146 = vmul.f32 %v78, %v111
  %v147 = vmul.f32 %v79, %v111
  %v148 = vmul.f32 %v80, %v111
  %v149 = vmul.f32 %v81, %v111
  %v150 = vmul.f32 %v82, %v111
  %v151 = vmul.f32 %v83, %v111
  %v152 = vmul.f32 %v84, %v111
  %v153 = vmul.f32 %v85, %v111
  %v154 = vmul.f32 %v86, %v111
  %v155 = vmul.f32 %v87, %v111
  %v156 = vmul.f32 %v88, %v111
  %v157 = vmul.f32 %v89, %v111
  %v158 = vmul.f32 %v90, %v111
  %v159 = vmul.f32 %v91, %v111
  %v160 = vmul.f32 %v92, %v111
  %v161 = vmul.f32 %v93, %v111
  %v162 = vmul.f32 %v94, %v111
  %v163 = vmul.f32 %v95, %v111
  %v164 = vmul.f32 %v96, %v111
  %v165 = vmul.f32 %v97, %v111
  %v166 = vmul.f32 %v98, %v111
  %v167 = vmul.f32 %v99, %v111
  %v168 = vmul.f32 %v100, %v111
  %v169 = vmul.f32 %v101, %v111
  %v170 = vmul.f32 %v102, %v111
  %v171 = vmul.f32 %v103, %v111
  %v172 = vmul.f32 %v104, %v111
  %v173 = vmul.f32 %v105, %v111
  %v174 = vmul.f32 %v106, %v111
  %v175 = vmul.f32 %v107, %v111
  %v176 = vmul.f32 %v108, %v111
  %v177 = vld [vmem:[%s6] sm:$0x1]
  %v179 = vperm.slane %v177, 0
  %v181 = vadd.f32 %v113, %v179
  %v182 = vadd.f32 %v114, %v179
  %v183 = vadd.f32 %v115, %v179
  %v184 = vadd.f32 %v116, %v179
  %v185 = vadd.f32 %v117, %v179
  %v186 = vadd.f32 %v118, %v179
  %v187 = vadd.f32 %v119, %v179
  %v188 = vadd.f32 %v120, %v179
  %v189 = vadd.f32 %v121, %v179
  %v190 = vadd.f32 %v122, %v179
  %v191 = vadd.f32 %v123, %v179
  %v192 = vadd.f32 %v124, %v179
  %v193 = vadd.f32 %v125, %v179
  %v194 = vadd.f32 %v126, %v179
  %v195 = vadd.f32 %v127, %v179
  %v196 = vadd.f32 %v128, %v179
  %v197 = vadd.f32 %v129, %v179
  %v198 = vadd.f32 %v130, %v179
  %v199 = vadd.f32 %v131, %v179
  %v200 = vadd.f32 %v132, %v179
  %v201 = vadd.f32 %v133, %v179
  %v202 = vadd.f32 %v134, %v179
  %v203 = vadd.f32 %v135, %v179
  %v204 = vadd.f32 %v136, %v179
  %v205 = vadd.f32 %v137, %v179
  %v206 = vadd.f32 %v138, %v179
  %v207 = vadd.f32 %v139, %v179
  %v208 = vadd.f32 %v140, %v179
  %v209 = vadd.f32 %v141, %v179
  %v210 = vadd.f32 %v142, %v179
  %v211 = vadd.f32 %v143, %v179
  %v212 = vadd.f32 %v144, %v179
  %v213 = vadd.f32 %v145, %v179
  %v214 = vadd.f32 %v146, %v179
  %v215 = vadd.f32 %v147, %v179
  %v216 = vadd.f32 %v148, %v179
  %v217 = vadd.f32 %v149, %v179
  %v218 = vadd.f32 %v150, %v179
  %v219 = vadd.f32 %v151, %v179
  %v220 = vadd.f32 %v152, %v179
  %v221 = vadd.f32 %v153, %v179
  %v222 = vadd.f32 %v154, %v179
  %v223 = vadd.f32 %v155, %v179
  %v224 = vadd.f32 %v156, %v179
  %v225 = vadd.f32 %v157, %v179
  %v226 = vadd.f32 %v158, %v179
  %v227 = vadd.f32 %v159, %v179
  %v228 = vadd.f32 %v160, %v179
  %v229 = vadd.f32 %v161, %v179
  %v230 = vadd.f32 %v162, %v179
  %v231 = vadd.f32 %v163, %v179
  %v232 = vadd.f32 %v164, %v179
  %v233 = vadd.f32 %v165, %v179
  %v234 = vadd.f32 %v166, %v179
  %v235 = vadd.f32 %v167, %v179
  %v236 = vadd.f32 %v168, %v179
  %v237 = vadd.f32 %v169, %v179
  %v238 = vadd.f32 %v170, %v179
  %v239 = vadd.f32 %v171, %v179
  %v240 = vadd.f32 %v172, %v179
  %v241 = vadd.f32 %v173, %v179
  %v242 = vadd.f32 %v174, %v179
  %v243 = vadd.f32 %v175, %v179
  %v244 = vadd.f32 %v176, %v179
  %v245 = vmax.f32 %v181, 0.0
  %v246 = vmax.f32 %v182, 0.0
  %v247 = vmax.f32 %v183, 0.0
  %v248 = vmax.f32 %v184, 0.0
  %v249 = vmax.f32 %v185, 0.0
  %v250 = vmax.f32 %v186, 0.0
  %v251 = vmax.f32 %v187, 0.0
  %v252 = vmax.f32 %v188, 0.0
  %v253 = vmax.f32 %v189, 0.0
  %v254 = vmax.f32 %v190, 0.0
  %v255 = vmax.f32 %v191, 0.0
  %v256 = vmax.f32 %v192, 0.0
  %v257 = vmax.f32 %v193, 0.0
  %v258 = vmax.f32 %v194, 0.0
  %v259 = vmax.f32 %v195, 0.0
  %v260 = vmax.f32 %v196, 0.0
  %v261 = vmax.f32 %v197, 0.0
  %v262 = vmax.f32 %v198, 0.0
  %v263 = vmax.f32 %v199, 0.0
  %v264 = vmax.f32 %v200, 0.0
  %v265 = vmax.f32 %v201, 0.0
  %v266 = vmax.f32 %v202, 0.0
  %v267 = vmax.f32 %v203, 0.0
  %v268 = vmax.f32 %v204, 0.0
  %v269 = vmax.f32 %v205, 0.0
  %v270 = vmax.f32 %v206, 0.0
  %v271 = vmax.f32 %v207, 0.0
  %v272 = vmax.f32 %v208, 0.0
  %v273 = vmax.f32 %v209, 0.0
  %v274 = vmax.f32 %v210, 0.0
  %v275 = vmax.f32 %v211, 0.0
  %v276 = vmax.f32 %v212, 0.0
  %v277 = vmax.f32 %v213, 0.0
  %v278 = vmax.f32 %v214, 0.0
  %v279 = vmax.f32 %v215, 0.0
  %v280 = vmax.f32 %v216, 0.0
  %v281 = vmax.f32 %v217, 0.0
  %v282 = vmax.f32 %v218, 0.0
  %v283 = vmax.f32 %v219, 0.0
  %v284 = vmax.f32 %v220, 0.0
  %v285 = vmax.f32 %v221, 0.0
  %v286 = vmax.f32 %v222, 0.0
  %v287 = vmax.f32 %v223, 0.0
  %v288 = vmax.f32 %v224, 0.0
  %v289 = vmax.f32 %v225, 0.0
  %v290 = vmax.f32 %v226, 0.0
  %v291 = vmax.f32 %v227, 0.0
  %v292 = vmax.f32 %v228, 0.0
  %v293 = vmax.f32 %v229, 0.0
  %v294 = vmax.f32 %v230, 0.0
  %v295 = vmax.f32 %v231, 0.0
  %v296 = vmax.f32 %v232, 0.0
  %v297 = vmax.f32 %v233, 0.0
  %v298 = vmax.f32 %v234, 0.0
  %v299 = vmax.f32 %v235, 0.0
  %v300 = vmax.f32 %v236, 0.0
  %v301 = vmax.f32 %v237, 0.0
  %v302 = vmax.f32 %v238, 0.0
  %v303 = vmax.f32 %v239, 0.0
  %v304 = vmax.f32 %v240, 0.0
  %v305 = vmax.f32 %v241, 0.0
  %v306 = vmax.f32 %v242, 0.0
  %v307 = vmax.f32 %v243, 0.0
  %v308 = vmax.f32 %v244, 0.0
  %v309 = vpack.c.bf16 %v246, %v245
  %v310 = vpack.c.bf16 %v248, %v247
  %v311 = vpack.c.bf16 %v250, %v249
  %v312 = vpack.c.bf16 %v252, %v251
  %v313 = vpack.c.bf16 %v254, %v253
  %v314 = vpack.c.bf16 %v256, %v255
  %v315 = vpack.c.bf16 %v258, %v257
  %v316 = vpack.c.bf16 %v260, %v259
  %v317 = vpack.c.bf16 %v262, %v261
  %v318 = vpack.c.bf16 %v264, %v263
  %v319 = vpack.c.bf16 %v266, %v265
  %v320 = vpack.c.bf16 %v268, %v267
  %v321 = vpack.c.bf16 %v270, %v269
  %v322 = vpack.c.bf16 %v272, %v271
  %v323 = vpack.c.bf16 %v274, %v273
  %v324 = vpack.c.bf16 %v276, %v275
  %v325 = vpack.c.bf16 %v278, %v277
  %v326 = vpack.c.bf16 %v280, %v279
  %v327 = vpack.c.bf16 %v282, %v281
  %v328 = vpack.c.bf16 %v284, %v283
  %v329 = vpack.c.bf16 %v286, %v285
  %v330 = vpack.c.bf16 %v288, %v287
  %v331 = vpack.c.bf16 %v290, %v289
  %v332 = vpack.c.bf16 %v292, %v291
  %v333 = vpack.c.bf16 %v294, %v293
  %v334 = vpack.c.bf16 %v296, %v295
  %v335 = vpack.c.bf16 %v298, %v297
  %v336 = vpack.c.bf16 %v300, %v299
  %v337 = vpack.c.bf16 %v302, %v301
  %v338 = vpack.c.bf16 %v304, %v303
  %v339 = vpack.c.bf16 %v306, %v305
  %v340 = vpack.c.bf16 %v308, %v307
  %v341 = vld [vmem:[%s9] sm:$0x3]
  %v342 = vld [vmem:[%s1] sm:$0xff]
  %v343 = vld [vmem:[%s1 + $0x8] sm:$0xff]
  %v344 = vld [vmem:[%s1 + $0x10] sm:$0xff]
  %v345 = vld [vmem:[%s1 + $0x18] sm:$0xff]
  %v346 = vld [vmem:[%s1 + $0x20] sm:$0xff]
  %v347 = vld [vmem:[%s1 + $0x28] sm:$0xff]
  %v348 = vld [vmem:[%s1 + $0x30] sm:$0xff]
  %v349 = vld [vmem:[%s1 + $0x38] sm:$0xff]
  %v350 = vld [vmem:[%s1 + $0x40] sm:$0xff]
  %v351 = vld [vmem:[%s1 + $0x48] sm:$0xff]
  %v352 = vld [vmem:[%s1 + $0x50] sm:$0xff]
  %v353 = vld [vmem:[%s1 + $0x58] sm:$0xff]
  %v354 = vld [vmem:[%s1 + $0x60] sm:$0xff]
  %v355 = vld [vmem:[%s1 + $0x68] sm:$0xff]
  %v356 = vld [vmem:[%s1 + $0x70] sm:$0xff]
  %v357 = vld [vmem:[%s1 + $0x78] sm:$0xff]
  %v358 = vld [vmem:[%s1 + $0x80] sm:$0xff]
  %v359 = vld [vmem:[%s1 + $0x88] sm:$0xff]
  %v360 = vld [vmem:[%s1 + $0x90] sm:$0xff]
  %v361 = vld [vmem:[%s1 + $0x98] sm:$0xff]
  %v362 = vld [vmem:[%s1 + $0xa0] sm:$0xff]
  %v363 = vld [vmem:[%s1 + $0xa8] sm:$0xff]
  %v364 = vld [vmem:[%s1 + $0xb0] sm:$0xff]
  %v365 = vld [vmem:[%s1 + $0xb8] sm:$0xff]
  %v366 = vld [vmem:[%s1 + $0xc0] sm:$0xff]
  %v367 = vld [vmem:[%s1 + $0xc8] sm:$0xff]
  %v368 = vld [vmem:[%s1 + $0xd0] sm:$0xff]
  %v369 = vld [vmem:[%s1 + $0xd8] sm:$0xff]
  %v370 = vld [vmem:[%s1 + $0xe0] sm:$0xff]
  %v371 = vld [vmem:[%s1 + $0xe8] sm:$0xff]
  %v372 = vld [vmem:[%s1 + $0xf0] sm:$0xff]
  %v373 = vld [vmem:[%s1 + $0xf8] sm:$0xff]
  %v374 = vld [vmem:[%s1 + $0x100] sm:$0xff]
  %v375 = vld [vmem:[%s1 + $0x108] sm:$0xff]
  %v376 = vld [vmem:[%s1 + $0x110] sm:$0xff]
  %v377 = vld [vmem:[%s1 + $0x118] sm:$0xff]
  %v378 = vld [vmem:[%s1 + $0x120] sm:$0xff]
  %v379 = vld [vmem:[%s1 + $0x128] sm:$0xff]
  %v380 = vld [vmem:[%s1 + $0x130] sm:$0xff]
  %v381 = vld [vmem:[%s1 + $0x138] sm:$0xff]
  %v382 = vld [vmem:[%s1 + $0x140] sm:$0xff]
  %v383 = vld [vmem:[%s1 + $0x148] sm:$0xff]
  %v384 = vld [vmem:[%s1 + $0x150] sm:$0xff]
  %v385 = vld [vmem:[%s1 + $0x158] sm:$0xff]
  %v386 = vld [vmem:[%s1 + $0x160] sm:$0xff]
  %v387 = vld [vmem:[%s1 + $0x168] sm:$0xff]
  %v388 = vld [vmem:[%s1 + $0x170] sm:$0xff]
  %v389 = vld [vmem:[%s1 + $0x178] sm:$0xff]
  %v390 = vld [vmem:[%s1 + $0x180] sm:$0xff]
  %v391 = vld [vmem:[%s1 + $0x188] sm:$0xff]
  %v392 = vld [vmem:[%s1 + $0x190] sm:$0xff]
  %v393 = vld [vmem:[%s1 + $0x198] sm:$0xff]
  %v394 = vld [vmem:[%s1 + $0x1a0] sm:$0xff]
  %v395 = vld [vmem:[%s1 + $0x1a8] sm:$0xff]
  %v396 = vld [vmem:[%s1 + $0x1b0] sm:$0xff]
  %v397 = vld [vmem:[%s1 + $0x1b8] sm:$0xff]
  %v398 = vld [vmem:[%s1 + $0x1c0] sm:$0xff]
  %v399 = vld [vmem:[%s1 + $0x1c8] sm:$0xff]
  %v400 = vld [vmem:[%s1 + $0x1d0] sm:$0xff]
  %v401 = vld [vmem:[%s1 + $0x1d8] sm:$0xff]
  %v402 = vld [vmem:[%s1 + $0x1e0] sm:$0xff]
  %v403 = vld [vmem:[%s1 + $0x1e8] sm:$0xff]
  %v404 = vld [vmem:[%s1 + $0x1f0] sm:$0xff]
  %v405 = vld [vmem:[%s1 + $0x1f8] sm:$0xff]
  %v406 = vld [vmem:[%s4] sm:$0x1]
  %v408 = vperm.slane %v406, 0
  %v410 = vmul.f32 %v342, %v408
  %v411 = vmul.f32 %v343, %v408
  %v412 = vmul.f32 %v344, %v408
  %v413 = vmul.f32 %v345, %v408
  %v414 = vmul.f32 %v346, %v408
  %v415 = vmul.f32 %v347, %v408
  %v416 = vmul.f32 %v348, %v408
  %v417 = vmul.f32 %v349, %v408
  %v418 = vmul.f32 %v350, %v408
  %v419 = vmul.f32 %v351, %v408
  %v420 = vmul.f32 %v352, %v408
  %v421 = vmul.f32 %v353, %v408
  %v422 = vmul.f32 %v354, %v408
  %v423 = vmul.f32 %v355, %v408
  %v424 = vmul.f32 %v356, %v408
  %v425 = vmul.f32 %v357, %v408
  %v426 = vmul.f32 %v358, %v408
  %v427 = vmul.f32 %v359, %v408
  %v428 = vmul.f32 %v360, %v408
  %v429 = vmul.f32 %v361, %v408
  %v430 = vmul.f32 %v362, %v408
  %v431 = vmul.f32 %v363, %v408
  %v432 = vmul.f32 %v364, %v408
  %v433 = vmul.f32 %v365, %v408
  %v434 = vmul.f32 %v366, %v408
  %v435 = vmul.f32 %v367, %v408
  %v436 = vmul.f32 %v368, %v408
  %v437 = vmul.f32 %v369, %v408
  %v438 = vmul.f32 %v370, %v408
  %v439 = vmul.f32 %v371, %v408
  %v440 = vmul.f32 %v372, %v408
  %v441 = vmul.f32 %v373, %v408
  %v442 = vmul.f32 %v374, %v408
  %v443 = vmul.f32 %v375, %v408
  %v444 = vmul.f32 %v376, %v408
  %v445 = vmul.f32 %v377, %v408
  %v446 = vmul.f32 %v378, %v408
  %v447 = vmul.f32 %v379, %v408
  %v448 = vmul.f32 %v380, %v408
  %v449 = vmul.f32 %v381, %v408
  %v450 = vmul.f32 %v382, %v408
  %v451 = vmul.f32 %v383, %v408
  %v452 = vmul.f32 %v384, %v408
  %v453 = vmul.f32 %v385, %v408
  %v454 = vmul.f32 %v386, %v408
  %v455 = vmul.f32 %v387, %v408
  %v456 = vmul.f32 %v388, %v408
  %v457 = vmul.f32 %v389, %v408
  %v458 = vmul.f32 %v390, %v408
  %v459 = vmul.f32 %v391, %v408
  %v460 = vmul.f32 %v392, %v408
  %v461 = vmul.f32 %v393, %v408
  %v462 = vmul.f32 %v394, %v408
  %v463 = vmul.f32 %v395, %v408
  %v464 = vmul.f32 %v396, %v408
  %v465 = vmul.f32 %v397, %v408
  %v466 = vmul.f32 %v398, %v408
  %v467 = vmul.f32 %v399, %v408
  %v468 = vmul.f32 %v400, %v408
  %v469 = vmul.f32 %v401, %v408
  %v470 = vmul.f32 %v402, %v408
  %v471 = vmul.f32 %v403, %v408
  %v472 = vmul.f32 %v404, %v408
  %v473 = vmul.f32 %v405, %v408
  %v474 = vld [vmem:[%s7] sm:$0x1]
  %v476 = vperm.slane %v474, 0
  %v478 = vadd.f32 %v410, %v476
  %v479 = vadd.f32 %v411, %v476
  %v480 = vadd.f32 %v412, %v476
  %v481 = vadd.f32 %v413, %v476
  %v482 = vadd.f32 %v414, %v476
  %v483 = vadd.f32 %v415, %v476
  %v484 = vadd.f32 %v416, %v476
  %v485 = vadd.f32 %v417, %v476
  %v486 = vadd.f32 %v418, %v476
  %v487 = vadd.f32 %v419, %v476
  %v488 = vadd.f32 %v420, %v476
  %v489 = vadd.f32 %v421, %v476
  %v490 = vadd.f32 %v422, %v476
  %v491 = vadd.f32 %v423, %v476
  %v492 = vadd.f32 %v424, %v476
  %v493 = vadd.f32 %v425, %v476
  %v494 = vadd.f32 %v426, %v476
  %v495 = vadd.f32 %v427, %v476
  %v496 = vadd.f32 %v428, %v476
  %v497 = vadd.f32 %v429, %v476
  %v498 = vadd.f32 %v430, %v476
  %v499 = vadd.f32 %v431, %v476
  %v500 = vadd.f32 %v432, %v476
  %v501 = vadd.f32 %v433, %v476
  %v502 = vadd.f32 %v434, %v476
  %v503 = vadd.f32 %v435, %v476
  %v504 = vadd.f32 %v436, %v476
  %v505 = vadd.f32 %v437, %v476
  %v506 = vadd.f32 %v438, %v476
  %v507 = vadd.f32 %v439, %v476
  %v508 = vadd.f32 %v440, %v476
  %v509 = vadd.f32 %v441, %v476
  %v510 = vadd.f32 %v442, %v476
  %v511 = vadd.f32 %v443, %v476
  %v512 = vadd.f32 %v444, %v476
  %v513 = vadd.f32 %v445, %v476
  %v514 = vadd.f32 %v446, %v476
  %v515 = vadd.f32 %v447, %v476
  %v516 = vadd.f32 %v448, %v476
  %v517 = vadd.f32 %v449, %v476
  %v518 = vadd.f32 %v450, %v476
  %v519 = vadd.f32 %v451, %v476
  %v520 = vadd.f32 %v452, %v476
  %v521 = vadd.f32 %v453, %v476
  %v522 = vadd.f32 %v454, %v476
  %v523 = vadd.f32 %v455, %v476
  %v524 = vadd.f32 %v456, %v476
  %v525 = vadd.f32 %v457, %v476
  %v526 = vadd.f32 %v458, %v476
  %v527 = vadd.f32 %v459, %v476
  %v528 = vadd.f32 %v460, %v476
  %v529 = vadd.f32 %v461, %v476
  %v530 = vadd.f32 %v462, %v476
  %v531 = vadd.f32 %v463, %v476
  %v532 = vadd.f32 %v464, %v476
  %v533 = vadd.f32 %v465, %v476
  %v534 = vadd.f32 %v466, %v476
  %v535 = vadd.f32 %v467, %v476
  %v536 = vadd.f32 %v468, %v476
  %v537 = vadd.f32 %v469, %v476
  %v538 = vadd.f32 %v470, %v476
  %v539 = vadd.f32 %v471, %v476
  %v540 = vadd.f32 %v472, %v476
  %v541 = vadd.f32 %v473, %v476
  %v542 = vmax.f32 %v478, 0.0
  %v543 = vmax.f32 %v479, 0.0
  %v544 = vmax.f32 %v480, 0.0
  %v545 = vmax.f32 %v481, 0.0
  %v546 = vmax.f32 %v482, 0.0
  %v547 = vmax.f32 %v483, 0.0
  %v548 = vmax.f32 %v484, 0.0
  %v549 = vmax.f32 %v485, 0.0
  %v550 = vmax.f32 %v486, 0.0
  %v551 = vmax.f32 %v487, 0.0
  %v552 = vmax.f32 %v488, 0.0
  %v553 = vmax.f32 %v489, 0.0
  %v554 = vmax.f32 %v490, 0.0
  %v555 = vmax.f32 %v491, 0.0
  %v556 = vmax.f32 %v492, 0.0
  %v557 = vmax.f32 %v493, 0.0
  %v558 = vmax.f32 %v494, 0.0
  %v559 = vmax.f32 %v495, 0.0
  %v560 = vmax.f32 %v496, 0.0
  %v561 = vmax.f32 %v497, 0.0
  %v562 = vmax.f32 %v498, 0.0
  %v563 = vmax.f32 %v499, 0.0
  %v564 = vmax.f32 %v500, 0.0
  %v565 = vmax.f32 %v501, 0.0
  %v566 = vmax.f32 %v502, 0.0
  %v567 = vmax.f32 %v503, 0.0
  %v568 = vmax.f32 %v504, 0.0
  %v569 = vmax.f32 %v505, 0.0
  %v570 = vmax.f32 %v506, 0.0
  %v571 = vmax.f32 %v507, 0.0
  %v572 = vmax.f32 %v508, 0.0
  %v573 = vmax.f32 %v509, 0.0
  %v574 = vmax.f32 %v510, 0.0
  %v575 = vmax.f32 %v511, 0.0
  %v576 = vmax.f32 %v512, 0.0
  %v577 = vmax.f32 %v513, 0.0
  %v578 = vmax.f32 %v514, 0.0
  %v579 = vmax.f32 %v515, 0.0
  %v580 = vmax.f32 %v516, 0.0
  %v581 = vmax.f32 %v517, 0.0
  %v582 = vmax.f32 %v518, 0.0
  %v583 = vmax.f32 %v519, 0.0
  %v584 = vmax.f32 %v520, 0.0
  %v585 = vmax.f32 %v521, 0.0
  %v586 = vmax.f32 %v522, 0.0
  %v587 = vmax.f32 %v523, 0.0
  %v588 = vmax.f32 %v524, 0.0
  %v589 = vmax.f32 %v525, 0.0
  %v590 = vmax.f32 %v526, 0.0
  %v591 = vmax.f32 %v527, 0.0
  %v592 = vmax.f32 %v528, 0.0
  %v593 = vmax.f32 %v529, 0.0
  %v594 = vmax.f32 %v530, 0.0
  %v595 = vmax.f32 %v531, 0.0
  %v596 = vmax.f32 %v532, 0.0
  %v597 = vmax.f32 %v533, 0.0
  %v598 = vmax.f32 %v534, 0.0
  %v599 = vmax.f32 %v535, 0.0
  %v600 = vmax.f32 %v536, 0.0
  %v601 = vmax.f32 %v537, 0.0
  %v602 = vmax.f32 %v538, 0.0
  %v603 = vmax.f32 %v539, 0.0
  %v604 = vmax.f32 %v540, 0.0
  %v605 = vmax.f32 %v541, 0.0
  %v606 = vpack.c.bf16 %v543, %v542
  %v607 = vpack.c.bf16 %v545, %v544
  %v608 = vpack.c.bf16 %v547, %v546
  %v609 = vpack.c.bf16 %v549, %v548
  %v610 = vpack.c.bf16 %v551, %v550
  %v611 = vpack.c.bf16 %v553, %v552
  %v612 = vpack.c.bf16 %v555, %v554
  %v613 = vpack.c.bf16 %v557, %v556
  %v614 = vpack.c.bf16 %v559, %v558
  %v615 = vpack.c.bf16 %v561, %v560
  %v616 = vpack.c.bf16 %v563, %v562
  %v617 = vpack.c.bf16 %v565, %v564
  %v618 = vpack.c.bf16 %v567, %v566
  %v619 = vpack.c.bf16 %v569, %v568
  %v620 = vpack.c.bf16 %v571, %v570
  %v621 = vpack.c.bf16 %v573, %v572
  %v622 = vpack.c.bf16 %v575, %v574
  %v623 = vpack.c.bf16 %v577, %v576
  %v624 = vpack.c.bf16 %v579, %v578
  %v625 = vpack.c.bf16 %v581, %v580
  %v626 = vpack.c.bf16 %v583, %v582
  %v627 = vpack.c.bf16 %v585, %v584
  %v628 = vpack.c.bf16 %v587, %v586
  %v629 = vpack.c.bf16 %v589, %v588
  %v630 = vpack.c.bf16 %v591, %v590
  %v631 = vpack.c.bf16 %v593, %v592
  %v632 = vpack.c.bf16 %v595, %v594
  %v633 = vpack.c.bf16 %v597, %v596
  %v634 = vpack.c.bf16 %v599, %v598
  %v635 = vpack.c.bf16 %v601, %v600
  %v636 = vpack.c.bf16 %v603, %v602
  %v637 = vpack.c.bf16 %v605, %v604
  %v638 = vld [vmem:[%s10] sm:$0x3]
  %vm639 = vcmask 31744
  %v641 = vsel %vm639, %v606, 0
  %v644 = vsel %vm639, %v607, 0
  %v647 = vsel %vm639, %v608, 0
  %v650 = vsel %vm639, %v609, 0
  %v653 = vsel %vm639, %v610, 0
  %v656 = vsel %vm639, %v611, 0
  %v659 = vsel %vm639, %v612, 0
  %v662 = vsel %vm639, %v613, 0
  %v665 = vsel %vm639, %v614, 0
  %v668 = vsel %vm639, %v615, 0
  %v671 = vsel %vm639, %v616, 0
  %v674 = vsel %vm639, %v617, 0
  %v677 = vsel %vm639, %v618, 0
  %v680 = vsel %vm639, %v619, 0
  %v683 = vsel %vm639, %v620, 0
  %v686 = vsel %vm639, %v621, 0
  %v689 = vsel %vm639, %v622, 0
  %v692 = vsel %vm639, %v623, 0
  %v695 = vsel %vm639, %v624, 0
  %v698 = vsel %vm639, %v625, 0
  %v701 = vsel %vm639, %v626, 0
  %v704 = vsel %vm639, %v627, 0
  %v707 = vsel %vm639, %v628, 0
  %v710 = vsel %vm639, %v629, 0
  %v713 = vsel %vm639, %v630, 0
  %v716 = vsel %vm639, %v631, 0
  %v719 = vsel %vm639, %v632, 0
  %v722 = vsel %vm639, %v633, 0
  %v725 = vsel %vm639, %v634, 0
  %v728 = vsel %vm639, %v635, 0
  %v731 = vsel %vm639, %v636, 0
  %v734 = vsel %vm639, %v637, 0
  %vm736 = vcmask 1041408
  %v738 = vsel %vm736, %v638, 0
  %740 = vmatpush.bf16.msra.mxu0 0
  %741 = vmatpush.bf16.msra.mxu0 0
  %742 = vmatpush.bf16.msra.mxu0 0
  %743 = vmatpush.bf16.msra.mxu0 0
  %744 = vmatpush.bf16.msra.mxu0 0
  %745 = vmatpush.bf16.msra.mxu0 0
  %746 = vmatpush.bf16.msra.mxu0 0
  %747 = vmatpush.bf16.msra.mxu0 %v738
  %748 = vmatmul.bf16.gmra.mxu0 %v641
  %v749 = vpop.f32.mrf.mxu0
  %v750 = vadd.f32 0.0, %v749
  %v751 = vpop.f32.mrf.mxu0
  %v752 = vadd.f32 0.0, %v751
  %753 = vmatmul.bf16.gmra.mxu0 %v644
  %v754 = vpop.f32.mrf.mxu0
  %v755 = vadd.f32 0.0, %v754
  %v756 = vpop.f32.mrf.mxu0
  %v757 = vadd.f32 0.0, %v756
  %758 = vmatmul.bf16.gmra.mxu0 %v647
  %v759 = vpop.f32.mrf.mxu0
  %v760 = vadd.f32 0.0, %v759
  %v761 = vpop.f32.mrf.mxu0
  %v762 = vadd.f32 0.0, %v761
  %763 = vmatmul.bf16.gmra.mxu0 %v650
  %v764 = vpop.f32.mrf.mxu0
  %v765 = vadd.f32 0.0, %v764
  %v766 = vpop.f32.mrf.mxu0
  %v767 = vadd.f32 0.0, %v766
  %768 = vmatmul.bf16.gmra.mxu0 %v653
  %v769 = vpop.f32.mrf.mxu0
  %v770 = vadd.f32 0.0, %v769
  %v771 = vpop.f32.mrf.mxu0
  %v772 = vadd.f32 0.0, %v771
  %773 = vmatmul.bf16.gmra.mxu0 %v656
  %v774 = vpop.f32.mrf.mxu0
  %v775 = vadd.f32 0.0, %v774
  %v776 = vpop.f32.mrf.mxu0
  %v777 = vadd.f32 0.0, %v776
  %778 = vmatmul.bf16.gmra.mxu0 %v659
  %v779 = vpop.f32.mrf.mxu0
  %v780 = vadd.f32 0.0, %v779
  %v781 = vpop.f32.mrf.mxu0
  %v782 = vadd.f32 0.0, %v781
  %783 = vmatmul.bf16.gmra.mxu0 %v662
  %v784 = vpop.f32.mrf.mxu0
  %v785 = vadd.f32 0.0, %v784
  %v786 = vpop.f32.mrf.mxu0
  %v787 = vadd.f32 0.0, %v786
  %788 = vmatmul.bf16.gmra.mxu0 %v665
  %v789 = vpop.f32.mrf.mxu0
  %v790 = vadd.f32 0.0, %v789
  %v791 = vpop.f32.mrf.mxu0
  %v792 = vadd.f32 0.0, %v791
  %793 = vmatmul.bf16.gmra.mxu0 %v668
  %v794 = vpop.f32.mrf.mxu0
  %v795 = vadd.f32 0.0, %v794
  %v796 = vpop.f32.mrf.mxu0
  %v797 = vadd.f32 0.0, %v796
  %798 = vmatmul.bf16.gmra.mxu0 %v671
  %v799 = vpop.f32.mrf.mxu0
  %v800 = vadd.f32 0.0, %v799
  %v801 = vpop.f32.mrf.mxu0
  %v802 = vadd.f32 0.0, %v801
  %803 = vmatmul.bf16.gmra.mxu0 %v674
  %v804 = vpop.f32.mrf.mxu0
  %v805 = vadd.f32 0.0, %v804
  %v806 = vpop.f32.mrf.mxu0
  %v807 = vadd.f32 0.0, %v806
  %808 = vmatmul.bf16.gmra.mxu0 %v677
  %v809 = vpop.f32.mrf.mxu0
  %v810 = vadd.f32 0.0, %v809
  %v811 = vpop.f32.mrf.mxu0
  %v812 = vadd.f32 0.0, %v811
  %813 = vmatmul.bf16.gmra.mxu0 %v680
  %v814 = vpop.f32.mrf.mxu0
  %v815 = vadd.f32 0.0, %v814
  %v816 = vpop.f32.mrf.mxu0
  %v817 = vadd.f32 0.0, %v816
  %818 = vmatmul.bf16.gmra.mxu0 %v683
  %v819 = vpop.f32.mrf.mxu0
  %v820 = vadd.f32 0.0, %v819
  %v821 = vpop.f32.mrf.mxu0
  %v822 = vadd.f32 0.0, %v821
  %823 = vmatmul.bf16.gmra.mxu0 %v686
  %v824 = vpop.f32.mrf.mxu0
  %v825 = vadd.f32 0.0, %v824
  %v826 = vpop.f32.mrf.mxu0
  %v827 = vadd.f32 0.0, %v826
  %828 = vmatmul.bf16.gmra.mxu0 %v689
  %v829 = vpop.f32.mrf.mxu0
  %v830 = vadd.f32 0.0, %v829
  %v831 = vpop.f32.mrf.mxu0
  %v832 = vadd.f32 0.0, %v831
  %833 = vmatmul.bf16.gmra.mxu0 %v692
  %v834 = vpop.f32.mrf.mxu0
  %v835 = vadd.f32 0.0, %v834
  %v836 = vpop.f32.mrf.mxu0
  %v837 = vadd.f32 0.0, %v836
  %838 = vmatmul.bf16.gmra.mxu0 %v695
  %v839 = vpop.f32.mrf.mxu0
  %v840 = vadd.f32 0.0, %v839
  %v841 = vpop.f32.mrf.mxu0
  %v842 = vadd.f32 0.0, %v841
  %843 = vmatmul.bf16.gmra.mxu0 %v698
  %v844 = vpop.f32.mrf.mxu0
  %v845 = vadd.f32 0.0, %v844
  %v846 = vpop.f32.mrf.mxu0
  %v847 = vadd.f32 0.0, %v846
  %848 = vmatmul.bf16.gmra.mxu0 %v701
  %v849 = vpop.f32.mrf.mxu0
  %v850 = vadd.f32 0.0, %v849
  %v851 = vpop.f32.mrf.mxu0
  %v852 = vadd.f32 0.0, %v851
  %853 = vmatmul.bf16.gmra.mxu0 %v704
  %v854 = vpop.f32.mrf.mxu0
  %v855 = vadd.f32 0.0, %v854
  %v856 = vpop.f32.mrf.mxu0
  %v857 = vadd.f32 0.0, %v856
  %858 = vmatmul.bf16.gmra.mxu0 %v707
  %v859 = vpop.f32.mrf.mxu0
  %v860 = vadd.f32 0.0, %v859
  %v861 = vpop.f32.mrf.mxu0
  %v862 = vadd.f32 0.0, %v861
  %863 = vmatmul.bf16.gmra.mxu0 %v710
  %v864 = vpop.f32.mrf.mxu0
  %v865 = vadd.f32 0.0, %v864
  %v866 = vpop.f32.mrf.mxu0
  %v867 = vadd.f32 0.0, %v866
  %868 = vmatmul.bf16.gmra.mxu0 %v713
  %v869 = vpop.f32.mrf.mxu0
  %v870 = vadd.f32 0.0, %v869
  %v871 = vpop.f32.mrf.mxu0
  %v872 = vadd.f32 0.0, %v871
  %873 = vmatmul.bf16.gmra.mxu0 %v716
  %v874 = vpop.f32.mrf.mxu0
  %v875 = vadd.f32 0.0, %v874
  %v876 = vpop.f32.mrf.mxu0
  %v877 = vadd.f32 0.0, %v876
  %878 = vmatmul.bf16.gmra.mxu0 %v719
  %v879 = vpop.f32.mrf.mxu0
  %v880 = vadd.f32 0.0, %v879
  %v881 = vpop.f32.mrf.mxu0
  %v882 = vadd.f32 0.0, %v881
  %883 = vmatmul.bf16.gmra.mxu0 %v722
  %v884 = vpop.f32.mrf.mxu0
  %v885 = vadd.f32 0.0, %v884
  %v886 = vpop.f32.mrf.mxu0
  %v887 = vadd.f32 0.0, %v886
  %888 = vmatmul.bf16.gmra.mxu0 %v725
  %v889 = vpop.f32.mrf.mxu0
  %v890 = vadd.f32 0.0, %v889
  %v891 = vpop.f32.mrf.mxu0
  %v892 = vadd.f32 0.0, %v891
  %893 = vmatmul.bf16.gmra.mxu0 %v728
  %v894 = vpop.f32.mrf.mxu0
  %v895 = vadd.f32 0.0, %v894
  %v896 = vpop.f32.mrf.mxu0
  %v897 = vadd.f32 0.0, %v896
  %898 = vmatmul.bf16.gmra.mxu0 %v731
  %v899 = vpop.f32.mrf.mxu0
  %v900 = vadd.f32 0.0, %v899
  %v901 = vpop.f32.mrf.mxu0
  %v902 = vadd.f32 0.0, %v901
  %903 = vmatmul.bf16.gmra.mxu0 %v734
  %v904 = vpop.f32.mrf.mxu0
  %v905 = vadd.f32 0.0, %v904
  %v906 = vpop.f32.mrf.mxu0
  %v907 = vadd.f32 0.0, %v906
  %908 = vdwg.mxu0
  %v910 = vsel %vm639, %v309, 0
  %v913 = vsel %vm639, %v310, 0
  %v916 = vsel %vm639, %v311, 0
  %v919 = vsel %vm639, %v312, 0
  %v922 = vsel %vm639, %v313, 0
  %v925 = vsel %vm639, %v314, 0
  %v928 = vsel %vm639, %v315, 0
  %v931 = vsel %vm639, %v316, 0
  %v934 = vsel %vm639, %v317, 0
  %v937 = vsel %vm639, %v318, 0
  %v940 = vsel %vm639, %v319, 0
  %v943 = vsel %vm639, %v320, 0
  %v946 = vsel %vm639, %v321, 0
  %v949 = vsel %vm639, %v322, 0
  %v952 = vsel %vm639, %v323, 0
  %v955 = vsel %vm639, %v324, 0
  %v958 = vsel %vm639, %v325, 0
  %v961 = vsel %vm639, %v326, 0
  %v964 = vsel %vm639, %v327, 0
  %v967 = vsel %vm639, %v328, 0
  %v970 = vsel %vm639, %v329, 0
  %v973 = vsel %vm639, %v330, 0
  %v976 = vsel %vm639, %v331, 0
  %v979 = vsel %vm639, %v332, 0
  %v982 = vsel %vm639, %v333, 0
  %v985 = vsel %vm639, %v334, 0
  %v988 = vsel %vm639, %v335, 0
  %v991 = vsel %vm639, %v336, 0
  %v994 = vsel %vm639, %v337, 0
  %v997 = vsel %vm639, %v338, 0
  %v1000 = vsel %vm639, %v339, 0
  %v1003 = vsel %vm639, %v340, 0
  %v1006 = vsel %vm736, %v341, 0
  %1008 = vmatpush.bf16.msra.mxu0 0
  %1009 = vmatpush.bf16.msra.mxu0 0
  %1010 = vmatpush.bf16.msra.mxu0 0
  %1011 = vmatpush.bf16.msra.mxu0 0
  %1012 = vmatpush.bf16.msra.mxu0 0
  %1013 = vmatpush.bf16.msra.mxu0 0
  %1014 = vmatpush.bf16.msra.mxu0 0
  %1015 = vmatpush.bf16.msra.mxu0 %v1006
  %1016 = vmatmul.bf16.gmra.mxu0 %v910
  %v1017 = vpop.f32.mrf.mxu0
  %v1018 = vadd.f32 %v750, %v1017
  %v1019 = vpop.f32.mrf.mxu0
  %v1020 = vadd.f32 %v752, %v1019
  %1021 = vmatmul.bf16.gmra.mxu0 %v913
  %v1022 = vpop.f32.mrf.mxu0
  %v1023 = vadd.f32 %v755, %v1022
  %v1024 = vpop.f32.mrf.mxu0
  %v1025 = vadd.f32 %v757, %v1024
  %1026 = vmatmul.bf16.gmra.mxu0 %v916
  %v1027 = vpop.f32.mrf.mxu0
  %v1028 = vadd.f32 %v760, %v1027
  %v1029 = vpop.f32.mrf.mxu0
  %v1030 = vadd.f32 %v762, %v1029
  %1031 = vmatmul.bf16.gmra.mxu0 %v919
  %v1032 = vpop.f32.mrf.mxu0
  %v1033 = vadd.f32 %v765, %v1032
  %v1034 = vpop.f32.mrf.mxu0
  %v1035 = vadd.f32 %v767, %v1034
  %1036 = vmatmul.bf16.gmra.mxu0 %v922
  %v1037 = vpop.f32.mrf.mxu0
  %v1038 = vadd.f32 %v770, %v1037
  %v1039 = vpop.f32.mrf.mxu0
  %v1040 = vadd.f32 %v772, %v1039
  %1041 = vmatmul.bf16.gmra.mxu0 %v925
  %v1042 = vpop.f32.mrf.mxu0
  %v1043 = vadd.f32 %v775, %v1042
  %v1044 = vpop.f32.mrf.mxu0
  %v1045 = vadd.f32 %v777, %v1044
  %1046 = vmatmul.bf16.gmra.mxu0 %v928
  %v1047 = vpop.f32.mrf.mxu0
  %v1048 = vadd.f32 %v780, %v1047
  %v1049 = vpop.f32.mrf.mxu0
  %v1050 = vadd.f32 %v782, %v1049
  %1051 = vmatmul.bf16.gmra.mxu0 %v931
  %v1052 = vpop.f32.mrf.mxu0
  %v1053 = vadd.f32 %v785, %v1052
  %v1054 = vpop.f32.mrf.mxu0
  %v1055 = vadd.f32 %v787, %v1054
  %1056 = vmatmul.bf16.gmra.mxu0 %v934
  %v1057 = vpop.f32.mrf.mxu0
  %v1058 = vadd.f32 %v790, %v1057
  %v1059 = vpop.f32.mrf.mxu0
  %v1060 = vadd.f32 %v792, %v1059
  %1061 = vmatmul.bf16.gmra.mxu0 %v937
  %v1062 = vpop.f32.mrf.mxu0
  %v1063 = vadd.f32 %v795, %v1062
  %v1064 = vpop.f32.mrf.mxu0
  %v1065 = vadd.f32 %v797, %v1064
  %1066 = vmatmul.bf16.gmra.mxu0 %v940
  %v1067 = vpop.f32.mrf.mxu0
  %v1068 = vadd.f32 %v800, %v1067
  %v1069 = vpop.f32.mrf.mxu0
  %v1070 = vadd.f32 %v802, %v1069
  %1071 = vmatmul.bf16.gmra.mxu0 %v943
  %v1072 = vpop.f32.mrf.mxu0
  %v1073 = vadd.f32 %v805, %v1072
  %v1074 = vpop.f32.mrf.mxu0
  %v1075 = vadd.f32 %v807, %v1074
  %1076 = vmatmul.bf16.gmra.mxu0 %v946
  %v1077 = vpop.f32.mrf.mxu0
  %v1078 = vadd.f32 %v810, %v1077
  %v1079 = vpop.f32.mrf.mxu0
  %v1080 = vadd.f32 %v812, %v1079
  %1081 = vmatmul.bf16.gmra.mxu0 %v949
  %v1082 = vpop.f32.mrf.mxu0
  %v1083 = vadd.f32 %v815, %v1082
  %v1084 = vpop.f32.mrf.mxu0
  %v1085 = vadd.f32 %v817, %v1084
  %1086 = vmatmul.bf16.gmra.mxu0 %v952
  %v1087 = vpop.f32.mrf.mxu0
  %v1088 = vadd.f32 %v820, %v1087
  %v1089 = vpop.f32.mrf.mxu0
  %v1090 = vadd.f32 %v822, %v1089
  %1091 = vmatmul.bf16.gmra.mxu0 %v955
  %v1092 = vpop.f32.mrf.mxu0
  %v1093 = vadd.f32 %v825, %v1092
  %v1094 = vpop.f32.mrf.mxu0
  %v1095 = vadd.f32 %v827, %v1094
  %1096 = vmatmul.bf16.gmra.mxu0 %v958
  %v1097 = vpop.f32.mrf.mxu0
  %v1098 = vadd.f32 %v830, %v1097
  %v1099 = vpop.f32.mrf.mxu0
  %v1100 = vadd.f32 %v832, %v1099
  %1101 = vmatmul.bf16.gmra.mxu0 %v961
  %v1102 = vpop.f32.mrf.mxu0
  %v1103 = vadd.f32 %v835, %v1102
  %v1104 = vpop.f32.mrf.mxu0
  %v1105 = vadd.f32 %v837, %v1104
  %1106 = vmatmul.bf16.gmra.mxu0 %v964
  %v1107 = vpop.f32.mrf.mxu0
  %v1108 = vadd.f32 %v840, %v1107
  %v1109 = vpop.f32.mrf.mxu0
  %v1110 = vadd.f32 %v842, %v1109
  %1111 = vmatmul.bf16.gmra.mxu0 %v967
  %v1112 = vpop.f32.mrf.mxu0
  %v1113 = vadd.f32 %v845, %v1112
  %v1114 = vpop.f32.mrf.mxu0
  %v1115 = vadd.f32 %v847, %v1114
  %1116 = vmatmul.bf16.gmra.mxu0 %v970
  %v1117 = vpop.f32.mrf.mxu0
  %v1118 = vadd.f32 %v850, %v1117
  %v1119 = vpop.f32.mrf.mxu0
  %v1120 = vadd.f32 %v852, %v1119
  %1121 = vmatmul.bf16.gmra.mxu0 %v973
  %v1122 = vpop.f32.mrf.mxu0
  %v1123 = vadd.f32 %v855, %v1122
  %v1124 = vpop.f32.mrf.mxu0
  %v1125 = vadd.f32 %v857, %v1124
  %1126 = vmatmul.bf16.gmra.mxu0 %v976
  %v1127 = vpop.f32.mrf.mxu0
  %v1128 = vadd.f32 %v860, %v1127
  %v1129 = vpop.f32.mrf.mxu0
  %v1130 = vadd.f32 %v862, %v1129
  %1131 = vmatmul.bf16.gmra.mxu0 %v979
  %v1132 = vpop.f32.mrf.mxu0
  %v1133 = vadd.f32 %v865, %v1132
  %v1134 = vpop.f32.mrf.mxu0
  %v1135 = vadd.f32 %v867, %v1134
  %1136 = vmatmul.bf16.gmra.mxu0 %v982
  %v1137 = vpop.f32.mrf.mxu0
  %v1138 = vadd.f32 %v870, %v1137
  %v1139 = vpop.f32.mrf.mxu0
  %v1140 = vadd.f32 %v872, %v1139
  %1141 = vmatmul.bf16.gmra.mxu0 %v985
  %v1142 = vpop.f32.mrf.mxu0
  %v1143 = vadd.f32 %v875, %v1142
  %v1144 = vpop.f32.mrf.mxu0
  %v1145 = vadd.f32 %v877, %v1144
  %1146 = vmatmul.bf16.gmra.mxu0 %v988
  %v1147 = vpop.f32.mrf.mxu0
  %v1148 = vadd.f32 %v880, %v1147
  %v1149 = vpop.f32.mrf.mxu0
  %v1150 = vadd.f32 %v882, %v1149
  %1151 = vmatmul.bf16.gmra.mxu0 %v991
  %v1152 = vpop.f32.mrf.mxu0
  %v1153 = vadd.f32 %v885, %v1152
  %v1154 = vpop.f32.mrf.mxu0
  %v1155 = vadd.f32 %v887, %v1154
  %1156 = vmatmul.bf16.gmra.mxu0 %v994
  %v1157 = vpop.f32.mrf.mxu0
  %v1158 = vadd.f32 %v890, %v1157
  %v1159 = vpop.f32.mrf.mxu0
  %v1160 = vadd.f32 %v892, %v1159
  %1161 = vmatmul.bf16.gmra.mxu0 %v997
  %v1162 = vpop.f32.mrf.mxu0
  %v1163 = vadd.f32 %v895, %v1162
  %v1164 = vpop.f32.mrf.mxu0
  %v1165 = vadd.f32 %v897, %v1164
  %1166 = vmatmul.bf16.gmra.mxu0 %v1000
  %v1167 = vpop.f32.mrf.mxu0
  %v1168 = vadd.f32 %v900, %v1167
  %v1169 = vpop.f32.mrf.mxu0
  %v1170 = vadd.f32 %v902, %v1169
  %1171 = vmatmul.bf16.gmra.mxu0 %v1003
  %v1172 = vpop.f32.mrf.mxu0
  %v1173 = vadd.f32 %v905, %v1172
  %v1174 = vpop.f32.mrf.mxu0
  %v1175 = vadd.f32 %v907, %v1174
  %1176 = vdwg.mxu0
  %v1177 = vld [vmem:[%s2] sm:$0xff]
  %v1178 = vld [vmem:[%s2 + $0x8] sm:$0xff]
  %v1179 = vld [vmem:[%s2 + $0x10] sm:$0xff]
  %v1180 = vld [vmem:[%s2 + $0x18] sm:$0xff]
  %v1181 = vld [vmem:[%s2 + $0x20] sm:$0xff]
  %v1182 = vld [vmem:[%s2 + $0x28] sm:$0xff]
  %v1183 = vld [vmem:[%s2 + $0x30] sm:$0xff]
  %v1184 = vld [vmem:[%s2 + $0x38] sm:$0xff]
  %v1185 = vld [vmem:[%s2 + $0x40] sm:$0xff]
  %v1186 = vld [vmem:[%s2 + $0x48] sm:$0xff]
  %v1187 = vld [vmem:[%s2 + $0x50] sm:$0xff]
  %v1188 = vld [vmem:[%s2 + $0x58] sm:$0xff]
  %v1189 = vld [vmem:[%s2 + $0x60] sm:$0xff]
  %v1190 = vld [vmem:[%s2 + $0x68] sm:$0xff]
  %v1191 = vld [vmem:[%s2 + $0x70] sm:$0xff]
  %v1192 = vld [vmem:[%s2 + $0x78] sm:$0xff]
  %v1193 = vld [vmem:[%s2 + $0x80] sm:$0xff]
  %v1194 = vld [vmem:[%s2 + $0x88] sm:$0xff]
  %v1195 = vld [vmem:[%s2 + $0x90] sm:$0xff]
  %v1196 = vld [vmem:[%s2 + $0x98] sm:$0xff]
  %v1197 = vld [vmem:[%s2 + $0xa0] sm:$0xff]
  %v1198 = vld [vmem:[%s2 + $0xa8] sm:$0xff]
  %v1199 = vld [vmem:[%s2 + $0xb0] sm:$0xff]
  %v1200 = vld [vmem:[%s2 + $0xb8] sm:$0xff]
  %v1201 = vld [vmem:[%s2 + $0xc0] sm:$0xff]
  %v1202 = vld [vmem:[%s2 + $0xc8] sm:$0xff]
  %v1203 = vld [vmem:[%s2 + $0xd0] sm:$0xff]
  %v1204 = vld [vmem:[%s2 + $0xd8] sm:$0xff]
  %v1205 = vld [vmem:[%s2 + $0xe0] sm:$0xff]
  %v1206 = vld [vmem:[%s2 + $0xe8] sm:$0xff]
  %v1207 = vld [vmem:[%s2 + $0xf0] sm:$0xff]
  %v1208 = vld [vmem:[%s2 + $0xf8] sm:$0xff]
  %v1209 = vld [vmem:[%s2 + $0x100] sm:$0xff]
  %v1210 = vld [vmem:[%s2 + $0x108] sm:$0xff]
  %v1211 = vld [vmem:[%s2 + $0x110] sm:$0xff]
  %v1212 = vld [vmem:[%s2 + $0x118] sm:$0xff]
  %v1213 = vld [vmem:[%s2 + $0x120] sm:$0xff]
  %v1214 = vld [vmem:[%s2 + $0x128] sm:$0xff]
  %v1215 = vld [vmem:[%s2 + $0x130] sm:$0xff]
  %v1216 = vld [vmem:[%s2 + $0x138] sm:$0xff]
  %v1217 = vld [vmem:[%s2 + $0x140] sm:$0xff]
  %v1218 = vld [vmem:[%s2 + $0x148] sm:$0xff]
  %v1219 = vld [vmem:[%s2 + $0x150] sm:$0xff]
  %v1220 = vld [vmem:[%s2 + $0x158] sm:$0xff]
  %v1221 = vld [vmem:[%s2 + $0x160] sm:$0xff]
  %v1222 = vld [vmem:[%s2 + $0x168] sm:$0xff]
  %v1223 = vld [vmem:[%s2 + $0x170] sm:$0xff]
  %v1224 = vld [vmem:[%s2 + $0x178] sm:$0xff]
  %v1225 = vld [vmem:[%s2 + $0x180] sm:$0xff]
  %v1226 = vld [vmem:[%s2 + $0x188] sm:$0xff]
  %v1227 = vld [vmem:[%s2 + $0x190] sm:$0xff]
  %v1228 = vld [vmem:[%s2 + $0x198] sm:$0xff]
  %v1229 = vld [vmem:[%s2 + $0x1a0] sm:$0xff]
  %v1230 = vld [vmem:[%s2 + $0x1a8] sm:$0xff]
  %v1231 = vld [vmem:[%s2 + $0x1b0] sm:$0xff]
  %v1232 = vld [vmem:[%s2 + $0x1b8] sm:$0xff]
  %v1233 = vld [vmem:[%s2 + $0x1c0] sm:$0xff]
  %v1234 = vld [vmem:[%s2 + $0x1c8] sm:$0xff]
  %v1235 = vld [vmem:[%s2 + $0x1d0] sm:$0xff]
  %v1236 = vld [vmem:[%s2 + $0x1d8] sm:$0xff]
  %v1237 = vld [vmem:[%s2 + $0x1e0] sm:$0xff]
  %v1238 = vld [vmem:[%s2 + $0x1e8] sm:$0xff]
  %v1239 = vld [vmem:[%s2 + $0x1f0] sm:$0xff]
  %v1240 = vld [vmem:[%s2 + $0x1f8] sm:$0xff]
  %v1241 = vld [vmem:[%s5] sm:$0x1]
  %v1243 = vperm.slane %v1241, 0
  %v1245 = vmul.f32 %v1177, %v1243
  %v1246 = vmul.f32 %v1178, %v1243
  %v1247 = vmul.f32 %v1179, %v1243
  %v1248 = vmul.f32 %v1180, %v1243
  %v1249 = vmul.f32 %v1181, %v1243
  %v1250 = vmul.f32 %v1182, %v1243
  %v1251 = vmul.f32 %v1183, %v1243
  %v1252 = vmul.f32 %v1184, %v1243
  %v1253 = vmul.f32 %v1185, %v1243
  %v1254 = vmul.f32 %v1186, %v1243
  %v1255 = vmul.f32 %v1187, %v1243
  %v1256 = vmul.f32 %v1188, %v1243
  %v1257 = vmul.f32 %v1189, %v1243
  %v1258 = vmul.f32 %v1190, %v1243
  %v1259 = vmul.f32 %v1191, %v1243
  %v1260 = vmul.f32 %v1192, %v1243
  %v1261 = vmul.f32 %v1193, %v1243
  %v1262 = vmul.f32 %v1194, %v1243
  %v1263 = vmul.f32 %v1195, %v1243
  %v1264 = vmul.f32 %v1196, %v1243
  %v1265 = vmul.f32 %v1197, %v1243
  %v1266 = vmul.f32 %v1198, %v1243
  %v1267 = vmul.f32 %v1199, %v1243
  %v1268 = vmul.f32 %v1200, %v1243
  %v1269 = vmul.f32 %v1201, %v1243
  %v1270 = vmul.f32 %v1202, %v1243
  %v1271 = vmul.f32 %v1203, %v1243
  %v1272 = vmul.f32 %v1204, %v1243
  %v1273 = vmul.f32 %v1205, %v1243
  %v1274 = vmul.f32 %v1206, %v1243
  %v1275 = vmul.f32 %v1207, %v1243
  %v1276 = vmul.f32 %v1208, %v1243
  %v1277 = vmul.f32 %v1209, %v1243
  %v1278 = vmul.f32 %v1210, %v1243
  %v1279 = vmul.f32 %v1211, %v1243
  %v1280 = vmul.f32 %v1212, %v1243
  %v1281 = vmul.f32 %v1213, %v1243
  %v1282 = vmul.f32 %v1214, %v1243
  %v1283 = vmul.f32 %v1215, %v1243
  %v1284 = vmul.f32 %v1216, %v1243
  %v1285 = vmul.f32 %v1217, %v1243
  %v1286 = vmul.f32 %v1218, %v1243
  %v1287 = vmul.f32 %v1219, %v1243
  %v1288 = vmul.f32 %v1220, %v1243
  %v1289 = vmul.f32 %v1221, %v1243
  %v1290 = vmul.f32 %v1222, %v1243
  %v1291 = vmul.f32 %v1223, %v1243
  %v1292 = vmul.f32 %v1224, %v1243
  %v1293 = vmul.f32 %v1225, %v1243
  %v1294 = vmul.f32 %v1226, %v1243
  %v1295 = vmul.f32 %v1227, %v1243
  %v1296 = vmul.f32 %v1228, %v1243
  %v1297 = vmul.f32 %v1229, %v1243
  %v1298 = vmul.f32 %v1230, %v1243
  %v1299 = vmul.f32 %v1231, %v1243
  %v1300 = vmul.f32 %v1232, %v1243
  %v1301 = vmul.f32 %v1233, %v1243
  %v1302 = vmul.f32 %v1234, %v1243
  %v1303 = vmul.f32 %v1235, %v1243
  %v1304 = vmul.f32 %v1236, %v1243
  %v1305 = vmul.f32 %v1237, %v1243
  %v1306 = vmul.f32 %v1238, %v1243
  %v1307 = vmul.f32 %v1239, %v1243
  %v1308 = vmul.f32 %v1240, %v1243
  %v1309 = vld [vmem:[%s8] sm:$0x1]
  %v1311 = vperm.slane %v1309, 0
  %v1313 = vadd.f32 %v1245, %v1311
  %v1314 = vadd.f32 %v1246, %v1311
  %v1315 = vadd.f32 %v1247, %v1311
  %v1316 = vadd.f32 %v1248, %v1311
  %v1317 = vadd.f32 %v1249, %v1311
  %v1318 = vadd.f32 %v1250, %v1311
  %v1319 = vadd.f32 %v1251, %v1311
  %v1320 = vadd.f32 %v1252, %v1311
  %v1321 = vadd.f32 %v1253, %v1311
  %v1322 = vadd.f32 %v1254, %v1311
  %v1323 = vadd.f32 %v1255, %v1311
  %v1324 = vadd.f32 %v1256, %v1311
  %v1325 = vadd.f32 %v1257, %v1311
  %v1326 = vadd.f32 %v1258, %v1311
  %v1327 = vadd.f32 %v1259, %v1311
  %v1328 = vadd.f32 %v1260, %v1311
  %v1329 = vadd.f32 %v1261, %v1311
  %v1330 = vadd.f32 %v1262, %v1311
  %v1331 = vadd.f32 %v1263, %v1311
  %v1332 = vadd.f32 %v1264, %v1311
  %v1333 = vadd.f32 %v1265, %v1311
  %v1334 = vadd.f32 %v1266, %v1311
  %v1335 = vadd.f32 %v1267, %v1311
  %v1336 = vadd.f32 %v1268, %v1311
  %v1337 = vadd.f32 %v1269, %v1311
  %v1338 = vadd.f32 %v1270, %v1311
  %v1339 = vadd.f32 %v1271, %v1311
  %v1340 = vadd.f32 %v1272, %v1311
  %v1341 = vadd.f32 %v1273, %v1311
  %v1342 = vadd.f32 %v1274, %v1311
  %v1343 = vadd.f32 %v1275, %v1311
  %v1344 = vadd.f32 %v1276, %v1311
  %v1345 = vadd.f32 %v1277, %v1311
  %v1346 = vadd.f32 %v1278, %v1311
  %v1347 = vadd.f32 %v1279, %v1311
  %v1348 = vadd.f32 %v1280, %v1311
  %v1349 = vadd.f32 %v1281, %v1311
  %v1350 = vadd.f32 %v1282, %v1311
  %v1351 = vadd.f32 %v1283, %v1311
  %v1352 = vadd.f32 %v1284, %v1311
  %v1353 = vadd.f32 %v1285, %v1311
  %v1354 = vadd.f32 %v1286, %v1311
  %v1355 = vadd.f32 %v1287, %v1311
  %v1356 = vadd.f32 %v1288, %v1311
  %v1357 = vadd.f32 %v1289, %v1311
  %v1358 = vadd.f32 %v1290, %v1311
  %v1359 = vadd.f32 %v1291, %v1311
  %v1360 = vadd.f32 %v1292, %v1311
  %v1361 = vadd.f32 %v1293, %v1311
  %v1362 = vadd.f32 %v1294, %v1311
  %v1363 = vadd.f32 %v1295, %v1311
  %v1364 = vadd.f32 %v1296, %v1311
  %v1365 = vadd.f32 %v1297, %v1311
  %v1366 = vadd.f32 %v1298, %v1311
  %v1367 = vadd.f32 %v1299, %v1311
  %v1368 = vadd.f32 %v1300, %v1311
  %v1369 = vadd.f32 %v1301, %v1311
  %v1370 = vadd.f32 %v1302, %v1311
  %v1371 = vadd.f32 %v1303, %v1311
  %v1372 = vadd.f32 %v1304, %v1311
  %v1373 = vadd.f32 %v1305, %v1311
  %v1374 = vadd.f32 %v1306, %v1311
  %v1375 = vadd.f32 %v1307, %v1311
  %v1376 = vadd.f32 %v1308, %v1311
  %v1377 = vmax.f32 %v1313, 0.0
  %v1378 = vmax.f32 %v1314, 0.0
  %v1379 = vmax.f32 %v1315, 0.0
  %v1380 = vmax.f32 %v1316, 0.0
  %v1381 = vmax.f32 %v1317, 0.0
  %v1382 = vmax.f32 %v1318, 0.0
  %v1383 = vmax.f32 %v1319, 0.0
  %v1384 = vmax.f32 %v1320, 0.0
  %v1385 = vmax.f32 %v1321, 0.0
  %v1386 = vmax.f32 %v1322, 0.0
  %v1387 = vmax.f32 %v1323, 0.0
  %v1388 = vmax.f32 %v1324, 0.0
  %v1389 = vmax.f32 %v1325, 0.0
  %v1390 = vmax.f32 %v1326, 0.0
  %v1391 = vmax.f32 %v1327, 0.0
  %v1392 = vmax.f32 %v1328, 0.0
  %v1393 = vmax.f32 %v1329, 0.0
  %v1394 = vmax.f32 %v1330, 0.0
  %v1395 = vmax.f32 %v1331, 0.0
  %v1396 = vmax.f32 %v1332, 0.0
  %v1397 = vmax.f32 %v1333, 0.0
  %v1398 = vmax.f32 %v1334, 0.0
  %v1399 = vmax.f32 %v1335, 0.0
  %v1400 = vmax.f32 %v1336, 0.0
  %v1401 = vmax.f32 %v1337, 0.0
  %v1402 = vmax.f32 %v1338, 0.0
  %v1403 = vmax.f32 %v1339, 0.0
  %v1404 = vmax.f32 %v1340, 0.0
  %v1405 = vmax.f32 %v1341, 0.0
  %v1406 = vmax.f32 %v1342, 0.0
  %v1407 = vmax.f32 %v1343, 0.0
  %v1408 = vmax.f32 %v1344, 0.0
  %v1409 = vmax.f32 %v1345, 0.0
  %v1410 = vmax.f32 %v1346, 0.0
  %v1411 = vmax.f32 %v1347, 0.0
  %v1412 = vmax.f32 %v1348, 0.0
  %v1413 = vmax.f32 %v1349, 0.0
  %v1414 = vmax.f32 %v1350, 0.0
  %v1415 = vmax.f32 %v1351, 0.0
  %v1416 = vmax.f32 %v1352, 0.0
  %v1417 = vmax.f32 %v1353, 0.0
  %v1418 = vmax.f32 %v1354, 0.0
  %v1419 = vmax.f32 %v1355, 0.0
  %v1420 = vmax.f32 %v1356, 0.0
  %v1421 = vmax.f32 %v1357, 0.0
  %v1422 = vmax.f32 %v1358, 0.0
  %v1423 = vmax.f32 %v1359, 0.0
  %v1424 = vmax.f32 %v1360, 0.0
  %v1425 = vmax.f32 %v1361, 0.0
  %v1426 = vmax.f32 %v1362, 0.0
  %v1427 = vmax.f32 %v1363, 0.0
  %v1428 = vmax.f32 %v1364, 0.0
  %v1429 = vmax.f32 %v1365, 0.0
  %v1430 = vmax.f32 %v1366, 0.0
  %v1431 = vmax.f32 %v1367, 0.0
  %v1432 = vmax.f32 %v1368, 0.0
  %v1433 = vmax.f32 %v1369, 0.0
  %v1434 = vmax.f32 %v1370, 0.0
  %v1435 = vmax.f32 %v1371, 0.0
  %v1436 = vmax.f32 %v1372, 0.0
  %v1437 = vmax.f32 %v1373, 0.0
  %v1438 = vmax.f32 %v1374, 0.0
  %v1439 = vmax.f32 %v1375, 0.0
  %v1440 = vmax.f32 %v1376, 0.0
  %v1441 = vpack.c.bf16 %v1378, %v1377
  %v1442 = vpack.c.bf16 %v1380, %v1379
  %v1443 = vpack.c.bf16 %v1382, %v1381
  %v1444 = vpack.c.bf16 %v1384, %v1383
  %v1445 = vpack.c.bf16 %v1386, %v1385
  %v1446 = vpack.c.bf16 %v1388, %v1387
  %v1447 = vpack.c.bf16 %v1390, %v1389
  %v1448 = vpack.c.bf16 %v1392, %v1391
  %v1449 = vpack.c.bf16 %v1394, %v1393
  %v1450 = vpack.c.bf16 %v1396, %v1395
  %v1451 = vpack.c.bf16 %v1398, %v1397
  %v1452 = vpack.c.bf16 %v1400, %v1399
  %v1453 = vpack.c.bf16 %v1402, %v1401
  %v1454 = vpack.c.bf16 %v1404, %v1403
  %v1455 = vpack.c.bf16 %v1406, %v1405
  %v1456 = vpack.c.bf16 %v1408, %v1407
  %v1457 = vpack.c.bf16 %v1410, %v1409
  %v1458 = vpack.c.bf16 %v1412, %v1411
  %v1459 = vpack.c.bf16 %v1414, %v1413
  %v1460 = vpack.c.bf16 %v1416, %v1415
  %v1461 = vpack.c.bf16 %v1418, %v1417
  %v1462 = vpack.c.bf16 %v1420, %v1419
  %v1463 = vpack.c.bf16 %v1422, %v1421
  %v1464 = vpack.c.bf16 %v1424, %v1423
  %v1465 = vpack.c.bf16 %v1426, %v1425
  %v1466 = vpack.c.bf16 %v1428, %v1427
  %v1467 = vpack.c.bf16 %v1430, %v1429
  %v1468 = vpack.c.bf16 %v1432, %v1431
  %v1469 = vpack.c.bf16 %v1434, %v1433
  %v1470 = vpack.c.bf16 %v1436, %v1435
  %v1471 = vpack.c.bf16 %v1438, %v1437
  %v1472 = vpack.c.bf16 %v1440, %v1439
  %v1473 = vld [vmem:[%s11] sm:$0x3]
  %v1475 = vsel %vm639, %v1441, 0
  %v1478 = vsel %vm639, %v1442, 0
  %v1481 = vsel %vm639, %v1443, 0
  %v1484 = vsel %vm639, %v1444, 0
  %v1487 = vsel %vm639, %v1445, 0
  %v1490 = vsel %vm639, %v1446, 0
  %v1493 = vsel %vm639, %v1447, 0
  %v1496 = vsel %vm639, %v1448, 0
  %v1499 = vsel %vm639, %v1449, 0
  %v1502 = vsel %vm639, %v1450, 0
  %v1505 = vsel %vm639, %v1451, 0
  %v1508 = vsel %vm639, %v1452, 0
  %v1511 = vsel %vm639, %v1453, 0
  %v1514 = vsel %vm639, %v1454, 0
  %v1517 = vsel %vm639, %v1455, 0
  %v1520 = vsel %vm639, %v1456, 0
  %v1523 = vsel %vm639, %v1457, 0
  %v1526 = vsel %vm639, %v1458, 0
  %v1529 = vsel %vm639, %v1459, 0
  %v1532 = vsel %vm639, %v1460, 0
  %v1535 = vsel %vm639, %v1461, 0
  %v1538 = vsel %vm639, %v1462, 0
  %v1541 = vsel %vm639, %v1463, 0
  %v1544 = vsel %vm639, %v1464, 0
  %v1547 = vsel %vm639, %v1465, 0
  %v1550 = vsel %vm639, %v1466, 0
  %v1553 = vsel %vm639, %v1467, 0
  %v1556 = vsel %vm639, %v1468, 0
  %v1559 = vsel %vm639, %v1469, 0
  %v1562 = vsel %vm639, %v1470, 0
  %v1565 = vsel %vm639, %v1471, 0
  %v1568 = vsel %vm639, %v1472, 0
  %v1571 = vsel %vm736, %v1473, 0
  %1573 = vmatpush.bf16.msra.mxu0 0
  %1574 = vmatpush.bf16.msra.mxu0 0
  %1575 = vmatpush.bf16.msra.mxu0 0
  %1576 = vmatpush.bf16.msra.mxu0 0
  %1577 = vmatpush.bf16.msra.mxu0 0
  %1578 = vmatpush.bf16.msra.mxu0 0
  %1579 = vmatpush.bf16.msra.mxu0 0
  %1580 = vmatpush.bf16.msra.mxu0 %v1571
  %1581 = vmatmul.bf16.gmra.mxu0 %v1475
  %v1582 = vpop.f32.mrf.mxu0
  %v1583 = vadd.f32 0.0, %v1582
  %v1584 = vpop.f32.mrf.mxu0
  %v1585 = vadd.f32 0.0, %v1584
  %1586 = vmatmul.bf16.gmra.mxu0 %v1478
  %v1587 = vpop.f32.mrf.mxu0
  %v1588 = vadd.f32 0.0, %v1587
  %v1589 = vpop.f32.mrf.mxu0
  %v1590 = vadd.f32 0.0, %v1589
  %1591 = vmatmul.bf16.gmra.mxu0 %v1481
  %v1592 = vpop.f32.mrf.mxu0
  %v1593 = vadd.f32 0.0, %v1592
  %v1594 = vpop.f32.mrf.mxu0
  %v1595 = vadd.f32 0.0, %v1594
  %1596 = vmatmul.bf16.gmra.mxu0 %v1484
  %v1597 = vpop.f32.mrf.mxu0
  %v1598 = vadd.f32 0.0, %v1597
  %v1599 = vpop.f32.mrf.mxu0
  %v1600 = vadd.f32 0.0, %v1599
  %1601 = vmatmul.bf16.gmra.mxu0 %v1487
  %v1602 = vpop.f32.mrf.mxu0
  %v1603 = vadd.f32 0.0, %v1602
  %v1604 = vpop.f32.mrf.mxu0
  %v1605 = vadd.f32 0.0, %v1604
  %1606 = vmatmul.bf16.gmra.mxu0 %v1490
  %v1607 = vpop.f32.mrf.mxu0
  %v1608 = vadd.f32 0.0, %v1607
  %v1609 = vpop.f32.mrf.mxu0
  %v1610 = vadd.f32 0.0, %v1609
  %1611 = vmatmul.bf16.gmra.mxu0 %v1493
  %v1612 = vpop.f32.mrf.mxu0
  %v1613 = vadd.f32 0.0, %v1612
  %v1614 = vpop.f32.mrf.mxu0
  %v1615 = vadd.f32 0.0, %v1614
  %1616 = vmatmul.bf16.gmra.mxu0 %v1496
  %v1617 = vpop.f32.mrf.mxu0
  %v1618 = vadd.f32 0.0, %v1617
  %v1619 = vpop.f32.mrf.mxu0
  %v1620 = vadd.f32 0.0, %v1619
  %1621 = vmatmul.bf16.gmra.mxu0 %v1499
  %v1622 = vpop.f32.mrf.mxu0
  %v1623 = vadd.f32 0.0, %v1622
  %v1624 = vpop.f32.mrf.mxu0
  %v1625 = vadd.f32 0.0, %v1624
  %1626 = vmatmul.bf16.gmra.mxu0 %v1502
  %v1627 = vpop.f32.mrf.mxu0
  %v1628 = vadd.f32 0.0, %v1627
  %v1629 = vpop.f32.mrf.mxu0
  %v1630 = vadd.f32 0.0, %v1629
  %1631 = vmatmul.bf16.gmra.mxu0 %v1505
  %v1632 = vpop.f32.mrf.mxu0
  %v1633 = vadd.f32 0.0, %v1632
  %v1634 = vpop.f32.mrf.mxu0
  %v1635 = vadd.f32 0.0, %v1634
  %1636 = vmatmul.bf16.gmra.mxu0 %v1508
  %v1637 = vpop.f32.mrf.mxu0
  %v1638 = vadd.f32 0.0, %v1637
  %v1639 = vpop.f32.mrf.mxu0
  %v1640 = vadd.f32 0.0, %v1639
  %1641 = vmatmul.bf16.gmra.mxu0 %v1511
  %v1642 = vpop.f32.mrf.mxu0
  %v1643 = vadd.f32 0.0, %v1642
  %v1644 = vpop.f32.mrf.mxu0
  %v1645 = vadd.f32 0.0, %v1644
  %1646 = vmatmul.bf16.gmra.mxu0 %v1514
  %v1647 = vpop.f32.mrf.mxu0
  %v1648 = vadd.f32 0.0, %v1647
  %v1649 = vpop.f32.mrf.mxu0
  %v1650 = vadd.f32 0.0, %v1649
  %1651 = vmatmul.bf16.gmra.mxu0 %v1517
  %v1652 = vpop.f32.mrf.mxu0
  %v1653 = vadd.f32 0.0, %v1652
  %v1654 = vpop.f32.mrf.mxu0
  %v1655 = vadd.f32 0.0, %v1654
  %1656 = vmatmul.bf16.gmra.mxu0 %v1520
  %v1657 = vpop.f32.mrf.mxu0
  %v1658 = vadd.f32 0.0, %v1657
  %v1659 = vpop.f32.mrf.mxu0
  %v1660 = vadd.f32 0.0, %v1659
  %1661 = vmatmul.bf16.gmra.mxu0 %v1523
  %v1662 = vpop.f32.mrf.mxu0
  %v1663 = vadd.f32 0.0, %v1662
  %v1664 = vpop.f32.mrf.mxu0
  %v1665 = vadd.f32 0.0, %v1664
  %1666 = vmatmul.bf16.gmra.mxu0 %v1526
  %v1667 = vpop.f32.mrf.mxu0
  %v1668 = vadd.f32 0.0, %v1667
  %v1669 = vpop.f32.mrf.mxu0
  %v1670 = vadd.f32 0.0, %v1669
  %1671 = vmatmul.bf16.gmra.mxu0 %v1529
  %v1672 = vpop.f32.mrf.mxu0
  %v1673 = vadd.f32 0.0, %v1672
  %v1674 = vpop.f32.mrf.mxu0
  %v1675 = vadd.f32 0.0, %v1674
  %1676 = vmatmul.bf16.gmra.mxu0 %v1532
  %v1677 = vpop.f32.mrf.mxu0
  %v1678 = vadd.f32 0.0, %v1677
  %v1679 = vpop.f32.mrf.mxu0
  %v1680 = vadd.f32 0.0, %v1679
  %1681 = vmatmul.bf16.gmra.mxu0 %v1535
  %v1682 = vpop.f32.mrf.mxu0
  %v1683 = vadd.f32 0.0, %v1682
  %v1684 = vpop.f32.mrf.mxu0
  %v1685 = vadd.f32 0.0, %v1684
  %1686 = vmatmul.bf16.gmra.mxu0 %v1538
  %v1687 = vpop.f32.mrf.mxu0
  %v1688 = vadd.f32 0.0, %v1687
  %v1689 = vpop.f32.mrf.mxu0
  %v1690 = vadd.f32 0.0, %v1689
  %1691 = vmatmul.bf16.gmra.mxu0 %v1541
  %v1692 = vpop.f32.mrf.mxu0
  %v1693 = vadd.f32 0.0, %v1692
  %v1694 = vpop.f32.mrf.mxu0
  %v1695 = vadd.f32 0.0, %v1694
  %1696 = vmatmul.bf16.gmra.mxu0 %v1544
  %v1697 = vpop.f32.mrf.mxu0
  %v1698 = vadd.f32 0.0, %v1697
  %v1699 = vpop.f32.mrf.mxu0
  %v1700 = vadd.f32 0.0, %v1699
  %1701 = vmatmul.bf16.gmra.mxu0 %v1547
  %v1702 = vpop.f32.mrf.mxu0
  %v1703 = vadd.f32 0.0, %v1702
  %v1704 = vpop.f32.mrf.mxu0
  %v1705 = vadd.f32 0.0, %v1704
  %1706 = vmatmul.bf16.gmra.mxu0 %v1550
  %v1707 = vpop.f32.mrf.mxu0
  %v1708 = vadd.f32 0.0, %v1707
  %v1709 = vpop.f32.mrf.mxu0
  %v1710 = vadd.f32 0.0, %v1709
  %1711 = vmatmul.bf16.gmra.mxu0 %v1553
  %v1712 = vpop.f32.mrf.mxu0
  %v1713 = vadd.f32 0.0, %v1712
  %v1714 = vpop.f32.mrf.mxu0
  %v1715 = vadd.f32 0.0, %v1714
  %1716 = vmatmul.bf16.gmra.mxu0 %v1556
  %v1717 = vpop.f32.mrf.mxu0
  %v1718 = vadd.f32 0.0, %v1717
  %v1719 = vpop.f32.mrf.mxu0
  %v1720 = vadd.f32 0.0, %v1719
  %1721 = vmatmul.bf16.gmra.mxu0 %v1559
  %v1722 = vpop.f32.mrf.mxu0
  %v1723 = vadd.f32 0.0, %v1722
  %v1724 = vpop.f32.mrf.mxu0
  %v1725 = vadd.f32 0.0, %v1724
  %1726 = vmatmul.bf16.gmra.mxu0 %v1562
  %v1727 = vpop.f32.mrf.mxu0
  %v1728 = vadd.f32 0.0, %v1727
  %v1729 = vpop.f32.mrf.mxu0
  %v1730 = vadd.f32 0.0, %v1729
  %1731 = vmatmul.bf16.gmra.mxu0 %v1565
  %v1732 = vpop.f32.mrf.mxu0
  %v1733 = vadd.f32 0.0, %v1732
  %v1734 = vpop.f32.mrf.mxu0
  %v1735 = vadd.f32 0.0, %v1734
  %1736 = vmatmul.bf16.gmra.mxu0 %v1568
  %v1737 = vpop.f32.mrf.mxu0
  %v1738 = vadd.f32 0.0, %v1737
  %v1739 = vpop.f32.mrf.mxu0
  %v1740 = vadd.f32 0.0, %v1739
  %1741 = vdwg.mxu0
  %v1742 = vadd.f32 %v1018, %v1583
  %v1743 = vadd.f32 %v1020, %v1585
  %v1744 = vadd.f32 %v1023, %v1588
  %v1745 = vadd.f32 %v1025, %v1590
  %v1746 = vadd.f32 %v1028, %v1593
  %v1747 = vadd.f32 %v1030, %v1595
  %v1748 = vadd.f32 %v1033, %v1598
  %v1749 = vadd.f32 %v1035, %v1600
  %v1750 = vadd.f32 %v1038, %v1603
  %v1751 = vadd.f32 %v1040, %v1605
  %v1752 = vadd.f32 %v1043, %v1608
  %v1753 = vadd.f32 %v1045, %v1610
  %v1754 = vadd.f32 %v1048, %v1613
  %v1755 = vadd.f32 %v1050, %v1615
  %v1756 = vadd.f32 %v1053, %v1618
  %v1757 = vadd.f32 %v1055, %v1620
  %v1758 = vadd.f32 %v1058, %v1623
  %v1759 = vadd.f32 %v1060, %v1625
  %v1760 = vadd.f32 %v1063, %v1628
  %v1761 = vadd.f32 %v1065, %v1630
  %v1762 = vadd.f32 %v1068, %v1633
  %v1763 = vadd.f32 %v1070, %v1635
  %v1764 = vadd.f32 %v1073, %v1638
  %v1765 = vadd.f32 %v1075, %v1640
  %v1766 = vadd.f32 %v1078, %v1643
  %v1767 = vadd.f32 %v1080, %v1645
  %v1768 = vadd.f32 %v1083, %v1648
  %v1769 = vadd.f32 %v1085, %v1650
  %v1770 = vadd.f32 %v1088, %v1653
  %v1771 = vadd.f32 %v1090, %v1655
  %v1772 = vadd.f32 %v1093, %v1658
  %v1773 = vadd.f32 %v1095, %v1660
  %v1774 = vadd.f32 %v1098, %v1663
  %v1775 = vadd.f32 %v1100, %v1665
  %v1776 = vadd.f32 %v1103, %v1668
  %v1777 = vadd.f32 %v1105, %v1670
  %v1778 = vadd.f32 %v1108, %v1673
  %v1779 = vadd.f32 %v1110, %v1675
  %v1780 = vadd.f32 %v1113, %v1678
  %v1781 = vadd.f32 %v1115, %v1680
  %v1782 = vadd.f32 %v1118, %v1683
  %v1783 = vadd.f32 %v1120, %v1685
  %v1784 = vadd.f32 %v1123, %v1688
  %v1785 = vadd.f32 %v1125, %v1690
  %v1786 = vadd.f32 %v1128, %v1693
  %v1787 = vadd.f32 %v1130, %v1695
  %v1788 = vadd.f32 %v1133, %v1698
  %v1789 = vadd.f32 %v1135, %v1700
  %v1790 = vadd.f32 %v1138, %v1703
  %v1791 = vadd.f32 %v1140, %v1705
  %v1792 = vadd.f32 %v1143, %v1708
  %v1793 = vadd.f32 %v1145, %v1710
  %v1794 = vadd.f32 %v1148, %v1713
  %v1795 = vadd.f32 %v1150, %v1715
  %v1796 = vadd.f32 %v1153, %v1718
  %v1797 = vadd.f32 %v1155, %v1720
  %v1798 = vadd.f32 %v1158, %v1723
  %v1799 = vadd.f32 %v1160, %v1725
  %v1800 = vadd.f32 %v1163, %v1728
  %v1801 = vadd.f32 %v1165, %v1730
  %v1802 = vadd.f32 %v1168, %v1733
  %v1803 = vadd.f32 %v1170, %v1735
  %v1804 = vadd.f32 %v1173, %v1738
  %v1805 = vadd.f32 %v1175, %v1740
  %vm1806 = vcmask 130048
  %1807 = vst.msk [vmem:[%s12] sm:$0xff] %vm1806, %v1742
  %1808 = vst.msk [vmem:[%s12 + $0x8] sm:$0xff] %vm1806, %v1743
  %1809 = vst.msk [vmem:[%s12 + $0x10] sm:$0xff] %vm1806, %v1744
  %1810 = vst.msk [vmem:[%s12 + $0x18] sm:$0xff] %vm1806, %v1745
  %1811 = vst.msk [vmem:[%s12 + $0x20] sm:$0xff] %vm1806, %v1746
  %1812 = vst.msk [vmem:[%s12 + $0x28] sm:$0xff] %vm1806, %v1747
  %1813 = vst.msk [vmem:[%s12 + $0x30] sm:$0xff] %vm1806, %v1748
  %1814 = vst.msk [vmem:[%s12 + $0x38] sm:$0xff] %vm1806, %v1749
  %1815 = vst.msk [vmem:[%s12 + $0x40] sm:$0xff] %vm1806, %v1750
  %1816 = vst.msk [vmem:[%s12 + $0x48] sm:$0xff] %vm1806, %v1751
  %1817 = vst.msk [vmem:[%s12 + $0x50] sm:$0xff] %vm1806, %v1752
  %1818 = vst.msk [vmem:[%s12 + $0x58] sm:$0xff] %vm1806, %v1753
  %1819 = vst.msk [vmem:[%s12 + $0x60] sm:$0xff] %vm1806, %v1754
  %1820 = vst.msk [vmem:[%s12 + $0x68] sm:$0xff] %vm1806, %v1755
  %1821 = vst.msk [vmem:[%s12 + $0x70] sm:$0xff] %vm1806, %v1756
  %1822 = vst.msk [vmem:[%s12 + $0x78] sm:$0xff] %vm1806, %v1757
  %1823 = vst.msk [vmem:[%s12 + $0x80] sm:$0xff] %vm1806, %v1758
  %1824 = vst.msk [vmem:[%s12 + $0x88] sm:$0xff] %vm1806, %v1759
  %1825 = vst.msk [vmem:[%s12 + $0x90] sm:$0xff] %vm1806, %v1760
  %1826 = vst.msk [vmem:[%s12 + $0x98] sm:$0xff] %vm1806, %v1761
  %1827 = vst.msk [vmem:[%s12 + $0xa0] sm:$0xff] %vm1806, %v1762
  %1828 = vst.msk [vmem:[%s12 + $0xa8] sm:$0xff] %vm1806, %v1763
  %1829 = vst.msk [vmem:[%s12 + $0xb0] sm:$0xff] %vm1806, %v1764
  %1830 = vst.msk [vmem:[%s12 + $0xb8] sm:$0xff] %vm1806, %v1765
  %1831 = vst.msk [vmem:[%s12 + $0xc0] sm:$0xff] %vm1806, %v1766
  %1832 = vst.msk [vmem:[%s12 + $0xc8] sm:$0xff] %vm1806, %v1767
  %1833 = vst.msk [vmem:[%s12 + $0xd0] sm:$0xff] %vm1806, %v1768
  %1834 = vst.msk [vmem:[%s12 + $0xd8] sm:$0xff] %vm1806, %v1769
  %1835 = vst.msk [vmem:[%s12 + $0xe0] sm:$0xff] %vm1806, %v1770
  %1836 = vst.msk [vmem:[%s12 + $0xe8] sm:$0xff] %vm1806, %v1771
  %1837 = vst.msk [vmem:[%s12 + $0xf0] sm:$0xff] %vm1806, %v1772
  %1838 = vst.msk [vmem:[%s12 + $0xf8] sm:$0xff] %vm1806, %v1773
  %1839 = vst.msk [vmem:[%s12 + $0x100] sm:$0xff] %vm1806, %v1774
  %1840 = vst.msk [vmem:[%s12 + $0x108] sm:$0xff] %vm1806, %v1775
  %1841 = vst.msk [vmem:[%s12 + $0x110] sm:$0xff] %vm1806, %v1776
  %1842 = vst.msk [vmem:[%s12 + $0x118] sm:$0xff] %vm1806, %v1777
  %1843 = vst.msk [vmem:[%s12 + $0x120] sm:$0xff] %vm1806, %v1778
  %1844 = vst.msk [vmem:[%s12 + $0x128] sm:$0xff] %vm1806, %v1779
  %1845 = vst.msk [vmem:[%s12 + $0x130] sm:$0xff] %vm1806, %v1780
  %1846 = vst.msk [vmem:[%s12 + $0x138] sm:$0xff] %vm1806, %v1781
  %1847 = vst.msk [vmem:[%s12 + $0x140] sm:$0xff] %vm1806, %v1782
  %1848 = vst.msk [vmem:[%s12 + $0x148] sm:$0xff] %vm1806, %v1783
  %1849 = vst.msk [vmem:[%s12 + $0x150] sm:$0xff] %vm1806, %v1784
  %1850 = vst.msk [vmem:[%s12 + $0x158] sm:$0xff] %vm1806, %v1785
  %1851 = vst.msk [vmem:[%s12 + $0x160] sm:$0xff] %vm1806, %v1786
  %1852 = vst.msk [vmem:[%s12 + $0x168] sm:$0xff] %vm1806, %v1787
  %1853 = vst.msk [vmem:[%s12 + $0x170] sm:$0xff] %vm1806, %v1788
  %1854 = vst.msk [vmem:[%s12 + $0x178] sm:$0xff] %vm1806, %v1789
  %1855 = vst.msk [vmem:[%s12 + $0x180] sm:$0xff] %vm1806, %v1790
  %1856 = vst.msk [vmem:[%s12 + $0x188] sm:$0xff] %vm1806, %v1791
  %1857 = vst.msk [vmem:[%s12 + $0x190] sm:$0xff] %vm1806, %v1792
  %1858 = vst.msk [vmem:[%s12 + $0x198] sm:$0xff] %vm1806, %v1793
  %1859 = vst.msk [vmem:[%s12 + $0x1a0] sm:$0xff] %vm1806, %v1794
  %1860 = vst.msk [vmem:[%s12 + $0x1a8] sm:$0xff] %vm1806, %v1795
  %1861 = vst.msk [vmem:[%s12 + $0x1b0] sm:$0xff] %vm1806, %v1796
  %1862 = vst.msk [vmem:[%s12 + $0x1b8] sm:$0xff] %vm1806, %v1797
  %1863 = vst.msk [vmem:[%s12 + $0x1c0] sm:$0xff] %vm1806, %v1798
  %1864 = vst.msk [vmem:[%s12 + $0x1c8] sm:$0xff] %vm1806, %v1799
  %1865 = vst.msk [vmem:[%s12 + $0x1d0] sm:$0xff] %vm1806, %v1800
  %1866 = vst.msk [vmem:[%s12 + $0x1d8] sm:$0xff] %vm1806, %v1801
  %1867 = vst.msk [vmem:[%s12 + $0x1e0] sm:$0xff] %vm1806, %v1802
  %1868 = vst.msk [vmem:[%s12 + $0x1e8] sm:$0xff] %vm1806, %v1803
  %1869 = vst.msk [vmem:[%s12 + $0x1f0] sm:$0xff] %vm1806, %v1804
  %1870 = vst.msk [vmem:[%s12 + $0x1f8] sm:$0xff] %vm1806, %v1805
  %v1871 = vsel %vm1806, %v1742, 0.0
  %v1872 = vsel %vm1806, %v1743, 0.0
  %v1873 = vadd.f32 %v1871, %v1872
  %v1874 = vsel %vm1806, %v1744, 0.0
  %v1875 = vadd.f32 %v1873, %v1874
  %v1876 = vsel %vm1806, %v1745, 0.0
  %v1877 = vadd.f32 %v1875, %v1876
  %v1878 = vsel %vm1806, %v1746, 0.0
  %v1879 = vadd.f32 %v1877, %v1878
  %v1880 = vsel %vm1806, %v1747, 0.0
  %v1881 = vadd.f32 %v1879, %v1880
  %v1882 = vsel %vm1806, %v1748, 0.0
  %v1883 = vadd.f32 %v1881, %v1882
  %v1884 = vsel %vm1806, %v1749, 0.0
  %v1885 = vadd.f32 %v1883, %v1884
  %v1886 = vsel %vm1806, %v1750, 0.0
  %v1887 = vadd.f32 %v1885, %v1886
  %v1888 = vsel %vm1806, %v1751, 0.0
  %v1889 = vadd.f32 %v1887, %v1888
  %v1890 = vsel %vm1806, %v1752, 0.0
  %v1891 = vadd.f32 %v1889, %v1890
  %v1892 = vsel %vm1806, %v1753, 0.0
  %v1893 = vadd.f32 %v1891, %v1892
  %v1894 = vsel %vm1806, %v1754, 0.0
  %v1895 = vadd.f32 %v1893, %v1894
  %v1896 = vsel %vm1806, %v1755, 0.0
  %v1897 = vadd.f32 %v1895, %v1896
  %v1898 = vsel %vm1806, %v1756, 0.0
  %v1899 = vadd.f32 %v1897, %v1898
  %v1900 = vsel %vm1806, %v1757, 0.0
  %v1901 = vadd.f32 %v1899, %v1900
  %v1902 = vsel %vm1806, %v1758, 0.0
  %v1903 = vadd.f32 %v1901, %v1902
  %v1904 = vsel %vm1806, %v1759, 0.0
  %v1905 = vadd.f32 %v1903, %v1904
  %v1906 = vsel %vm1806, %v1760, 0.0
  %v1907 = vadd.f32 %v1905, %v1906
  %v1908 = vsel %vm1806, %v1761, 0.0
  %v1909 = vadd.f32 %v1907, %v1908
  %v1910 = vsel %vm1806, %v1762, 0.0
  %v1911 = vadd.f32 %v1909, %v1910
  %v1912 = vsel %vm1806, %v1763, 0.0
  %v1913 = vadd.f32 %v1911, %v1912
  %v1914 = vsel %vm1806, %v1764, 0.0
  %v1915 = vadd.f32 %v1913, %v1914
  %v1916 = vsel %vm1806, %v1765, 0.0
  %v1917 = vadd.f32 %v1915, %v1916
  %v1918 = vsel %vm1806, %v1766, 0.0
  %v1919 = vadd.f32 %v1917, %v1918
  %v1920 = vsel %vm1806, %v1767, 0.0
  %v1921 = vadd.f32 %v1919, %v1920
  %v1922 = vsel %vm1806, %v1768, 0.0
  %v1923 = vadd.f32 %v1921, %v1922
  %v1924 = vsel %vm1806, %v1769, 0.0
  %v1925 = vadd.f32 %v1923, %v1924
  %v1926 = vsel %vm1806, %v1770, 0.0
  %v1927 = vadd.f32 %v1925, %v1926
  %v1928 = vsel %vm1806, %v1771, 0.0
  %v1929 = vadd.f32 %v1927, %v1928
  %v1930 = vsel %vm1806, %v1772, 0.0
  %v1931 = vadd.f32 %v1929, %v1930
  %v1932 = vsel %vm1806, %v1773, 0.0
  %v1933 = vadd.f32 %v1931, %v1932
  %v1934 = vsel %vm1806, %v1774, 0.0
  %v1935 = vadd.f32 %v1933, %v1934
  %v1936 = vsel %vm1806, %v1775, 0.0
  %v1937 = vadd.f32 %v1935, %v1936
  %v1938 = vsel %vm1806, %v1776, 0.0
  %v1939 = vadd.f32 %v1937, %v1938
  %v1940 = vsel %vm1806, %v1777, 0.0
  %v1941 = vadd.f32 %v1939, %v1940
  %v1942 = vsel %vm1806, %v1778, 0.0
  %v1943 = vadd.f32 %v1941, %v1942
  %v1944 = vsel %vm1806, %v1779, 0.0
  %v1945 = vadd.f32 %v1943, %v1944
  %v1946 = vsel %vm1806, %v1780, 0.0
  %v1947 = vadd.f32 %v1945, %v1946
  %v1948 = vsel %vm1806, %v1781, 0.0
  %v1949 = vadd.f32 %v1947, %v1948
  %v1950 = vsel %vm1806, %v1782, 0.0
  %v1951 = vadd.f32 %v1949, %v1950
  %v1952 = vsel %vm1806, %v1783, 0.0
  %v1953 = vadd.f32 %v1951, %v1952
  %v1954 = vsel %vm1806, %v1784, 0.0
  %v1955 = vadd.f32 %v1953, %v1954
  %v1956 = vsel %vm1806, %v1785, 0.0
  %v1957 = vadd.f32 %v1955, %v1956
  %v1958 = vsel %vm1806, %v1786, 0.0
  %v1959 = vadd.f32 %v1957, %v1958
  %v1960 = vsel %vm1806, %v1787, 0.0
  %v1961 = vadd.f32 %v1959, %v1960
  %v1962 = vsel %vm1806, %v1788, 0.0
  %v1963 = vadd.f32 %v1961, %v1962
  %v1964 = vsel %vm1806, %v1789, 0.0
  %v1965 = vadd.f32 %v1963, %v1964
  %v1966 = vsel %vm1806, %v1790, 0.0
  %v1967 = vadd.f32 %v1965, %v1966
  %v1968 = vsel %vm1806, %v1791, 0.0
  %v1969 = vadd.f32 %v1967, %v1968
  %v1970 = vsel %vm1806, %v1792, 0.0
  %v1971 = vadd.f32 %v1969, %v1970
  %v1972 = vsel %vm1806, %v1793, 0.0
  %v1973 = vadd.f32 %v1971, %v1972
  %v1974 = vsel %vm1806, %v1794, 0.0
  %v1975 = vadd.f32 %v1973, %v1974
  %v1976 = vsel %vm1806, %v1795, 0.0
  %v1977 = vadd.f32 %v1975, %v1976
  %v1978 = vsel %vm1806, %v1796, 0.0
  %v1979 = vadd.f32 %v1977, %v1978
  %v1980 = vsel %vm1806, %v1797, 0.0
  %v1981 = vadd.f32 %v1979, %v1980
  %v1982 = vsel %vm1806, %v1798, 0.0
  %v1983 = vadd.f32 %v1981, %v1982
  %v1984 = vsel %vm1806, %v1799, 0.0
  %v1985 = vadd.f32 %v1983, %v1984
  %v1986 = vsel %vm1806, %v1800, 0.0
  %v1987 = vadd.f32 %v1985, %v1986
  %v1988 = vsel %vm1806, %v1801, 0.0
  %v1989 = vadd.f32 %v1987, %v1988
  %v1990 = vsel %vm1806, %v1802, 0.0
  %v1991 = vadd.f32 %v1989, %v1990
  %v1992 = vsel %vm1806, %v1803, 0.0
  %v1993 = vadd.f32 %v1991, %v1992
  %v1994 = vsel %vm1806, %v1804, 0.0
  %v1995 = vadd.f32 %v1993, %v1994
  %v1996 = vsel %vm1806, %v1805, 0.0
  %v1997 = vadd.f32 %v1995, %v1996
  %v1998 = vrot.slane %v1997, 4
  %v1999 = vadd.f32 %v1997, %v1998
  %v2000 = vrot.slane %v1999, 2
  %v2001 = vadd.f32 %v1999, %v2000
  %v2002 = vrot.slane %v2001, 1
  %v2003 = vadd.f32 %v2001, %v2002
  %vm2004 = vcmask 122880
  %2005 = vst.msk [vmem:[%s13] sm:$0x1] %vm2004, %v2003
  %v2006 = vmul.f32 %v1742, %v1742
  %v2007 = vmul.f32 %v1743, %v1743
  %v2008 = vmul.f32 %v1744, %v1744
  %v2009 = vmul.f32 %v1745, %v1745
  %v2010 = vmul.f32 %v1746, %v1746
  %v2011 = vmul.f32 %v1747, %v1747
  %v2012 = vmul.f32 %v1748, %v1748
  %v2013 = vmul.f32 %v1749, %v1749
  %v2014 = vmul.f32 %v1750, %v1750
  %v2015 = vmul.f32 %v1751, %v1751
  %v2016 = vmul.f32 %v1752, %v1752
  %v2017 = vmul.f32 %v1753, %v1753
  %v2018 = vmul.f32 %v1754, %v1754
  %v2019 = vmul.f32 %v1755, %v1755
  %v2020 = vmul.f32 %v1756, %v1756
  %v2021 = vmul.f32 %v1757, %v1757
  %v2022 = vmul.f32 %v1758, %v1758
  %v2023 = vmul.f32 %v1759, %v1759
  %v2024 = vmul.f32 %v1760, %v1760
  %v2025 = vmul.f32 %v1761, %v1761
  %v2026 = vmul.f32 %v1762, %v1762
  %v2027 = vmul.f32 %v1763, %v1763
  %v2028 = vmul.f32 %v1764, %v1764
  %v2029 = vmul.f32 %v1765, %v1765
  %v2030 = vmul.f32 %v1766, %v1766
  %v2031 = vmul.f32 %v1767, %v1767
  %v2032 = vmul.f32 %v1768, %v1768
  %v2033 = vmul.f32 %v1769, %v1769
  %v2034 = vmul.f32 %v1770, %v1770
  %v2035 = vmul.f32 %v1771, %v1771
  %v2036 = vmul.f32 %v1772, %v1772
  %v2037 = vmul.f32 %v1773, %v1773
  %v2038 = vmul.f32 %v1774, %v1774
  %v2039 = vmul.f32 %v1775, %v1775
  %v2040 = vmul.f32 %v1776, %v1776
  %v2041 = vmul.f32 %v1777, %v1777
  %v2042 = vmul.f32 %v1778, %v1778
  %v2043 = vmul.f32 %v1779, %v1779
  %v2044 = vmul.f32 %v1780, %v1780
  %v2045 = vmul.f32 %v1781, %v1781
  %v2046 = vmul.f32 %v1782, %v1782
  %v2047 = vmul.f32 %v1783, %v1783
  %v2048 = vmul.f32 %v1784, %v1784
  %v2049 = vmul.f32 %v1785, %v1785
  %v2050 = vmul.f32 %v1786, %v1786
  %v2051 = vmul.f32 %v1787, %v1787
  %v2052 = vmul.f32 %v1788, %v1788
  %v2053 = vmul.f32 %v1789, %v1789
  %v2054 = vmul.f32 %v1790, %v1790
  %v2055 = vmul.f32 %v1791, %v1791
  %v2056 = vmul.f32 %v1792, %v1792
  %v2057 = vmul.f32 %v1793, %v1793
  %v2058 = vmul.f32 %v1794, %v1794
  %v2059 = vmul.f32 %v1795, %v1795
  %v2060 = vmul.f32 %v1796, %v1796
  %v2061 = vmul.f32 %v1797, %v1797
  %v2062 = vmul.f32 %v1798, %v1798
  %v2063 = vmul.f32 %v1799, %v1799
  %v2064 = vmul.f32 %v1800, %v1800
  %v2065 = vmul.f32 %v1801, %v1801
  %v2066 = vmul.f32 %v1802, %v1802
  %v2067 = vmul.f32 %v1803, %v1803
  %v2068 = vmul.f32 %v1804, %v1804
  %v2069 = vmul.f32 %v1805, %v1805
  %v2070 = vsel %vm1806, %v2006, 0.0
  %v2071 = vsel %vm1806, %v2007, 0.0
  %v2072 = vadd.f32 %v2070, %v2071
  %v2073 = vsel %vm1806, %v2008, 0.0
  %v2074 = vadd.f32 %v2072, %v2073
  %v2075 = vsel %vm1806, %v2009, 0.0
  %v2076 = vadd.f32 %v2074, %v2075
  %v2077 = vsel %vm1806, %v2010, 0.0
  %v2078 = vadd.f32 %v2076, %v2077
  %v2079 = vsel %vm1806, %v2011, 0.0
  %v2080 = vadd.f32 %v2078, %v2079
  %v2081 = vsel %vm1806, %v2012, 0.0
  %v2082 = vadd.f32 %v2080, %v2081
  %v2083 = vsel %vm1806, %v2013, 0.0
  %v2084 = vadd.f32 %v2082, %v2083
  %v2085 = vsel %vm1806, %v2014, 0.0
  %v2086 = vadd.f32 %v2084, %v2085
  %v2087 = vsel %vm1806, %v2015, 0.0
  %v2088 = vadd.f32 %v2086, %v2087
  %v2089 = vsel %vm1806, %v2016, 0.0
  %v2090 = vadd.f32 %v2088, %v2089
  %v2091 = vsel %vm1806, %v2017, 0.0
  %v2092 = vadd.f32 %v2090, %v2091
  %v2093 = vsel %vm1806, %v2018, 0.0
  %v2094 = vadd.f32 %v2092, %v2093
  %v2095 = vsel %vm1806, %v2019, 0.0
  %v2096 = vadd.f32 %v2094, %v2095
  %v2097 = vsel %vm1806, %v2020, 0.0
  %v2098 = vadd.f32 %v2096, %v2097
  %v2099 = vsel %vm1806, %v2021, 0.0
  %v2100 = vadd.f32 %v2098, %v2099
  %v2101 = vsel %vm1806, %v2022, 0.0
  %v2102 = vadd.f32 %v2100, %v2101
  %v2103 = vsel %vm1806, %v2023, 0.0
  %v2104 = vadd.f32 %v2102, %v2103
  %v2105 = vsel %vm1806, %v2024, 0.0
  %v2106 = vadd.f32 %v2104, %v2105
  %v2107 = vsel %vm1806, %v2025, 0.0
  %v2108 = vadd.f32 %v2106, %v2107
  %v2109 = vsel %vm1806, %v2026, 0.0
  %v2110 = vadd.f32 %v2108, %v2109
  %v2111 = vsel %vm1806, %v2027, 0.0
  %v2112 = vadd.f32 %v2110, %v2111
  %v2113 = vsel %vm1806, %v2028, 0.0
  %v2114 = vadd.f32 %v2112, %v2113
  %v2115 = vsel %vm1806, %v2029, 0.0
  %v2116 = vadd.f32 %v2114, %v2115
  %v2117 = vsel %vm1806, %v2030, 0.0
  %v2118 = vadd.f32 %v2116, %v2117
  %v2119 = vsel %vm1806, %v2031, 0.0
  %v2120 = vadd.f32 %v2118, %v2119
  %v2121 = vsel %vm1806, %v2032, 0.0
  %v2122 = vadd.f32 %v2120, %v2121
  %v2123 = vsel %vm1806, %v2033, 0.0
  %v2124 = vadd.f32 %v2122, %v2123
  %v2125 = vsel %vm1806, %v2034, 0.0
  %v2126 = vadd.f32 %v2124, %v2125
  %v2127 = vsel %vm1806, %v2035, 0.0
  %v2128 = vadd.f32 %v2126, %v2127
  %v2129 = vsel %vm1806, %v2036, 0.0
  %v2130 = vadd.f32 %v2128, %v2129
  %v2131 = vsel %vm1806, %v2037, 0.0
  %v2132 = vadd.f32 %v2130, %v2131
  %v2133 = vsel %vm1806, %v2038, 0.0
  %v2134 = vadd.f32 %v2132, %v2133
  %v2135 = vsel %vm1806, %v2039, 0.0
  %v2136 = vadd.f32 %v2134, %v2135
  %v2137 = vsel %vm1806, %v2040, 0.0
  %v2138 = vadd.f32 %v2136, %v2137
  %v2139 = vsel %vm1806, %v2041, 0.0
  %v2140 = vadd.f32 %v2138, %v2139
  %v2141 = vsel %vm1806, %v2042, 0.0
  %v2142 = vadd.f32 %v2140, %v2141
  %v2143 = vsel %vm1806, %v2043, 0.0
  %v2144 = vadd.f32 %v2142, %v2143
  %v2145 = vsel %vm1806, %v2044, 0.0
  %v2146 = vadd.f32 %v2144, %v2145
  %v2147 = vsel %vm1806, %v2045, 0.0
  %v2148 = vadd.f32 %v2146, %v2147
  %v2149 = vsel %vm1806, %v2046, 0.0
  %v2150 = vadd.f32 %v2148, %v2149
  %v2151 = vsel %vm1806, %v2047, 0.0
  %v2152 = vadd.f32 %v2150, %v2151
  %v2153 = vsel %vm1806, %v2048, 0.0
  %v2154 = vadd.f32 %v2152, %v2153
  %v2155 = vsel %vm1806, %v2049, 0.0
  %v2156 = vadd.f32 %v2154, %v2155
  %v2157 = vsel %vm1806, %v2050, 0.0
  %v2158 = vadd.f32 %v2156, %v2157
  %v2159 = vsel %vm1806, %v2051, 0.0
  %v2160 = vadd.f32 %v2158, %v2159
  %v2161 = vsel %vm1806, %v2052, 0.0
  %v2162 = vadd.f32 %v2160, %v2161
  %v2163 = vsel %vm1806, %v2053, 0.0
  %v2164 = vadd.f32 %v2162, %v2163
  %v2165 = vsel %vm1806, %v2054, 0.0
  %v2166 = vadd.f32 %v2164, %v2165
  %v2167 = vsel %vm1806, %v2055, 0.0
  %v2168 = vadd.f32 %v2166, %v2167
  %v2169 = vsel %vm1806, %v2056, 0.0
  %v2170 = vadd.f32 %v2168, %v2169
  %v2171 = vsel %vm1806, %v2057, 0.0
  %v2172 = vadd.f32 %v2170, %v2171
  %v2173 = vsel %vm1806, %v2058, 0.0
  %v2174 = vadd.f32 %v2172, %v2173
  %v2175 = vsel %vm1806, %v2059, 0.0
  %v2176 = vadd.f32 %v2174, %v2175
  %v2177 = vsel %vm1806, %v2060, 0.0
  %v2178 = vadd.f32 %v2176, %v2177
  %v2179 = vsel %vm1806, %v2061, 0.0
  %v2180 = vadd.f32 %v2178, %v2179
  %v2181 = vsel %vm1806, %v2062, 0.0
  %v2182 = vadd.f32 %v2180, %v2181
  %v2183 = vsel %vm1806, %v2063, 0.0
  %v2184 = vadd.f32 %v2182, %v2183
  %v2185 = vsel %vm1806, %v2064, 0.0
  %v2186 = vadd.f32 %v2184, %v2185
  %v2187 = vsel %vm1806, %v2065, 0.0
  %v2188 = vadd.f32 %v2186, %v2187
  %v2189 = vsel %vm1806, %v2066, 0.0
  %v2190 = vadd.f32 %v2188, %v2189
  %v2191 = vsel %vm1806, %v2067, 0.0
  %v2192 = vadd.f32 %v2190, %v2191
  %v2193 = vsel %vm1806, %v2068, 0.0
  %v2194 = vadd.f32 %v2192, %v2193
  %v2195 = vsel %vm1806, %v2069, 0.0
  %v2196 = vadd.f32 %v2194, %v2195
  %v2197 = vrot.slane %v2196, 4
  %v2198 = vadd.f32 %v2196, %v2197
  %v2199 = vrot.slane %v2198, 2
  %v2200 = vadd.f32 %v2198, %v2199
  %v2201 = vrot.slane %v2200, 1
  %v2202 = vadd.f32 %v2200, %v2201
  %2203 = vst.msk [vmem:[%s14] sm:$0x1] %vm2004, %v2202
  // Predicated region
  $region50: #{dense_block_forward.12} parent=0 // pred_check
    _
  $region51: #{dense_block_forward.12} parent=0 // pred_check_branch
    %2205 = sbr.rel (0) target = $region53
  $region52: #{dense_block_forward.12} parent=0 // pred_region
    _
  $region53: #{dense_block_forward.12} parent=0 // pred_fallthru
    _
  // Predicated region
  $region54: #{dense_block_forward.12} parent=0 // pred_check
    _
  $region55: #{dense_block_forward.12} parent=0 // pred_check_branch
    %2207 = sbr.rel (0) target = $region57
  $region56: #{dense_block_forward.12} parent=0 // pred_region
    _
  $region57: #{dense_block_forward.12} parent=0 // pred_fallthru
    _
  // Predicated region
  $region58: #{dense_block_forward.12} parent=0 // pred_check
    _
  $region59: #{dense_block_forward.12} parent=0 // pred_check_branch
    %2209 = sbr.rel (0) target = $region61
  $region60: #{dense_block_forward.12} parent=0 // pred_region
    _
  $region61: #{dense_block_forward.12} parent=0 // pred_fallthru
    _
  // Predicated region
  $region62: #{dense_block_forward.12} parent=0 // pred_check
    _
  $region63: #{dense_block_forward.12} parent=0 // pred_check_branch
    %2211 = sbr.rel (0) target = $region65
  $region64: #{dense_block_forward.12} parent=0 // pred_region
    _
  $region65: #{dense_block_forward.12} parent=0 // pred_fallthru
    _
  // Predicated region
  $region66: #{dense_block_forward.12} parent=0 // pred_check
    _
  $region67: #{dense_block_forward.12} parent=0 // pred_check_branch
    %2213 = sbr.rel (0) target = $region69
  $region68: #{dense_block_forward.12} parent=0 // pred_region
    _
  $region69: #{dense_block_forward.12} parent=0 // pred_fallthru
    _
  // Predicated region
  $region70: #{dense_block_forward.12} parent=0 // pred_check
    _
  $region71: #{dense_block_forward.12} parent=0 // pred_check_branch
    %2215 = sbr.rel (0) target = $region73
  $region72: #{dense_block_forward.12} parent=0 // pred_region
    _
  $region73: #{dense_block_forward.12} parent=0 // pred_fallthru
    _

// kernel: dense_block_forward.13
$region0: #{dense_block_forward.13}
  #allocation0 [shape = 'u32[]', space=smem, size = 0x4, offset = 0x4, fixed_abs, tag = 'smem constant byte address 0x4 - core index']
  #allocation1 [shape = 'u32[72,128]{1,0:T(1,128)}', space=vmem, size = 0x9000, scoped, tag = 'internal scratch']
  #allocation2 [shape = 'f32[18,18,16]{2,1,0:T(8,128)}', space=vmem, size = 0x36000, scoped, tag = 'scratch operand']
  %s0 = inlined_call_operand.vmem [shape: f32[512,16], index: 0, kind: input, shape index: {}]
  %s1 = inlined_call_operand.vmem [shape: f32[1,16], index: 1, kind: input, shape index: {}]
  %s2 = inlined_call_operand.vmem [shape: f32[1,16], index: 2, kind: input, shape index: {}]
  %s3 = inlined_call_operand.vmem [shape: bf16[144,4], index: 3, kind: input, shape index: {}]
  %s4 = inlined_call_operand.vmem [shape: f32[512,4], index: 4, kind: output, shape index: {0}]
  %s5 = inlined_call_operand.hbm [shape: f32[2,1,4], index: 5, kind: output, shape index: {1}]
  %s6 = inlined_call_operand.hbm [shape: f32[2,1,4], index: 6, kind: output, shape index: {2}]
  %7 = xla_tuple %s4, %s5, %s6
  %s8 = sld [smem:[#allocation0]]
  $region65: #{dense_block_forward.13} parent=0
    _
  %s10 = ssub.s32 1, %s8
  %s11 = scalar_select 0, %s10, %s8
  $region1: #{dense_block_forward.13} parent=0
    #allocation3 [shape = 'u8[1024]{0}', space=vmem, size = 0x400, scoped, tag = 'output window, operand 1']
    #allocation4 [shape = 's32[2]{0}', space=sflag, size = 0x8, scoped, tag = 'scoped memory for dense_block_forward.13']
    #allocation5 [shape = 'u8[1024]{0}', space=vmem, size = 0x400, scoped, tag = 'output window, operand 2']
    #allocation6 [shape = 's32[2]{0}', space=sflag, size = 0x8, scoped, tag = 'scoped memory for dense_block_forward.13']
    %12 = vsyncpa [#allocation4], 0
    %s13 = scalar_lea.sflag [#allocation4], 1
    %14 = vsyncpa %s13, 0
    %15 = vsyncpa [#allocation6], 0
    %s16 = scalar_lea.sflag [#allocation6], 1
    %17 = vsyncpa %s16, 0
    loop: start=0, step=1, limit=4
    $region2: #{dense_block_forward.13} parent=1 // loop_pre_header
      _
    $region3: #{dense_block_forward.13} parent=1 // loop_header
      %s19 = sphi 0, %s23
      %p20 = scmp.ge.s32.totalorder %s19, 4
      %s29 = sphi 0, %s31
      %s32 = sphi 0, %s29
      %s33 = sphi 0, %s32
      %s49 = sphi 0, %s33
      %s53 = sphi 0, %s53
      %s55 = sphi 0, %s53
      %s56 = sphi 0, %s55
      %s70 = sphi 0, %s56
      %s74 = sphi 0, %s74
      %s76 = sphi 0, %s74
      %s77 = sphi 0, %s76
      %s91 = sphi 0, %s77
      %s95 = sphi 0, %s95
      %s97 = sphi 0, %s95
      %s98 = sphi 0, %s97
      %s112 = sphi 0, %s98
      %s118 = sphi 0, %s120
      %s121 = sphi 0, %s118
      %s122 = sphi 0, %s121
      %s138 = sphi 0, %s122
      %s144 = sphi 0, %s146
      %s147 = sphi 0, %s144
      %s148 = sphi 0, %s147
      %s164 = sphi 0, %s148
      %s170 = sphi 0, %s172
      %s173 = sphi 0, %s170
      %s174 = sphi 0, %s173
      %s190 = sphi 0, %s174
    $region4: #{dense_block_forward.13} parent=1 // loop_header_branch
      %22 = sbr.rel (%p20) target = $region8
    $region5: #{dense_block_forward.13} parent=1 // loop_body
      %s24 = ssub.s32 %s19, 1
      %s25 = ssub.s32 %s19, 2
      %s26 = sadd.s32 %s19, 1
      %s27 = ssub.s32 %s19, %s26
      %p28 = scmp.eq.s32.totalorder %s27, 0
      %s30 = sadd.s32 %s29, 1
      %s31 = scalar_select %p28, %s29, %s30
      %p34 = pneg %p28
      %p35 = scmp.eq.s32.totalorder %s19, 1
      %p36 = por %p34, %p35
      %p37 = scmp.ne.s32.totalorder %s29, %s32
      %p38 = scmp.eq.s32.totalorder %s19, 0
      %p39 = por %p37, %p38
      %p40 = scmp.ne.s32.totalorder %s29, %s32
      %p41 = scmp.eq.s32.totalorder %s24, 1
      %p42 = por %p40, %p41
      %p43 = scmp.ne.s32.totalorder %s32, %s33
      %p44 = scmp.eq.s32.totalorder %s24, 0
      %p45 = por %p43, %p44
      %p46 = scmp.ne.s32.totalorder %s32, %s33
      %p47 = scmp.eq.s32.totalorder %s25, 1
      %p48 = por %p46, %p47
      %p50 = scmp.ne.s32.totalorder %s33, %s49
      %p51 = scmp.eq.s32.totalorder %s25, 0
      %p52 = por %p50, %p51
      %s54 = sadd.s32 %s53, 1
      %p57 = scmp.eq.s32.totalorder %s19, 1
      %p58 = scmp.ne.s32.totalorder %s53, %s55
      %p59 = scmp.eq.s32.totalorder %s19, 0
      %p60 = por %p58, %p59
      %p61 = scmp.ne.s32.totalorder %s53, %s55
      %p62 = scmp.eq.s32.totalorder %s24, 1
      %p63 = por %p61, %p62
      %p64 = scmp.ne.s32.totalorder %s55, %s56
      %p65 = scmp.eq.s32.totalorder %s24, 0
      %p66 = por %p64, %p65
      %p67 = scmp.ne.s32.totalorder %s55, %s56
      %p68 = scmp.eq.s32.totalorder %s25, 1
      %p69 = por %p67, %p68
      %p71 = scmp.ne.s32.totalorder %s56, %s70
      %p72 = scmp.eq.s32.totalorder %s25, 0
      %p73 = por %p71, %p72
      %s75 = sadd.s32 %s74, 1
      %p78 = scmp.eq.s32.totalorder %s19, 1
      %p79 = scmp.ne.s32.totalorder %s74, %s76
      %p80 = scmp.eq.s32.totalorder %s19, 0
      %p81 = por %p79, %p80
      %p82 = scmp.ne.s32.totalorder %s74, %s76
      %p83 = scmp.eq.s32.totalorder %s24, 1
      %p84 = por %p82, %p83
      %p85 = scmp.ne.s32.totalorder %s76, %s77
      %p86 = scmp.eq.s32.totalorder %s24, 0
      %p87 = por %p85, %p86
      %p88 = scmp.ne.s32.totalorder %s76, %s77
      %p89 = scmp.eq.s32.totalorder %s25, 1
      %p90 = por %p88, %p89
      %p92 = scmp.ne.s32.totalorder %s77, %s91
      %p93 = scmp.eq.s32.totalorder %s25, 0
      %p94 = por %p92, %p93
      %s96 = sadd.s32 %s95, 1
      %p99 = scmp.eq.s32.totalorder %s19, 1
      %p100 = scmp.ne.s32.totalorder %s95, %s97
      %p101 = scmp.eq.s32.totalorder %s19, 0
      %p102 = por %p100, %p101
      %p103 = scmp.ne.s32.totalorder %s95, %s97
      %p104 = scmp.eq.s32.totalorder %s24, 1
      %p105 = por %p103, %p104
      %p106 = scmp.ne.s32.totalorder %s97, %s98
      %p107 = scmp.eq.s32.totalorder %s24, 0
      %p108 = por %p106, %p107
      %p109 = scmp.ne.s32.totalorder %s97, %s98
      %p110 = scmp.eq.s32.totalorder %s25, 1
      %p111 = por %p109, %p110
      %p113 = scmp.ne.s32.totalorder %s98, %s112
      %p114 = scmp.eq.s32.totalorder %s25, 0
      %p115 = por %p113, %p114
      %s116 = ssub.s32 %s19, %s26
      %p117 = scmp.eq.s32.totalorder %s116, 0
      %s119 = sadd.s32 %s118, 1
      %s120 = scalar_select %p117, %s118, %s119
      %p123 = pneg %p117
      %p124 = scmp.eq.s32.totalorder %s19, 1
      %p125 = por %p123, %p124
      %p126 = scmp.ne.s32.totalorder %s118, %s121
      %p127 = scmp.eq.s32.totalorder %s19, 0
      %p128 = por %p126, %p127
      %p129 = scmp.ne.s32.totalorder %s118, %s121
      %p130 = scmp.eq.s32.totalorder %s24, 1
      %p131 = por %p129, %p130
      %p132 = scmp.ne.s32.totalorder %s121, %s122
      %p133 = scmp.eq.s32.totalorder %s24, 0
      %p134 = por %p132, %p133
      %p135 = scmp.ne.s32.totalorder %s121, %s122
      %p136 = scmp.eq.s32.totalorder %s25, 1
      %p137 = por %p135, %p136
      %p139 = scmp.ne.s32.totalorder %s122, %s138
      %p140 = scmp.eq.s32.totalorder %s25, 0
      %p141 = por %p139, %p140
      %s142 = ssub.s32 %s19, %s26
      %p143 = scmp.eq.s32.totalorder %s142, 0
      %s145 = sadd.s32 %s144, 1
      %s146 = scalar_select %p143, %s144, %s145
      %p149 = pneg %p143
      %p150 = scmp.eq.s32.totalorder %s19, 1
      %p151 = por %p149, %p150
      %p152 = scmp.ne.s32.totalorder %s144, %s147
      %p153 = scmp.eq.s32.totalorder %s19, 0
      %p154 = por %p152, %p153
      %p155 = scmp.ne.s32.totalorder %s144, %s147
      %p156 = scmp.eq.s32.totalorder %s24, 1
      %p157 = por %p155, %p156
      %p158 = scmp.ne.s32.totalorder %s147, %s148
      %p159 = scmp.eq.s32.totalorder %s24, 0
      %p160 = por %p158, %p159
      %p161 = scmp.ne.s32.totalorder %s147, %s148
      %p162 = scmp.eq.s32.totalorder %s25, 1
      %p163 = por %p161, %p162
      %p165 = scmp.ne.s32.totalorder %s148, %s164
      %p166 = scmp.eq.s32.totalorder %s25, 0
      %p167 = por %p165, %p166
      %s168 = ssub.s32 %s19, %s26
      %p169 = scmp.eq.s32.totalorder %s168, 0
      %s171 = sadd.s32 %s170, 1
      %s172 = scalar_select %p169, %s170, %s171
      %p175 = pneg %p169
      %p176 = scmp.eq.s32.totalorder %s19, 1
      %p177 = por %p175, %p176
      %p178 = scmp.ne.s32.totalorder %s170, %s173
      %p179 = scmp.eq.s32.totalorder %s19, 0
      %p180 = por %p178, %p179
      %p181 = scmp.ne.s32.totalorder %s170, %s173
      %p182 = scmp.eq.s32.totalorder %s24, 1
      %p183 = por %p181, %p182
      %p184 = scmp.ne.s32.totalorder %s173, %s174
      %p185 = scmp.eq.s32.totalorder %s24, 0
      %p186 = por %p184, %p185
      %p187 = scmp.ne.s32.totalorder %s173, %s174
      %p188 = scmp.eq.s32.totalorder %s25, 1
      %p189 = por %p187, %p188
      %p191 = scmp.ne.s32.totalorder %s174, %s190
      %p192 = scmp.eq.s32.totalorder %s25, 0
      %p193 = por %p191, %p192
      %p194 = scmp.le.s32.totalorder 1, %s19
      %p195 = scmp.lt.s32.totalorder %s19, 3
      %p196 = pnand %p194, %p195
      %p197 = pneg %p196
      // Predicated region
      $region9: #{dense_block_forward.13} parent=5 // pred_check
        _
      $region10: #{dense_block_forward.13} parent=5 // pred_check_branch
        %199 = sbr.rel (%p196) target = $region12
      $region11: #{dense_block_forward.13} parent=5 // pred_region
        %s200 = ssub.s32 %s19, 1
        // Predicated region
        $region13: #{dense_block_forward.13} parent=11 // pred_check
          %p201 = pneg %p66
        $region14: #{dense_block_forward.13} parent=11 // pred_check_branch
          %203 = sbr.rel (%p201) target = $region16
        $region15: #{dense_block_forward.13} parent=11 // pred_region
          _
        $region16: #{dense_block_forward.13} parent=11 // pred_fallthru
          _
        // Predicated region
        $region17: #{dense_block_forward.13} parent=11 // pred_check
          %p204 = pneg %p87
        $region18: #{dense_block_forward.13} parent=11 // pred_check_branch
          %206 = sbr.rel (%p204) target = $region20
        $region19: #{dense_block_forward.13} parent=11 // pred_region
          _
        $region20: #{dense_block_forward.13} parent=11 // pred_fallthru
          _
        // Predicated region
        $region21: #{dense_block_forward.13} parent=11 // pred_check
          %p207 = pneg %p108
        $region22: #{dense_block_forward.13} parent=11 // pred_check_branch
          %209 = sbr.rel (%p207) target = $region24
        $region23: #{dense_block_forward.13} parent=11 // pred_region
          _
        $region24: #{dense_block_forward.13} parent=11 // pred_fallthru
          _
      $region12: #{dense_block_forward.13} parent=5 // pred_fallthru
        _
      %p210 = scmp.lt.s32.totalorder %s19, 2
      // Predicated region
      $region25: #{dense_block_forward.13} parent=5 // pred_check
        %p211 = pneg %p210
      $region26: #{dense_block_forward.13} parent=5 // pred_check_branch
        %213 = sbr.rel (%p211) target = $region28
      $region27: #{dense_block_forward.13} parent=5 // pred_region
        // Predicated region
        $region29: #{dense_block_forward.13} parent=27 // pred_check
          %p214 = pneg %p39
        $region30: #{dense_block_forward.13} parent=27 // pred_check_branch
          %216 = sbr.rel (%p214) target = $region32
        $region31: #{dense_block_forward.13} parent=27 // pred_region
          %s217 = smul.u32 32, %s19
          %p218 = scmp.lt.s32.totalorder %s217, 63
          %s219 = scalar_select %p218, %s217, 63
          %s220 = smul.addr %s219, 8
          %s221 = scalar_lea.vmem %s0, %s220
          %s222 = smul.u32 32, %s19
        $region32: #{dense_block_forward.13} parent=27 // pred_fallthru
          _
      $region28: #{dense_block_forward.13} parent=5 // pred_fallthru
        _
      %p223 = scmp.le.s32.totalorder 1, %s19
      %p224 = scmp.lt.s32.totalorder %s19, 3
      %p225 = pnand %p223, %p224
      %p226 = pneg %p225
      // Predicated region
      $region33: #{dense_block_forward.13} parent=5 // pred_check
        _
      $region34: #{dense_block_forward.13} parent=5 // pred_check_branch
        %228 = sbr.rel (%p225) target = $region36
      $region35: #{dense_block_forward.13} parent=5 // pred_region
        %s229 = ssub.s32 %s19, 1
        %s230 = smul.u32 32, %s24
        %p231 = scmp.lt.s32.totalorder %s230, 63
        %s232 = scalar_select %p231, %s230, 63
        %s233 = smul.addr %s232, 8
        %s234 = scalar_lea.vmem %s0, %s233
        %p235 = pneg %p45
        %p236 = pneg %p42
        %p237 = pneg %p66
        %p238 = pneg %p63
        %p239 = pneg %p87
        %p240 = pneg %p84
        %p241 = pneg %p108
        %p242 = pneg %p105
        %p243 = pneg %p134
        %p244 = pneg %p131
        %s245 = smul.u32 32, %s24
        %p246 = scmp.lt.s32.totalorder %s245, 63
        %s247 = scalar_select %p246, %s245, 63
        %s248 = smul.addr %s247, 8
        %s249 = scalar_lea.vmem %s4, %s248
        %p250 = pneg %p160
        %p251 = pneg %p157
        %s252 = sand.u32 %s147, 1
        %s253 = scalar_lea.sflag [#allocation4], %s252
        %s254 = sand.u32 %s147, 1
        %s255 = scalar_lea.vmem [#allocation3], %s254
        %p256 = pneg %p186
        %p257 = pneg %p183
        %s258 = sand.u32 %s173, 1
        %s259 = scalar_lea.sflag [#allocation6], %s258
        %s260 = sand.u32 %s173, 1
        %s261 = scalar_lea.vmem [#allocation5], %s260
        %s262 = smul.u32 32, %s24
        %p263 = scmp.lt.s32.totalorder %s262, 63
        %s264 = scalar_select %p263, %s262, 63
        %s265 = smul.addr %s264, 8
        %s266 = scalar_lea.vmem %s0, %s265
        %s267 = smul.u32 32, %s24
        %s268 = smul.u32 32, %s24
        %p269 = scmp.lt.s32.totalorder %s268, 63
        %s270 = scalar_select %p269, %s268, 63
        %s271 = smul.addr %s270, 8
        %s272 = scalar_lea.vmem %s4, %s271
        %s273 = smul.u32 32, %s24
        %v275 = vld [vmem:[%s266] sm:$0xff]
        %v276 = vld [vmem:[%s266 + $0x8] sm:$0xff]
        %v277 = vld [vmem:[%s266 + $0x10] sm:$0xff]
        %v278 = vld [vmem:[%s266 + $0x18] sm:$0xff]
        %v279 = vld [vmem:[%s266 + $0x20] sm:$0xff]
        %v280 = vld [vmem:[%s266 + $0x28] sm:$0xff]
        %v281 = vld [vmem:[%s266 + $0x30] sm:$0xff]
        %v282 = vld [vmem:[%s266 + $0x38] sm:$0xff]
        %v283 = vld [vmem:[%s266 + $0x40] sm:$0xff]
        %v284 = vld [vmem:[%s266 + $0x48] sm:$0xff]
        %v285 = vld [vmem:[%s266 + $0x50] sm:$0xff]
        %v286 = vld [vmem:[%s266 + $0x58] sm:$0xff]
        %v287 = vld [vmem:[%s266 + $0x60] sm:$0xff]
        %v288 = vld [vmem:[%s266 + $0x68] sm:$0xff]
        %v289 = vld [vmem:[%s266 + $0x70] sm:$0xff]
        %v290 = vld [vmem:[%s266 + $0x78] sm:$0xff]
        %v291 = vld [vmem:[%s266 + $0x80] sm:$0xff]
        %v292 = vld [vmem:[%s266 + $0x88] sm:$0xff]
        %v293 = vld [vmem:[%s266 + $0x90] sm:$0xff]
        %v294 = vld [vmem:[%s266 + $0x98] sm:$0xff]
        %v295 = vld [vmem:[%s266 + $0xa0] sm:$0xff]
        %v296 = vld [vmem:[%s266 + $0xa8] sm:$0xff]
        %v297 = vld [vmem:[%s266 + $0xb0] sm:$0xff]
        %v298 = vld [vmem:[%s266 + $0xb8] sm:$0xff]
        %v299 = vld [vmem:[%s266 + $0xc0] sm:$0xff]
        %v300 = vld [vmem:[%s266 + $0xc8] sm:$0xff]
        %v301 = vld [vmem:[%s266 + $0xd0] sm:$0xff]
        %v302 = vld [vmem:[%s266 + $0xd8] sm:$0xff]
        %v303 = vld [vmem:[%s266 + $0xe0] sm:$0xff]
        %v304 = vld [vmem:[%s266 + $0xe8] sm:$0xff]
        %v305 = vld [vmem:[%s266 + $0xf0] sm:$0xff]
        %v306 = vld [vmem:[%s266 + $0xf8] sm:$0xff]
        %v307 = vld [vmem:[%s1] sm:$0x1]
        %v309 = vperm.slane %v307, 0
        %v311 = vmul.f32 %v275, %v309
        %v312 = vmul.f32 %v276, %v309
        %v313 = vmul.f32 %v277, %v309
        %v314 = vmul.f32 %v278, %v309
        %v315 = vmul.f32 %v279, %v309
        %v316 = vmul.f32 %v280, %v309
        %v317 = vmul.f32 %v281, %v309
        %v318 = vmul.f32 %v282, %v309
        %v319 = vmul.f32 %v283, %v309
        %v320 = vmul.f32 %v284, %v309
        %v321 = vmul.f32 %v285, %v309
        %v322 = vmul.f32 %v286, %v309
        %v323 = vmul.f32 %v287, %v309
        %v324 = vmul.f32 %v288, %v309
        %v325 = vmul.f32 %v289, %v309
        %v326 = vmul.f32 %v290, %v309
        %v327 = vmul.f32 %v291, %v309
        %v328 = vmul.f32 %v292, %v309
        %v329 = vmul.f32 %v293, %v309
        %v330 = vmul.f32 %v294, %v309
        %v331 = vmul.f32 %v295, %v309
        %v332 = vmul.f32 %v296, %v309
        %v333 = vmul.f32 %v297, %v309
        %v334 = vmul.f32 %v298, %v309
        %v335 = vmul.f32 %v299, %v309
        %v336 = vmul.f32 %v300, %v309
        %v337 = vmul.f32 %v301, %v309
        %v338 = vmul.f32 %v302, %v309
        %v339 = vmul.f32 %v303, %v309
        %v340 = vmul.f32 %v304, %v309
        %v341 = vmul.f32 %v305, %v309
        %v342 = vmul.f32 %v306, %v309
        %v343 = vld [vmem:[%s2] sm:$0x1]
        %v345 = vperm.slane %v343, 0
        %v347 = vadd.f32 %v311, %v345
        %v348 = vadd.f32 %v312, %v345
        %v349 = vadd.f32 %v313, %v345
        %v350 = vadd.f32 %v314, %v345
        %v351 = vadd.f32 %v315, %v345
        %v352 = vadd.f32 %v316, %v345
        %v353 = vadd.f32 %v317, %v345
        %v354 = vadd.f32 %v318, %v345
        %v355 = vadd.f32 %v319, %v345
        %v356 = vadd.f32 %v320, %v345
        %v357 = vadd.f32 %v321, %v345
        %v358 = vadd.f32 %v322, %v345
        %v359 = vadd.f32 %v323, %v345
        %v360 = vadd.f32 %v324, %v345
        %v361 = vadd.f32 %v325, %v345
        %v362 = vadd.f32 %v326, %v345
        %v363 = vadd.f32 %v327, %v345
        %v364 = vadd.f32 %v328, %v345
        %v365 = vadd.f32 %v329, %v345
        %v366 = vadd.f32 %v330, %v345
        %v367 = vadd.f32 %v331, %v345
        %v368 = vadd.f32 %v332, %v345
        %v369 = vadd.f32 %v333, %v345
        %v370 = vadd.f32 %v334, %v345
        %v371 = vadd.f32 %v335, %v345
        %v372 = vadd.f32 %v336, %v345
        %v373 = vadd.f32 %v337, %v345
        %v374 = vadd.f32 %v338, %v345
        %v375 = vadd.f32 %v339, %v345
        %v376 = vadd.f32 %v340, %v345
        %v377 = vadd.f32 %v341, %v345
        %v378 = vadd.f32 %v342, %v345
        %v379 = vmax.f32 %v347, 0.0
        %v380 = vmax.f32 %v348, 0.0
        %v381 = vmax.f32 %v349, 0.0
        %v382 = vmax.f32 %v350, 0.0
        %v383 = vmax.f32 %v351, 0.0
        %v384 = vmax.f32 %v352, 0.0
        %v385 = vmax.f32 %v353, 0.0
        %v386 = vmax.f32 %v354, 0.0
        %v387 = vmax.f32 %v355, 0.0
        %v388 = vmax.f32 %v356, 0.0
        %v389 = vmax.f32 %v357, 0.0
        %v390 = vmax.f32 %v358, 0.0
        %v391 = vmax.f32 %v359, 0.0
        %v392 = vmax.f32 %v360, 0.0
        %v393 = vmax.f32 %v361, 0.0
        %v394 = vmax.f32 %v362, 0.0
        %v395 = vmax.f32 %v363, 0.0
        %v396 = vmax.f32 %v364, 0.0
        %v397 = vmax.f32 %v365, 0.0
        %v398 = vmax.f32 %v366, 0.0
        %v399 = vmax.f32 %v367, 0.0
        %v400 = vmax.f32 %v368, 0.0
        %v401 = vmax.f32 %v369, 0.0
        %v402 = vmax.f32 %v370, 0.0
        %v403 = vmax.f32 %v371, 0.0
        %v404 = vmax.f32 %v372, 0.0
        %v405 = vmax.f32 %v373, 0.0
        %v406 = vmax.f32 %v374, 0.0
        %v407 = vmax.f32 %v375, 0.0
        %v408 = vmax.f32 %v376, 0.0
        %v409 = vmax.f32 %v377, 0.0
        %v410 = vmax.f32 %v378, 0.0
        %vm411 = vcmask 130048
        %412 = vst.msk [vmem:[#allocation2] sm:$0xff] %vm411, 0.0
        %413 = vst.msk [vmem:[#allocation2 + $0x8] sm:$0xff] %vm411, 0.0
        %vm414 = vcmask 123904
        %415 = vst.msk [vmem:[#allocation2 + $0x10] sm:$0x3] %vm414, 0.0
        %416 = vst.msk [vmem:[#allocation2 + $0x18] sm:$0xff] %vm411, 0.0
        %417 = vst.msk [vmem:[#allocation2 + $0x20] sm:$0xff] %vm411, 0.0
        %418 = vst.msk [vmem:[#allocation2 + $0x28] sm:$0x3] %vm414, 0.0
        %419 = vst.msk [vmem:[#allocation2 + $0x30] sm:$0xff] %vm411, 0.0
        %420 = vst.msk [vmem:[#allocation2 + $0x38] sm:$0xff] %vm411, 0.0
        %421 = vst.msk [vmem:[#allocation2 + $0x40] sm:$0x3] %vm414, 0.0
        %422 = vst.msk [vmem:[#allocation2 + $0x48] sm:$0xff] %vm411, 0.0
        %423 = vst.msk [vmem:[#allocation2 + $0x50] sm:$0xff] %vm411, 0.0
        %424 = vst.msk [vmem:[#allocation2 + $0x58] sm:$0x3] %vm414, 0.0
        %425 = vst.msk [vmem:[#allocation2 + $0x60] sm:$0xff] %vm411, 0.0
        %426 = vst.msk [vmem:[#allocation2 + $0x68] sm:$0xff] %vm411, 0.0
        %427 = vst.msk [vmem:[#allocation2 + $0x70] sm:$0x3] %vm414, 0.0
        %428 = vst.msk [vmem:[#allocation2 + $0x78] sm:$0xff] %vm411, 0.0
        %429 = vst.msk [vmem:[#allocation2 + $0x80] sm:$0xff] %vm411, 0.0
        %430 = vst.msk [vmem:[#allocation2 + $0x88] sm:$0x3] %vm414, 0.0
        %431 = vst.msk [vmem:[#allocation2 + $0x90] sm:$0xff] %vm411, 0.0
        %432 = vst.msk [vmem:[#allocation2 + $0x98] sm:$0xff] %vm411, 0.0
        %433 = vst.msk [vmem:[#allocation2 + $0xa0] sm:$0x3] %vm414, 0.0
        %434 = vst.msk [vmem:[#allocation2 + $0xa8] sm:$0xff] %vm411, 0.0
        %435 = vst.msk [vmem:[#allocation2 + $0xb0] sm:$0xff] %vm411, 0.0
        %436 = vst.msk [vmem:[#allocation2 + $0xb8] sm:$0x3] %vm414, 0.0
        %437 = vst.msk [vmem:[#allocation2 + $0xc0] sm:$0xff] %vm411, 0.0
        %438 = vst.msk [vmem:[#allocation2 + $0xc8] sm:$0xff] %vm411, 0.0
        %439 = vst.msk [vmem:[#allocation2 + $0xd0] sm:$0x3] %vm414, 0.0
        %440 = vst.msk [vmem:[#allocation2 + $0xd8] sm:$0xff] %vm411, 0.0
        %441 = vst.msk [vmem:[#allocation2 + $0xe0] sm:$0xff] %vm411, 0.0
        %442 = vst.msk [vmem:[#allocation2 + $0xe8] sm:$0x3] %vm414, 0.0
        %443 = vst.msk [vmem:[#allocation2 + $0xf0] sm:$0xff] %vm411, 0.0
        %444 = vst.msk [vmem:[#allocation2 + $0xf8] sm:$0xff] %vm411, 0.0
        %445 = vst.msk [vmem:[#allocation2 + $0x100] sm:$0x3] %vm414, 0.0
        %446 = vst.msk [vmem:[#allocation2 + $0x108] sm:$0xff] %vm411, 0.0
        %447 = vst.msk [vmem:[#allocation2 + $0x110] sm:$0xff] %vm411, 0.0
        %448 = vst.msk [vmem:[#allocation2 + $0x118] sm:$0x3] %vm414, 0.0
        %449 = vst.msk [vmem:[#allocation2 + $0x120] sm:$0xff] %vm411, 0.0
        %450 = vst.msk [vmem:[#allocation2 + $0x128] sm:$0xff] %vm411, 0.0
        %451 = vst.msk [vmem:[#allocation2 + $0x130] sm:$0x3] %vm414, 0.0
        %452 = vst.msk [vmem:[#allocation2 + $0x138] sm:$0xff] %vm411, 0.0
        %453 = vst.msk [vmem:[#allocation2 + $0x140] sm:$0xff] %vm411, 0.0
        %454 = vst.msk [vmem:[#allocation2 + $0x148] sm:$0x3] %vm414, 0.0
        %455 = vst.msk [vmem:[#allocation2 + $0x150] sm:$0xff] %vm411, 0.0
        %456 = vst.msk [vmem:[#allocation2 + $0x158] sm:$0xff] %vm411, 0.0
        %457 = vst.msk [vmem:[#allocation2 + $0x160] sm:$0x3] %vm414, 0.0
        %458 = vst.msk [vmem:[#allocation2 + $0x168] sm:$0xff] %vm411, 0.0
        %459 = vst.msk [vmem:[#allocation2 + $0x170] sm:$0xff] %vm411, 0.0
        %460 = vst.msk [vmem:[#allocation2 + $0x178] sm:$0x3] %vm414, 0.0
        %461 = vst.msk [vmem:[#allocation2 + $0x180] sm:$0xff] %vm411, 0.0
        %462 = vst.msk [vmem:[#allocation2 + $0x188] sm:$0xff] %vm411, 0.0
        %463 = vst.msk [vmem:[#allocation2 + $0x190] sm:$0x3] %vm414, 0.0
        %464 = vst.msk [vmem:[#allocation2 + $0x198] sm:$0xff] %vm411, 0.0
        %465 = vst.msk [vmem:[#allocation2 + $0x1a0] sm:$0xff] %vm411, 0.0
        %466 = vst.msk [vmem:[#allocation2 + $0x1a8] sm:$0x3] %vm414, 0.0
        %s467 = scalar_lea.vmem [#allocation2], 24
        %468 = vst.msk [vmem:[%s467 + $0x1] sm:$0xff] %vm411, %v379
        %469 = vst.msk [vmem:[%s467 + $0x9] sm:$0xff] %vm411, %v380
        %470 = vst.msk [vmem:[%s467 + $0x19] sm:$0xff] %vm411, %v381
        %471 = vst.msk [vmem:[%s467 + $0x21] sm:$0xff] %vm411, %v382
        %472 = vst.msk [vmem:[%s467 + $0x31] sm:$0xff] %vm411, %v383
        %473 = vst.msk [vmem:[%s467 + $0x39] sm:$0xff] %vm411, %v384
        %474 = vst.msk [vmem:[%s467 + $0x49] sm:$0xff] %vm411, %v385
        %475 = vst.msk [vmem:[%s467 + $0x51] sm:$0xff] %vm411, %v386
        %476 = vst.msk [vmem:[%s467 + $0x61] sm:$0xff] %vm411, %v387
        %477 = vst.msk [vmem:[%s467 + $0x69] sm:$0xff] %vm411, %v388
        %478 = vst.msk [vmem:[%s467 + $0x79] sm:$0xff] %vm411, %v389
        %479 = vst.msk [vmem:[%s467 + $0x81] sm:$0xff] %vm411, %v390
        %480 = vst.msk [vmem:[%s467 + $0x91] sm:$0xff] %vm411, %v391
        %481 = vst.msk [vmem:[%s467 + $0x99] sm:$0xff] %vm411, %v392
        %482 = vst.msk [vmem:[%s467 + $0xa9] sm:$0xff] %vm411, %v393
        %483 = vst.msk [vmem:[%s467 + $0xb1] sm:$0xff] %vm411, %v394
        %484 = vst.msk [vmem:[%s467 + $0xc1] sm:$0xff] %vm411, %v395
        %485 = vst.msk [vmem:[%s467 + $0xc9] sm:$0xff] %vm411, %v396
        %486 = vst.msk [vmem:[%s467 + $0xd9] sm:$0xff] %vm411, %v397
        %487 = vst.msk [vmem:[%s467 + $0xe1] sm:$0xff] %vm411, %v398
        %488 = vst.msk [vmem:[%s467 + $0xf1] sm:$0xff] %vm411, %v399
        %489 = vst.msk [vmem:[%s467 + $0xf9] sm:$0xff] %vm411, %v400
        %490 = vst.msk [vmem:[%s467 + $0x109] sm:$0xff] %vm411, %v401
        %491 = vst.msk [vmem:[%s467 + $0x111] sm:$0xff] %vm411, %v402
        %492 = vst.msk [vmem:[%s467 + $0x121] sm:$0xff] %vm411, %v403
        %493 = vst.msk [vmem:[%s467 + $0x129] sm:$0xff] %vm411, %v404
        %494 = vst.msk [vmem:[%s467 + $0x139] sm:$0xff] %vm411, %v405
        %495 = vst.msk [vmem:[%s467 + $0x141] sm:$0xff] %vm411, %v406
        %496 = vst.msk [vmem:[%s467 + $0x151] sm:$0xff] %vm411, %v407
        %497 = vst.msk [vmem:[%s467 + $0x159] sm:$0xff] %vm411, %v408
        %498 = vst.msk [vmem:[%s467 + $0x169] sm:$0xff] %vm411, %v409
        %499 = vst.msk [vmem:[%s467 + $0x171] sm:$0xff] %vm411, %v410
        %v500 = vld [vmem:[#allocation2] sm:$0xff]
        %v501 = vld [vmem:[#allocation2 + $0x8] sm:$0xff]
        %v502 = vld [vmem:[#allocation2 + $0x18] sm:$0xff]
        %v503 = vld [vmem:[#allocation2 + $0x20] sm:$0xff]
        %v504 = vld [vmem:[#allocation2 + $0x30] sm:$0xff]
        %v505 = vld [vmem:[#allocation2 + $0x38] sm:$0xff]
        %v506 = vld [vmem:[#allocation2 + $0x48] sm:$0xff]
        %v507 = vld [vmem:[#allocation2 + $0x50] sm:$0xff]
        %v508 = vld [vmem:[#allocation2 + $0x60] sm:$0xff]
        %v509 = vld [vmem:[#allocation2 + $0x68] sm:$0xff]
        %v510 = vld [vmem:[#allocation2 + $0x78] sm:$0xff]
        %v511 = vld [vmem:[#allocation2 + $0x80] sm:$0xff]
        %v512 = vld [vmem:[#allocation2 + $0x90] sm:$0xff]
        %v513 = vld [vmem:[#allocation2 + $0x98] sm:$0xff]
        %v514 = vld [vmem:[#allocation2 + $0xa8] sm:$0xff]
        %v515 = vld [vmem:[#allocation2 + $0xb0] sm:$0xff]
        %v516 = vld [vmem:[#allocation2 + $0xc0] sm:$0xff]
        %v517 = vld [vmem:[#allocation2 + $0xc8] sm:$0xff]
        %v518 = vld [vmem:[#allocation2 + $0xd8] sm:$0xff]
        %v519 = vld [vmem:[#allocation2 + $0xe0] sm:$0xff]
        %v520 = vld [vmem:[#allocation2 + $0xf0] sm:$0xff]
        %v521 = vld [vmem:[#allocation2 + $0xf8] sm:$0xff]
        %v522 = vld [vmem:[#allocation2 + $0x108] sm:$0xff]
        %v523 = vld [vmem:[#allocation2 + $0x110] sm:$0xff]
        %v524 = vld [vmem:[#allocation2 + $0x120] sm:$0xff]
        %v525 = vld [vmem:[#allocation2 + $0x128] sm:$0xff]
        %v526 = vld [vmem:[#allocation2 + $0x138] sm:$0xff]
        %v527 = vld [vmem:[#allocation2 + $0x140] sm:$0xff]
        %v528 = vld [vmem:[#allocation2 + $0x150] sm:$0xff]
        %v529 = vld [vmem:[#allocation2 + $0x158] sm:$0xff]
        %v530 = vld [vmem:[#allocation2 + $0x168] sm:$0xff]
        %v531 = vld [vmem:[#allocation2 + $0x170] sm:$0xff]
        %v532 = vld [vmem:[#allocation2 + $0x1] sm:$0xff]
        %v533 = vld [vmem:[#allocation2 + $0x9] sm:$0xff]
        %v534 = vld [vmem:[#allocation2 + $0x19] sm:$0xff]
        %v535 = vld [vmem:[#allocation2 + $0x21] sm:$0xff]
        %v536 = vld [vmem:[#allocation2 + $0x31] sm:$0xff]
        %v537 = vld [vmem:[#allocation2 + $0x39] sm:$0xff]
        %v538 = vld [vmem:[#allocation2 + $0x49] sm:$0xff]
        %v539 = vld [vmem:[#allocation2 + $0x51] sm:$0xff]
        %v540 = vld [vmem:[#allocation2 + $0x61] sm:$0xff]
        %v541 = vld [vmem:[#allocation2 + $0x69] sm:$0xff]
        %v542 = vld [vmem:[#allocation2 + $0x79] sm:$0xff]
        %v543 = vld [vmem:[#allocation2 + $0x81] sm:$0xff]
        %v544 = vld [vmem:[#allocation2 + $0x91] sm:$0xff]
        %v545 = vld [vmem:[#allocation2 + $0x99] sm:$0xff]
        %v546 = vld [vmem:[#allocation2 + $0xa9] sm:$0xff]
        %v547 = vld [vmem:[#allocation2 + $0xb1] sm:$0xff]
        %v548 = vld [vmem:[#allocation2 + $0xc1] sm:$0xff]
        %v549 = vld [vmem:[#allocation2 + $0xc9] sm:$0xff]
        %v550 = vld [vmem:[#allocation2 + $0xd9] sm:$0xff]
        %v551 = vld [vmem:[#allocation2 + $0xe1] sm:$0xff]
        %v552 = vld [vmem:[#allocation2 + $0xf1] sm:$0xff]
        %v553 = vld [vmem:[#allocation2 + $0xf9] sm:$0xff]
        %v554 = vld [vmem:[#allocation2 + $0x109] sm:$0xff]
        %v555 = vld [vmem:[#allocation2 + $0x111] sm:$0xff]
        %v556 = vld [vmem:[#allocation2 + $0x121] sm:$0xff]
        %v557 = vld [vmem:[#allocation2 + $0x129] sm:$0xff]
        %v558 = vld [vmem:[#allocation2 + $0x139] sm:$0xff]
        %v559 = vld [vmem:[#allocation2 + $0x141] sm:$0xff]
        %v560 = vld [vmem:[#allocation2 + $0x151] sm:$0xff]
        %v561 = vld [vmem:[#allocation2 + $0x159] sm:$0xff]
        %v562 = vld [vmem:[#allocation2 + $0x169] sm:$0xff]
        %v563 = vld [vmem:[#allocation2 + $0x171] sm:$0xff]
        %v564 = vld [vmem:[#allocation2 + $0x2] sm:$0xff]
        %v565 = vld [vmem:[#allocation2 + $0xa] sm:$0xff]
        %v566 = vld [vmem:[#allocation2 + $0x1a] sm:$0xff]
        %v567 = vld [vmem:[#allocation2 + $0x22] sm:$0xff]
        %v568 = vld [vmem:[#allocation2 + $0x32] sm:$0xff]
        %v569 = vld [vmem:[#allocation2 + $0x3a] sm:$0xff]
        %v570 = vld [vmem:[#allocation2 + $0x4a] sm:$0xff]
        %v571 = vld [vmem:[#allocation2 + $0x52] sm:$0xff]
        %v572 = vld [vmem:[#allocation2 + $0x62] sm:$0xff]
        %v573 = vld [vmem:[#allocation2 + $0x6a] sm:$0xff]
        %v574 = vld [vmem:[#allocation2 + $0x7a] sm:$0xff]
        %v575 = vld [vmem:[#allocation2 + $0x82] sm:$0xff]
        %v576 = vld [vmem:[#allocation2 + $0x92] sm:$0xff]
        %v577 = vld [vmem:[#allocation2 + $0x9a] sm:$0xff]
        %v578 = vld [vmem:[#allocation2 + $0xaa] sm:$0xff]
        %v579 = vld [vmem:[#allocation2 + $0xb2] sm:$0xff]
        %v580 = vld [vmem:[#allocation2 + $0xc2] sm:$0xff]
        %v581 = vld [vmem:[#allocation2 + $0xca] sm:$0xff]
        %v582 = vld [vmem:[#allocation2 + $0xda] sm:$0xff]
        %v583 = vld [vmem:[#allocation2 + $0xe2] sm:$0xff]
        %v584 = vld [vmem:[#allocation2 + $0xf2] sm:$0xff]
        %v585 = vld [vmem:[#allocation2 + $0xfa] sm:$0xff]
        %v586 = vld [vmem:[#allocation2 + $0x10a] sm:$0xff]
        %v587 = vld [vmem:[#allocation2 + $0x112] sm:$0xff]
        %v588 = vld [vmem:[#allocation2 + $0x122] sm:$0xff]
        %v589 = vld [vmem:[#allocation2 + $0x12a] sm:$0xff]
        %v590 = vld [vmem:[#allocation2 + $0x13a] sm:$0xff]
        %v591 = vld [vmem:[#allocation2 + $0x142] sm:$0xff]
        %v592 = vld [vmem:[#allocation2 + $0x152] sm:$0xff]
        %v593 = vld [vmem:[#allocation2 + $0x15a] sm:$0xff]
        %v594 = vld [vmem:[#allocation2 + $0x16a] sm:$0xff]
        %v595 = vld [vmem:[#allocation2 + $0x172] sm:$0xff]
        %v596 = vld [vmem:[%s467] sm:$0xff]
        %v597 = vld [vmem:[%s467 + $0x8] sm:$0xff]
        %v598 = vld [vmem:[%s467 + $0x18] sm:$0xff]
        %v599 = vld [vmem:[%s467 + $0x20] sm:$0xff]
        %v600 = vld [vmem:[%s467 + $0x30] sm:$0xff]
        %v601 = vld [vmem:[%s467 + $0x38] sm:$0xff]
        %v602 = vld [vmem:[%s467 + $0x48] sm:$0xff]
        %v603 = vld [vmem:[%s467 + $0x50] sm:$0xff]
        %v604 = vld [vmem:[%s467 + $0x60] sm:$0xff]
        %v605 = vld [vmem:[%s467 + $0x68] sm:$0xff]
        %v606 = vld [vmem:[%s467 + $0x78] sm:$0xff]
        %v607 = vld [vmem:[%s467 + $0x80] sm:$0xff]
        %v608 = vld [vmem:[%s467 + $0x90] sm:$0xff]
        %v609 = vld [vmem:[%s467 + $0x98] sm:$0xff]
        %v610 = vld [vmem:[%s467 + $0xa8] sm:$0xff]
        %v611 = vld [vmem:[%s467 + $0xb0] sm:$0xff]
        %v612 = vld [vmem:[%s467 + $0xc0] sm:$0xff]
        %v613 = vld [vmem:[%s467 + $0xc8] sm:$0xff]
        %v614 = vld [vmem:[%s467 + $0xd8] sm:$0xff]
        %v615 = vld [vmem:[%s467 + $0xe0] sm:$0xff]
        %v616 = vld [vmem:[%s467 + $0xf0] sm:$0xff]
        %v617 = vld [vmem:[%s467 + $0xf8] sm:$0xff]
        %v618 = vld [vmem:[%s467 + $0x108] sm:$0xff]
        %v619 = vld [vmem:[%s467 + $0x110] sm:$0xff]
        %v620 = vld [vmem:[%s467 + $0x120] sm:$0xff]
        %v621 = vld [vmem:[%s467 + $0x128] sm:$0xff]
        %v622 = vld [vmem:[%s467 + $0x138] sm:$0xff]
        %v623 = vld [vmem:[%s467 + $0x140] sm:$0xff]
        %v624 = vld [vmem:[%s467 + $0x150] sm:$0xff]
        %v625 = vld [vmem:[%s467 + $0x158] sm:$0xff]
        %v626 = vld [vmem:[%s467 + $0x168] sm:$0xff]
        %v627 = vld [vmem:[%s467 + $0x170] sm:$0xff]
        %v628 = vld [vmem:[%s467 + $0x1] sm:$0xff]
        %v629 = vld [vmem:[%s467 + $0x9] sm:$0xff]
        %v630 = vld [vmem:[%s467 + $0x19] sm:$0xff]
        %v631 = vld [vmem:[%s467 + $0x21] sm:$0xff]
        %v632 = vld [vmem:[%s467 + $0x31] sm:$0xff]
        %v633 = vld [vmem:[%s467 + $0x39] sm:$0xff]
        %v634 = vld [vmem:[%s467 + $0x49] sm:$0xff]
        %v635 = vld [vmem:[%s467 + $0x51] sm:$0xff]
        %v636 = vld [vmem:[%s467 + $0x61] sm:$0xff]
        %v637 = vld [vmem:[%s467 + $0x69] sm:$0xff]
        %v638 = vld [vmem:[%s467 + $0x79] sm:$0xff]
        %v639 = vld [vmem:[%s467 + $0x81] sm:$0xff]
        %v640 = vld [vmem:[%s467 + $0x91] sm:$0xff]
        %v641 = vld [vmem:[%s467 + $0x99] sm:$0xff]
        %v642 = vld [vmem:[%s467 + $0xa9] sm:$0xff]
        %v643 = vld [vmem:[%s467 + $0xb1] sm:$0xff]
        %v644 = vld [vmem:[%s467 + $0xc1] sm:$0xff]
        %v645 = vld [vmem:[%s467 + $0xc9] sm:$0xff]
        %v646 = vld [vmem:[%s467 + $0xd9] sm:$0xff]
        %v647 = vld [vmem:[%s467 + $0xe1] sm:$0xff]
        %v648 = vld [vmem:[%s467 + $0xf1] sm:$0xff]
        %v649 = vld [vmem:[%s467 + $0xf9] sm:$0xff]
        %v650 = vld [vmem:[%s467 + $0x109] sm:$0xff]
        %v651 = vld [vmem:[%s467 + $0x111] sm:$0xff]
        %v652 = vld [vmem:[%s467 + $0x121] sm:$0xff]
        %v653 = vld [vmem:[%s467 + $0x129] sm:$0xff]
        %v654 = vld [vmem:[%s467 + $0x139] sm:$0xff]
        %v655 = vld [vmem:[%s467 + $0x141] sm:$0xff]
        %v656 = vld [vmem:[%s467 + $0x151] sm:$0xff]
        %v657 = vld [vmem:[%s467 + $0x159] sm:$0xff]
        %v658 = vld [vmem:[%s467 + $0x169] sm:$0xff]
        %v659 = vld [vmem:[%s467 + $0x171] sm:$0xff]
        %v660 = vld [vmem:[%s467 + $0x2] sm:$0xff]
        %v661 = vld [vmem:[%s467 + $0xa] sm:$0xff]
        %v662 = vld [vmem:[%s467 + $0x1a] sm:$0xff]
        %v663 = vld [vmem:[%s467 + $0x22] sm:$0xff]
        %v664 = vld [vmem:[%s467 + $0x32] sm:$0xff]
        %v665 = vld [vmem:[%s467 + $0x3a] sm:$0xff]
        %v666 = vld [vmem:[%s467 + $0x4a] sm:$0xff]
        %v667 = vld [vmem:[%s467 + $0x52] sm:$0xff]
        %v668 = vld [vmem:[%s467 + $0x62] sm:$0xff]
        %v669 = vld [vmem:[%s467 + $0x6a] sm:$0xff]
        %v670 = vld [vmem:[%s467 + $0x7a] sm:$0xff]
        %v671 = vld [vmem:[%s467 + $0x82] sm:$0xff]
        %v672 = vld [vmem:[%s467 + $0x92] sm:$0xff]
        %v673 = vld [vmem:[%s467 + $0x9a] sm:$0xff]
        %v674 = vld [vmem:[%s467 + $0xaa] sm:$0xff]
        %v675 = vld [vmem:[%s467 + $0xb2] sm:$0xff]
        %v676 = vld [vmem:[%s467 + $0xc2] sm:$0xff]
        %v677 = vld [vmem:[%s467 + $0xca] sm:$0xff]
        %v678 = vld [vmem:[%s467 + $0xda] sm:$0xff]
        %v679 = vld [vmem:[%s467 + $0xe2] sm:$0xff]
        %v680 = vld [vmem:[%s467 + $0xf2] sm:$0xff]
        %v681 = vld [vmem:[%s467 + $0xfa] sm:$0xff]
        %v682 = vld [vmem:[%s467 + $0x10a] sm:$0xff]
        %v683 = vld [vmem:[%s467 + $0x112] sm:$0xff]
        %v684 = vld [vmem:[%s467 + $0x122] sm:$0xff]
        %v685 = vld [vmem:[%s467 + $0x12a] sm:$0xff]
        %v686 = vld [vmem:[%s467 + $0x13a] sm:$0xff]
        %v687 = vld [vmem:[%s467 + $0x142] sm:$0xff]
        %v688 = vld [vmem:[%s467 + $0x152] sm:$0xff]
        %v689 = vld [vmem:[%s467 + $0x15a] sm:$0xff]
        %v690 = vld [vmem:[%s467 + $0x16a] sm:$0xff]
        %v691 = vld [vmem:[%s467 + $0x172] sm:$0xff]
        %s692 = scalar_lea.vmem [#allocation2], 48
        %v693 = vld [vmem:[%s692] sm:$0xff]
        %v694 = vld [vmem:[%s692 + $0x8] sm:$0xff]
        %v695 = vld [vmem:[%s692 + $0x18] sm:$0xff]
        %v696 = vld [vmem:[%s692 + $0x20] sm:$0xff]
        %v697 = vld [vmem:[%s692 + $0x30] sm:$0xff]
        %v698 = vld [vmem:[%s692 + $0x38] sm:$0xff]
        %v699 = vld [vmem:[%s692 + $0x48] sm:$0xff]
        %v700 = vld [vmem:[%s692 + $0x50] sm:$0xff]
        %v701 = vld [vmem:[%s692 + $0x60] sm:$0xff]
        %v702 = vld [vmem:[%s692 + $0x68] sm:$0xff]
        %v703 = vld [vmem:[%s692 + $0x78] sm:$0xff]
        %v704 = vld [vmem:[%s692 + $0x80] sm:$0xff]
        %v705 = vld [vmem:[%s692 + $0x90] sm:$0xff]
        %v706 = vld [vmem:[%s692 + $0x98] sm:$0xff]
        %v707 = vld [vmem:[%s692 + $0xa8] sm:$0xff]
        %v708 = vld [vmem:[%s692 + $0xb0] sm:$0xff]
        %v709 = vld [vmem:[%s692 + $0xc0] sm:$0xff]
        %v710 = vld [vmem:[%s692 + $0xc8] sm:$0xff]
        %v711 = vld [vmem:[%s692 + $0xd8] sm:$0xff]
        %v712 = vld [vmem:[%s692 + $0xe0] sm:$0xff]
        %v713 = vld [vmem:[%s692 + $0xf0] sm:$0xff]
        %v714 = vld [vmem:[%s692 + $0xf8] sm:$0xff]
        %v715 = vld [vmem:[%s692 + $0x108] sm:$0xff]
        %v716 = vld [vmem:[%s692 + $0x110] sm:$0xff]
        %v717 = vld [vmem:[%s692 + $0x120] sm:$0xff]
        %v718 = vld [vmem:[%s692 + $0x128] sm:$0xff]
        %v719 = vld [vmem:[%s692 + $0x138] sm:$0xff]
        %v720 = vld [vmem:[%s692 + $0x140] sm:$0xff]
        %v721 = vld [vmem:[%s692 + $0x150] sm:$0xff]
        %v722 = vld [vmem:[%s692 + $0x158] sm:$0xff]
        %v723 = vld [vmem:[%s692 + $0x168] sm:$0xff]
        %v724 = vld [vmem:[%s692 + $0x170] sm:$0xff]
        %v725 = vld [vmem:[%s692 + $0x1] sm:$0xff]
        %v726 = vld [vmem:[%s692 + $0x9] sm:$0xff]
        %v727 = vld [vmem:[%s692 + $0x19] sm:$0xff]
        %v728 = vld [vmem:[%s692 + $0x21] sm:$0xff]
        %v729 = vld [vmem:[%s692 + $0x31] sm:$0xff]
        %v730 = vld [vmem:[%s692 + $0x39] sm:$0xff]
        %v731 = vld [vmem:[%s692 + $0x49] sm:$0xff]
        %v732 = vld [vmem:[%s692 + $0x51] sm:$0xff]
        %v733 = vld [vmem:[%s692 + $0x61] sm:$0xff]
        %v734 = vld [vmem:[%s692 + $0x69] sm:$0xff]
        %v735 = vld [vmem:[%s692 + $0x79] sm:$0xff]
        %v736 = vld [vmem:[%s692 + $0x81] sm:$0xff]
        %v737 = vld [vmem:[%s692 + $0x91] sm:$0xff]
        %v738 = vld [vmem:[%s692 + $0x99] sm:$0xff]
        %v739 = vld [vmem:[%s692 + $0xa9] sm:$0xff]
        %v740 = vld [vmem:[%s692 + $0xb1] sm:$0xff]
        %v741 = vld [vmem:[%s692 + $0xc1] sm:$0xff]
        %v742 = vld [vmem:[%s692 + $0xc9] sm:$0xff]
        %v743 = vld [vmem:[%s692 + $0xd9] sm:$0xff]
        %v744 = vld [vmem:[%s692 + $0xe1] sm:$0xff]
        %v745 = vld [vmem:[%s692 + $0xf1] sm:$0xff]
        %v746 = vld [vmem:[%s692 + $0xf9] sm:$0xff]
        %v747 = vld [vmem:[%s692 + $0x109] sm:$0xff]
        %v748 = vld [vmem:[%s692 + $0x111] sm:$0xff]
        %v749 = vld [vmem:[%s692 + $0x121] sm:$0xff]
        %v750 = vld [vmem:[%s692 + $0x129] sm:$0xff]
        %v751 = vld [vmem:[%s692 + $0x139] sm:$0xff]
        %v752 = vld [vmem:[%s692 + $0x141] sm:$0xff]
        %v753 = vld [vmem:[%s692 + $0x151] sm:$0xff]
        %v754 = vld [vmem:[%s692 + $0x159] sm:$0xff]
        %v755 = vld [vmem:[%s692 + $0x169] sm:$0xff]
        %v756 = vld [vmem:[%s692 + $0x171] sm:$0xff]
        %v757 = vld [vmem:[%s692 + $0x2] sm:$0xff]
        %v758 = vld [vmem:[%s692 + $0xa] sm:$0xff]
        %v759 = vld [vmem:[%s692 + $0x1a] sm:$0xff]
        %v760 = vld [vmem:[%s692 + $0x22] sm:$0xff]
        %v761 = vld [vmem:[%s692 + $0x32] sm:$0xff]
        %v762 = vld [vmem:[%s692 + $0x3a] sm:$0xff]
        %v763 = vld [vmem:[%s692 + $0x4a] sm:$0xff]
        %v764 = vld [vmem:[%s692 + $0x52] sm:$0xff]
        %v765 = vld [vmem:[%s692 + $0x62] sm:$0xff]
        %v766 = vld [vmem:[%s692 + $0x6a] sm:$0xff]
        %v767 = vld [vmem:[%s692 + $0x7a] sm:$0xff]
        %v768 = vld [vmem:[%s692 + $0x82] sm:$0xff]
        %v769 = vld [vmem:[%s692 + $0x92] sm:$0xff]
        %v770 = vld [vmem:[%s692 + $0x9a] sm:$0xff]
        %v771 = vld [vmem:[%s692 + $0xaa] sm:$0xff]
        %v772 = vld [vmem:[%s692 + $0xb2] sm:$0xff]
        %v773 = vld [vmem:[%s692 + $0xc2] sm:$0xff]
        %v774 = vld [vmem:[%s692 + $0xca] sm:$0xff]
        %v775 = vld [vmem:[%s692 + $0xda] sm:$0xff]
        %v776 = vld [vmem:[%s692 + $0xe2] sm:$0xff]
        %v777 = vld [vmem:[%s692 + $0xf2] sm:$0xff]
        %v778 = vld [vmem:[%s692 + $0xfa] sm:$0xff]
        %v779 = vld [vmem:[%s692 + $0x10a] sm:$0xff]
        %v780 = vld [vmem:[%s692 + $0x112] sm:$0xff]
        %v781 = vld [vmem:[%s692 + $0x122] sm:$0xff]
        %v782 = vld [vmem:[%s692 + $0x12a] sm:$0xff]
        %v783 = vld [vmem:[%s692 + $0x13a] sm:$0xff]
        %v784 = vld [vmem:[%s692 + $0x142] sm:$0xff]
        %v785 = vld [vmem:[%s692 + $0x152] sm:$0xff]
        %v786 = vld [vmem:[%s692 + $0x15a] sm:$0xff]
        %v787 = vld [vmem:[%s692 + $0x16a] sm:$0xff]
        %v788 = vld [vmem:[%s692 + $0x172] sm:$0xff]
        %v789 = vpack.c.bf16 %v501, %v500
        %v790 = vpack.c.bf16 %v503, %v502
        %v791 = vpack.c.bf16 %v505, %v504
        %v792 = vpack.c.bf16 %v507, %v506
        %v793 = vpack.c.bf16 %v509, %v508
        %v794 = vpack.c.bf16 %v511, %v510
        %v795 = vpack.c.bf16 %v513, %v512
        %v796 = vpack.c.bf16 %v515, %v514
        %v797 = vpack.c.bf16 %v517, %v516
        %v798 = vpack.c.bf16 %v519, %v518
        %v799 = vpack.c.bf16 %v521, %v520
        %v800 = vpack.c.bf16 %v523, %v522
        %v801 = vpack.c.bf16 %v525, %v524
        %v802 = vpack.c.bf16 %v527, %v526
        %v803 = vpack.c.bf16 %v529, %v528
        %v804 = vpack.c.bf16 %v531, %v530
        %v805 = vld [vmem:[%s3] sm:$0xf]
        %v806 = vld [vmem:[%s3 + $0x4] sm:$0xf]
        %v807 = vpack.c.bf16 %v533, %v532
        %v808 = vpack.c.bf16 %v535, %v534
        %v809 = vpack.c.bf16 %v537, %v536
        %v810 = vpack.c.bf16 %v539, %v538
        %v811 = vpack.c.bf16 %v541, %v540
        %v812 = vpack.c.bf16 %v543, %v542
        %v813 = vpack.c.bf16 %v545, %v544
        %v814 = vpack.c.bf16 %v547, %v546
        %v815 = vpack.c.bf16 %v549, %v548
        %v816 = vpack.c.bf16 %v551, %v550
        %v817 = vpack.c.bf16 %v553, %v552
        %v818 = vpack.c.bf16 %v555, %v554
        %v819 = vpack.c.bf16 %v557, %v556
        %v820 = vpack.c.bf16 %v559, %v558
        %v821 = vpack.c.bf16 %v561, %v560
        %v822 = vpack.c.bf16 %v563, %v562
        %v823 = vld [vmem:[%s3 + $0x8] sm:$0xf]
        %v824 = vld [vmem:[%s3 + $0xc] sm:$0xf]
        %v827 = vunpack.c.l.b16 %v823
        %v828 = vunpack.c.l.b16 %v824
        %v829 = vpack.c.b16 %v828, %v827
        %v832 = vsel %vm411, %v807, 0
        %v835 = vsel %vm411, %v808, 0
        %v838 = vsel %vm411, %v809, 0
        %v841 = vsel %vm411, %v810, 0
        %v844 = vsel %vm411, %v811, 0
        %v847 = vsel %vm411, %v812, 0
        %v850 = vsel %vm411, %v813, 0
        %v853 = vsel %vm411, %v814, 0
        %v856 = vsel %vm411, %v815, 0
        %v859 = vsel %vm411, %v816, 0
        %v862 = vsel %vm411, %v817, 0
        %v865 = vsel %vm411, %v818, 0
        %v868 = vsel %vm411, %v819, 0
        %v871 = vsel %vm411, %v820, 0
        %v874 = vsel %vm411, %v821, 0
        %v877 = vsel %vm411, %v822, 0
        %879 = vmatpush.bf16.msra.mxu0 0
        %880 = vmatpush.bf16.msra.mxu0 0
        %881 = vmatpush.bf16.msra.mxu0 0
        %882 = vmatpush.bf16.msra.mxu0 0
        %883 = vmatpush.bf16.msra.mxu0 0
        %884 = vmatpush.bf16.msra.mxu0 0
        %885 = vmatpush.bf16.msra.mxu0 0
        %886 = vmatpush.bf16.msra.mxu0 %v829
        %887 = vmatmul.bf16.gmra.mxu0 %v832
        %v888 = vpop.f32.mrf.mxu0
        %v889 = vadd.f32 0.0, %v888
        %v890 = vpop.f32.mrf.mxu0
        %v891 = vadd.f32 0.0, %v890
        %892 = vmatmul.bf16.gmra.mxu0 %v835
        %v893 = vpop.f32.mrf.mxu0
        %v894 = vadd.f32 0.0, %v893
        %v895 = vpop.f32.mrf.mxu0
        %v896 = vadd.f32 0.0, %v895
        %897 = vmatmul.bf16.gmra.mxu0 %v838
        %v898 = vpop.f32.mrf.mxu0
        %v899 = vadd.f32 0.0, %v898
        %v900 = vpop.f32.mrf.mxu0
        %v901 = vadd.f32 0.0, %v900
        %902 = vmatmul.bf16.gmra.mxu0 %v841
        %v903 = vpop.f32.mrf.mxu0
        %v904 = vadd.f32 0.0, %v903
        %v905 = vpop.f32.mrf.mxu0
        %v906 = vadd.f32 0.0, %v905
        %907 = vmatmul.bf16.gmra.mxu0 %v844
        %v908 = vpop.f32.mrf.mxu0
        %v909 = vadd.f32 0.0, %v908
        %v910 = vpop.f32.mrf.mxu0
        %v911 = vadd.f32 0.0, %v910
        %912 = vmatmul.bf16.gmra.mxu0 %v847
        %v913 = vpop.f32.mrf.mxu0
        %v914 = vadd.f32 0.0, %v913
        %v915 = vpop.f32.mrf.mxu0
        %v916 = vadd.f32 0.0, %v915
        %917 = vmatmul.bf16.gmra.mxu0 %v850
        %v918 = vpop.f32.mrf.mxu0
        %v919 = vadd.f32 0.0, %v918
        %v920 = vpop.f32.mrf.mxu0
        %v921 = vadd.f32 0.0, %v920
        %922 = vmatmul.bf16.gmra.mxu0 %v853
        %v923 = vpop.f32.mrf.mxu0
        %v924 = vadd.f32 0.0, %v923
        %v925 = vpop.f32.mrf.mxu0
        %v926 = vadd.f32 0.0, %v925
        %927 = vmatmul.bf16.gmra.mxu0 %v856
        %v928 = vpop.f32.mrf.mxu0
        %v929 = vadd.f32 0.0, %v928
        %v930 = vpop.f32.mrf.mxu0
        %v931 = vadd.f32 0.0, %v930
        %932 = vmatmul.bf16.gmra.mxu0 %v859
        %v933 = vpop.f32.mrf.mxu0
        %v934 = vadd.f32 0.0, %v933
        %v935 = vpop.f32.mrf.mxu0
        %v936 = vadd.f32 0.0, %v935
        %937 = vmatmul.bf16.gmra.mxu0 %v862
        %v938 = vpop.f32.mrf.mxu0
        %v939 = vadd.f32 0.0, %v938
        %v940 = vpop.f32.mrf.mxu0
        %v941 = vadd.f32 0.0, %v940
        %942 = vmatmul.bf16.gmra.mxu0 %v865
        %v943 = vpop.f32.mrf.mxu0
        %v944 = vadd.f32 0.0, %v943
        %v945 = vpop.f32.mrf.mxu0
        %v946 = vadd.f32 0.0, %v945
        %947 = vmatmul.bf16.gmra.mxu0 %v868
        %v948 = vpop.f32.mrf.mxu0
        %v949 = vadd.f32 0.0, %v948
        %v950 = vpop.f32.mrf.mxu0
        %v951 = vadd.f32 0.0, %v950
        %952 = vmatmul.bf16.gmra.mxu0 %v871
        %v953 = vpop.f32.mrf.mxu0
        %v954 = vadd.f32 0.0, %v953
        %v955 = vpop.f32.mrf.mxu0
        %v956 = vadd.f32 0.0, %v955
        %957 = vmatmul.bf16.gmra.mxu0 %v874
        %v958 = vpop.f32.mrf.mxu0
        %v959 = vadd.f32 0.0, %v958
        %v960 = vpop.f32.mrf.mxu0
        %v961 = vadd.f32 0.0, %v960
        %962 = vmatmul.bf16.gmra.mxu0 %v877
        %v963 = vpop.f32.mrf.mxu0
        %v964 = vadd.f32 0.0, %v963
        %v965 = vpop.f32.mrf.mxu0
        %v966 = vadd.f32 0.0, %v965
        %967 = vdwg.mxu0
        %v970 = vunpack.c.l.b16 %v805
        %v971 = vunpack.c.l.b16 %v806
        %v972 = vpack.c.b16 %v971, %v970
        %v975 = vsel %vm411, %v789, 0
        %v978 = vsel %vm411, %v790, 0
        %v981 = vsel %vm411, %v791, 0
        %v984 = vsel %vm411, %v792, 0
        %v987 = vsel %vm411, %v793, 0
        %v990 = vsel %vm411, %v794, 0
        %v993 = vsel %vm411, %v795, 0
        %v996 = vsel %vm411, %v796, 0
        %v999 = vsel %vm411, %v797, 0
        %v1002 = vsel %vm411, %v798, 0
        %v1005 = vsel %vm411, %v799, 0
        %v1008 = vsel %vm411, %v800, 0
        %v1011 = vsel %vm411, %v801, 0
        %v1014 = vsel %vm411, %v802, 0
        %v1017 = vsel %vm411, %v803, 0
        %v1020 = vsel %vm411, %v804, 0
        %1022 = vmatpush.bf16.msra.mxu0 0
        %1023 = vmatpush.bf16.msra.mxu0 0
        %1024 = vmatpush.bf16.msra.mxu0 0
        %1025 = vmatpush.bf16.msra.mxu0 0
        %1026 = vmatpush.bf16.msra.mxu0 0
        %1027 = vmatpush.bf16.msra.mxu0 0
        %1028 = vmatpush.bf16.msra.mxu0 0
        %1029 = vmatpush.bf16.msra.mxu0 %v972
        %1030 = vmatmul.bf16.gmra.mxu0 %v975
        %v1031 = vpop.f32.mrf.mxu0
        %v1032 = vadd.f32 %v889, %v1031
        %v1033 = vpop.f32.mrf.mxu0
        %v1034 = vadd.f32 %v891, %v1033
        %1035 = vmatmul.bf16.gmra.mxu0 %v978
        %v1036 = vpop.f32.mrf.mxu0
        %v1037 = vadd.f32 %v894, %v1036
        %v1038 = vpop.f32.mrf.mxu0
        %v1039 = vadd.f32 %v896, %v1038
        %1040 = vmatmul.bf16.gmra.mxu0 %v981
        %v1041 = vpop.f32.mrf.mxu0
        %v1042 = vadd.f32 %v899, %v1041
        %v1043 = vpop.f32.mrf.mxu0
        %v1044 = vadd.f32 %v901, %v1043
        %1045 = vmatmul.bf16.gmra.mxu0 %v984
        %v1046 = vpop.f32.mrf.mxu0
        %v1047 = vadd.f32 %v904, %v1046
        %v1048 = vpop.f32.mrf.mxu0
        %v1049 = vadd.f32 %v906, %v1048
        %1050 = vmatmul.bf16.gmra.mxu0 %v987
        %v1051 = vpop.f32.mrf.mxu0
        %v1052 = vadd.f32 %v909, %v1051
        %v1053 = vpop.f32.mrf.mxu0
        %v1054 = vadd.f32 %v911, %v1053
        %1055 = vmatmul.bf16.gmra.mxu0 %v990
        %v1056 = vpop.f32.mrf.mxu0
        %v1057 = vadd.f32 %v914, %v1056
        %v1058 = vpop.f32.mrf.mxu0
        %v1059 = vadd.f32 %v916, %v1058
        %1060 = vmatmul.bf16.gmra.mxu0 %v993
        %v1061 = vpop.f32.mrf.mxu0
        %v1062 = vadd.f32 %v919, %v1061
        %v1063 = vpop.f32.mrf.mxu0
        %v1064 = vadd.f32 %v921, %v1063
        %1065 = vmatmul.bf16.gmra.mxu0 %v996
        %v1066 = vpop.f32.mrf.mxu0
        %v1067 = vadd.f32 %v924, %v1066
        %v1068 = vpop.f32.mrf.mxu0
        %v1069 = vadd.f32 %v926, %v1068
        %1070 = vmatmul.bf16.gmra.mxu0 %v999
        %v1071 = vpop.f32.mrf.mxu0
        %v1072 = vadd.f32 %v929, %v1071
        %v1073 = vpop.f32.mrf.mxu0
        %v1074 = vadd.f32 %v931, %v1073
        %1075 = vmatmul.bf16.gmra.mxu0 %v1002
        %v1076 = vpop.f32.mrf.mxu0
        %v1077 = vadd.f32 %v934, %v1076
        %v1078 = vpop.f32.mrf.mxu0
        %v1079 = vadd.f32 %v936, %v1078
        %1080 = vmatmul.bf16.gmra.mxu0 %v1005
        %v1081 = vpop.f32.mrf.mxu0
        %v1082 = vadd.f32 %v939, %v1081
        %v1083 = vpop.f32.mrf.mxu0
        %v1084 = vadd.f32 %v941, %v1083
        %1085 = vmatmul.bf16.gmra.mxu0 %v1008
        %v1086 = vpop.f32.mrf.mxu0
        %v1087 = vadd.f32 %v944, %v1086
        %v1088 = vpop.f32.mrf.mxu0
        %v1089 = vadd.f32 %v946, %v1088
        %1090 = vmatmul.bf16.gmra.mxu0 %v1011
        %v1091 = vpop.f32.mrf.mxu0
        %v1092 = vadd.f32 %v949, %v1091
        %v1093 = vpop.f32.mrf.mxu0
        %v1094 = vadd.f32 %v951, %v1093
        %1095 = vmatmul.bf16.gmra.mxu0 %v1014
        %v1096 = vpop.f32.mrf.mxu0
        %v1097 = vadd.f32 %v954, %v1096
        %v1098 = vpop.f32.mrf.mxu0
        %v1099 = vadd.f32 %v956, %v1098
        %1100 = vmatmul.bf16.gmra.mxu0 %v1017
        %v1101 = vpop.f32.mrf.mxu0
        %v1102 = vadd.f32 %v959, %v1101
        %v1103 = vpop.f32.mrf.mxu0
        %v1104 = vadd.f32 %v961, %v1103
        %1105 = vmatmul.bf16.gmra.mxu0 %v1020
        %v1106 = vpop.f32.mrf.mxu0
        %v1107 = vadd.f32 %v964, %v1106
        %v1108 = vpop.f32.mrf.mxu0
        %v1109 = vadd.f32 %v966, %v1108
        %1110 = vdwg.mxu0
        %v1111 = vpack.c.bf16 %v565, %v564
        %v1112 = vpack.c.bf16 %v567, %v566
        %v1113 = vpack.c.bf16 %v569, %v568
        %v1114 = vpack.c.bf16 %v571, %v570
        %v1115 = vpack.c.bf16 %v573, %v572
        %v1116 = vpack.c.bf16 %v575, %v574
        %v1117 = vpack.c.bf16 %v577, %v576
        %v1118 = vpack.c.bf16 %v579, %v578
        %v1119 = vpack.c.bf16 %v581, %v580
        %v1120 = vpack.c.bf16 %v583, %v582
        %v1121 = vpack.c.bf16 %v585, %v584
        %v1122 = vpack.c.bf16 %v587, %v586
        %v1123 = vpack.c.bf16 %v589, %v588
        %v1124 = vpack.c.bf16 %v591, %v590
        %v1125 = vpack.c.bf16 %v593, %v592
        %v1126 = vpack.c.bf16 %v595, %v594
        %v1127 = vld [vmem:[%s3 + $0x10] sm:$0xf]
        %v1128 = vld [vmem:[%s3 + $0x14] sm:$0xf]
        %v1131 = vunpack.c.l.b16 %v1127
        %v1132 = vunpack.c.l.b16 %v1128
        %v1133 = vpack.c.b16 %v1132, %v1131
        %v1136 = vsel %vm411, %v1111, 0
        %v1139 = vsel %vm411, %v1112, 0
        %v1142 = vsel %vm411, %v1113, 0
        %v1145 = vsel %vm411, %v1114, 0
        %v1148 = vsel %vm411, %v1115, 0
        %v1151 = vsel %vm411, %v1116, 0
        %v1154 = vsel %vm411, %v1117, 0
        %v1157 = vsel %vm411, %v1118, 0
        %v1160 = vsel %vm411, %v1119, 0
        %v1163 = vsel %vm411, %v1120, 0
        %v1166 = vsel %vm411, %v1121, 0
        %v1169 = vsel %vm411, %v1122, 0
        %v1172 = vsel %vm411, %v1123, 0
        %v1175 = vsel %vm411, %v1124, 0
        %v1178 = vsel %vm411, %v1125, 0
        %v1181 = vsel %vm411, %v1126, 0
        %1183 = vmatpush.bf16.msra.mxu0 0
        %1184 = vmatpush.bf16.msra.mxu0 0
        %1185 = vmatpush.bf16.msra.mxu0 0
        %1186 = vmatpush.bf16.msra.mxu0 0
        %1187 = vmatpush.bf16.msra.mxu0 0
        %1188 = vmatpush.bf16.msra.mxu0 0
        %1189 = vmatpush.bf16.msra.mxu0 0
        %1190 = vmatpush.bf16.msra.mxu0 %v1133
        %1191 = vmatmul.bf16.gmra.mxu0 %v1136
        %v1192 = vpop.f32.mrf.mxu0
        %v1193 = vadd.f32 0.0, %v1192
        %v1194 = vpop.f32.mrf.mxu0
        %v1195 = vadd.f32 0.0, %v1194
        %1196 = vmatmul.bf16.gmra.mxu0 %v1139
        %v1197 = vpop.f32.mrf.mxu0
        %v1198 = vadd.f32 0.0, %v1197
        %v1199 = vpop.f32.mrf.mxu0
        %v1200 = vadd.f32 0.0, %v1199
        %1201 = vmatmul.bf16.gmra.mxu0 %v1142
        %v1202 = vpop.f32.mrf.mxu0
        %v1203 = vadd.f32 0.0, %v1202
        %v1204 = vpop.f32.mrf.mxu0
        %v1205 = vadd.f32 0.0, %v1204
        %1206 = vmatmul.bf16.gmra.mxu0 %v1145
        %v1207 = vpop.f32.mrf.mxu0
        %v1208 = vadd.f32 0.0, %v1207
        %v1209 = vpop.f32.mrf.mxu0
        %v1210 = vadd.f32 0.0, %v1209
        %1211 = vmatmul.bf16.gmra.mxu0 %v1148
        %v1212 = vpop.f32.mrf.mxu0
        %v1213 = vadd.f32 0.0, %v1212
        %v1214 = vpop.f32.mrf.mxu0
        %v1215 = vadd.f32 0.0, %v1214
        %1216 = vmatmul.bf16.gmra.mxu0 %v1151
        %v1217 = vpop.f32.mrf.mxu0
        %v1218 = vadd.f32 0.0, %v1217
        %v1219 = vpop.f32.mrf.mxu0
        %v1220 = vadd.f32 0.0, %v1219
        %1221 = vmatmul.bf16.gmra.mxu0 %v1154
        %v1222 = vpop.f32.mrf.mxu0
        %v1223 = vadd.f32 0.0, %v1222
        %v1224 = vpop.f32.mrf.mxu0
        %v1225 = vadd.f32 0.0, %v1224
        %1226 = vmatmul.bf16.gmra.mxu0 %v1157
        %v1227 = vpop.f32.mrf.mxu0
        %v1228 = vadd.f32 0.0, %v1227
        %v1229 = vpop.f32.mrf.mxu0
        %v1230 = vadd.f32 0.0, %v1229
        %1231 = vmatmul.bf16.gmra.mxu0 %v1160
        %v1232 = vpop.f32.mrf.mxu0
        %v1233 = vadd.f32 0.0, %v1232
        %v1234 = vpop.f32.mrf.mxu0
        %v1235 = vadd.f32 0.0, %v1234
        %1236 = vmatmul.bf16.gmra.mxu0 %v1163
        %v1237 = vpop.f32.mrf.mxu0
        %v1238 = vadd.f32 0.0, %v1237
        %v1239 = vpop.f32.mrf.mxu0
        %v1240 = vadd.f32 0.0, %v1239
        %1241 = vmatmul.bf16.gmra.mxu0 %v1166
        %v1242 = vpop.f32.mrf.mxu0
        %v1243 = vadd.f32 0.0, %v1242
        %v1244 = vpop.f32.mrf.mxu0
        %v1245 = vadd.f32 0.0, %v1244
        %1246 = vmatmul.bf16.gmra.mxu0 %v1169
        %v1247 = vpop.f32.mrf.mxu0
        %v1248 = vadd.f32 0.0, %v1247
        %v1249 = vpop.f32.mrf.mxu0
        %v1250 = vadd.f32 0.0, %v1249
        %1251 = vmatmul.bf16.gmra.mxu0 %v1172
        %v1252 = vpop.f32.mrf.mxu0
        %v1253 = vadd.f32 0.0, %v1252
        %v1254 = vpop.f32.mrf.mxu0
        %v1255 = vadd.f32 0.0, %v1254
        %1256 = vmatmul.bf16.gmra.mxu0 %v1175
        %v1257 = vpop.f32.mrf.mxu0
        %v1258 = vadd.f32 0.0, %v1257
        %v1259 = vpop.f32.mrf.mxu0
        %v1260 = vadd.f32 0.0, %v1259
        %1261 = vmatmul.bf16.gmra.mxu0 %v1178
        %v1262 = vpop.f32.mrf.mxu0
        %v1263 = vadd.f32 0.0, %v1262
        %v1264 = vpop.f32.mrf.mxu0
        %v1265 = vadd.f32 0.0, %v1264
        %1266 = vmatmul.bf16.gmra.mxu0 %v1181
        %v1267 = vpop.f32.mrf.mxu0
        %v1268 = vadd.f32 0.0, %v1267
        %v1269 = vpop.f32.mrf.mxu0
        %v1270 = vadd.f32 0.0, %v1269
        %1271 = vdwg.mxu0
        %v1272 = vadd.f32 %v1032, %v1193
        %v1273 = vadd.f32 %v1034, %v1195
        %v1274 = vadd.f32 %v1037, %v1198
        %v1275 = vadd.f32 %v1039, %v1200
        %v1276 = vadd.f32 %v1042, %v1203
        %v1277 = vadd.f32 %v1044, %v1205
        %v1278 = vadd.f32 %v1047, %v1208
        %v1279 = vadd.f32 %v1049, %v1210
        %v1280 = vadd.f32 %v1052, %v1213
        %v1281 = vadd.f32 %v1054, %v1215
        %v1282 = vadd.f32 %v1057, %v1218
        %v1283 = vadd.f32 %v1059, %v1220
        %v1284 = vadd.f32 %v1062, %v1223
        %v1285 = vadd.f32 %v1064, %v1225
        %v1286 = vadd.f32 %v1067, %v1228
        %v1287 = vadd.f32 %v1069, %v1230
        %v1288 = vadd.f32 %v1072, %v1233
        %v1289 = vadd.f32 %v1074, %v1235
        %v1290 = vadd.f32 %v1077, %v1238
        %v1291 = vadd.f32 %v1079, %v1240
        %v1292 = vadd.f32 %v1082, %v1243
        %v1293 = vadd.f32 %v1084, %v1245
        %v1294 = vadd.f32 %v1087, %v1248
        %v1295 = vadd.f32 %v1089, %v1250
        %v1296 = vadd.f32 %v1092, %v1253
        %v1297 = vadd.f32 %v1094, %v1255
        %v1298 = vadd.f32 %v1097, %v1258
        %v1299 = vadd.f32 %v1099, %v1260
        %v1300 = vadd.f32 %v1102, %v1263
        %v1301 = vadd.f32 %v1104, %v1265
        %v1302 = vadd.f32 %v1107, %v1268
        %v1303 = vadd.f32 %v1109, %v1270
        %v1304 = vpack.c.bf16 %v597, %v596
        %v1305 = vpack.c.bf16 %v599, %v598
        %v1306 = vpack.c.bf16 %v601, %v600
        %v1307 = vpack.c.bf16 %v603, %v602
        %v1308 = vpack.c.bf16 %v605, %v604
        %v1309 = vpack.c.bf16 %v607, %v606
        %v1310 = vpack.c.bf16 %v609, %v608
        %v1311 = vpack.c.bf16 %v611, %v610
        %v1312 = vpack.c.bf16 %v613, %v612
        %v1313 = vpack.c.bf16 %v615, %v614
        %v1314 = vpack.c.bf16 %v617, %v616
        %v1315 = vpack.c.bf16 %v619, %v618
        %v1316 = vpack.c.bf16 %v621, %v620
        %v1317 = vpack.c.bf16 %v623, %v622
        %v1318 = vpack.c.bf16 %v625, %v624
        %v1319 = vpack.c.bf16 %v627, %v626
        %v1320 = vld [vmem:[%s3 + $0x18] sm:$0xf]
        %v1321 = vld [vmem:[%s3 + $0x1c] sm:$0xf]
        %v1324 = vunpack.c.l.b16 %v1320
        %v1325 = vunpack.c.l.b16 %v1321
        %v1326 = vpack.c.b16 %v1325, %v1324
        %v1329 = vsel %vm411, %v1304, 0
        %v1332 = vsel %vm411, %v1305, 0
        %v1335 = vsel %vm411, %v1306, 0
        %v1338 = vsel %vm411, %v1307, 0
        %v1341 = vsel %vm411, %v1308, 0
        %v1344 = vsel %vm411, %v1309, 0
        %v1347 = vsel %vm411, %v1310, 0
        %v1350 = vsel %vm411, %v1311, 0
        %v1353 = vsel %vm411, %v1312, 0
        %v1356 = vsel %vm411, %v1313, 0
        %v1359 = vsel %vm411, %v1314, 0
        %v1362 = vsel %vm411, %v1315, 0
        %v1365 = vsel %vm411, %v1316, 0
        %v1368 = vsel %vm411, %v1317, 0
        %v1371 = vsel %vm411, %v1318, 0
        %v1374 = vsel %vm411, %v1319, 0
        %1376 = vmatpush.bf16.msra.mxu0 0
        %1377 = vmatpush.bf16.msra.mxu0 0
        %1378 = vmatpush.bf16.msra.mxu0 0
        %1379 = vmatpush.bf16.msra.mxu0 0
        %1380 = vmatpush.bf16.msra.mxu0 0
        %1381 = vmatpush.bf16.msra.mxu0 0
        %1382 = vmatpush.bf16.msra.mxu0 0
        %1383 = vmatpush.bf16.msra.mxu0 %v1326
        %1384 = vmatmul.bf16.gmra.mxu0 %v1329
        %v1385 = vpop.f32.mrf.mxu0
        %v1386 = vadd.f32 0.0, %v1385
        %v1387 = vpop.f32.mrf.mxu0
        %v1388 = vadd.f32 0.0, %v1387
        %1389 = vmatmul.bf16.gmra.mxu0 %v1332
        %v1390 = vpop.f32.mrf.mxu0
        %v1391 = vadd.f32 0.0, %v1390
        %v1392 = vpop.f32.mrf.mxu0
        %v1393 = vadd.f32 0.0, %v1392
        %1394 = vmatmul.bf16.gmra.mxu0 %v1335
        %v1395 = vpop.f32.mrf.mxu0
        %v1396 = vadd.f32 0.0, %v1395
        %v1397 = vpop.f32.mrf.mxu0
        %v1398 = vadd.f32 0.0, %v1397
        %1399 = vmatmul.bf16.gmra.mxu0 %v1338
        %v1400 = vpop.f32.mrf.mxu0
        %v1401 = vadd.f32 0.0, %v1400
        %v1402 = vpop.f32.mrf.mxu0
        %v1403 = vadd.f32 0.0, %v1402
        %1404 = vmatmul.bf16.gmra.mxu0 %v1341
        %v1405 = vpop.f32.mrf.mxu0
        %v1406 = vadd.f32 0.0, %v1405
        %v1407 = vpop.f32.mrf.mxu0
        %v1408 = vadd.f32 0.0, %v1407
        %1409 = vmatmul.bf16.gmra.mxu0 %v1344
        %v1410 = vpop.f32.mrf.mxu0
        %v1411 = vadd.f32 0.0, %v1410
        %v1412 = vpop.f32.mrf.mxu0
        %v1413 = vadd.f32 0.0, %v1412
        %1414 = vmatmul.bf16.gmra.mxu0 %v1347
        %v1415 = vpop.f32.mrf.mxu0
        %v1416 = vadd.f32 0.0, %v1415
        %v1417 = vpop.f32.mrf.mxu0
        %v1418 = vadd.f32 0.0, %v1417
        %1419 = vmatmul.bf16.gmra.mxu0 %v1350
        %v1420 = vpop.f32.mrf.mxu0
        %v1421 = vadd.f32 0.0, %v1420
        %v1422 = vpop.f32.mrf.mxu0
        %v1423 = vadd.f32 0.0, %v1422
        %1424 = vmatmul.bf16.gmra.mxu0 %v1353
        %v1425 = vpop.f32.mrf.mxu0
        %v1426 = vadd.f32 0.0, %v1425
        %v1427 = vpop.f32.mrf.mxu0
        %v1428 = vadd.f32 0.0, %v1427
        %1429 = vmatmul.bf16.gmra.mxu0 %v1356
        %v1430 = vpop.f32.mrf.mxu0
        %v1431 = vadd.f32 0.0, %v1430
        %v1432 = vpop.f32.mrf.mxu0
        %v1433 = vadd.f32 0.0, %v1432
        %1434 = vmatmul.bf16.gmra.mxu0 %v1359
        %v1435 = vpop.f32.mrf.mxu0
        %v1436 = vadd.f32 0.0, %v1435
        %v1437 = vpop.f32.mrf.mxu0
        %v1438 = vadd.f32 0.0, %v1437
        %1439 = vmatmul.bf16.gmra.mxu0 %v1362
        %v1440 = vpop.f32.mrf.mxu0
        %v1441 = vadd.f32 0.0, %v1440
        %v1442 = vpop.f32.mrf.mxu0
        %v1443 = vadd.f32 0.0, %v1442
        %1444 = vmatmul.bf16.gmra.mxu0 %v1365
        %v1445 = vpop.f32.mrf.mxu0
        %v1446 = vadd.f32 0.0, %v1445
        %v1447 = vpop.f32.mrf.mxu0
        %v1448 = vadd.f32 0.0, %v1447
        %1449 = vmatmul.bf16.gmra.mxu0 %v1368
        %v1450 = vpop.f32.mrf.mxu0
        %v1451 = vadd.f32 0.0, %v1450
        %v1452 = vpop.f32.mrf.mxu0
        %v1453 = vadd.f32 0.0, %v1452
        %1454 = vmatmul.bf16.gmra.mxu0 %v1371
        %v1455 = vpop.f32.mrf.mxu0
        %v1456 = vadd.f32 0.0, %v1455
        %v1457 = vpop.f32.mrf.mxu0
        %v1458 = vadd.f32 0.0, %v1457
        %1459 = vmatmul.bf16.gmra.mxu0 %v1374
        %v1460 = vpop.f32.mrf.mxu0
        %v1461 = vadd.f32 0.0, %v1460
        %v1462 = vpop.f32.mrf.mxu0
        %v1463 = vadd.f32 0.0, %v1462
        %1464 = vdwg.mxu0
        %v1465 = vadd.f32 %v1272, %v1386
        %v1466 = vadd.f32 %v1273, %v1388
        %v1467 = vadd.f32 %v1274, %v1391
        %v1468 = vadd.f32 %v1275, %v1393
        %v1469 = vadd.f32 %v1276, %v1396
        %v1470 = vadd.f32 %v1277, %v1398
        %v1471 = vadd.f32 %v1278, %v1401
        %v1472 = vadd.f32 %v1279, %v1403
        %v1473 = vadd.f32 %v1280, %v1406
        %v1474 = vadd.f32 %v1281, %v1408
        %v1475 = vadd.f32 %v1282, %v1411
        %v1476 = vadd.f32 %v1283, %v1413
        %v1477 = vadd.f32 %v1284, %v1416
        %v1478 = vadd.f32 %v1285, %v1418
        %v1479 = vadd.f32 %v1286, %v1421
        %v1480 = vadd.f32 %v1287, %v1423
        %v1481 = vadd.f32 %v1288, %v1426
        %v1482 = vadd.f32 %v1289, %v1428
        %v1483 = vadd.f32 %v1290, %v1431
        %v1484 = vadd.f32 %v1291, %v1433
        %v1485 = vadd.f32 %v1292, %v1436
        %v1486 = vadd.f32 %v1293, %v1438
        %v1487 = vadd.f32 %v1294, %v1441
        %v1488 = vadd.f32 %v1295, %v1443
        %v1489 = vadd.f32 %v1296, %v1446
        %v1490 = vadd.f32 %v1297, %v1448
        %v1491 = vadd.f32 %v1298, %v1451
        %v1492 = vadd.f32 %v1299, %v1453
        %v1493 = vadd.f32 %v1300, %v1456
        %v1494 = vadd.f32 %v1301, %v1458
        %v1495 = vadd.f32 %v1302, %v1461
        %v1496 = vadd.f32 %v1303, %v1463
        %v1497 = vpack.c.bf16 %v629, %v628
        %v1498 = vpack.c.bf16 %v631, %v630
        %v1499 = vpack.c.bf16 %v633, %v632
        %v1500 = vpack.c.bf16 %v635, %v634
        %v1501 = vpack.c.bf16 %v637, %v636
        %v1502 = vpack.c.bf16 %v639, %v638
        %v1503 = vpack.c.bf16 %v641, %v640
        %v1504 = vpack.c.bf16 %v643, %v642
        %v1505 = vpack.c.bf16 %v645, %v644
        %v1506 = vpack.c.bf16 %v647, %v646
        %v1507 = vpack.c.bf16 %v649, %v648
        %v1508 = vpack.c.bf16 %v651, %v650
        %v1509 = vpack.c.bf16 %v653, %v652
        %v1510 = vpack.c.bf16 %v655, %v654
        %v1511 = vpack.c.bf16 %v657, %v656
        %v1512 = vpack.c.bf16 %v659, %v658
        %v1513 = vld [vmem:[%s3 + $0x20] sm:$0xf]
        %v1514 = vld [vmem:[%s3 + $0x24] sm:$0xf]
        %v1517 = vunpack.c.l.b16 %v1513
        %v1518 = vunpack.c.l.b16 %v1514
        %v1519 = vpack.c.b16 %v1518, %v1517
        %v1522 = vsel %vm411, %v1497, 0
        %v1525 = vsel %vm411, %v1498, 0
        %v1528 = vsel %vm411, %v1499, 0
        %v1531 = vsel %vm411, %v1500, 0
        %v1534 = vsel %vm411, %v1501, 0
        %v1537 = vsel %vm411, %v1502, 0
        %v1540 = vsel %vm411, %v1503, 0
        %v1543 = vsel %vm411, %v1504, 0
        %v1546 = vsel %vm411, %v1505, 0
        %v1549 = vsel %vm411, %v1506, 0
        %v1552 = vsel %vm411, %v1507, 0
        %v1555 = vsel %vm411, %v1508, 0
        %v1558 = vsel %vm411, %v1509, 0
        %v1561 = vsel %vm411, %v1510, 0
        %v1564 = vsel %vm411, %v1511, 0
        %v1567 = vsel %vm411, %v1512, 0
        %1569 = vmatpush.bf16.msra.mxu0 0
        %1570 = vmatpush.bf16.msra.mxu0 0
        %1571 = vmatpush.bf16.msra.mxu0 0
        %1572 = vmatpush.bf16.msra.mxu0 0
        %1573 = vmatpush.bf16.msra.mxu0 0
        %1574 = vmatpush.bf16.msra.mxu0 0
        %1575 = vmatpush.bf16.msra.mxu0 0
        %1576 = vmatpush.bf16.msra.mxu0 %v1519
        %1577 = vmatmul.bf16.gmra.mxu0 %v1522
        %v1578 = vpop.f32.mrf.mxu0
        %v1579 = vadd.f32 0.0, %v1578
        %v1580 = vpop.f32.mrf.mxu0
        %v1581 = vadd.f32 0.0, %v1580
        %1582 = vmatmul.bf16.gmra.mxu0 %v1525
        %v1583 = vpop.f32.mrf.mxu0
        %v1584 = vadd.f32 0.0, %v1583
        %v1585 = vpop.f32.mrf.mxu0
        %v1586 = vadd.f32 0.0, %v1585
        %1587 = vmatmul.bf16.gmra.mxu0 %v1528
        %v1588 = vpop.f32.mrf.mxu0
        %v1589 = vadd.f32 0.0, %v1588
        %v1590 = vpop.f32.mrf.mxu0
        %v1591 = vadd.f32 0.0, %v1590
        %1592 = vmatmul.bf16.gmra.mxu0 %v1531
        %v1593 = vpop.f32.mrf.mxu0
        %v1594 = vadd.f32 0.0, %v1593
        %v1595 = vpop.f32.mrf.mxu0
        %v1596 = vadd.f32 0.0, %v1595
        %1597 = vmatmul.bf16.gmra.mxu0 %v1534
        %v1598 = vpop.f32.mrf.mxu0
        %v1599 = vadd.f32 0.0, %v1598
        %v1600 = vpop.f32.mrf.mxu0
        %v1601 = vadd.f32 0.0, %v1600
        %1602 = vmatmul.bf16.gmra.mxu0 %v1537
        %v1603 = vpop.f32.mrf.mxu0
        %v1604 = vadd.f32 0.0, %v1603
        %v1605 = vpop.f32.mrf.mxu0
        %v1606 = vadd.f32 0.0, %v1605
        %1607 = vmatmul.bf16.gmra.mxu0 %v1540
        %v1608 = vpop.f32.mrf.mxu0
        %v1609 = vadd.f32 0.0, %v1608
        %v1610 = vpop.f32.mrf.mxu0
        %v1611 = vadd.f32 0.0, %v1610
        %1612 = vmatmul.bf16.gmra.mxu0 %v1543
        %v1613 = vpop.f32.mrf.mxu0
        %v1614 = vadd.f32 0.0, %v1613
        %v1615 = vpop.f32.mrf.mxu0
        %v1616 = vadd.f32 0.0, %v1615
        %1617 = vmatmul.bf16.gmra.mxu0 %v1546
        %v1618 = vpop.f32.mrf.mxu0
        %v1619 = vadd.f32 0.0, %v1618
        %v1620 = vpop.f32.mrf.mxu0
        %v1621 = vadd.f32 0.0, %v1620
        %1622 = vmatmul.bf16.gmra.mxu0 %v1549
        %v1623 = vpop.f32.mrf.mxu0
        %v1624 = vadd.f32 0.0, %v1623
        %v1625 = vpop.f32.mrf.mxu0
        %v1626 = vadd.f32 0.0, %v1625
        %1627 = vmatmul.bf16.gmra.mxu0 %v1552
        %v1628 = vpop.f32.mrf.mxu0
        %v1629 = vadd.f32 0.0, %v1628
        %v1630 = vpop.f32.mrf.mxu0
        %v1631 = vadd.f32 0.0, %v1630
        %1632 = vmatmul.bf16.gmra.mxu0 %v1555
        %v1633 = vpop.f32.mrf.mxu0
        %v1634 = vadd.f32 0.0, %v1633
        %v1635 = vpop.f32.mrf.mxu0
        %v1636 = vadd.f32 0.0, %v1635
        %1637 = vmatmul.bf16.gmra.mxu0 %v1558
        %v1638 = vpop.f32.mrf.mxu0
        %v1639 = vadd.f32 0.0, %v1638
        %v1640 = vpop.f32.mrf.mxu0
        %v1641 = vadd.f32 0.0, %v1640
        %1642 = vmatmul.bf16.gmra.mxu0 %v1561
        %v1643 = vpop.f32.mrf.mxu0
        %v1644 = vadd.f32 0.0, %v1643
        %v1645 = vpop.f32.mrf.mxu0
        %v1646 = vadd.f32 0.0, %v1645
        %1647 = vmatmul.bf16.gmra.mxu0 %v1564
        %v1648 = vpop.f32.mrf.mxu0
        %v1649 = vadd.f32 0.0, %v1648
        %v1650 = vpop.f32.mrf.mxu0
        %v1651 = vadd.f32 0.0, %v1650
        %1652 = vmatmul.bf16.gmra.mxu0 %v1567
        %v1653 = vpop.f32.mrf.mxu0
        %v1654 = vadd.f32 0.0, %v1653
        %v1655 = vpop.f32.mrf.mxu0
        %v1656 = vadd.f32 0.0, %v1655
        %1657 = vdwg.mxu0
        %v1658 = vadd.f32 %v1465, %v1579
        %v1659 = vadd.f32 %v1466, %v1581
        %v1660 = vadd.f32 %v1467, %v1584
        %v1661 = vadd.f32 %v1468, %v1586
        %v1662 = vadd.f32 %v1469, %v1589
        %v1663 = vadd.f32 %v1470, %v1591
        %v1664 = vadd.f32 %v1471, %v1594
        %v1665 = vadd.f32 %v1472, %v1596
        %v1666 = vadd.f32 %v1473, %v1599
        %v1667 = vadd.f32 %v1474, %v1601
        %v1668 = vadd.f32 %v1475, %v1604
        %v1669 = vadd.f32 %v1476, %v1606
        %v1670 = vadd.f32 %v1477, %v1609
        %v1671 = vadd.f32 %v1478, %v1611
        %v1672 = vadd.f32 %v1479, %v1614
        %v1673 = vadd.f32 %v1480, %v1616
        %v1674 = vadd.f32 %v1481, %v1619
        %v1675 = vadd.f32 %v1482, %v1621
        %v1676 = vadd.f32 %v1483, %v1624
        %v1677 = vadd.f32 %v1484, %v1626
        %v1678 = vadd.f32 %v1485, %v1629
        %v1679 = vadd.f32 %v1486, %v1631
        %v1680 = vadd.f32 %v1487, %v1634
        %v1681 = vadd.f32 %v1488, %v1636
        %v1682 = vadd.f32 %v1489, %v1639
        %v1683 = vadd.f32 %v1490, %v1641
        %v1684 = vadd.f32 %v1491, %v1644
        %v1685 = vadd.f32 %v1492, %v1646
        %v1686 = vadd.f32 %v1493, %v1649
        %v1687 = vadd.f32 %v1494, %v1651
        %v1688 = vadd.f32 %v1495, %v1654
        %v1689 = vadd.f32 %v1496, %v1656
        %v1690 = vpack.c.bf16 %v661, %v660
        %v1691 = vpack.c.bf16 %v663, %v662
        %v1692 = vpack.c.bf16 %v665, %v664
        %v1693 = vpack.c.bf16 %v667, %v666
        %v1694 = vpack.c.bf16 %v669, %v668
        %v1695 = vpack.c.bf16 %v671, %v670
        %v1696 = vpack.c.bf16 %v673, %v672
        %v1697 = vpack.c.bf16 %v675, %v674
        %v1698 = vpack.c.bf16 %v677, %v676
        %v1699 = vpack.c.bf16 %v679, %v678
        %v1700 = vpack.c.bf16 %v681, %v680
        %v1701 = vpack.c.bf16 %v683, %v682
        %v1702 = vpack.c.bf16 %v685, %v684
        %v1703 = vpack.c.bf16 %v687, %v686
        %v1704 = vpack.c.bf16 %v689, %v688
        %v1705 = vpack.c.bf16 %v691, %v690
        %v1706 = vld [vmem:[%s3 + $0x28] sm:$0xf]
        %v1707 = vld [vmem:[%s3 + $0x2c] sm:$0xf]
        %v1710 = vunpack.c.l.b16 %v1706
        %v1711 = vunpack.c.l.b16 %v1707
        %v1712 = vpack.c.b16 %v1711, %v1710
        %v1715 = vsel %vm411, %v1690, 0
        %v1718 = vsel %vm411, %v1691, 0
        %v1721 = vsel %vm411, %v1692, 0
        %v1724 = vsel %vm411, %v1693, 0
        %v1727 = vsel %vm411, %v1694, 0
        %v1730 = vsel %vm411, %v1695, 0
        %v1733 = vsel %vm411, %v1696, 0
        %v1736 = vsel %vm411, %v1697, 0
        %v1739 = vsel %vm411, %v1698, 0
        %v1742 = vsel %vm411, %v1699, 0
        %v1745 = vsel %vm411, %v1700, 0
        %v1748 = vsel %vm411, %v1701, 0
        %v1751 = vsel %vm411, %v1702, 0
        %v1754 = vsel %vm411, %v1703, 0
        %v1757 = vsel %vm411, %v1704, 0
        %v1760 = vsel %vm411, %v1705, 0
        %1762 = vmatpush.bf16.msra.mxu0 0
        %1763 = vmatpush.bf16.msra.mxu0 0
        %1764 = vmatpush.bf16.msra.mxu0 0
        %1765 = vmatpush.bf16.msra.mxu0 0
        %1766 = vmatpush.bf16.msra.mxu0 0
        %1767 = vmatpush.bf16.msra.mxu0 0
        %1768 = vmatpush.bf16.msra.mxu0 0
        %1769 = vmatpush.bf16.msra.mxu0 %v1712
        %1770 = vmatmul.bf16.gmra.mxu0 %v1715
        %v1771 = vpop.f32.mrf.mxu0
        %v1772 = vadd.f32 0.0, %v1771
        %v1773 = vpop.f32.mrf.mxu0
        %v1774 = vadd.f32 0.0, %v1773
        %1775 = vmatmul.bf16.gmra.mxu0 %v1718
        %v1776 = vpop.f32.mrf.mxu0
        %v1777 = vadd.f32 0.0, %v1776
        %v1778 = vpop.f32.mrf.mxu0
        %v1779 = vadd.f32 0.0, %v1778
        %1780 = vmatmul.bf16.gmra.mxu0 %v1721
        %v1781 = vpop.f32.mrf.mxu0
        %v1782 = vadd.f32 0.0, %v1781
        %v1783 = vpop.f32.mrf.mxu0
        %v1784 = vadd.f32 0.0, %v1783
        %1785 = vmatmul.bf16.gmra.mxu0 %v1724
        %v1786 = vpop.f32.mrf.mxu0
        %v1787 = vadd.f32 0.0, %v1786
        %v1788 = vpop.f32.mrf.mxu0
        %v1789 = vadd.f32 0.0, %v1788
        %1790 = vmatmul.bf16.gmra.mxu0 %v1727
        %v1791 = vpop.f32.mrf.mxu0
        %v1792 = vadd.f32 0.0, %v1791
        %v1793 = vpop.f32.mrf.mxu0
        %v1794 = vadd.f32 0.0, %v1793
        %1795 = vmatmul.bf16.gmra.mxu0 %v1730
        %v1796 = vpop.f32.mrf.mxu0
        %v1797 = vadd.f32 0.0, %v1796
        %v1798 = vpop.f32.mrf.mxu0
        %v1799 = vadd.f32 0.0, %v1798
        %1800 = vmatmul.bf16.gmra.mxu0 %v1733
        %v1801 = vpop.f32.mrf.mxu0
        %v1802 = vadd.f32 0.0, %v1801
        %v1803 = vpop.f32.mrf.mxu0
        %v1804 = vadd.f32 0.0, %v1803
        %1805 = vmatmul.bf16.gmra.mxu0 %v1736
        %v1806 = vpop.f32.mrf.mxu0
        %v1807 = vadd.f32 0.0, %v1806
        %v1808 = vpop.f32.mrf.mxu0
        %v1809 = vadd.f32 0.0, %v1808
        %1810 = vmatmul.bf16.gmra.mxu0 %v1739
        %v1811 = vpop.f32.mrf.mxu0
        %v1812 = vadd.f32 0.0, %v1811
        %v1813 = vpop.f32.mrf.mxu0
        %v1814 = vadd.f32 0.0, %v1813
        %1815 = vmatmul.bf16.gmra.mxu0 %v1742
        %v1816 = vpop.f32.mrf.mxu0
        %v1817 = vadd.f32 0.0, %v1816
        %v1818 = vpop.f32.mrf.mxu0
        %v1819 = vadd.f32 0.0, %v1818
        %1820 = vmatmul.bf16.gmra.mxu0 %v1745
        %v1821 = vpop.f32.mrf.mxu0
        %v1822 = vadd.f32 0.0, %v1821
        %v1823 = vpop.f32.mrf.mxu0
        %v1824 = vadd.f32 0.0, %v1823
        %1825 = vmatmul.bf16.gmra.mxu0 %v1748
        %v1826 = vpop.f32.mrf.mxu0
        %v1827 = vadd.f32 0.0, %v1826
        %v1828 = vpop.f32.mrf.mxu0
        %v1829 = vadd.f32 0.0, %v1828
        %1830 = vmatmul.bf16.gmra.mxu0 %v1751
        %v1831 = vpop.f32.mrf.mxu0
        %v1832 = vadd.f32 0.0, %v1831
        %v1833 = vpop.f32.mrf.mxu0
        %v1834 = vadd.f32 0.0, %v1833
        %1835 = vmatmul.bf16.gmra.mxu0 %v1754
        %v1836 = vpop.f32.mrf.mxu0
        %v1837 = vadd.f32 0.0, %v1836
        %v1838 = vpop.f32.mrf.mxu0
        %v1839 = vadd.f32 0.0, %v1838
        %1840 = vmatmul.bf16.gmra.mxu0 %v1757
        %v1841 = vpop.f32.mrf.mxu0
        %v1842 = vadd.f32 0.0, %v1841
        %v1843 = vpop.f32.mrf.mxu0
        %v1844 = vadd.f32 0.0, %v1843
        %1845 = vmatmul.bf16.gmra.mxu0 %v1760
        %v1846 = vpop.f32.mrf.mxu0
        %v1847 = vadd.f32 0.0, %v1846
        %v1848 = vpop.f32.mrf.mxu0
        %v1849 = vadd.f32 0.0, %v1848
        %1850 = vdwg.mxu0
        %v1851 = vadd.f32 %v1658, %v1772
        %v1852 = vadd.f32 %v1659, %v1774
        %v1853 = vadd.f32 %v1660, %v1777
        %v1854 = vadd.f32 %v1661, %v1779
        %v1855 = vadd.f32 %v1662, %v1782
        %v1856 = vadd.f32 %v1663, %v1784
        %v1857 = vadd.f32 %v1664, %v1787
        %v1858 = vadd.f32 %v1665, %v1789
        %v1859 = vadd.f32 %v1666, %v1792
        %v1860 = vadd.f32 %v1667, %v1794
        %v1861 = vadd.f32 %v1668, %v1797
        %v1862 = vadd.f32 %v1669, %v1799
        %v1863 = vadd.f32 %v1670, %v1802
        %v1864 = vadd.f32 %v1671, %v1804
        %v1865 = vadd.f32 %v1672, %v1807
        %v1866 = vadd.f32 %v1673, %v1809
        %v1867 = vadd.f32 %v1674, %v1812
        %v1868 = vadd.f32 %v1675, %v1814
        %v1869 = vadd.f32 %v1676, %v1817
        %v1870 = vadd.f32 %v1677, %v1819
        %v1871 = vadd.f32 %v1678, %v1822
        %v1872 = vadd.f32 %v1679, %v1824
        %v1873 = vadd.f32 %v1680, %v1827
        %v1874 = vadd.f32 %v1681, %v1829
        %v1875 = vadd.f32 %v1682, %v1832
        %v1876 = vadd.f32 %v1683, %v1834
        %v1877 = vadd.f32 %v1684, %v1837
        %v1878 = vadd.f32 %v1685, %v1839
        %v1879 = vadd.f32 %v1686, %v1842
        %v1880 = vadd.f32 %v1687, %v1844
        %v1881 = vadd.f32 %v1688, %v1847
        %v1882 = vadd.f32 %v1689, %v1849
        %v1883 = vpack.c.bf16 %v694, %v693
        %v1884 = vpack.c.bf16 %v696, %v695
        %v1885 = vpack.c.bf16 %v698, %v697
        %v1886 = vpack.c.bf16 %v700, %v699
        %v1887 = vpack.c.bf16 %v702, %v701
        %v1888 = vpack.c.bf16 %v704, %v703
        %v1889 = vpack.c.bf16 %v706, %v705
        %v1890 = vpack.c.bf16 %v708, %v707
        %v1891 = vpack.c.bf16 %v710, %v709
        %v1892 = vpack.c.bf16 %v712, %v711
        %v1893 = vpack.c.bf16 %v714, %v713
        %v1894 = vpack.c.bf16 %v716, %v715
        %v1895 = vpack.c.bf16 %v718, %v717
        %v1896 = vpack.c.bf16 %v720, %v719
        %v1897 = vpack.c.bf16 %v722, %v721
        %v1898 = vpack.c.bf16 %v724, %v723
        %v1899 = vld [vmem:[%s3 + $0x30] sm:$0xf]
        %v1900 = vld [vmem:[%s3 + $0x34] sm:$0xf]
        %v1903 = vunpack.c.l.b16 %v1899
        %v1904 = vunpack.c.l.b16 %v1900
        %v1905 = vpack.c.b16 %v1904, %v1903
        %v1908 = vsel %vm411, %v1883, 0
        %v1911 = vsel %vm411, %v1884, 0
        %v1914 = vsel %vm411, %v1885, 0
        %v1917 = vsel %vm411, %v1886, 0
        %v1920 = vsel %vm411, %v1887, 0
        %v1923 = vsel %vm411, %v1888, 0
        %v1926 = vsel %vm411, %v1889, 0
        %v1929 = vsel %vm411, %v1890, 0
        %v1932 = vsel %vm411, %v1891, 0
        %v1935 = vsel %vm411, %v1892, 0
        %v1938 = vsel %vm411, %v1893, 0
        %v1941 = vsel %vm411, %v1894, 0
        %v1944 = vsel %vm411, %v1895, 0
        %v1947 = vsel %vm411, %v1896, 0
        %v1950 = vsel %vm411, %v1897, 0
        %v1953 = vsel %vm411, %v1898, 0
        %1955 = vmatpush.bf16.msra.mxu0 0
        %1956 = vmatpush.bf16.msra.mxu0 0
        %1957 = vmatpush.bf16.msra.mxu0 0
        %1958 = vmatpush.bf16.msra.mxu0 0
        %1959 = vmatpush.bf16.msra.mxu0 0
        %1960 = vmatpush.bf16.msra.mxu0 0
        %1961 = vmatpush.bf16.msra.mxu0 0
        %1962 = vmatpush.bf16.msra.mxu0 %v1905
        %1963 = vmatmul.bf16.gmra.mxu0 %v1908
        %v1964 = vpop.f32.mrf.mxu0
        %v1965 = vadd.f32 0.0, %v1964
        %v1966 = vpop.f32.mrf.mxu0
        %v1967 = vadd.f32 0.0, %v1966
        %1968 = vmatmul.bf16.gmra.mxu0 %v1911
        %v1969 = vpop.f32.mrf.mxu0
        %v1970 = vadd.f32 0.0, %v1969
        %v1971 = vpop.f32.mrf.mxu0
        %v1972 = vadd.f32 0.0, %v1971
        %1973 = vmatmul.bf16.gmra.mxu0 %v1914
        %v1974 = vpop.f32.mrf.mxu0
        %v1975 = vadd.f32 0.0, %v1974
        %v1976 = vpop.f32.mrf.mxu0
        %v1977 = vadd.f32 0.0, %v1976
        %1978 = vmatmul.bf16.gmra.mxu0 %v1917
        %v1979 = vpop.f32.mrf.mxu0
        %v1980 = vadd.f32 0.0, %v1979
        %v1981 = vpop.f32.mrf.mxu0
        %v1982 = vadd.f32 0.0, %v1981
        %1983 = vmatmul.bf16.gmra.mxu0 %v1920
        %v1984 = vpop.f32.mrf.mxu0
        %v1985 = vadd.f32 0.0, %v1984
        %v1986 = vpop.f32.mrf.mxu0
        %v1987 = vadd.f32 0.0, %v1986
        %1988 = vmatmul.bf16.gmra.mxu0 %v1923
        %v1989 = vpop.f32.mrf.mxu0
        %v1990 = vadd.f32 0.0, %v1989
        %v1991 = vpop.f32.mrf.mxu0
        %v1992 = vadd.f32 0.0, %v1991
        %1993 = vmatmul.bf16.gmra.mxu0 %v1926
        %v1994 = vpop.f32.mrf.mxu0
        %v1995 = vadd.f32 0.0, %v1994
        %v1996 = vpop.f32.mrf.mxu0
        %v1997 = vadd.f32 0.0, %v1996
        %1998 = vmatmul.bf16.gmra.mxu0 %v1929
        %v1999 = vpop.f32.mrf.mxu0
        %v2000 = vadd.f32 0.0, %v1999
        %v2001 = vpop.f32.mrf.mxu0
        %v2002 = vadd.f32 0.0, %v2001
        %2003 = vmatmul.bf16.gmra.mxu0 %v1932
        %v2004 = vpop.f32.mrf.mxu0
        %v2005 = vadd.f32 0.0, %v2004
        %v2006 = vpop.f32.mrf.mxu0
        %v2007 = vadd.f32 0.0, %v2006
        %2008 = vmatmul.bf16.gmra.mxu0 %v1935
        %v2009 = vpop.f32.mrf.mxu0
        %v2010 = vadd.f32 0.0, %v2009
        %v2011 = vpop.f32.mrf.mxu0
        %v2012 = vadd.f32 0.0, %v2011
        %2013 = vmatmul.bf16.gmra.mxu0 %v1938
        %v2014 = vpop.f32.mrf.mxu0
        %v2015 = vadd.f32 0.0, %v2014
        %v2016 = vpop.f32.mrf.mxu0
        %v2017 = vadd.f32 0.0, %v2016
        %2018 = vmatmul.bf16.gmra.mxu0 %v1941
        %v2019 = vpop.f32.mrf.mxu0
        %v2020 = vadd.f32 0.0, %v2019
        %v2021 = vpop.f32.mrf.mxu0
        %v2022 = vadd.f32 0.0, %v2021
        %2023 = vmatmul.bf16.gmra.mxu0 %v1944
        %v2024 = vpop.f32.mrf.mxu0
        %v2025 = vadd.f32 0.0, %v2024
        %v2026 = vpop.f32.mrf.mxu0
        %v2027 = vadd.f32 0.0, %v2026
        %2028 = vmatmul.bf16.gmra.mxu0 %v1947
        %v2029 = vpop.f32.mrf.mxu0
        %v2030 = vadd.f32 0.0, %v2029
        %v2031 = vpop.f32.mrf.mxu0
        %v2032 = vadd.f32 0.0, %v2031
        %2033 = vmatmul.bf16.gmra.mxu0 %v1950
        %v2034 = vpop.f32.mrf.mxu0
        %v2035 = vadd.f32 0.0, %v2034
        %v2036 = vpop.f32.mrf.mxu0
        %v2037 = vadd.f32 0.0, %v2036
        %2038 = vmatmul.bf16.gmra.mxu0 %v1953
        %v2039 = vpop.f32.mrf.mxu0
        %v2040 = vadd.f32 0.0, %v2039
        %v2041 = vpop.f32.mrf.mxu0
        %v2042 = vadd.f32 0.0, %v2041
        %2043 = vdwg.mxu0
        %v2044 = vadd.f32 %v1851, %v1965
        %v2045 = vadd.f32 %v1852, %v1967
        %v2046 = vadd.f32 %v1853, %v1970
        %v2047 = vadd.f32 %v1854, %v1972
        %v2048 = vadd.f32 %v1855, %v1975
        %v2049 = vadd.f32 %v1856, %v1977
        %v2050 = vadd.f32 %v1857, %v1980
        %v2051 = vadd.f32 %v1858, %v1982
        %v2052 = vadd.f32 %v1859, %v1985
        %v2053 = vadd.f32 %v1860, %v1987
        %v2054 = vadd.f32 %v1861, %v1990
        %v2055 = vadd.f32 %v1862, %v1992
        %v2056 = vadd.f32 %v1863, %v1995
        %v2057 = vadd.f32 %v1864, %v1997
        %v2058 = vadd.f32 %v1865, %v2000
        %v2059 = vadd.f32 %v1866, %v2002
        %v2060 = vadd.f32 %v1867, %v2005
        %v2061 = vadd.f32 %v1868, %v2007
        %v2062 = vadd.f32 %v1869, %v2010
        %v2063 = vadd.f32 %v1870, %v2012
        %v2064 = vadd.f32 %v1871, %v2015
        %v2065 = vadd.f32 %v1872, %v2017
        %v2066 = vadd.f32 %v1873, %v2020
        %v2067 = vadd.f32 %v1874, %v2022
        %v2068 = vadd.f32 %v1875, %v2025
        %v2069 = vadd.f32 %v1876, %v2027
        %v2070 = vadd.f32 %v1877, %v2030
        %v2071 = vadd.f32 %v1878, %v2032
        %v2072 = vadd.f32 %v1879, %v2035
        %v2073 = vadd.f32 %v1880, %v2037
        %v2074 = vadd.f32 %v1881, %v2040
        %v2075 = vadd.f32 %v1882, %v2042
        %v2076 = vpack.c.bf16 %v726, %v725
        %v2077 = vpack.c.bf16 %v728, %v727
        %v2078 = vpack.c.bf16 %v730, %v729
        %v2079 = vpack.c.bf16 %v732, %v731
        %v2080 = vpack.c.bf16 %v734, %v733
        %v2081 = vpack.c.bf16 %v736, %v735
        %v2082 = vpack.c.bf16 %v738, %v737
        %v2083 = vpack.c.bf16 %v740, %v739
        %v2084 = vpack.c.bf16 %v742, %v741
        %v2085 = vpack.c.bf16 %v744, %v743
        %v2086 = vpack.c.bf16 %v746, %v745
        %v2087 = vpack.c.bf16 %v748, %v747
        %v2088 = vpack.c.bf16 %v750, %v749
        %v2089 = vpack.c.bf16 %v752, %v751
        %v2090 = vpack.c.bf16 %v754, %v753
        %v2091 = vpack.c.bf16 %v756, %v755
        %v2092 = vld [vmem:[%s3 + $0x38] sm:$0xf]
        %v2093 = vld [vmem:[%s3 + $0x3c] sm:$0xf]
        %v2096 = vunpack.c.l.b16 %v2092
        %v2097 = vunpack.c.l.b16 %v2093
        %v2098 = vpack.c.b16 %v2097, %v2096
        %v2101 = vsel %vm411, %v2076, 0
        %v2104 = vsel %vm411, %v2077, 0
        %v2107 = vsel %vm411, %v2078, 0
        %v2110 = vsel %vm411, %v2079, 0
        %v2113 = vsel %vm411, %v2080, 0
        %v2116 = vsel %vm411, %v2081, 0
        %v2119 = vsel %vm411, %v2082, 0
        %v2122 = vsel %vm411, %v2083, 0
        %v2125 = vsel %vm411, %v2084, 0
        %v2128 = vsel %vm411, %v2085, 0
        %v2131 = vsel %vm411, %v2086, 0
        %v2134 = vsel %vm411, %v2087, 0
        %v2137 = vsel %vm411, %v2088, 0
        %v2140 = vsel %vm411, %v2089, 0
        %v2143 = vsel %vm411, %v2090, 0
        %v2146 = vsel %vm411, %v2091, 0
        %2148 = vmatpush.bf16.msra.mxu0 0
        %2149 = vmatpush.bf16.msra.mxu0 0
        %2150 = vmatpush.bf16.msra.mxu0 0
        %2151 = vmatpush.bf16.msra.mxu0 0
        %2152 = vmatpush.bf16.msra.mxu0 0
        %2153 = vmatpush.bf16.msra.mxu0 0
        %2154 = vmatpush.bf16.msra.mxu0 0
        %2155 = vmatpush.bf16.msra.mxu0 %v2098
        %2156 = vmatmul.bf16.gmra.mxu0 %v2101
        %v2157 = vpop.f32.mrf.mxu0
        %v2158 = vadd.f32 0.0, %v2157
        %v2159 = vpop.f32.mrf.mxu0
        %v2160 = vadd.f32 0.0, %v2159
        %2161 = vmatmul.bf16.gmra.mxu0 %v2104
        %v2162 = vpop.f32.mrf.mxu0
        %v2163 = vadd.f32 0.0, %v2162
        %v2164 = vpop.f32.mrf.mxu0
        %v2165 = vadd.f32 0.0, %v2164
        %2166 = vmatmul.bf16.gmra.mxu0 %v2107
        %v2167 = vpop.f32.mrf.mxu0
        %v2168 = vadd.f32 0.0, %v2167
        %v2169 = vpop.f32.mrf.mxu0
        %v2170 = vadd.f32 0.0, %v2169
        %2171 = vmatmul.bf16.gmra.mxu0 %v2110
        %v2172 = vpop.f32.mrf.mxu0
        %v2173 = vadd.f32 0.0, %v2172
        %v2174 = vpop.f32.mrf.mxu0
        %v2175 = vadd.f32 0.0, %v2174
        %2176 = vmatmul.bf16.gmra.mxu0 %v2113
        %v2177 = vpop.f32.mrf.mxu0
        %v2178 = vadd.f32 0.0, %v2177
        %v2179 = vpop.f32.mrf.mxu0
        %v2180 = vadd.f32 0.0, %v2179
        %2181 = vmatmul.bf16.gmra.mxu0 %v2116
        %v2182 = vpop.f32.mrf.mxu0
        %v2183 = vadd.f32 0.0, %v2182
        %v2184 = vpop.f32.mrf.mxu0
        %v2185 = vadd.f32 0.0, %v2184
        %2186 = vmatmul.bf16.gmra.mxu0 %v2119
        %v2187 = vpop.f32.mrf.mxu0
        %v2188 = vadd.f32 0.0, %v2187
        %v2189 = vpop.f32.mrf.mxu0
        %v2190 = vadd.f32 0.0, %v2189
        %2191 = vmatmul.bf16.gmra.mxu0 %v2122
        %v2192 = vpop.f32.mrf.mxu0
        %v2193 = vadd.f32 0.0, %v2192
        %v2194 = vpop.f32.mrf.mxu0
        %v2195 = vadd.f32 0.0, %v2194
        %2196 = vmatmul.bf16.gmra.mxu0 %v2125
        %v2197 = vpop.f32.mrf.mxu0
        %v2198 = vadd.f32 0.0, %v2197
        %v2199 = vpop.f32.mrf.mxu0
        %v2200 = vadd.f32 0.0, %v2199
        %2201 = vmatmul.bf16.gmra.mxu0 %v2128
        %v2202 = vpop.f32.mrf.mxu0
        %v2203 = vadd.f32 0.0, %v2202
        %v2204 = vpop.f32.mrf.mxu0
        %v2205 = vadd.f32 0.0, %v2204
        %2206 = vmatmul.bf16.gmra.mxu0 %v2131
        %v2207 = vpop.f32.mrf.mxu0
        %v2208 = vadd.f32 0.0, %v2207
        %v2209 = vpop.f32.mrf.mxu0
        %v2210 = vadd.f32 0.0, %v2209
        %2211 = vmatmul.bf16.gmra.mxu0 %v2134
        %v2212 = vpop.f32.mrf.mxu0
        %v2213 = vadd.f32 0.0, %v2212
        %v2214 = vpop.f32.mrf.mxu0
        %v2215 = vadd.f32 0.0, %v2214
        %2216 = vmatmul.bf16.gmra.mxu0 %v2137
        %v2217 = vpop.f32.mrf.mxu0
        %v2218 = vadd.f32 0.0, %v2217
        %v2219 = vpop.f32.mrf.mxu0
        %v2220 = vadd.f32 0.0, %v2219
        %2221 = vmatmul.bf16.gmra.mxu0 %v2140
        %v2222 = vpop.f32.mrf.mxu0
        %v2223 = vadd.f32 0.0, %v2222
        %v2224 = vpop.f32.mrf.mxu0
        %v2225 = vadd.f32 0.0, %v2224
        %2226 = vmatmul.bf16.gmra.mxu0 %v2143
        %v2227 = vpop.f32.mrf.mxu0
        %v2228 = vadd.f32 0.0, %v2227
        %v2229 = vpop.f32.mrf.mxu0
        %v2230 = vadd.f32 0.0, %v2229
        %2231 = vmatmul.bf16.gmra.mxu0 %v2146
        %v2232 = vpop.f32.mrf.mxu0
        %v2233 = vadd.f32 0.0, %v2232
        %v2234 = vpop.f32.mrf.mxu0
        %v2235 = vadd.f32 0.0, %v2234
        %2236 = vdwg.mxu0
        %v2237 = vadd.f32 %v2044, %v2158
        %v2238 = vadd.f32 %v2045, %v2160
        %v2239 = vadd.f32 %v2046, %v2163
        %v2240 = vadd.f32 %v2047, %v2165
        %v2241 = vadd.f32 %v2048, %v2168
        %v2242 = vadd.f32 %v2049, %v2170
        %v2243 = vadd.f32 %v2050, %v2173
        %v2244 = vadd.f32 %v2051, %v2175
        %v2245 = vadd.f32 %v2052, %v2178
        %v2246 = vadd.f32 %v2053, %v2180
        %v2247 = vadd.f32 %v2054, %v2183
        %v2248 = vadd.f32 %v2055, %v2185
        %v2249 = vadd.f32 %v2056, %v2188
        %v2250 = vadd.f32 %v2057, %v2190
        %v2251 = vadd.f32 %v2058, %v2193
        %v2252 = vadd.f32 %v2059, %v2195
        %v2253 = vadd.f32 %v2060, %v2198
        %v2254 = vadd.f32 %v2061, %v2200
        %v2255 = vadd.f32 %v2062, %v2203
        %v2256 = vadd.f32 %v2063, %v2205
        %v2257 = vadd.f32 %v2064, %v2208
        %v2258 = vadd.f32 %v2065, %v2210
        %v2259 = vadd.f32 %v2066, %v2213
        %v2260 = vadd.f32 %v2067, %v2215
        %v2261 = vadd.f32 %v2068, %v2218
        %v2262 = vadd.f32 %v2069, %v2220
        %v2263 = vadd.f32 %v2070, %v2223
        %v2264 = vadd.f32 %v2071, %v2225
        %v2265 = vadd.f32 %v2072, %v2228
        %v2266 = vadd.f32 %v2073, %v2230
        %v2267 = vadd.f32 %v2074, %v2233
        %v2268 = vadd.f32 %v2075, %v2235
        %v2269 = vpack.c.bf16 %v758, %v757
        %v2270 = vpack.c.bf16 %v760, %v759
        %v2271 = vpack.c.bf16 %v762, %v761
        %v2272 = vpack.c.bf16 %v764, %v763
        %v2273 = vpack.c.bf16 %v766, %v765
        %v2274 = vpack.c.bf16 %v768, %v767
        %v2275 = vpack.c.bf16 %v770, %v769
        %v2276 = vpack.c.bf16 %v772, %v771
        %v2277 = vpack.c.bf16 %v774, %v773
        %v2278 = vpack.c.bf16 %v776, %v775
        %v2279 = vpack.c.bf16 %v778, %v777
        %v2280 = vpack.c.bf16 %v780, %v779
        %v2281 = vpack.c.bf16 %v782, %v781
        %v2282 = vpack.c.bf16 %v784, %v783
        %v2283 = vpack.c.bf16 %v786, %v785
        %v2284 = vpack.c.bf16 %v788, %v787
        %v2285 = vld [vmem:[%s3 + $0x40] sm:$0xf]
        %v2286 = vld [vmem:[%s3 + $0x44] sm:$0xf]
        %v2289 = vunpack.c.l.b16 %v2285
        %v2290 = vunpack.c.l.b16 %v2286
        %v2291 = vpack.c.b16 %v2290, %v2289
        %v2294 = vsel %vm411, %v2269, 0
        %v2297 = vsel %vm411, %v2270, 0
        %v2300 = vsel %vm411, %v2271, 0
        %v2303 = vsel %vm411, %v2272, 0
        %v2306 = vsel %vm411, %v2273, 0
        %v2309 = vsel %vm411, %v2274, 0
        %v2312 = vsel %vm411, %v2275, 0
        %v2315 = vsel %vm411, %v2276, 0
        %v2318 = vsel %vm411, %v2277, 0
        %v2321 = vsel %vm411, %v2278, 0
        %v2324 = vsel %vm411, %v2279, 0
        %v2327 = vsel %vm411, %v2280, 0
        %v2330 = vsel %vm411, %v2281, 0
        %v2333 = vsel %vm411, %v2282, 0
        %v2336 = vsel %vm411, %v2283, 0
        %v2339 = vsel %vm411, %v2284, 0
        %2341 = vmatpush.bf16.msra.mxu0 0
        %2342 = vmatpush.bf16.msra.mxu0 0
        %2343 = vmatpush.bf16.msra.mxu0 0
        %2344 = vmatpush.bf16.msra.mxu0 0
        %2345 = vmatpush.bf16.msra.mxu0 0
        %2346 = vmatpush.bf16.msra.mxu0 0
        %2347 = vmatpush.bf16.msra.mxu0 0
        %2348 = vmatpush.bf16.msra.mxu0 %v2291
        %2349 = vmatmul.bf16.gmra.mxu0 %v2294
        %v2350 = vpop.f32.mrf.mxu0
        %v2351 = vadd.f32 0.0, %v2350
        %v2352 = vpop.f32.mrf.mxu0
        %v2353 = vadd.f32 0.0, %v2352
        %2354 = vmatmul.bf16.gmra.mxu0 %v2297
        %v2355 = vpop.f32.mrf.mxu0
        %v2356 = vadd.f32 0.0, %v2355
        %v2357 = vpop.f32.mrf.mxu0
        %v2358 = vadd.f32 0.0, %v2357
        %2359 = vmatmul.bf16.gmra.mxu0 %v2300
        %v2360 = vpop.f32.mrf.mxu0
        %v2361 = vadd.f32 0.0, %v2360
        %v2362 = vpop.f32.mrf.mxu0
        %v2363 = vadd.f32 0.0, %v2362
        %2364 = vmatmul.bf16.gmra.mxu0 %v2303
        %v2365 = vpop.f32.mrf.mxu0
        %v2366 = vadd.f32 0.0, %v2365
        %v2367 = vpop.f32.mrf.mxu0
        %v2368 = vadd.f32 0.0, %v2367
        %2369 = vmatmul.bf16.gmra.mxu0 %v2306
        %v2370 = vpop.f32.mrf.mxu0
        %v2371 = vadd.f32 0.0, %v2370
        %v2372 = vpop.f32.mrf.mxu0
        %v2373 = vadd.f32 0.0, %v2372
        %2374 = vmatmul.bf16.gmra.mxu0 %v2309
        %v2375 = vpop.f32.mrf.mxu0
        %v2376 = vadd.f32 0.0, %v2375
        %v2377 = vpop.f32.mrf.mxu0
        %v2378 = vadd.f32 0.0, %v2377
        %2379 = vmatmul.bf16.gmra.mxu0 %v2312
        %v2380 = vpop.f32.mrf.mxu0
        %v2381 = vadd.f32 0.0, %v2380
        %v2382 = vpop.f32.mrf.mxu0
        %v2383 = vadd.f32 0.0, %v2382
        %2384 = vmatmul.bf16.gmra.mxu0 %v2315
        %v2385 = vpop.f32.mrf.mxu0
        %v2386 = vadd.f32 0.0, %v2385
        %v2387 = vpop.f32.mrf.mxu0
        %v2388 = vadd.f32 0.0, %v2387
        %2389 = vmatmul.bf16.gmra.mxu0 %v2318
        %v2390 = vpop.f32.mrf.mxu0
        %v2391 = vadd.f32 0.0, %v2390
        %v2392 = vpop.f32.mrf.mxu0
        %v2393 = vadd.f32 0.0, %v2392
        %2394 = vmatmul.bf16.gmra.mxu0 %v2321
        %v2395 = vpop.f32.mrf.mxu0
        %v2396 = vadd.f32 0.0, %v2395
        %v2397 = vpop.f32.mrf.mxu0
        %v2398 = vadd.f32 0.0, %v2397
        %2399 = vmatmul.bf16.gmra.mxu0 %v2324
        %v2400 = vpop.f32.mrf.mxu0
        %v2401 = vadd.f32 0.0, %v2400
        %v2402 = vpop.f32.mrf.mxu0
        %v2403 = vadd.f32 0.0, %v2402
        %2404 = vmatmul.bf16.gmra.mxu0 %v2327
        %v2405 = vpop.f32.mrf.mxu0
        %v2406 = vadd.f32 0.0, %v2405
        %v2407 = vpop.f32.mrf.mxu0
        %v2408 = vadd.f32 0.0, %v2407
        %2409 = vmatmul.bf16.gmra.mxu0 %v2330
        %v2410 = vpop.f32.mrf.mxu0
        %v2411 = vadd.f32 0.0, %v2410
        %v2412 = vpop.f32.mrf.mxu0
        %v2413 = vadd.f32 0.0, %v2412
        %2414 = vmatmul.bf16.gmra.mxu0 %v2333
        %v2415 = vpop.f32.mrf.mxu0
        %v2416 = vadd.f32 0.0, %v2415
        %v2417 = vpop.f32.mrf.mxu0
        %v2418 = vadd.f32 0.0, %v2417
        %2419 = vmatmul.bf16.gmra.mxu0 %v2336
        %v2420 = vpop.f32.mrf.mxu0
        %v2421 = vadd.f32 0.0, %v2420
        %v2422 = vpop.f32.mrf.mxu0
        %v2423 = vadd.f32 0.0, %v2422
        %2424 = vmatmul.bf16.gmra.mxu0 %v2339
        %v2425 = vpop.f32.mrf.mxu0
        %v2426 = vadd.f32 0.0, %v2425
        %v2427 = vpop.f32.mrf.mxu0
        %v2428 = vadd.f32 0.0, %v2427
        %2429 = vdwg.mxu0
        %v2430 = vadd.f32 %v2237, %v2351
        %v2431 = vadd.f32 %v2238, %v2353
        %v2432 = vadd.f32 %v2239, %v2356
        %v2433 = vadd.f32 %v2240, %v2358
        %v2434 = vadd.f32 %v2241, %v2361
        %v2435 = vadd.f32 %v2242, %v2363
        %v2436 = vadd.f32 %v2243, %v2366
        %v2437 = vadd.f32 %v2244, %v2368
        %v2438 = vadd.f32 %v2245, %v2371
        %v2439 = vadd.f32 %v2246, %v2373
        %v2440 = vadd.f32 %v2247, %v2376
        %v2441 = vadd.f32 %v2248, %v2378
        %v2442 = vadd.f32 %v2249, %v2381
        %v2443 = vadd.f32 %v2250, %v2383
        %v2444 = vadd.f32 %v2251, %v2386
        %v2445 = vadd.f32 %v2252, %v2388
        %v2446 = vadd.f32 %v2253, %v2391
        %v2447 = vadd.f32 %v2254, %v2393
        %v2448 = vadd.f32 %v2255, %v2396
        %v2449 = vadd.f32 %v2256, %v2398
        %v2450 = vadd.f32 %v2257, %v2401
        %v2451 = vadd.f32 %v2258, %v2403
        %v2452 = vadd.f32 %v2259, %v2406
        %v2453 = vadd.f32 %v2260, %v2408
        %v2454 = vadd.f32 %v2261, %v2411
        %v2455 = vadd.f32 %v2262, %v2413
        %v2456 = vadd.f32 %v2263, %v2416
        %v2457 = vadd.f32 %v2264, %v2418
        %v2458 = vadd.f32 %v2265, %v2421
        %v2459 = vadd.f32 %v2266, %v2423
        %v2460 = vadd.f32 %v2267, %v2426
        %v2461 = vadd.f32 %v2268, %v2428
        %vm2462 = vcmask 31744
        %2463 = vst.msk [vmem:[%s272] sm:$0xff] %vm2462, %v2430
        %2464 = vst.msk [vmem:[%s272 + $0x8] sm:$0xff] %vm2462, %v2431
        %2465 = vst.msk [vmem:[%s272 + $0x10] sm:$0xff] %vm2462, %v2432
        %2466 = vst.msk [vmem:[%s272 + $0x18] sm:$0xff] %vm2462, %v2433
        %2467 = vst.msk [vmem:[%s272 + $0x20] sm:$0xff] %vm2462, %v2434
        %2468 = vst.msk [vmem:[%s272 + $0x28] sm:$0xff] %vm2462, %v2435
        %2469 = vst.msk [vmem:[%s272 + $0x30] sm:$0xff] %vm2462, %v2436
        %2470 = vst.msk [vmem:[%s272 + $0x38] sm:$0xff] %vm2462, %v2437
        %2471 = vst.msk [vmem:[%s272 + $0x40] sm:$0xff] %vm2462, %v2438
        %2472 = vst.msk [vmem:[%s272 + $0x48] sm:$0xff] %vm2462, %v2439
        %2473 = vst.msk [vmem:[%s272 + $0x50] sm:$0xff] %vm2462, %v2440
        %2474 = vst.msk [vmem:[%s272 + $0x58] sm:$0xff] %vm2462, %v2441
        %2475 = vst.msk [vmem:[%s272 + $0x60] sm:$0xff] %vm2462, %v2442
        %2476 = vst.msk [vmem:[%s272 + $0x68] sm:$0xff] %vm2462, %v2443
        %2477 = vst.msk [vmem:[%s272 + $0x70] sm:$0xff] %vm2462, %v2444
        %2478 = vst.msk [vmem:[%s272 + $0x78] sm:$0xff] %vm2462, %v2445
        %2479 = vst.msk [vmem:[%s272 + $0x80] sm:$0xff] %vm2462, %v2446
        %2480 = vst.msk [vmem:[%s272 + $0x88] sm:$0xff] %vm2462, %v2447
        %2481 = vst.msk [vmem:[%s272 + $0x90] sm:$0xff] %vm2462, %v2448
        %2482 = vst.msk [vmem:[%s272 + $0x98] sm:$0xff] %vm2462, %v2449
        %2483 = vst.msk [vmem:[%s272 + $0xa0] sm:$0xff] %vm2462, %v2450
        %2484 = vst.msk [vmem:[%s272 + $0xa8] sm:$0xff] %vm2462, %v2451
        %2485 = vst.msk [vmem:[%s272 + $0xb0] sm:$0xff] %vm2462, %v2452
        %2486 = vst.msk [vmem:[%s272 + $0xb8] sm:$0xff] %vm2462, %v2453
        %2487 = vst.msk [vmem:[%s272 + $0xc0] sm:$0xff] %vm2462, %v2454
        %2488 = vst.msk [vmem:[%s272 + $0xc8] sm:$0xff] %vm2462, %v2455
        %2489 = vst.msk [vmem:[%s272 + $0xd0] sm:$0xff] %vm2462, %v2456
        %2490 = vst.msk [vmem:[%s272 + $0xd8] sm:$0xff] %vm2462, %v2457
        %2491 = vst.msk [vmem:[%s272 + $0xe0] sm:$0xff] %vm2462, %v2458
        %2492 = vst.msk [vmem:[%s272 + $0xe8] sm:$0xff] %vm2462, %v2459
        %2493 = vst.msk [vmem:[%s272 + $0xf0] sm:$0xff] %vm2462, %v2460
        %2494 = vst.msk [vmem:[%s272 + $0xf8] sm:$0xff] %vm2462, %v2461
        %v2495 = vsel %vm2462, %v2430, 0.0
        %v2496 = vsel %vm2462, %v2431, 0.0
        %v2497 = vadd.f32 %v2495, %v2496
        %v2498 = vsel %vm2462, %v2432, 0.0
        %v2499 = vadd.f32 %v2497, %v2498
        %v2500 = vsel %vm2462, %v2433, 0.0
        %v2501 = vadd.f32 %v2499, %v2500
        %v2502 = vsel %vm2462, %v2434, 0.0
        %v2503 = vadd.f32 %v2501, %v2502
        %v2504 = vsel %vm2462, %v2435, 0.0
        %v2505 = vadd.f32 %v2503, %v2504
        %v2506 = vsel %vm2462, %v2436, 0.0
        %v2507 = vadd.f32 %v2505, %v2506
        %v2508 = vsel %vm2462, %v2437, 0.0
        %v2509 = vadd.f32 %v2507, %v2508
        %v2510 = vsel %vm2462, %v2438, 0.0
        %v2511 = vadd.f32 %v2509, %v2510
        %v2512 = vsel %vm2462, %v2439, 0.0
        %v2513 = vadd.f32 %v2511, %v2512
        %v2514 = vsel %vm2462, %v2440, 0.0
        %v2515 = vadd.f32 %v2513, %v2514
        %v2516 = vsel %vm2462, %v2441, 0.0
        %v2517 = vadd.f32 %v2515, %v2516
        %v2518 = vsel %vm2462, %v2442, 0.0
        %v2519 = vadd.f32 %v2517, %v2518
        %v2520 = vsel %vm2462, %v2443, 0.0
        %v2521 = vadd.f32 %v2519, %v2520
        %v2522 = vsel %vm2462, %v2444, 0.0
        %v2523 = vadd.f32 %v2521, %v2522
        %v2524 = vsel %vm2462, %v2445, 0.0
        %v2525 = vadd.f32 %v2523, %v2524
        %v2526 = vsel %vm2462, %v2446, 0.0
        %v2527 = vadd.f32 %v2525, %v2526
        %v2528 = vsel %vm2462, %v2447, 0.0
        %v2529 = vadd.f32 %v2527, %v2528
        %v2530 = vsel %vm2462, %v2448, 0.0
        %v2531 = vadd.f32 %v2529, %v2530
        %v2532 = vsel %vm2462, %v2449, 0.0
        %v2533 = vadd.f32 %v2531, %v2532
        %v2534 = vsel %vm2462, %v2450, 0.0
        %v2535 = vadd.f32 %v2533, %v2534
        %v2536 = vsel %vm2462, %v2451, 0.0
        %v2537 = vadd.f32 %v2535, %v2536
        %v2538 = vsel %vm2462, %v2452, 0.0
        %v2539 = vadd.f32 %v2537, %v2538
        %v2540 = vsel %vm2462, %v2453, 0.0
        %v2541 = vadd.f32 %v2539, %v2540
        %v2542 = vsel %vm2462, %v2454, 0.0
        %v2543 = vadd.f32 %v2541, %v2542
        %v2544 = vsel %vm2462, %v2455, 0.0
        %v2545 = vadd.f32 %v2543, %v2544
        %v2546 = vsel %vm2462, %v2456, 0.0
        %v2547 = vadd.f32 %v2545, %v2546
        %v2548 = vsel %vm2462, %v2457, 0.0
        %v2549 = vadd.f32 %v2547, %v2548
        %v2550 = vsel %vm2462, %v2458, 0.0
        %v2551 = vadd.f32 %v2549, %v2550
        %v2552 = vsel %vm2462, %v2459, 0.0
        %v2553 = vadd.f32 %v2551, %v2552
        %v2554 = vsel %vm2462, %v2460, 0.0
        %v2555 = vadd.f32 %v2553, %v2554
        %v2556 = vsel %vm2462, %v2461, 0.0
        %v2557 = vadd.f32 %v2555, %v2556
        %v2558 = vrot.slane %v2557, 4
        %v2559 = vadd.f32 %v2557, %v2558
        %v2560 = vrot.slane %v2559, 2
        %v2561 = vadd.f32 %v2559, %v2560
        %v2562 = vrot.slane %v2561, 1
        %v2563 = vadd.f32 %v2561, %v2562
        %vm2564 = vcmask 24576
        %2565 = vst.msk [vmem:[%s255] sm:$0x1] %vm2564, %v2563
        %v2566 = vmul.f32 %v2430, %v2430
        %v2567 = vmul.f32 %v2431, %v2431
        %v2568 = vmul.f32 %v2432, %v2432
        %v2569 = vmul.f32 %v2433, %v2433
        %v2570 = vmul.f32 %v2434, %v2434
        %v2571 = vmul.f32 %v2435, %v2435
        %v2572 = vmul.f32 %v2436, %v2436
        %v2573 = vmul.f32 %v2437, %v2437
        %v2574 = vmul.f32 %v2438, %v2438
        %v2575 = vmul.f32 %v2439, %v2439
        %v2576 = vmul.f32 %v2440, %v2440
        %v2577 = vmul.f32 %v2441, %v2441
        %v2578 = vmul.f32 %v2442, %v2442
        %v2579 = vmul.f32 %v2443, %v2443
        %v2580 = vmul.f32 %v2444, %v2444
        %v2581 = vmul.f32 %v2445, %v2445
        %v2582 = vmul.f32 %v2446, %v2446
        %v2583 = vmul.f32 %v2447, %v2447
        %v2584 = vmul.f32 %v2448, %v2448
        %v2585 = vmul.f32 %v2449, %v2449
        %v2586 = vmul.f32 %v2450, %v2450
        %v2587 = vmul.f32 %v2451, %v2451
        %v2588 = vmul.f32 %v2452, %v2452
        %v2589 = vmul.f32 %v2453, %v2453
        %v2590 = vmul.f32 %v2454, %v2454
        %v2591 = vmul.f32 %v2455, %v2455
        %v2592 = vmul.f32 %v2456, %v2456
        %v2593 = vmul.f32 %v2457, %v2457
        %v2594 = vmul.f32 %v2458, %v2458
        %v2595 = vmul.f32 %v2459, %v2459
        %v2596 = vmul.f32 %v2460, %v2460
        %v2597 = vmul.f32 %v2461, %v2461
        %v2598 = vsel %vm2462, %v2566, 0.0
        %v2599 = vsel %vm2462, %v2567, 0.0
        %v2600 = vadd.f32 %v2598, %v2599
        %v2601 = vsel %vm2462, %v2568, 0.0
        %v2602 = vadd.f32 %v2600, %v2601
        %v2603 = vsel %vm2462, %v2569, 0.0
        %v2604 = vadd.f32 %v2602, %v2603
        %v2605 = vsel %vm2462, %v2570, 0.0
        %v2606 = vadd.f32 %v2604, %v2605
        %v2607 = vsel %vm2462, %v2571, 0.0
        %v2608 = vadd.f32 %v2606, %v2607
        %v2609 = vsel %vm2462, %v2572, 0.0
        %v2610 = vadd.f32 %v2608, %v2609
        %v2611 = vsel %vm2462, %v2573, 0.0
        %v2612 = vadd.f32 %v2610, %v2611
        %v2613 = vsel %vm2462, %v2574, 0.0
        %v2614 = vadd.f32 %v2612, %v2613
        %v2615 = vsel %vm2462, %v2575, 0.0
        %v2616 = vadd.f32 %v2614, %v2615
        %v2617 = vsel %vm2462, %v2576, 0.0
        %v2618 = vadd.f32 %v2616, %v2617
        %v2619 = vsel %vm2462, %v2577, 0.0
        %v2620 = vadd.f32 %v2618, %v2619
        %v2621 = vsel %vm2462, %v2578, 0.0
        %v2622 = vadd.f32 %v2620, %v2621
        %v2623 = vsel %vm2462, %v2579, 0.0
        %v2624 = vadd.f32 %v2622, %v2623
        %v2625 = vsel %vm2462, %v2580, 0.0
        %v2626 = vadd.f32 %v2624, %v2625
        %v2627 = vsel %vm2462, %v2581, 0.0
        %v2628 = vadd.f32 %v2626, %v2627
        %v2629 = vsel %vm2462, %v2582, 0.0
        %v2630 = vadd.f32 %v2628, %v2629
        %v2631 = vsel %vm2462, %v2583, 0.0
        %v2632 = vadd.f32 %v2630, %v2631
        %v2633 = vsel %vm2462, %v2584, 0.0
        %v2634 = vadd.f32 %v2632, %v2633
        %v2635 = vsel %vm2462, %v2585, 0.0
        %v2636 = vadd.f32 %v2634, %v2635
        %v2637 = vsel %vm2462, %v2586, 0.0
        %v2638 = vadd.f32 %v2636, %v2637
        %v2639 = vsel %vm2462, %v2587, 0.0
        %v2640 = vadd.f32 %v2638, %v2639
        %v2641 = vsel %vm2462, %v2588, 0.0
        %v2642 = vadd.f32 %v2640, %v2641
        %v2643 = vsel %vm2462, %v2589, 0.0
        %v2644 = vadd.f32 %v2642, %v2643
        %v2645 = vsel %vm2462, %v2590, 0.0
        %v2646 = vadd.f32 %v2644, %v2645
        %v2647 = vsel %vm2462, %v2591, 0.0
        %v2648 = vadd.f32 %v2646, %v2647
        %v2649 = vsel %vm2462, %v2592, 0.0
        %v2650 = vadd.f32 %v2648, %v2649
        %v2651 = vsel %vm2462, %v2593, 0.0
        %v2652 = vadd.f32 %v2650, %v2651
        %v2653 = vsel %vm2462, %v2594, 0.0
        %v2654 = vadd.f32 %v2652, %v2653
        %v2655 = vsel %vm2462, %v2595, 0.0
        %v2656 = vadd.f32 %v2654, %v2655
        %v2657 = vsel %vm2462, %v2596, 0.0
        %v2658 = vadd.f32 %v2656, %v2657
        %v2659 = vsel %vm2462, %v2597, 0.0
        %v2660 = vadd.f32 %v2658, %v2659
        %v2661 = vrot.slane %v2660, 4
        %v2662 = vadd.f32 %v2660, %v2661
        %v2663 = vrot.slane %v2662, 2
        %v2664 = vadd.f32 %v2662, %v2663
        %v2665 = vrot.slane %v2664, 1
        %v2666 = vadd.f32 %v2664, %v2665
        %2667 = vst.msk [vmem:[%s261] sm:$0x1] %vm2564, %v2666
        %s2668 = smul.u32 32, %s24
        %p2669 = scmp.lt.s32.totalorder %s2668, 63
        %s2670 = scalar_select %p2669, %s2668, 63
        %s2671 = smul.addr %s2670, 8
        %s2672 = scalar_lea.vmem %s4, %s2671
        %s2673 = sand.u32 %s147, 1
        %s2674 = scalar_lea.sflag [#allocation4], %s2673
        %s2675 = sand.u32 %s147, 1
        %s2676 = scalar_lea.vmem [#allocation3], %s2675
        %s2677 = sand.u32 %s173, 1
        %s2678 = scalar_lea.sflag [#allocation6], %s2677
        %s2679 = sand.u32 %s173, 1
        %s2680 = scalar_lea.vmem [#allocation5], %s2679
        // Predicated region
        $region37: #{dense_block_forward.13} parent=35 // pred_check
          %p2681 = pneg %p131
        $region38: #{dense_block_forward.13} parent=35 // pred_check_branch
          %2683 = sbr.rel (%p2681) target = $region40
        $region39: #{dense_block_forward.13} parent=35 // pred_region
          %s2684 = smul.u32 32, %s24
        $region40: #{dense_block_forward.13} parent=35 // pred_fallthru
          _
        // Predicated region
        $region41: #{dense_block_forward.13} parent=35 // pred_check
          %p2685 = pneg %p157
        $region42: #{dense_block_forward.13} parent=35 // pred_check_branch
          %2687 = sbr.rel (%p2685) target = $region44
        $region43: #{dense_block_forward.13} parent=35 // pred_region
          %2689 = vsyncadd %s2674, 0
          %s2690 = scalar_lea.hbm %s5, %s24
          %s2692 = sshll.u32 %s2676, 4
          %s2693 = int_to_ptr.vmem [resolvable:$true] %s2692
          %s2694 = sshll.u32 %s2690, 4
          %s2695 = int_to_ptr.hbm [resolvable:$true] %s2694
          %2697 = dma.vmem_to_hbm [thread:$0]  %s2693, 16, %s2695, %s2674
        $region44: #{dense_block_forward.13} parent=35 // pred_fallthru
          _
        // Predicated region
        $region45: #{dense_block_forward.13} parent=35 // pred_check
          %p2698 = pneg %p183
        $region46: #{dense_block_forward.13} parent=35 // pred_check_branch
          %2700 = sbr.rel (%p2698) target = $region48
        $region47: #{dense_block_forward.13} parent=35 // pred_region
          %2702 = vsyncadd %s2678, 0
          %s2703 = scalar_lea.hbm %s6, %s24
          %s2705 = sshll.u32 %s2680, 4
          %s2706 = int_to_ptr.vmem [resolvable:$true] %s2705
          %s2707 = sshll.u32 %s2703, 4
          %s2708 = int_to_ptr.hbm [resolvable:$true] %s2707
          %2710 = dma.vmem_to_hbm [thread:$0]  %s2706, 16, %s2708, %s2678
        $region48: #{dense_block_forward.13} parent=35 // pred_fallthru
          _
      $region36: #{dense_block_forward.13} parent=5 // pred_fallthru
        _
      %p2711 = scmp.le.s32.totalorder 2, %s19
      // Predicated region
      $region49: #{dense_block_forward.13} parent=5 // pred_check
        %p2712 = pneg %p2711
      $region50: #{dense_block_forward.13} parent=5 // pred_check_branch
        %2714 = sbr.rel (%p2712) target = $region52
      $region51: #{dense_block_forward.13} parent=5 // pred_region
        %s2715 = ssub.s32 %s19, 2
        // Predicated region
        $region53: #{dense_block_forward.13} parent=51 // pred_check
          %p2716 = pneg %p137
        $region54: #{dense_block_forward.13} parent=51 // pred_check_branch
          %2718 = sbr.rel (%p2716) target = $region56
        $region55: #{dense_block_forward.13} parent=51 // pred_region
          %s2719 = smul.u32 32, %s25
          %p2720 = scmp.lt.s32.totalorder %s2719, 63
          %s2721 = scalar_select %p2720, %s2719, 63
          %s2722 = smul.addr %s2721, 8
          %s2723 = scalar_lea.vmem %s4, %s2722
        $region56: #{dense_block_forward.13} parent=51 // pred_fallthru
          _
        // Predicated region
        $region57: #{dense_block_forward.13} parent=51 // pred_check
          %p2724 = pneg %p163
        $region58: #{dense_block_forward.13} parent=51 // pred_check_branch
          %2726 = sbr.rel (%p2724) target = $region60
        $region59: #{dense_block_forward.13} parent=51 // pred_region
          %s2727 = sand.u32 %s148, 1
          %s2728 = scalar_lea.sflag [#allocation4], %s2727
          %s2729 = sand.u32 %s148, 1
          %s2730 = scalar_lea.vmem [#allocation3], %s2729
          %2732 = dma.done %s2728, 16
        $region60: #{dense_block_forward.13} parent=51 // pred_fallthru
          _
        // Predicated region
        $region61: #{dense_block_forward.13} parent=51 // pred_check
          %p2733 = pneg %p189
        $region62: #{dense_block_forward.13} parent=51 // pred_check_branch
          %2735 = sbr.rel (%p2733) target = $region64
        $region63: #{dense_block_forward.13} parent=51 // pred_region
          %s2736 = sand.u32 %s174, 1
          %s2737 = scalar_lea.sflag [#allocation6], %s2736
          %s2738 = sand.u32 %s174, 1
          %s2739 = scalar_lea.vmem [#allocation5], %s2738
          %2741 = dma.done %s2737, 16
        $region64: #{dense_block_forward.13} parent=51 // pred_fallthru
          _
      $region52: #{dense_block_forward.13} parent=5 // pred_fallthru
        _
    $region6: #{dense_block_forward.13} parent=1 // loop_footer
      %s23 = sadd.s32 1, %s19
    $region7: #{dense_block_forward.13} parent=1 // loop_footer_branch
      %18 = sbr.rel target = $region3
    $region8: #{dense_block_forward.13} parent=1 // loop_exit
      _
    %2742 = vsyncpa [#allocation4], 1
    %s2743 = scalar_lea.sflag [#allocation4], 1
    %2744 = vsyncpa %s2743, 1
    %2745 = vsyncpa [#allocation6], 1
    %s2746 = scalar_lea.sflag [#allocation6], 1
    %2747 = vsyncpa %s2746, 1

</llo_original>
